<compile_context>
chip_gen: v6e
topology: v6e:2x2x1
jax: 0.10.0
libtpu: 0.0.40
codegen_flags: <defaults>
</compile_context>

<pallas_src>
import jax
import jax.numpy as jnp
from jax.experimental import pallas as pl
from jax.experimental.pallas import tpu as pltpu


def _round_up(x, m):
    return (x + m - 1) // m * m


def _mlp_kernel(x_ref,
                w1, b1, w2, b2,                 # encoder
                w3, b3, w4, b4, w5, b5,         # intermediate
                w6, b6, w7, b7,                 # decoder
                o_ref, h_ref):
    """One (batch-tile i, output-N-tile j) grid step.

    The hidden state after the decoder's first Linear+ReLU (shape (TB, 1024))
    depends only on the batch tile, so it is computed once per batch tile
    (when j == 0) into VMEM scratch and reused for every output-N tile.
    """

    def linear_relu(h, w, b):
        # bf16 inputs to the MXU, f32 accumulation, f32 activations.
        y = jnp.dot(h.astype(w.dtype), w, preferred_element_type=jnp.float32) + b
        return jnp.maximum(y, 0.0)

    @pl.when(pl.program_id(1) == 0)
    def _():
        h = x_ref[...].astype(jnp.float32)
        # encoder: Linear(input_dim,1024) ReLU, Linear(1024,256) ReLU
        h = linear_relu(h, w1[...], b1[...])
        h = linear_relu(h, w2[...], b2[...])
        # intermediate: 256->512->512->256, ReLU each (Dropout = identity at inference)
        h = linear_relu(h, w3[...], b3[...])
        h = linear_relu(h, w4[...], b4[...])
        h = linear_relu(h, w5[...], b5[...])
        # decoder, first layer: Linear(256,1024) ReLU
        h = linear_relu(h, w6[...], b6[...])
        h_ref[...] = h

    # decoder, final layer tile: Linear(1024, TN) + Sigmoid
    h = h_ref[...]
    y = jnp.dot(h.astype(w7.dtype), w7[...], preferred_element_type=jnp.float32) + b7[...]
    o_ref[...] = jax.nn.sigmoid(y).astype(o_ref.dtype)


def encoder_decoder_forward(x, params, output_hw, *, batch_tile=128):
    """x: (B, input_dim) float32. params: list of 7 (w, b) f32 pairs.
    Returns (B, 3, H, W) float32 (matches PyTorch x.view(-1, 3, H, W))."""
    H, W = output_hw
    B, input_dim = x.shape
    out_features = 3 * H * W

    # ---- tiling / padding geometry --------------------------------------
    TB = batch_tile                              # batch tile (multiple of 8, fills MXU rows)
    B_pad = _round_up(B, TB)
    K_pad = _round_up(input_dim, 128)            # fill the MXU contraction depth
    out_pad = _round_up(out_features, 128)       # lane-dense (unmasked) output stores
    if out_pad > 2048:                           # stream the big final weight in N tiles
        out_pad = _round_up(out_features, 1024)
        TN = 1024
    else:
        TN = out_pad

    # ---- operand preparation (wrapper-side, not in the kernel) -----------
    x_p = jnp.zeros((B_pad, K_pad), jnp.float32).at[:B, :input_dim].set(x)

    (w1, b1), (w2, b2), (w3, b3), (w4, b4), (w5, b5), (w6, b6), (w7, b7) = params

    w1_p = jnp.zeros((K_pad, w1.shape[1]), w1.dtype).at[:input_dim, :].set(w1)
    w7_p = jnp.zeros((w7.shape[0], out_pad), w7.dtype).at[:, :out_features].set(w7)
    b7_p = jnp.zeros((out_pad,), b7.dtype).at[:out_features].set(b7)

    weights = [w1_p, w2, w3, w4, w5, w6, w7_p]
    biases = [b1, b2, b3, b4, b5, b6, b7_p]

    # bf16 weights (halved DMA traffic, native MXU dtype); f32 biases as (1, dim).
    weights = [w.astype(jnp.bfloat16) for w in weights]
    biases = [b.astype(jnp.float32).reshape(1, -1) for b in biases]

    flat_args = [x_p]
    in_specs = [pl.BlockSpec((TB, K_pad), lambda i, j: (i, 0))]
    for w, b in zip(weights[:-1], biases[:-1]):
        flat_args += [w, b]
        # constant index_map -> weights stay VMEM-resident across grid steps
        in_specs += [pl.BlockSpec(w.shape, lambda i, j: (0, 0)),
                     pl.BlockSpec(b.shape, lambda i, j: (0, 0))]
    flat_args += [weights[-1], biases[-1]]
    in_specs += [pl.BlockSpec((weights[-1].shape[0], TN), lambda i, j: (0, j)),
                 pl.BlockSpec((1, TN), lambda i, j: (0, j))]

    out_specs = pl.BlockSpec((TB, TN), lambda i, j: (i, j))
    grid = (B_pad // TB, out_pad // TN)

    # ---- scheduling hints -------------------------------------------------
    layer_dims = [(w.shape[0], w.shape[1]) for w in weights]
    flops = 2 * B_pad * sum(k * n for k, n in layer_dims)
    bytes_accessed = (sum(k * n * 2 for k, n in layer_dims)      # bf16 weights
                      + sum(n * 4 for _, n in layer_dims)        # f32 biases
                      + B_pad * K_pad * 4 + B_pad * out_pad * 4) # x in, out
    cost = pl.CostEstimate(flops=flops,
                           transcendentals=B_pad * out_pad,      # sigmoid
                           bytes_accessed=bytes_accessed)

    out_flat = pl.pallas_call(
        _mlp_kernel,
        out_shape=jax.ShapeDtypeStruct((B_pad, out_pad), jnp.float32),
        grid=grid,
        in_specs=in_specs,
        out_specs=out_specs,
        scratch_shapes=[pltpu.VMEM((TB, 1024), jnp.float32)],    # decoder hidden state
        compiler_params=pltpu.CompilerParams(
            dimension_semantics=("parallel", "arbitrary"),
            vmem_limit_bytes=32 * 1024 * 1024,                   # fits v7x's 64 MiB VMEM
        ),
        cost_estimate=cost,
    )(*flat_args)

    # Glue: drop padding, reshape like x.view(-1, 3, H, W)
    return out_flat[:B, :out_features].reshape(B, 3, H, W)


def init_params(key, input_dim, output_hw):
    """Deterministic init matching PyTorch nn.Linear default (U(-1/sqrt(fan_in), +))."""
    H, W = output_hw
    dims = [
        (input_dim, 1024),   # encoder 0
        (1024, 256),         # encoder 2
        (256, 512),          # intermediate 0
        (512, 512),          # intermediate 3
        (512, 256),          # intermediate 6
        (256, 1024),         # decoder 0
        (1024, 3 * H * W),   # decoder 2
    ]
    params = []
    for (fan_in, fan_out) in dims:
        key, kw, kb = jax.random.split(key, 3)
        bound = 1.0 / (fan_in ** 0.5)
        w = jax.random.uniform(kw, (fan_in, fan_out), jnp.float32, -bound, bound)
        b = jax.random.uniform(kb, (fan_out,), jnp.float32, -bound, bound)
        params.append((w, b))
    return params


if __name__ == "__main__":
    key = jax.random.PRNGKey(0)
    batch = 2
    input_dim = 32
    output_hw = (8, 8)   # -> final layer 3*8*8 = 192 features (padded to 256 lanes)

    key, kx = jax.random.split(key)
    x = jax.random.normal(kx, (batch, input_dim), jnp.float32)

    params = init_params(key, input_dim, output_hw)

    out = encoder_decoder_forward(x, params, output_hw)
    out = jax.block_until_ready(out)

    assert out.shape == (batch, 3, output_hw[0], output_hw[1])
    assert bool(jnp.all((out >= 0.0) & (out <= 1.0)))  # sigmoid range sanity check
    print("KERNEL_OK")
</pallas_src>

<mosaic_0001>
module attributes {stable_mosaic.version = 11 : i64} {
  func.func @_mlp_kernel(%arg0: i32, %arg1: i32, %arg2: memref<128x128xf32, #tpu.memory_space<vmem>>, %arg3: memref<128x1024xbf16, #tpu.memory_space<vmem>>, %arg4: memref<1x1024xf32, #tpu.memory_space<vmem>>, %arg5: memref<1024x256xbf16, #tpu.memory_space<vmem>>, %arg6: memref<1x256xf32, #tpu.memory_space<vmem>>, %arg7: memref<256x512xbf16, #tpu.memory_space<vmem>>, %arg8: memref<1x512xf32, #tpu.memory_space<vmem>>, %arg9: memref<512x512xbf16, #tpu.memory_space<vmem>>, %arg10: memref<1x512xf32, #tpu.memory_space<vmem>>, %arg11: memref<512x256xbf16, #tpu.memory_space<vmem>>, %arg12: memref<1x256xf32, #tpu.memory_space<vmem>>, %arg13: memref<256x1024xbf16, #tpu.memory_space<vmem>>, %arg14: memref<1x1024xf32, #tpu.memory_space<vmem>>, %arg15: memref<1024x256xbf16, #tpu.memory_space<vmem>>, %arg16: memref<1x256xf32, #tpu.memory_space<vmem>>, %arg17: memref<128x256xf32, #tpu.memory_space<vmem>>, %arg18: memref<128x1024xf32, #tpu.memory_space<vmem>>) attributes {dimension_semantics = [#tpu.dimension_semantics<parallel>, #tpu.dimension_semantics<arbitrary>], iteration_bounds = array<i64: 1, 1>, scalar_prefetch = 0 : i64, scratch_operands = 1 : i64, tpu.core_type = #tpu.core_type<tc>, window_params = [{transform_indices = @transform_0, window_bounds = array<i64: 128, 128>}, {pipeline_mode = #tpu.pipeline_mode<synchronous>, transform_indices = @transform_1, window_bounds = array<i64: 128, 1024>}, {pipeline_mode = #tpu.pipeline_mode<synchronous>, transform_indices = @transform_2, window_bounds = array<i64: 1, 1024>}, {pipeline_mode = #tpu.pipeline_mode<synchronous>, transform_indices = @transform_3, window_bounds = array<i64: 1024, 256>}, {pipeline_mode = #tpu.pipeline_mode<synchronous>, transform_indices = @transform_4, window_bounds = array<i64: 1, 256>}, {pipeline_mode = #tpu.pipeline_mode<synchronous>, transform_indices = @transform_5, window_bounds = array<i64: 256, 512>}, {pipeline_mode = #tpu.pipeline_mode<synchronous>, transform_indices = @transform_6, window_bounds = array<i64: 1, 512>}, {pipeline_mode = #tpu.pipeline_mode<synchronous>, transform_indices = @transform_7, window_bounds = array<i64: 512, 512>}, {pipeline_mode = #tpu.pipeline_mode<synchronous>, transform_indices = @transform_8, window_bounds = array<i64: 1, 512>}, {pipeline_mode = #tpu.pipeline_mode<synchronous>, transform_indices = @transform_9, window_bounds = array<i64: 512, 256>}, {pipeline_mode = #tpu.pipeline_mode<synchronous>, transform_indices = @transform_10, window_bounds = array<i64: 1, 256>}, {pipeline_mode = #tpu.pipeline_mode<synchronous>, transform_indices = @transform_11, window_bounds = array<i64: 256, 1024>}, {pipeline_mode = #tpu.pipeline_mode<synchronous>, transform_indices = @transform_12, window_bounds = array<i64: 1, 1024>}, {transform_indices = @transform_13, window_bounds = array<i64: 1024, 256>}, {transform_indices = @transform_14, window_bounds = array<i64: 1, 256>}, {transform_indices = @transform_15, window_bounds = array<i64: 128, 256>}]} {
    %c0_i32 = arith.constant 0 : i32
    %0 = arith.cmpi eq, %arg1, %c0_i32 : i32
    %1 = arith.extui %0 : i1 to i32
    %c0_i32_0 = arith.constant 0 : i32
    %2 = arith.cmpi ne, %1, %c0_i32_0 : i32
    scf.if %2 {
      %c0_9 = arith.constant 0 : index
      %c0_10 = arith.constant 0 : index
      %16 = vector.load %arg2[%c0_9, %c0_10] : memref<128x128xf32, #tpu.memory_space<vmem>>, vector<128x128xf32>
      %c0_11 = arith.constant 0 : index
      %c0_12 = arith.constant 0 : index
      %17 = vector.load %arg3[%c0_11, %c0_12] : memref<128x1024xbf16, #tpu.memory_space<vmem>>, vector<128x1024xbf16>
      %c0_13 = arith.constant 0 : index
      %c0_14 = arith.constant 0 : index
      %18 = vector.load %arg4[%c0_13, %c0_14] : memref<1x1024xf32, #tpu.memory_space<vmem>>, vector<1x1024xf32>
      %19 = arith.truncf %16 : vector<128x128xf32> to vector<128x128xbf16>
      %cst_15 = arith.constant dense<0.000000e+00> : vector<128x1024xf32>
      %20 = tpu.matmul %19, %17, %cst_15 {dimension_numbers = #tpu.dot_dimension_numbers<[1], [0], [0], [1], [0, 0, 1, 1], [], []>} : vector<128x128xbf16>, vector<128x1024xbf16>, vector<128x1024xf32> -> vector<128x1024xf32>
      %21 = vector.broadcast %18 : vector<1x1024xf32> to vector<128x1024xf32>
      %22 = arith.addf %20, %21 : vector<128x1024xf32>
      %cst_16 = arith.constant 0.000000e+00 : f32
      %23 = vector.broadcast %cst_16 : f32 to vector<128x1024xf32>
      %24 = arith.maximumf %22, %23 : vector<128x1024xf32>
      %c0_17 = arith.constant 0 : index
      %c0_18 = arith.constant 0 : index
      %25 = vector.load %arg5[%c0_17, %c0_18] : memref<1024x256xbf16, #tpu.memory_space<vmem>>, vector<1024x256xbf16>
      %c0_19 = arith.constant 0 : index
      %c0_20 = arith.constant 0 : index
      %26 = vector.load %arg6[%c0_19, %c0_20] : memref<1x256xf32, #tpu.memory_space<vmem>>, vector<1x256xf32>
      %27 = arith.truncf %24 : vector<128x1024xf32> to vector<128x1024xbf16>
      %cst_21 = arith.constant dense<0.000000e+00> : vector<128x256xf32>
      %28 = tpu.matmul %27, %25, %cst_21 {dimension_numbers = #tpu.dot_dimension_numbers<[1], [0], [0], [1], [0, 0, 1, 1], [], []>} : vector<128x1024xbf16>, vector<1024x256xbf16>, vector<128x256xf32> -> vector<128x256xf32>
      %29 = vector.broadcast %26 : vector<1x256xf32> to vector<128x256xf32>
      %30 = arith.addf %28, %29 : vector<128x256xf32>
      %cst_22 = arith.constant 0.000000e+00 : f32
      %31 = vector.broadcast %cst_22 : f32 to vector<128x256xf32>
      %32 = arith.maximumf %30, %31 : vector<128x256xf32>
      %c0_23 = arith.constant 0 : index
      %c0_24 = arith.constant 0 : index
      %33 = vector.load %arg7[%c0_23, %c0_24] : memref<256x512xbf16, #tpu.memory_space<vmem>>, vector<256x512xbf16>
      %c0_25 = arith.constant 0 : index
      %c0_26 = arith.constant 0 : index
      %34 = vector.load %arg8[%c0_25, %c0_26] : memref<1x512xf32, #tpu.memory_space<vmem>>, vector<1x512xf32>
      %35 = arith.truncf %32 : vector<128x256xf32> to vector<128x256xbf16>
      %cst_27 = arith.constant dense<0.000000e+00> : vector<128x512xf32>
      %36 = tpu.matmul %35, %33, %cst_27 {dimension_numbers = #tpu.dot_dimension_numbers<[1], [0], [0], [1], [0, 0, 1, 1], [], []>} : vector<128x256xbf16>, vector<256x512xbf16>, vector<128x512xf32> -> vector<128x512xf32>
      %37 = vector.broadcast %34 : vector<1x512xf32> to vector<128x512xf32>
      %38 = arith.addf %36, %37 : vector<128x512xf32>
      %cst_28 = arith.constant 0.000000e+00 : f32
      %39 = vector.broadcast %cst_28 : f32 to vector<128x512xf32>
      %40 = arith.maximumf %38, %39 : vector<128x512xf32>
      %c0_29 = arith.constant 0 : index
      %c0_30 = arith.constant 0 : index
      %41 = vector.load %arg9[%c0_29, %c0_30] : memref<512x512xbf16, #tpu.memory_space<vmem>>, vector<512x512xbf16>
      %c0_31 = arith.constant 0 : index
      %c0_32 = arith.constant 0 : index
      %42 = vector.load %arg10[%c0_31, %c0_32] : memref<1x512xf32, #tpu.memory_space<vmem>>, vector<1x512xf32>
      %43 = arith.truncf %40 : vector<128x512xf32> to vector<128x512xbf16>
      %cst_33 = arith.constant dense<0.000000e+00> : vector<128x512xf32>
      %44 = tpu.matmul %43, %41, %cst_33 {dimension_numbers = #tpu.dot_dimension_numbers<[1], [0], [0], [1], [0, 0, 1, 1], [], []>} : vector<128x512xbf16>, vector<512x512xbf16>, vector<128x512xf32> -> vector<128x512xf32>
      %45 = vector.broadcast %42 : vector<1x512xf32> to vector<128x512xf32>
      %46 = arith.addf %44, %45 : vector<128x512xf32>
      %cst_34 = arith.constant 0.000000e+00 : f32
      %47 = vector.broadcast %cst_34 : f32 to vector<128x512xf32>
      %48 = arith.maximumf %46, %47 : vector<128x512xf32>
      %c0_35 = arith.constant 0 : index
      %c0_36 = arith.constant 0 : index
      %49 = vector.load %arg11[%c0_35, %c0_36] : memref<512x256xbf16, #tpu.memory_space<vmem>>, vector<512x256xbf16>
      %c0_37 = arith.constant 0 : index
      %c0_38 = arith.constant 0 : index
      %50 = vector.load %arg12[%c0_37, %c0_38] : memref<1x256xf32, #tpu.memory_space<vmem>>, vector<1x256xf32>
      %51 = arith.truncf %48 : vector<128x512xf32> to vector<128x512xbf16>
      %cst_39 = arith.constant dense<0.000000e+00> : vector<128x256xf32>
      %52 = tpu.matmul %51, %49, %cst_39 {dimension_numbers = #tpu.dot_dimension_numbers<[1], [0], [0], [1], [0, 0, 1, 1], [], []>} : vector<128x512xbf16>, vector<512x256xbf16>, vector<128x256xf32> -> vector<128x256xf32>
      %53 = vector.broadcast %50 : vector<1x256xf32> to vector<128x256xf32>
      %54 = arith.addf %52, %53 : vector<128x256xf32>
      %cst_40 = arith.constant 0.000000e+00 : f32
      %55 = vector.broadcast %cst_40 : f32 to vector<128x256xf32>
      %56 = arith.maximumf %54, %55 : vector<128x256xf32>
      %c0_41 = arith.constant 0 : index
      %c0_42 = arith.constant 0 : index
      %57 = vector.load %arg13[%c0_41, %c0_42] : memref<256x1024xbf16, #tpu.memory_space<vmem>>, vector<256x1024xbf16>
      %c0_43 = arith.constant 0 : index
      %c0_44 = arith.constant 0 : index
      %58 = vector.load %arg14[%c0_43, %c0_44] : memref<1x1024xf32, #tpu.memory_space<vmem>>, vector<1x1024xf32>
      %59 = arith.truncf %56 : vector<128x256xf32> to vector<128x256xbf16>
      %cst_45 = arith.constant dense<0.000000e+00> : vector<128x1024xf32>
      %60 = tpu.matmul %59, %57, %cst_45 {dimension_numbers = #tpu.dot_dimension_numbers<[1], [0], [0], [1], [0, 0, 1, 1], [], []>} : vector<128x256xbf16>, vector<256x1024xbf16>, vector<128x1024xf32> -> vector<128x1024xf32>
      %61 = vector.broadcast %58 : vector<1x1024xf32> to vector<128x1024xf32>
      %62 = arith.addf %60, %61 : vector<128x1024xf32>
      %cst_46 = arith.constant 0.000000e+00 : f32
      %63 = vector.broadcast %cst_46 : f32 to vector<128x1024xf32>
      %64 = arith.maximumf %62, %63 : vector<128x1024xf32>
      %c0_47 = arith.constant 0 : index
      %c0_48 = arith.constant 0 : index
      %65 = vector.load %arg18[%c0_47, %c0_48] : memref<128x1024xf32, #tpu.memory_space<vmem>>, vector<128x1024xf32>
      tpu.vector_store %arg18[%c0_47, %c0_48], %64 {strides = array<i32>} : memref<128x1024xf32, #tpu.memory_space<vmem>>, vector<128x1024xf32>,
    } else {
    }
    %c0 = arith.constant 0 : index
    %c0_1 = arith.constant 0 : index
    %3 = vector.load %arg18[%c0, %c0_1] : memref<128x1024xf32, #tpu.memory_space<vmem>>, vector<128x1024xf32>
    %4 = arith.truncf %3 : vector<128x1024xf32> to vector<128x1024xbf16>
    %c0_2 = arith.constant 0 : index
    %c0_3 = arith.constant 0 : index
    %5 = vector.load %arg15[%c0_2, %c0_3] : memref<1024x256xbf16, #tpu.memory_space<vmem>>, vector<1024x256xbf16>
    %cst = arith.constant dense<0.000000e+00> : vector<128x256xf32>
    %6 = tpu.matmul %4, %5, %cst {dimension_numbers = #tpu.dot_dimension_numbers<[1], [0], [0], [1], [0, 0, 1, 1], [], []>} : vector<128x1024xbf16>, vector<1024x256xbf16>, vector<128x256xf32> -> vector<128x256xf32>
    %c0_4 = arith.constant 0 : index
    %c0_5 = arith.constant 0 : index
    %7 = vector.load %arg16[%c0_4, %c0_5] : memref<1x256xf32, #tpu.memory_space<vmem>>, vector<1x256xf32>
    %8 = vector.broadcast %7 : vector<1x256xf32> to vector<128x256xf32>
    %9 = arith.addf %6, %8 : vector<128x256xf32>
    %10 = arith.negf %9 : vector<128x256xf32>
    %11 = math.exp %10 : vector<128x256xf32>
    %cst_6 = arith.constant 1.000000e+00 : f32
    %12 = vector.broadcast %cst_6 : f32 to vector<128x256xf32>
    %13 = arith.addf %12, %11 : vector<128x256xf32>
    %14 = arith.divf %12, %13 : vector<128x256xf32>
    %c0_7 = arith.constant 0 : index
    %c0_8 = arith.constant 0 : index
    %15 = vector.load %arg17[%c0_7, %c0_8] : memref<128x256xf32, #tpu.memory_space<vmem>>, vector<128x256xf32>
    tpu.vector_store %arg17[%c0_7, %c0_8], %14 {strides = array<i32>} : memref<128x256xf32, #tpu.memory_space<vmem>>, vector<128x256xf32>,
    return
  }
  func.func @transform_0(%arg0: i32, %arg1: i32) -> (i32, i32) {
    %c0_i32 = arith.constant 0 : i32
    %c0_i32_0 = arith.constant 0 : i32
    return %arg0, %c0_i32 : i32, i32
  }
  func.func @transform_1(%arg0: i32, %arg1: i32) -> (i32, i32) {
    %c0_i32 = arith.constant 0 : i32
    %c0_i32_0 = arith.constant 0 : i32
    %c0_i32_1 = arith.constant 0 : i32
    return %c0_i32, %c0_i32_0 : i32, i32
  }
  func.func @transform_2(%arg0: i32, %arg1: i32) -> (i32, i32) {
    %c0_i32 = arith.constant 0 : i32
    %c0_i32_0 = arith.constant 0 : i32
    %c0_i32_1 = arith.constant 0 : i32
    return %c0_i32, %c0_i32_0 : i32, i32
  }
  func.func @transform_3(%arg0: i32, %arg1: i32) -> (i32, i32) {
    %c0_i32 = arith.constant 0 : i32
    %c0_i32_0 = arith.constant 0 : i32
    %c0_i32_1 = arith.constant 0 : i32
    return %c0_i32, %c0_i32_0 : i32, i32
  }
  func.func @transform_4(%arg0: i32, %arg1: i32) -> (i32, i32) {
    %c0_i32 = arith.constant 0 : i32
    %c0_i32_0 = arith.constant 0 : i32
    %c0_i32_1 = arith.constant 0 : i32
    return %c0_i32, %c0_i32_0 : i32, i32
  }
  func.func @transform_5(%arg0: i32, %arg1: i32) -> (i32, i32) {
    %c0_i32 = arith.constant 0 : i32
    %c0_i32_0 = arith.constant 0 : i32
    %c0_i32_1 = arith.constant 0 : i32
    return %c0_i32, %c0_i32_0 : i32, i32
  }
  func.func @transform_6(%arg0: i32, %arg1: i32) -> (i32, i32) {
    %c0_i32 = arith.constant 0 : i32
    %c0_i32_0 = arith.constant 0 : i32
    %c0_i32_1 = arith.constant 0 : i32
    return %c0_i32, %c0_i32_0 : i32, i32
  }
  func.func @transform_7(%arg0: i32, %arg1: i32) -> (i32, i32) {
    %c0_i32 = arith.constant 0 : i32
    %c0_i32_0 = arith.constant 0 : i32
    %c0_i32_1 = arith.constant 0 : i32
    return %c0_i32, %c0_i32_0 : i32, i32
  }
  func.func @transform_8(%arg0: i32, %arg1: i32) -> (i32, i32) {
    %c0_i32 = arith.constant 0 : i32
    %c0_i32_0 = arith.constant 0 : i32
    %c0_i32_1 = arith.constant 0 : i32
    return %c0_i32, %c0_i32_0 : i32, i32
  }
  func.func @transform_9(%arg0: i32, %arg1: i32) -> (i32, i32) {
    %c0_i32 = arith.constant 0 : i32
    %c0_i32_0 = arith.constant 0 : i32
    %c0_i32_1 = arith.constant 0 : i32
    return %c0_i32, %c0_i32_0 : i32, i32
  }
  func.func @transform_10(%arg0: i32, %arg1: i32) -> (i32, i32) {
    %c0_i32 = arith.constant 0 : i32
    %c0_i32_0 = arith.constant 0 : i32
    %c0_i32_1 = arith.constant 0 : i32
    return %c0_i32, %c0_i32_0 : i32, i32
  }
  func.func @transform_11(%arg0: i32, %arg1: i32) -> (i32, i32) {
    %c0_i32 = arith.constant 0 : i32
    %c0_i32_0 = arith.constant 0 : i32
    %c0_i32_1 = arith.constant 0 : i32
    return %c0_i32, %c0_i32_0 : i32, i32
  }
  func.func @transform_12(%arg0: i32, %arg1: i32) -> (i32, i32) {
    %c0_i32 = arith.constant 0 : i32
    %c0_i32_0 = arith.constant 0 : i32
    %c0_i32_1 = arith.constant 0 : i32
    return %c0_i32, %c0_i32_0 : i32, i32
  }
  func.func @transform_13(%arg0: i32, %arg1: i32) -> (i32, i32) {
    %c0_i32 = arith.constant 0 : i32
    %c0_i32_0 = arith.constant 0 : i32
    return %c0_i32, %arg1 : i32, i32
  }
  func.func @transform_14(%arg0: i32, %arg1: i32) -> (i32, i32) {
    %c0_i32 = arith.constant 0 : i32
    %c0_i32_0 = arith.constant 0 : i32
    return %c0_i32, %arg1 : i32, i32
  }
  func.func @transform_15(%arg0: i32, %arg1: i32) -> (i32, i32) {
    %c0_i32 = arith.constant 0 : i32
    return %arg0, %arg1 : i32, i32
  }
}

</mosaic_0001>

<llo_original>
// kernel: tpu_custom_call.1
$region0: #{tpu_custom_call.1}
  #allocation0 [shape = 'u32[]', space=smem, size = 0x4, offset = 0x4, fixed_abs, tag = 'smem constant byte address 0x4 - core index']
  #allocation1 [shape = 'u32[144,128]{1,0:T(1,128)}', space=vmem, size = 0x12000, scoped, tag = 'internal scratch']
  #allocation2 [shape = 'f32[128,1024]{1,0:T(8,128)}', space=vmem, size = 0x80000, scoped, tag = 'scratch operand']
  %s0 = inlined_call_operand.hbm [shape: f32[128,128], index: 0, kind: input, shape index: {}]
  %s1 = inlined_call_operand.hbm [shape: bf16[128,1024], index: 1, kind: input, shape index: {}]
  %s2 = inlined_call_operand.hbm [shape: f32[1,1024], index: 2, kind: input, shape index: {}]
  %s3 = inlined_call_operand.hbm [shape: bf16[1024,256], index: 3, kind: input, shape index: {}]
  %s4 = inlined_call_operand.hbm [shape: f32[1,256], index: 4, kind: input, shape index: {}]
  %s5 = inlined_call_operand.hbm [shape: bf16[256,512], index: 5, kind: input, shape index: {}]
  %s6 = inlined_call_operand.vmem [shape: f32[1,512], index: 6, kind: input, shape index: {}]
  %s7 = inlined_call_operand.hbm [shape: bf16[512,512], index: 7, kind: input, shape index: {}]
  %s8 = inlined_call_operand.vmem [shape: f32[1,512], index: 8, kind: input, shape index: {}]
  %s9 = inlined_call_operand.hbm [shape: bf16[512,256], index: 9, kind: input, shape index: {}]
  %s10 = inlined_call_operand.vmem [shape: f32[1,256], index: 10, kind: input, shape index: {}]
  %s11 = inlined_call_operand.hbm [shape: bf16[256,1024], index: 11, kind: input, shape index: {}]
  %s12 = inlined_call_operand.vmem [shape: f32[1,1024], index: 12, kind: input, shape index: {}]
  %s13 = inlined_call_operand.hbm [shape: bf16[1024,256], index: 13, kind: input, shape index: {}]
  %s14 = inlined_call_operand.vmem [shape: f32[1,256], index: 14, kind: input, shape index: {}]
  %s15 = inlined_call_operand.hbm [shape: f32[128,256], index: 15, kind: output, shape index: {}]
  %s16 = sld [smem:[#allocation0]]
  $region114: #{tpu_custom_call.1} parent=0
    _
  %s18 = ssub.s32 1, %s16
  %s19 = scalar_select 0, %s18, %s16
  $region1: #{tpu_custom_call.1} parent=0
    #allocation3 [shape = 'u8[65536]{0}', space=vmem, size = 0x10000, scoped, tag = 'input window, operand 0, single buffered']
    #allocation4 [shape = 's32[1]{0}', space=sflag, size = 0x4, scoped, tag = 'scoped memory for tpu_custom_call.1']
    #allocation5 [shape = 's32[1]{0}', space=sflag, size = 0x4, scoped, tag = 'scoped memory for tpu_custom_call.1']
    #allocation6 [shape = 'u8[262144]{0}', space=vmem, size = 0x40000, scoped, tag = 'input window, operand 1, single buffered']
    #allocation7 [shape = 's32[1]{0}', space=sflag, size = 0x4, scoped, tag = 'scoped memory for tpu_custom_call.1']
    #allocation8 [shape = 'u8[4096]{0}', space=vmem, size = 0x1000, scoped, tag = 'input window, operand 2, single buffered']
    #allocation9 [shape = 'u8[524288]{0}', space=vmem, size = 0x80000, scoped, tag = 'input window, operand 3, single buffered']
    #allocation10 [shape = 's32[1]{0}', space=sflag, size = 0x4, scoped, tag = 'scoped memory for tpu_custom_call.1']
    #allocation11 [shape = 'u8[1024]{0}', space=vmem, size = 0x400, scoped, tag = 'input window, operand 4, single buffered']
    #allocation12 [shape = 'u8[262144]{0}', space=vmem, size = 0x40000, scoped, tag = 'input window, operand 5, single buffered']
    #allocation13 [shape = 's32[1]{0}', space=sflag, size = 0x4, scoped, tag = 'scoped memory for tpu_custom_call.1']
    #allocation14 [shape = 'u8[524288]{0}', space=vmem, size = 0x80000, scoped, tag = 'input window, operand 7, single buffered']
    #allocation15 [shape = 'u8[262144]{0}', space=vmem, size = 0x40000, scoped, tag = 'input window, operand 9, single buffered']
    #allocation16 [shape = 's32[1]{0}', space=sflag, size = 0x4, scoped, tag = 'scoped memory for tpu_custom_call.1']
    #allocation17 [shape = 'u8[524288]{0}', space=vmem, size = 0x80000, scoped, tag = 'input window, operand 11, single buffered']
    #allocation18 [shape = 'u8[524288]{0}', space=vmem, size = 0x80000, scoped, tag = 'input window, operand 13, single buffered']
    #allocation19 [shape = 's32[1]{0}', space=sflag, size = 0x4, scoped, tag = 'scoped memory for tpu_custom_call.1']
    #allocation20 [shape = 'u8[131072]{0}', space=vmem, size = 0x20000, scoped, tag = 'output window, operand 0, single buffered']
    %20 = vsyncpa [#allocation4], 0
    %21 = vsyncpa [#allocation7], 0
    %22 = vsyncpa [#allocation10], 0
    %23 = vsyncpa [#allocation13], 0
    %24 = vsyncpa [#allocation16], 0
    %25 = vsyncpa [#allocation19], 0
    %26 = vsyncpa [#allocation5], 0
    // Predicated region
    $region2: #{tpu_custom_call.1} parent=1 // pred_check
      _
    $region3: #{tpu_custom_call.1} parent=1 // pred_check_branch
      %28 = sbr.rel (0) target = $region5
    $region4: #{tpu_custom_call.1} parent=1 // pred_region
      %s30 = ssub.s32 2048, 2048
      %31 = vsyncadd [#allocation4], %s30
      %s32 = sshll.u32 [#allocation3], 4
      %s33 = int_to_ptr.vmem [resolvable:$true] %s32
      %38 = dma.hbm_to_vmem [thread:$0]  %s0, 2048, %s33, [#allocation4], 128, 128, 8
    $region5: #{tpu_custom_call.1} parent=1 // pred_fallthru
      _
    // Predicated region
    $region6: #{tpu_custom_call.1} parent=1 // pred_check
      _
    $region7: #{tpu_custom_call.1} parent=1 // pred_check_branch
      %40 = sbr.rel (0) target = $region9
    $region8: #{tpu_custom_call.1} parent=1 // pred_region
      %s42 = ssub.s32 8192, 8192
      %43 = vsyncadd [#allocation7], %s42
      %s44 = sshll.u32 [#allocation6], 4
      %s45 = int_to_ptr.vmem [resolvable:$true] %s44
      %50 = dma.hbm_to_vmem [thread:$0]  %s1, 8192, %s45, [#allocation7], 512, 512, 32
    $region9: #{tpu_custom_call.1} parent=1 // pred_fallthru
      _
    // Predicated region
    $region10: #{tpu_custom_call.1} parent=1 // pred_check
      _
    $region11: #{tpu_custom_call.1} parent=1 // pred_check_branch
      %52 = sbr.rel (0) target = $region13
    $region12: #{tpu_custom_call.1} parent=1 // pred_region
      %s54 = ssub.s32 128, 128
      %55 = vsyncadd [#allocation7], %s54
      %s57 = sshll.u32 [#allocation8], 4
      %s58 = int_to_ptr.vmem [resolvable:$true] %s57
      %60 = dma.hbm_to_vmem [thread:$0]  %s2, 128, %s58, [#allocation7]
    $region13: #{tpu_custom_call.1} parent=1 // pred_fallthru
      _
    // Predicated region
    $region14: #{tpu_custom_call.1} parent=1 // pred_check
      _
    $region15: #{tpu_custom_call.1} parent=1 // pred_check_branch
      %62 = sbr.rel (0) target = $region17
    $region16: #{tpu_custom_call.1} parent=1 // pred_region
      %s64 = ssub.s32 16384, 16384
      %65 = vsyncadd [#allocation10], %s64
      %s66 = sshll.u32 [#allocation9], 4
      %s67 = int_to_ptr.vmem [resolvable:$true] %s66
      %72 = dma.hbm_to_vmem [thread:$0]  %s3, 16384, %s67, [#allocation10], 128, 128, 8
    $region17: #{tpu_custom_call.1} parent=1 // pred_fallthru
      _
    // Predicated region
    $region18: #{tpu_custom_call.1} parent=1 // pred_check
      _
    $region19: #{tpu_custom_call.1} parent=1 // pred_check_branch
      %74 = sbr.rel (0) target = $region21
    $region20: #{tpu_custom_call.1} parent=1 // pred_region
      %s76 = ssub.s32 32, 32
      %77 = vsyncadd [#allocation10], %s76
      %s79 = sshll.u32 [#allocation11], 4
      %s80 = int_to_ptr.vmem [resolvable:$true] %s79
      %82 = dma.hbm_to_vmem [thread:$0]  %s4, 32, %s80, [#allocation10]
    $region21: #{tpu_custom_call.1} parent=1 // pred_fallthru
      _
    // Predicated region
    $region22: #{tpu_custom_call.1} parent=1 // pred_check
      _
    $region23: #{tpu_custom_call.1} parent=1 // pred_check_branch
      %84 = sbr.rel (0) target = $region25
    $region24: #{tpu_custom_call.1} parent=1 // pred_region
      %s86 = ssub.s32 8192, 8192
      %87 = vsyncadd [#allocation13], %s86
      %s88 = sshll.u32 [#allocation12], 4
      %s89 = int_to_ptr.vmem [resolvable:$true] %s88
      %94 = dma.hbm_to_vmem [thread:$0]  %s5, 8192, %s89, [#allocation13], 256, 256, 16
    $region25: #{tpu_custom_call.1} parent=1 // pred_fallthru
      _
    // Predicated region
    $region26: #{tpu_custom_call.1} parent=1 // pred_check
      _
    $region27: #{tpu_custom_call.1} parent=1 // pred_check_branch
      %96 = sbr.rel (0) target = $region29
    $region28: #{tpu_custom_call.1} parent=1 // pred_region
      _
    $region29: #{tpu_custom_call.1} parent=1 // pred_fallthru
      _
    // Predicated region
    $region30: #{tpu_custom_call.1} parent=1 // pred_check
      _
    $region31: #{tpu_custom_call.1} parent=1 // pred_check_branch
      %98 = sbr.rel (0) target = $region33
    $region32: #{tpu_custom_call.1} parent=1 // pred_region
      %s100 = ssub.s32 16384, 16384
      %101 = vsyncadd [#allocation13], %s100
      %s102 = sshll.u32 [#allocation14], 4
      %s103 = int_to_ptr.vmem [resolvable:$true] %s102
      %108 = dma.hbm_to_vmem [thread:$0]  %s7, 16384, %s103, [#allocation13], 256, 256, 16
    $region33: #{tpu_custom_call.1} parent=1 // pred_fallthru
      _
    // Predicated region
    $region34: #{tpu_custom_call.1} parent=1 // pred_check
      _
    $region35: #{tpu_custom_call.1} parent=1 // pred_check_branch
      %110 = sbr.rel (0) target = $region37
    $region36: #{tpu_custom_call.1} parent=1 // pred_region
      _
    $region37: #{tpu_custom_call.1} parent=1 // pred_fallthru
      _
    // Predicated region
    $region38: #{tpu_custom_call.1} parent=1 // pred_check
      _
    $region39: #{tpu_custom_call.1} parent=1 // pred_check_branch
      %112 = sbr.rel (0) target = $region41
    $region40: #{tpu_custom_call.1} parent=1 // pred_region
      %s114 = ssub.s32 8192, 8192
      %115 = vsyncadd [#allocation16], %s114
      %s116 = sshll.u32 [#allocation15], 4
      %s117 = int_to_ptr.vmem [resolvable:$true] %s116
      %122 = dma.hbm_to_vmem [thread:$0]  %s9, 8192, %s117, [#allocation16], 128, 128, 8
    $region41: #{tpu_custom_call.1} parent=1 // pred_fallthru
      _
    // Predicated region
    $region42: #{tpu_custom_call.1} parent=1 // pred_check
      _
    $region43: #{tpu_custom_call.1} parent=1 // pred_check_branch
      %124 = sbr.rel (0) target = $region45
    $region44: #{tpu_custom_call.1} parent=1 // pred_region
      _
    $region45: #{tpu_custom_call.1} parent=1 // pred_fallthru
      _
    // Predicated region
    $region46: #{tpu_custom_call.1} parent=1 // pred_check
      _
    $region47: #{tpu_custom_call.1} parent=1 // pred_check_branch
      %126 = sbr.rel (0) target = $region49
    $region48: #{tpu_custom_call.1} parent=1 // pred_region
      %s128 = ssub.s32 16384, 16384
      %129 = vsyncadd [#allocation16], %s128
      %s130 = sshll.u32 [#allocation17], 4
      %s131 = int_to_ptr.vmem [resolvable:$true] %s130
      %136 = dma.hbm_to_vmem [thread:$0]  %s11, 16384, %s131, [#allocation16], 512, 512, 32
    $region49: #{tpu_custom_call.1} parent=1 // pred_fallthru
      _
    // Predicated region
    $region50: #{tpu_custom_call.1} parent=1 // pred_check
      _
    $region51: #{tpu_custom_call.1} parent=1 // pred_check_branch
      %138 = sbr.rel (0) target = $region53
    $region52: #{tpu_custom_call.1} parent=1 // pred_region
      _
    $region53: #{tpu_custom_call.1} parent=1 // pred_fallthru
      _
    // Predicated region
    $region54: #{tpu_custom_call.1} parent=1 // pred_check
      _
    $region55: #{tpu_custom_call.1} parent=1 // pred_check_branch
      %140 = sbr.rel (0) target = $region57
    $region56: #{tpu_custom_call.1} parent=1 // pred_region
      %s142 = ssub.s32 16384, 16384
      %143 = vsyncadd [#allocation19], %s142
      %s144 = sshll.u32 [#allocation18], 4
      %s145 = int_to_ptr.vmem [resolvable:$true] %s144
      %150 = dma.hbm_to_vmem [thread:$0]  %s13, 16384, %s145, [#allocation19], 128, 128, 8
    $region57: #{tpu_custom_call.1} parent=1 // pred_fallthru
      _
    // Predicated region
    $region58: #{tpu_custom_call.1} parent=1 // pred_check
      _
    $region59: #{tpu_custom_call.1} parent=1 // pred_check_branch
      %152 = sbr.rel (0) target = $region61
    $region60: #{tpu_custom_call.1} parent=1 // pred_region
      _
    $region61: #{tpu_custom_call.1} parent=1 // pred_fallthru
      _
    // Predicated region
    $region62: #{tpu_custom_call.1} parent=1 // pred_check
      _
    $region63: #{tpu_custom_call.1} parent=1 // pred_check_branch
      %154 = sbr.rel (0) target = $region65
    $region64: #{tpu_custom_call.1} parent=1 // pred_region
      %155 = dma.done [#allocation4], 2048
    $region65: #{tpu_custom_call.1} parent=1 // pred_fallthru
      _
    // Predicated region
    $region66: #{tpu_custom_call.1} parent=1 // pred_check
      _
    $region67: #{tpu_custom_call.1} parent=1 // pred_check_branch
      %157 = sbr.rel (0) target = $region69
    $region68: #{tpu_custom_call.1} parent=1 // pred_region
      %158 = dma.done [#allocation7], 8192
    $region69: #{tpu_custom_call.1} parent=1 // pred_fallthru
      _
    // Predicated region
    $region70: #{tpu_custom_call.1} parent=1 // pred_check
      _
    $region71: #{tpu_custom_call.1} parent=1 // pred_check_branch
      %160 = sbr.rel (0) target = $region73
    $region72: #{tpu_custom_call.1} parent=1 // pred_region
      %161 = dma.done [#allocation7], 128
    $region73: #{tpu_custom_call.1} parent=1 // pred_fallthru
      _
    // Predicated region
    $region74: #{tpu_custom_call.1} parent=1 // pred_check
      _
    $region75: #{tpu_custom_call.1} parent=1 // pred_check_branch
      %163 = sbr.rel (0) target = $region77
    $region76: #{tpu_custom_call.1} parent=1 // pred_region
      %164 = dma.done [#allocation10], 16384
    $region77: #{tpu_custom_call.1} parent=1 // pred_fallthru
      _
    // Predicated region
    $region78: #{tpu_custom_call.1} parent=1 // pred_check
      _
    $region79: #{tpu_custom_call.1} parent=1 // pred_check_branch
      %166 = sbr.rel (0) target = $region81
    $region80: #{tpu_custom_call.1} parent=1 // pred_region
      %167 = dma.done [#allocation10], 32
    $region81: #{tpu_custom_call.1} parent=1 // pred_fallthru
      _
    // Predicated region
    $region82: #{tpu_custom_call.1} parent=1 // pred_check
      _
    $region83: #{tpu_custom_call.1} parent=1 // pred_check_branch
      %169 = sbr.rel (0) target = $region85
    $region84: #{tpu_custom_call.1} parent=1 // pred_region
      %170 = dma.done [#allocation13], 8192
    $region85: #{tpu_custom_call.1} parent=1 // pred_fallthru
      _
    // Predicated region
    $region86: #{tpu_custom_call.1} parent=1 // pred_check
      _
    $region87: #{tpu_custom_call.1} parent=1 // pred_check_branch
      %172 = sbr.rel (0) target = $region89
    $region88: #{tpu_custom_call.1} parent=1 // pred_region
      %173 = dma.done [#allocation13], 16384
    $region89: #{tpu_custom_call.1} parent=1 // pred_fallthru
      _
    // Predicated region
    $region90: #{tpu_custom_call.1} parent=1 // pred_check
      _
    $region91: #{tpu_custom_call.1} parent=1 // pred_check_branch
      %175 = sbr.rel (0) target = $region93
    $region92: #{tpu_custom_call.1} parent=1 // pred_region
      %176 = dma.done [#allocation16], 8192
    $region93: #{tpu_custom_call.1} parent=1 // pred_fallthru
      _
    // Predicated region
    $region94: #{tpu_custom_call.1} parent=1 // pred_check
      _
    $region95: #{tpu_custom_call.1} parent=1 // pred_check_branch
      %178 = sbr.rel (0) target = $region97
    $region96: #{tpu_custom_call.1} parent=1 // pred_region
      %179 = dma.done [#allocation16], 16384
    $region97: #{tpu_custom_call.1} parent=1 // pred_fallthru
      _
    // Predicated region
    $region98: #{tpu_custom_call.1} parent=1 // pred_check
      _
    $region99: #{tpu_custom_call.1} parent=1 // pred_check_branch
      %181 = sbr.rel (0) target = $region101
    $region100: #{tpu_custom_call.1} parent=1 // pred_region
      %182 = dma.done [#allocation19], 16384
    $region101: #{tpu_custom_call.1} parent=1 // pred_fallthru
      _
    %p184 = scmp.eq.s32.totalorder 0, 0
    // Predicated region
    $region102: #{tpu_custom_call.1} parent=1 // pred_check
      %p185 = pneg %p184
    $region103: #{tpu_custom_call.1} parent=1 // pred_check_branch
      %187 = sbr.rel (%p185) target = $region105
    $region104: #{tpu_custom_call.1} parent=1 // pred_region
      %v188 = vld [vmem:[#allocation3] sm:$0xff]
      %v189 = vld [vmem:[#allocation3 + $0x8] sm:$0xff]
      %v190 = vld [vmem:[#allocation3 + $0x10] sm:$0xff]
      %v191 = vld [vmem:[#allocation3 + $0x18] sm:$0xff]
      %v192 = vld [vmem:[#allocation3 + $0x20] sm:$0xff]
      %v193 = vld [vmem:[#allocation3 + $0x28] sm:$0xff]
      %v194 = vld [vmem:[#allocation3 + $0x30] sm:$0xff]
      %v195 = vld [vmem:[#allocation3 + $0x38] sm:$0xff]
      %v196 = vld [vmem:[#allocation3 + $0x40] sm:$0xff]
      %v197 = vld [vmem:[#allocation3 + $0x48] sm:$0xff]
      %v198 = vld [vmem:[#allocation3 + $0x50] sm:$0xff]
      %v199 = vld [vmem:[#allocation3 + $0x58] sm:$0xff]
      %v200 = vld [vmem:[#allocation3 + $0x60] sm:$0xff]
      %v201 = vld [vmem:[#allocation3 + $0x68] sm:$0xff]
      %v202 = vld [vmem:[#allocation3 + $0x70] sm:$0xff]
      %v203 = vld [vmem:[#allocation3 + $0x78] sm:$0xff]
      %v204 = vld [vmem:[#allocation6] sm:$0xff]
      %v205 = vld [vmem:[#allocation6 + $0x8] sm:$0xff]
      %v206 = vld [vmem:[#allocation6 + $0x10] sm:$0xff]
      %v207 = vld [vmem:[#allocation6 + $0x18] sm:$0xff]
      %v208 = vld [vmem:[#allocation6 + $0x20] sm:$0xff]
      %v209 = vld [vmem:[#allocation6 + $0x28] sm:$0xff]
      %v210 = vld [vmem:[#allocation6 + $0x30] sm:$0xff]
      %v211 = vld [vmem:[#allocation6 + $0x38] sm:$0xff]
      %v212 = vld [vmem:[#allocation6 + $0x40] sm:$0xff]
      %v213 = vld [vmem:[#allocation6 + $0x48] sm:$0xff]
      %v214 = vld [vmem:[#allocation6 + $0x50] sm:$0xff]
      %v215 = vld [vmem:[#allocation6 + $0x58] sm:$0xff]
      %v216 = vld [vmem:[#allocation6 + $0x60] sm:$0xff]
      %v217 = vld [vmem:[#allocation6 + $0x68] sm:$0xff]
      %v218 = vld [vmem:[#allocation6 + $0x70] sm:$0xff]
      %v219 = vld [vmem:[#allocation6 + $0x78] sm:$0xff]
      %v220 = vld [vmem:[#allocation6 + $0x80] sm:$0xff]
      %v221 = vld [vmem:[#allocation6 + $0x88] sm:$0xff]
      %v222 = vld [vmem:[#allocation6 + $0x90] sm:$0xff]
      %v223 = vld [vmem:[#allocation6 + $0x98] sm:$0xff]
      %v224 = vld [vmem:[#allocation6 + $0xa0] sm:$0xff]
      %v225 = vld [vmem:[#allocation6 + $0xa8] sm:$0xff]
      %v226 = vld [vmem:[#allocation6 + $0xb0] sm:$0xff]
      %v227 = vld [vmem:[#allocation6 + $0xb8] sm:$0xff]
      %v228 = vld [vmem:[#allocation6 + $0xc0] sm:$0xff]
      %v229 = vld [vmem:[#allocation6 + $0xc8] sm:$0xff]
      %v230 = vld [vmem:[#allocation6 + $0xd0] sm:$0xff]
      %v231 = vld [vmem:[#allocation6 + $0xd8] sm:$0xff]
      %v232 = vld [vmem:[#allocation6 + $0xe0] sm:$0xff]
      %v233 = vld [vmem:[#allocation6 + $0xe8] sm:$0xff]
      %v234 = vld [vmem:[#allocation6 + $0xf0] sm:$0xff]
      %v235 = vld [vmem:[#allocation6 + $0xf8] sm:$0xff]
      %v236 = vld [vmem:[#allocation6 + $0x100] sm:$0xff]
      %v237 = vld [vmem:[#allocation6 + $0x108] sm:$0xff]
      %v238 = vld [vmem:[#allocation6 + $0x110] sm:$0xff]
      %v239 = vld [vmem:[#allocation6 + $0x118] sm:$0xff]
      %v240 = vld [vmem:[#allocation6 + $0x120] sm:$0xff]
      %v241 = vld [vmem:[#allocation6 + $0x128] sm:$0xff]
      %v242 = vld [vmem:[#allocation6 + $0x130] sm:$0xff]
      %v243 = vld [vmem:[#allocation6 + $0x138] sm:$0xff]
      %v244 = vld [vmem:[#allocation6 + $0x140] sm:$0xff]
      %v245 = vld [vmem:[#allocation6 + $0x148] sm:$0xff]
      %v246 = vld [vmem:[#allocation6 + $0x150] sm:$0xff]
      %v247 = vld [vmem:[#allocation6 + $0x158] sm:$0xff]
      %v248 = vld [vmem:[#allocation6 + $0x160] sm:$0xff]
      %v249 = vld [vmem:[#allocation6 + $0x168] sm:$0xff]
      %v250 = vld [vmem:[#allocation6 + $0x170] sm:$0xff]
      %v251 = vld [vmem:[#allocation6 + $0x178] sm:$0xff]
      %v252 = vld [vmem:[#allocation6 + $0x180] sm:$0xff]
      %v253 = vld [vmem:[#allocation6 + $0x188] sm:$0xff]
      %v254 = vld [vmem:[#allocation6 + $0x190] sm:$0xff]
      %v255 = vld [vmem:[#allocation6 + $0x198] sm:$0xff]
      %v256 = vld [vmem:[#allocation6 + $0x1a0] sm:$0xff]
      %v257 = vld [vmem:[#allocation6 + $0x1a8] sm:$0xff]
      %v258 = vld [vmem:[#allocation6 + $0x1b0] sm:$0xff]
      %v259 = vld [vmem:[#allocation6 + $0x1b8] sm:$0xff]
      %v260 = vld [vmem:[#allocation6 + $0x1c0] sm:$0xff]
      %v261 = vld [vmem:[#allocation6 + $0x1c8] sm:$0xff]
      %v262 = vld [vmem:[#allocation6 + $0x1d0] sm:$0xff]
      %v263 = vld [vmem:[#allocation6 + $0x1d8] sm:$0xff]
      %v264 = vld [vmem:[#allocation6 + $0x1e0] sm:$0xff]
      %v265 = vld [vmem:[#allocation6 + $0x1e8] sm:$0xff]
      %v266 = vld [vmem:[#allocation6 + $0x1f0] sm:$0xff]
      %v267 = vld [vmem:[#allocation6 + $0x1f8] sm:$0xff]
      %v268 = vld [vmem:[#allocation8] sm:$0xff]
      %v269 = vpack.c.bf16 %v189, %v188
      %v270 = vpack.c.bf16 %v191, %v190
      %v271 = vpack.c.bf16 %v193, %v192
      %v272 = vpack.c.bf16 %v195, %v194
      %v273 = vpack.c.bf16 %v197, %v196
      %v274 = vpack.c.bf16 %v199, %v198
      %v275 = vpack.c.bf16 %v201, %v200
      %v276 = vpack.c.bf16 %v203, %v202
      %v278 = vlaneseq
      %v279 = vshrl.u32 %v278, 7
      %v280 = vsub.s32 0, %v279
      %v281 = vrot.slane %v268, %v280
      %v282 = vlaneseq
      %v283 = vshrl.u32 %v282, 7
      %v284 = vsub.s32 1, %v283
      %v285 = vrot.slane %v268, %v284
      %v286 = vlaneseq
      %v287 = vshrl.u32 %v286, 7
      %v288 = vsub.s32 2, %v287
      %v289 = vrot.slane %v268, %v288
      %v290 = vlaneseq
      %v291 = vshrl.u32 %v290, 7
      %v292 = vsub.s32 3, %v291
      %v293 = vrot.slane %v268, %v292
      %v294 = vlaneseq
      %v295 = vshrl.u32 %v294, 7
      %v296 = vsub.s32 4, %v295
      %v297 = vrot.slane %v268, %v296
      %v298 = vlaneseq
      %v299 = vshrl.u32 %v298, 7
      %v300 = vsub.s32 5, %v299
      %v301 = vrot.slane %v268, %v300
      %v302 = vlaneseq
      %v303 = vshrl.u32 %v302, 7
      %v304 = vsub.s32 6, %v303
      %v305 = vrot.slane %v268, %v304
      %v306 = vlaneseq
      %v307 = vshrl.u32 %v306, 7
      %v308 = vsub.s32 7, %v307
      %v309 = vrot.slane %v268, %v308
      %v382 = vunpack.c.l.b16 %v204
      %v383 = vunpack.c.h.b16 %v204
      %v384 = vunpack.c.l.b16 %v205
      %v385 = vunpack.c.h.b16 %v205
      %v386 = vunpack.c.l.b16 %v206
      %v387 = vunpack.c.h.b16 %v206
      %v388 = vunpack.c.l.b16 %v207
      %v389 = vunpack.c.h.b16 %v207
      %v390 = vunpack.c.l.b16 %v208
      %v391 = vunpack.c.h.b16 %v208
      %v392 = vunpack.c.l.b16 %v209
      %v393 = vunpack.c.h.b16 %v209
      %v394 = vunpack.c.l.b16 %v210
      %v395 = vunpack.c.h.b16 %v210
      %v396 = vunpack.c.l.b16 %v211
      %v397 = vunpack.c.h.b16 %v211
      %v398 = vunpack.c.l.b16 %v212
      %v399 = vunpack.c.h.b16 %v212
      %v400 = vunpack.c.l.b16 %v213
      %v401 = vunpack.c.h.b16 %v213
      %v402 = vunpack.c.l.b16 %v214
      %v403 = vunpack.c.h.b16 %v214
      %v404 = vunpack.c.l.b16 %v215
      %v405 = vunpack.c.h.b16 %v215
      %v406 = vunpack.c.l.b16 %v216
      %v407 = vunpack.c.h.b16 %v216
      %v408 = vunpack.c.l.b16 %v217
      %v409 = vunpack.c.h.b16 %v217
      %v410 = vunpack.c.l.b16 %v218
      %v411 = vunpack.c.h.b16 %v218
      %v412 = vunpack.c.l.b16 %v219
      %v413 = vunpack.c.h.b16 %v219
      %v414 = vunpack.c.l.b16 %v220
      %v415 = vunpack.c.h.b16 %v220
      %v416 = vunpack.c.l.b16 %v221
      %v417 = vunpack.c.h.b16 %v221
      %v418 = vunpack.c.l.b16 %v222
      %v419 = vunpack.c.h.b16 %v222
      %v420 = vunpack.c.l.b16 %v223
      %v421 = vunpack.c.h.b16 %v223
      %v422 = vunpack.c.l.b16 %v224
      %v423 = vunpack.c.h.b16 %v224
      %v424 = vunpack.c.l.b16 %v225
      %v425 = vunpack.c.h.b16 %v225
      %v426 = vunpack.c.l.b16 %v226
      %v427 = vunpack.c.h.b16 %v226
      %v428 = vunpack.c.l.b16 %v227
      %v429 = vunpack.c.h.b16 %v227
      %v430 = vunpack.c.l.b16 %v228
      %v431 = vunpack.c.h.b16 %v228
      %v432 = vunpack.c.l.b16 %v229
      %v433 = vunpack.c.h.b16 %v229
      %v434 = vunpack.c.l.b16 %v230
      %v435 = vunpack.c.h.b16 %v230
      %v436 = vunpack.c.l.b16 %v231
      %v437 = vunpack.c.h.b16 %v231
      %v438 = vunpack.c.l.b16 %v232
      %v439 = vunpack.c.h.b16 %v232
      %v440 = vunpack.c.l.b16 %v233
      %v441 = vunpack.c.h.b16 %v233
      %v442 = vunpack.c.l.b16 %v234
      %v443 = vunpack.c.h.b16 %v234
      %v444 = vunpack.c.l.b16 %v235
      %v445 = vunpack.c.h.b16 %v235
      %v446 = vunpack.c.l.b16 %v236
      %v447 = vunpack.c.h.b16 %v236
      %v448 = vunpack.c.l.b16 %v237
      %v449 = vunpack.c.h.b16 %v237
      %v450 = vunpack.c.l.b16 %v238
      %v451 = vunpack.c.h.b16 %v238
      %v452 = vunpack.c.l.b16 %v239
      %v453 = vunpack.c.h.b16 %v239
      %v454 = vunpack.c.l.b16 %v240
      %v455 = vunpack.c.h.b16 %v240
      %v456 = vunpack.c.l.b16 %v241
      %v457 = vunpack.c.h.b16 %v241
      %v458 = vunpack.c.l.b16 %v242
      %v459 = vunpack.c.h.b16 %v242
      %v460 = vunpack.c.l.b16 %v243
      %v461 = vunpack.c.h.b16 %v243
      %v462 = vunpack.c.l.b16 %v244
      %v463 = vunpack.c.h.b16 %v244
      %v464 = vunpack.c.l.b16 %v245
      %v465 = vunpack.c.h.b16 %v245
      %v466 = vunpack.c.l.b16 %v246
      %v467 = vunpack.c.h.b16 %v246
      %v468 = vunpack.c.l.b16 %v247
      %v469 = vunpack.c.h.b16 %v247
      %v470 = vunpack.c.l.b16 %v248
      %v471 = vunpack.c.h.b16 %v248
      %v472 = vunpack.c.l.b16 %v249
      %v473 = vunpack.c.h.b16 %v249
      %v474 = vunpack.c.l.b16 %v250
      %v475 = vunpack.c.h.b16 %v250
      %v476 = vunpack.c.l.b16 %v251
      %v477 = vunpack.c.h.b16 %v251
      %v478 = vunpack.c.l.b16 %v252
      %v479 = vunpack.c.h.b16 %v252
      %v480 = vunpack.c.l.b16 %v253
      %v481 = vunpack.c.h.b16 %v253
      %v482 = vunpack.c.l.b16 %v254
      %v483 = vunpack.c.h.b16 %v254
      %v484 = vunpack.c.l.b16 %v255
      %v485 = vunpack.c.h.b16 %v255
      %v486 = vunpack.c.l.b16 %v256
      %v487 = vunpack.c.h.b16 %v256
      %v488 = vunpack.c.l.b16 %v257
      %v489 = vunpack.c.h.b16 %v257
      %v490 = vunpack.c.l.b16 %v258
      %v491 = vunpack.c.h.b16 %v258
      %v492 = vunpack.c.l.b16 %v259
      %v493 = vunpack.c.h.b16 %v259
      %v494 = vunpack.c.l.b16 %v260
      %v495 = vunpack.c.h.b16 %v260
      %v496 = vunpack.c.l.b16 %v261
      %v497 = vunpack.c.h.b16 %v261
      %v498 = vunpack.c.l.b16 %v262
      %v499 = vunpack.c.h.b16 %v262
      %v500 = vunpack.c.l.b16 %v263
      %v501 = vunpack.c.h.b16 %v263
      %v502 = vunpack.c.l.b16 %v264
      %v503 = vunpack.c.h.b16 %v264
      %v504 = vunpack.c.l.b16 %v265
      %v505 = vunpack.c.h.b16 %v265
      %v506 = vunpack.c.l.b16 %v266
      %v507 = vunpack.c.h.b16 %v266
      %v508 = vunpack.c.l.b16 %v267
      %v509 = vunpack.c.h.b16 %v267
      %v510 = vpack.c.b16 %v390, %v382
      %v511 = vpack.c.b16 %v391, %v383
      %v512 = vpack.c.b16 %v392, %v384
      %v513 = vpack.c.b16 %v393, %v385
      %v514 = vpack.c.b16 %v394, %v386
      %v515 = vpack.c.b16 %v395, %v387
      %v516 = vpack.c.b16 %v396, %v388
      %v517 = vpack.c.b16 %v397, %v389
      %v518 = vpack.c.b16 %v406, %v398
      %v519 = vpack.c.b16 %v407, %v399
      %v520 = vpack.c.b16 %v408, %v400
      %v521 = vpack.c.b16 %v409, %v401
      %v522 = vpack.c.b16 %v410, %v402
      %v523 = vpack.c.b16 %v411, %v403
      %v524 = vpack.c.b16 %v412, %v404
      %v525 = vpack.c.b16 %v413, %v405
      %v526 = vpack.c.b16 %v422, %v414
      %v527 = vpack.c.b16 %v423, %v415
      %v528 = vpack.c.b16 %v424, %v416
      %v529 = vpack.c.b16 %v425, %v417
      %v530 = vpack.c.b16 %v426, %v418
      %v531 = vpack.c.b16 %v427, %v419
      %v532 = vpack.c.b16 %v428, %v420
      %v533 = vpack.c.b16 %v429, %v421
      %v534 = vpack.c.b16 %v438, %v430
      %v535 = vpack.c.b16 %v439, %v431
      %v536 = vpack.c.b16 %v440, %v432
      %v537 = vpack.c.b16 %v441, %v433
      %v538 = vpack.c.b16 %v442, %v434
      %v539 = vpack.c.b16 %v443, %v435
      %v540 = vpack.c.b16 %v444, %v436
      %v541 = vpack.c.b16 %v445, %v437
      %v542 = vpack.c.b16 %v454, %v446
      %v543 = vpack.c.b16 %v455, %v447
      %v544 = vpack.c.b16 %v456, %v448
      %v545 = vpack.c.b16 %v457, %v449
      %v546 = vpack.c.b16 %v458, %v450
      %v547 = vpack.c.b16 %v459, %v451
      %v548 = vpack.c.b16 %v460, %v452
      %v549 = vpack.c.b16 %v461, %v453
      %v550 = vpack.c.b16 %v470, %v462
      %v551 = vpack.c.b16 %v471, %v463
      %v552 = vpack.c.b16 %v472, %v464
      %v553 = vpack.c.b16 %v473, %v465
      %v554 = vpack.c.b16 %v474, %v466
      %v555 = vpack.c.b16 %v475, %v467
      %v556 = vpack.c.b16 %v476, %v468
      %v557 = vpack.c.b16 %v477, %v469
      %v558 = vpack.c.b16 %v486, %v478
      %v559 = vpack.c.b16 %v487, %v479
      %v560 = vpack.c.b16 %v488, %v480
      %v561 = vpack.c.b16 %v489, %v481
      %v562 = vpack.c.b16 %v490, %v482
      %v563 = vpack.c.b16 %v491, %v483
      %v564 = vpack.c.b16 %v492, %v484
      %v565 = vpack.c.b16 %v493, %v485
      %v566 = vpack.c.b16 %v502, %v494
      %v567 = vpack.c.b16 %v503, %v495
      %v568 = vpack.c.b16 %v504, %v496
      %v569 = vpack.c.b16 %v505, %v497
      %v570 = vpack.c.b16 %v506, %v498
      %v571 = vpack.c.b16 %v507, %v499
      %v572 = vpack.c.b16 %v508, %v500
      %v573 = vpack.c.b16 %v509, %v501
      %638 = vmatprep.subr.bf16.mxu0 %v567
      %639 = vmatpush1.bf16.msra.mxu0 %v566
      %640 = vmatprep.subr.bf16.mxu0 %v559
      %641 = vmatpush1.bf16.msra.mxu0 %v558
      %642 = vmatprep.subr.bf16.mxu0 %v551
      %643 = vmatpush1.bf16.msra.mxu0 %v550
      %644 = vmatprep.subr.bf16.mxu0 %v543
      %645 = vmatpush1.bf16.msra.mxu0 %v542
      %646 = vmatprep.subr.bf16.mxu0 %v535
      %647 = vmatpush1.bf16.msra.mxu0 %v534
      %648 = vmatprep.subr.bf16.mxu0 %v527
      %649 = vmatpush1.bf16.msra.mxu0 %v526
      %650 = vmatprep.subr.bf16.mxu0 %v519
      %651 = vmatpush1.bf16.msra.mxu0 %v518
      %652 = vmatprep.subr.bf16.mxu0 %v511
      %653 = vmatpush1.bf16.msra.mxu0 %v510
      %654 = vmatprep.subr.bf16.mxu0 0
      %655 = vmatpush2.bf16.msra.mxu0 0
      %656 = vmatprep.subr.bf16.mxu0 0
      %657 = vmatpush2.bf16.msra.mxu0 0
      %658 = vmatprep.subr.bf16.mxu0 0
      %659 = vmatpush2.bf16.msra.mxu0 0
      %660 = vmatprep.subr.bf16.mxu0 0
      %661 = vmatpush2.bf16.msra.mxu0 0
      %662 = vmatprep.subr.bf16.mxu0 0
      %663 = vmatpush2.bf16.msra.mxu0 0
      %664 = vmatprep.subr.bf16.mxu0 0
      %665 = vmatpush2.bf16.msra.mxu0 0
      %666 = vmatprep.subr.bf16.mxu0 0
      %667 = vmatpush2.bf16.msra.mxu0 0
      %668 = vmatprep.subr.bf16.mxu0 0
      %669 = vmatpush2.bf16.msra.mxu0 0
      %670 = vmatprep.mubr.bf16.mxu0 0
      %671 = vmatmul.mubr.bf16.gmra.mxu0 %v269
      %v672 = vpop.f32.mrf.mxu0
      %v673 = vadd.f32 %v281, %v672
      %v674 = vpop.f32.mrf.mxu0
      %v675 = vadd.f32 %v285, %v674
      %v676 = vpop.f32.mrf.mxu0
      %v677 = vadd.f32 %v281, %v676
      %v678 = vpop.f32.mrf.mxu0
      %v679 = vadd.f32 %v285, %v678
      %680 = vmatprep.mubr.bf16.mxu0 0
      %681 = vmatmul.mubr.bf16.gmra.mxu0 %v270
      %v682 = vpop.f32.mrf.mxu0
      %v683 = vadd.f32 %v281, %v682
      %v684 = vpop.f32.mrf.mxu0
      %v685 = vadd.f32 %v285, %v684
      %v686 = vpop.f32.mrf.mxu0
      %v687 = vadd.f32 %v281, %v686
      %v688 = vpop.f32.mrf.mxu0
      %v689 = vadd.f32 %v285, %v688
      %690 = vmatprep.mubr.bf16.mxu0 0
      %691 = vmatmul.mubr.bf16.gmra.mxu0 %v271
      %v692 = vpop.f32.mrf.mxu0
      %v693 = vadd.f32 %v281, %v692
      %v694 = vpop.f32.mrf.mxu0
      %v695 = vadd.f32 %v285, %v694
      %v696 = vpop.f32.mrf.mxu0
      %v697 = vadd.f32 %v281, %v696
      %v698 = vpop.f32.mrf.mxu0
      %v699 = vadd.f32 %v285, %v698
      %700 = vmatprep.mubr.bf16.mxu0 0
      %701 = vmatmul.mubr.bf16.gmra.mxu0 %v272
      %v702 = vpop.f32.mrf.mxu0
      %v703 = vadd.f32 %v281, %v702
      %v704 = vpop.f32.mrf.mxu0
      %v705 = vadd.f32 %v285, %v704
      %v706 = vpop.f32.mrf.mxu0
      %v707 = vadd.f32 %v281, %v706
      %v708 = vpop.f32.mrf.mxu0
      %v709 = vadd.f32 %v285, %v708
      %710 = vmatprep.mubr.bf16.mxu0 0
      %711 = vmatmul.mubr.bf16.gmra.mxu0 %v273
      %v712 = vpop.f32.mrf.mxu0
      %v713 = vadd.f32 %v281, %v712
      %v714 = vpop.f32.mrf.mxu0
      %v715 = vadd.f32 %v285, %v714
      %v716 = vpop.f32.mrf.mxu0
      %v717 = vadd.f32 %v281, %v716
      %v718 = vpop.f32.mrf.mxu0
      %v719 = vadd.f32 %v285, %v718
      %720 = vmatprep.mubr.bf16.mxu0 0
      %721 = vmatmul.mubr.bf16.gmra.mxu0 %v274
      %v722 = vpop.f32.mrf.mxu0
      %v723 = vadd.f32 %v281, %v722
      %v724 = vpop.f32.mrf.mxu0
      %v725 = vadd.f32 %v285, %v724
      %v726 = vpop.f32.mrf.mxu0
      %v727 = vadd.f32 %v281, %v726
      %v728 = vpop.f32.mrf.mxu0
      %v729 = vadd.f32 %v285, %v728
      %730 = vmatprep.mubr.bf16.mxu0 0
      %731 = vmatmul.mubr.bf16.gmra.mxu0 %v275
      %v732 = vpop.f32.mrf.mxu0
      %v733 = vadd.f32 %v281, %v732
      %v734 = vpop.f32.mrf.mxu0
      %v735 = vadd.f32 %v285, %v734
      %v736 = vpop.f32.mrf.mxu0
      %v737 = vadd.f32 %v281, %v736
      %v738 = vpop.f32.mrf.mxu0
      %v739 = vadd.f32 %v285, %v738
      %740 = vmatprep.mubr.bf16.mxu0 0
      %741 = vmatmul.mubr.bf16.gmra.mxu0 %v276
      %v742 = vpop.f32.mrf.mxu0
      %v743 = vadd.f32 %v281, %v742
      %v744 = vpop.f32.mrf.mxu0
      %v745 = vadd.f32 %v285, %v744
      %v746 = vpop.f32.mrf.mxu0
      %v747 = vadd.f32 %v281, %v746
      %v748 = vpop.f32.mrf.mxu0
      %v749 = vadd.f32 %v285, %v748
      %750 = vdwg.mxu0
      %751 = vmatprep.subr.bf16.mxu0 %v569
      %752 = vmatpush1.bf16.msra.mxu0 %v568
      %753 = vmatprep.subr.bf16.mxu0 %v561
      %754 = vmatpush1.bf16.msra.mxu0 %v560
      %755 = vmatprep.subr.bf16.mxu0 %v553
      %756 = vmatpush1.bf16.msra.mxu0 %v552
      %757 = vmatprep.subr.bf16.mxu0 %v545
      %758 = vmatpush1.bf16.msra.mxu0 %v544
      %759 = vmatprep.subr.bf16.mxu0 %v537
      %760 = vmatpush1.bf16.msra.mxu0 %v536
      %761 = vmatprep.subr.bf16.mxu0 %v529
      %762 = vmatpush1.bf16.msra.mxu0 %v528
      %763 = vmatprep.subr.bf16.mxu0 %v521
      %764 = vmatpush1.bf16.msra.mxu0 %v520
      %765 = vmatprep.subr.bf16.mxu0 %v513
      %766 = vmatpush1.bf16.msra.mxu0 %v512
      %767 = vmatprep.subr.bf16.mxu0 0
      %768 = vmatpush2.bf16.msra.mxu0 0
      %769 = vmatprep.subr.bf16.mxu0 0
      %770 = vmatpush2.bf16.msra.mxu0 0
      %771 = vmatprep.subr.bf16.mxu0 0
      %772 = vmatpush2.bf16.msra.mxu0 0
      %773 = vmatprep.subr.bf16.mxu0 0
      %774 = vmatpush2.bf16.msra.mxu0 0
      %775 = vmatprep.subr.bf16.mxu0 0
      %776 = vmatpush2.bf16.msra.mxu0 0
      %777 = vmatprep.subr.bf16.mxu0 0
      %778 = vmatpush2.bf16.msra.mxu0 0
      %779 = vmatprep.subr.bf16.mxu0 0
      %780 = vmatpush2.bf16.msra.mxu0 0
      %781 = vmatprep.subr.bf16.mxu0 0
      %782 = vmatpush2.bf16.msra.mxu0 0
      %783 = vmatprep.mubr.bf16.mxu0 0
      %784 = vmatmul.mubr.bf16.gmra.mxu0 %v269
      %v785 = vpop.f32.mrf.mxu0
      %v786 = vadd.f32 %v289, %v785
      %v787 = vpop.f32.mrf.mxu0
      %v788 = vadd.f32 %v293, %v787
      %v789 = vpop.f32.mrf.mxu0
      %v790 = vadd.f32 %v289, %v789
      %v791 = vpop.f32.mrf.mxu0
      %v792 = vadd.f32 %v293, %v791
      %793 = vmatprep.mubr.bf16.mxu0 0
      %794 = vmatmul.mubr.bf16.gmra.mxu0 %v270
      %v795 = vpop.f32.mrf.mxu0
      %v796 = vadd.f32 %v289, %v795
      %v797 = vpop.f32.mrf.mxu0
      %v798 = vadd.f32 %v293, %v797
      %v799 = vpop.f32.mrf.mxu0
      %v800 = vadd.f32 %v289, %v799
      %v801 = vpop.f32.mrf.mxu0
      %v802 = vadd.f32 %v293, %v801
      %803 = vmatprep.mubr.bf16.mxu0 0
      %804 = vmatmul.mubr.bf16.gmra.mxu0 %v271
      %v805 = vpop.f32.mrf.mxu0
      %v806 = vadd.f32 %v289, %v805
      %v807 = vpop.f32.mrf.mxu0
      %v808 = vadd.f32 %v293, %v807
      %v809 = vpop.f32.mrf.mxu0
      %v810 = vadd.f32 %v289, %v809
      %v811 = vpop.f32.mrf.mxu0
      %v812 = vadd.f32 %v293, %v811
      %813 = vmatprep.mubr.bf16.mxu0 0
      %814 = vmatmul.mubr.bf16.gmra.mxu0 %v272
      %v815 = vpop.f32.mrf.mxu0
      %v816 = vadd.f32 %v289, %v815
      %v817 = vpop.f32.mrf.mxu0
      %v818 = vadd.f32 %v293, %v817
      %v819 = vpop.f32.mrf.mxu0
      %v820 = vadd.f32 %v289, %v819
      %v821 = vpop.f32.mrf.mxu0
      %v822 = vadd.f32 %v293, %v821
      %823 = vmatprep.mubr.bf16.mxu0 0
      %824 = vmatmul.mubr.bf16.gmra.mxu0 %v273
      %v825 = vpop.f32.mrf.mxu0
      %v826 = vadd.f32 %v289, %v825
      %v827 = vpop.f32.mrf.mxu0
      %v828 = vadd.f32 %v293, %v827
      %v829 = vpop.f32.mrf.mxu0
      %v830 = vadd.f32 %v289, %v829
      %v831 = vpop.f32.mrf.mxu0
      %v832 = vadd.f32 %v293, %v831
      %833 = vmatprep.mubr.bf16.mxu0 0
      %834 = vmatmul.mubr.bf16.gmra.mxu0 %v274
      %v835 = vpop.f32.mrf.mxu0
      %v836 = vadd.f32 %v289, %v835
      %v837 = vpop.f32.mrf.mxu0
      %v838 = vadd.f32 %v293, %v837
      %v839 = vpop.f32.mrf.mxu0
      %v840 = vadd.f32 %v289, %v839
      %v841 = vpop.f32.mrf.mxu0
      %v842 = vadd.f32 %v293, %v841
      %843 = vmatprep.mubr.bf16.mxu0 0
      %844 = vmatmul.mubr.bf16.gmra.mxu0 %v275
      %v845 = vpop.f32.mrf.mxu0
      %v846 = vadd.f32 %v289, %v845
      %v847 = vpop.f32.mrf.mxu0
      %v848 = vadd.f32 %v293, %v847
      %v849 = vpop.f32.mrf.mxu0
      %v850 = vadd.f32 %v289, %v849
      %v851 = vpop.f32.mrf.mxu0
      %v852 = vadd.f32 %v293, %v851
      %853 = vmatprep.mubr.bf16.mxu0 0
      %854 = vmatmul.mubr.bf16.gmra.mxu0 %v276
      %v855 = vpop.f32.mrf.mxu0
      %v856 = vadd.f32 %v289, %v855
      %v857 = vpop.f32.mrf.mxu0
      %v858 = vadd.f32 %v293, %v857
      %v859 = vpop.f32.mrf.mxu0
      %v860 = vadd.f32 %v289, %v859
      %v861 = vpop.f32.mrf.mxu0
      %v862 = vadd.f32 %v293, %v861
      %863 = vdwg.mxu0
      %864 = vmatprep.subr.bf16.mxu0 %v571
      %865 = vmatpush1.bf16.msra.mxu0 %v570
      %866 = vmatprep.subr.bf16.mxu0 %v563
      %867 = vmatpush1.bf16.msra.mxu0 %v562
      %868 = vmatprep.subr.bf16.mxu0 %v555
      %869 = vmatpush1.bf16.msra.mxu0 %v554
      %870 = vmatprep.subr.bf16.mxu0 %v547
      %871 = vmatpush1.bf16.msra.mxu0 %v546
      %872 = vmatprep.subr.bf16.mxu0 %v539
      %873 = vmatpush1.bf16.msra.mxu0 %v538
      %874 = vmatprep.subr.bf16.mxu0 %v531
      %875 = vmatpush1.bf16.msra.mxu0 %v530
      %876 = vmatprep.subr.bf16.mxu0 %v523
      %877 = vmatpush1.bf16.msra.mxu0 %v522
      %878 = vmatprep.subr.bf16.mxu0 %v515
      %879 = vmatpush1.bf16.msra.mxu0 %v514
      %880 = vmatprep.subr.bf16.mxu0 0
      %881 = vmatpush2.bf16.msra.mxu0 0
      %882 = vmatprep.subr.bf16.mxu0 0
      %883 = vmatpush2.bf16.msra.mxu0 0
      %884 = vmatprep.subr.bf16.mxu0 0
      %885 = vmatpush2.bf16.msra.mxu0 0
      %886 = vmatprep.subr.bf16.mxu0 0
      %887 = vmatpush2.bf16.msra.mxu0 0
      %888 = vmatprep.subr.bf16.mxu0 0
      %889 = vmatpush2.bf16.msra.mxu0 0
      %890 = vmatprep.subr.bf16.mxu0 0
      %891 = vmatpush2.bf16.msra.mxu0 0
      %892 = vmatprep.subr.bf16.mxu0 0
      %893 = vmatpush2.bf16.msra.mxu0 0
      %894 = vmatprep.subr.bf16.mxu0 0
      %895 = vmatpush2.bf16.msra.mxu0 0
      %896 = vmatprep.mubr.bf16.mxu0 0
      %897 = vmatmul.mubr.bf16.gmra.mxu0 %v269
      %v898 = vpop.f32.mrf.mxu0
      %v899 = vadd.f32 %v297, %v898
      %v900 = vpop.f32.mrf.mxu0
      %v901 = vadd.f32 %v301, %v900
      %v902 = vpop.f32.mrf.mxu0
      %v903 = vadd.f32 %v297, %v902
      %v904 = vpop.f32.mrf.mxu0
      %v905 = vadd.f32 %v301, %v904
      %906 = vmatprep.mubr.bf16.mxu0 0
      %907 = vmatmul.mubr.bf16.gmra.mxu0 %v270
      %v908 = vpop.f32.mrf.mxu0
      %v909 = vadd.f32 %v297, %v908
      %v910 = vpop.f32.mrf.mxu0
      %v911 = vadd.f32 %v301, %v910
      %v912 = vpop.f32.mrf.mxu0
      %v913 = vadd.f32 %v297, %v912
      %v914 = vpop.f32.mrf.mxu0
      %v915 = vadd.f32 %v301, %v914
      %916 = vmatprep.mubr.bf16.mxu0 0
      %917 = vmatmul.mubr.bf16.gmra.mxu0 %v271
      %v918 = vpop.f32.mrf.mxu0
      %v919 = vadd.f32 %v297, %v918
      %v920 = vpop.f32.mrf.mxu0
      %v921 = vadd.f32 %v301, %v920
      %v922 = vpop.f32.mrf.mxu0
      %v923 = vadd.f32 %v297, %v922
      %v924 = vpop.f32.mrf.mxu0
      %v925 = vadd.f32 %v301, %v924
      %926 = vmatprep.mubr.bf16.mxu0 0
      %927 = vmatmul.mubr.bf16.gmra.mxu0 %v272
      %v928 = vpop.f32.mrf.mxu0
      %v929 = vadd.f32 %v297, %v928
      %v930 = vpop.f32.mrf.mxu0
      %v931 = vadd.f32 %v301, %v930
      %v932 = vpop.f32.mrf.mxu0
      %v933 = vadd.f32 %v297, %v932
      %v934 = vpop.f32.mrf.mxu0
      %v935 = vadd.f32 %v301, %v934
      %936 = vmatprep.mubr.bf16.mxu0 0
      %937 = vmatmul.mubr.bf16.gmra.mxu0 %v273
      %v938 = vpop.f32.mrf.mxu0
      %v939 = vadd.f32 %v297, %v938
      %v940 = vpop.f32.mrf.mxu0
      %v941 = vadd.f32 %v301, %v940
      %v942 = vpop.f32.mrf.mxu0
      %v943 = vadd.f32 %v297, %v942
      %v944 = vpop.f32.mrf.mxu0
      %v945 = vadd.f32 %v301, %v944
      %946 = vmatprep.mubr.bf16.mxu0 0
      %947 = vmatmul.mubr.bf16.gmra.mxu0 %v274
      %v948 = vpop.f32.mrf.mxu0
      %v949 = vadd.f32 %v297, %v948
      %v950 = vpop.f32.mrf.mxu0
      %v951 = vadd.f32 %v301, %v950
      %v952 = vpop.f32.mrf.mxu0
      %v953 = vadd.f32 %v297, %v952
      %v954 = vpop.f32.mrf.mxu0
      %v955 = vadd.f32 %v301, %v954
      %956 = vmatprep.mubr.bf16.mxu0 0
      %957 = vmatmul.mubr.bf16.gmra.mxu0 %v275
      %v958 = vpop.f32.mrf.mxu0
      %v959 = vadd.f32 %v297, %v958
      %v960 = vpop.f32.mrf.mxu0
      %v961 = vadd.f32 %v301, %v960
      %v962 = vpop.f32.mrf.mxu0
      %v963 = vadd.f32 %v297, %v962
      %v964 = vpop.f32.mrf.mxu0
      %v965 = vadd.f32 %v301, %v964
      %966 = vmatprep.mubr.bf16.mxu0 0
      %967 = vmatmul.mubr.bf16.gmra.mxu0 %v276
      %v968 = vpop.f32.mrf.mxu0
      %v969 = vadd.f32 %v297, %v968
      %v970 = vpop.f32.mrf.mxu0
      %v971 = vadd.f32 %v301, %v970
      %v972 = vpop.f32.mrf.mxu0
      %v973 = vadd.f32 %v297, %v972
      %v974 = vpop.f32.mrf.mxu0
      %v975 = vadd.f32 %v301, %v974
      %976 = vdwg.mxu0
      %977 = vmatprep.subr.bf16.mxu0 %v573
      %978 = vmatpush1.bf16.msra.mxu0 %v572
      %979 = vmatprep.subr.bf16.mxu0 %v565
      %980 = vmatpush1.bf16.msra.mxu0 %v564
      %981 = vmatprep.subr.bf16.mxu0 %v557
      %982 = vmatpush1.bf16.msra.mxu0 %v556
      %983 = vmatprep.subr.bf16.mxu0 %v549
      %984 = vmatpush1.bf16.msra.mxu0 %v548
      %985 = vmatprep.subr.bf16.mxu0 %v541
      %986 = vmatpush1.bf16.msra.mxu0 %v540
      %987 = vmatprep.subr.bf16.mxu0 %v533
      %988 = vmatpush1.bf16.msra.mxu0 %v532
      %989 = vmatprep.subr.bf16.mxu0 %v525
      %990 = vmatpush1.bf16.msra.mxu0 %v524
      %991 = vmatprep.subr.bf16.mxu0 %v517
      %992 = vmatpush1.bf16.msra.mxu0 %v516
      %993 = vmatprep.subr.bf16.mxu0 0
      %994 = vmatpush2.bf16.msra.mxu0 0
      %995 = vmatprep.subr.bf16.mxu0 0
      %996 = vmatpush2.bf16.msra.mxu0 0
      %997 = vmatprep.subr.bf16.mxu0 0
      %998 = vmatpush2.bf16.msra.mxu0 0
      %999 = vmatprep.subr.bf16.mxu0 0
      %1000 = vmatpush2.bf16.msra.mxu0 0
      %1001 = vmatprep.subr.bf16.mxu0 0
      %1002 = vmatpush2.bf16.msra.mxu0 0
      %1003 = vmatprep.subr.bf16.mxu0 0
      %1004 = vmatpush2.bf16.msra.mxu0 0
      %1005 = vmatprep.subr.bf16.mxu0 0
      %1006 = vmatpush2.bf16.msra.mxu0 0
      %1007 = vmatprep.subr.bf16.mxu0 0
      %1008 = vmatpush2.bf16.msra.mxu0 0
      %1009 = vmatprep.mubr.bf16.mxu0 0
      %1010 = vmatmul.mubr.bf16.gmra.mxu0 %v269
      %v1011 = vpop.f32.mrf.mxu0
      %v1012 = vadd.f32 %v305, %v1011
      %v1013 = vpop.f32.mrf.mxu0
      %v1014 = vadd.f32 %v309, %v1013
      %v1015 = vpop.f32.mrf.mxu0
      %v1016 = vadd.f32 %v305, %v1015
      %v1017 = vpop.f32.mrf.mxu0
      %v1018 = vadd.f32 %v309, %v1017
      %1019 = vmatprep.mubr.bf16.mxu0 0
      %1020 = vmatmul.mubr.bf16.gmra.mxu0 %v270
      %v1021 = vpop.f32.mrf.mxu0
      %v1022 = vadd.f32 %v305, %v1021
      %v1023 = vpop.f32.mrf.mxu0
      %v1024 = vadd.f32 %v309, %v1023
      %v1025 = vpop.f32.mrf.mxu0
      %v1026 = vadd.f32 %v305, %v1025
      %v1027 = vpop.f32.mrf.mxu0
      %v1028 = vadd.f32 %v309, %v1027
      %1029 = vmatprep.mubr.bf16.mxu0 0
      %1030 = vmatmul.mubr.bf16.gmra.mxu0 %v271
      %v1031 = vpop.f32.mrf.mxu0
      %v1032 = vadd.f32 %v305, %v1031
      %v1033 = vpop.f32.mrf.mxu0
      %v1034 = vadd.f32 %v309, %v1033
      %v1035 = vpop.f32.mrf.mxu0
      %v1036 = vadd.f32 %v305, %v1035
      %v1037 = vpop.f32.mrf.mxu0
      %v1038 = vadd.f32 %v309, %v1037
      %1039 = vmatprep.mubr.bf16.mxu0 0
      %1040 = vmatmul.mubr.bf16.gmra.mxu0 %v272
      %v1041 = vpop.f32.mrf.mxu0
      %v1042 = vadd.f32 %v305, %v1041
      %v1043 = vpop.f32.mrf.mxu0
      %v1044 = vadd.f32 %v309, %v1043
      %v1045 = vpop.f32.mrf.mxu0
      %v1046 = vadd.f32 %v305, %v1045
      %v1047 = vpop.f32.mrf.mxu0
      %v1048 = vadd.f32 %v309, %v1047
      %1049 = vmatprep.mubr.bf16.mxu0 0
      %1050 = vmatmul.mubr.bf16.gmra.mxu0 %v273
      %v1051 = vpop.f32.mrf.mxu0
      %v1052 = vadd.f32 %v305, %v1051
      %v1053 = vpop.f32.mrf.mxu0
      %v1054 = vadd.f32 %v309, %v1053
      %v1055 = vpop.f32.mrf.mxu0
      %v1056 = vadd.f32 %v305, %v1055
      %v1057 = vpop.f32.mrf.mxu0
      %v1058 = vadd.f32 %v309, %v1057
      %1059 = vmatprep.mubr.bf16.mxu0 0
      %1060 = vmatmul.mubr.bf16.gmra.mxu0 %v274
      %v1061 = vpop.f32.mrf.mxu0
      %v1062 = vadd.f32 %v305, %v1061
      %v1063 = vpop.f32.mrf.mxu0
      %v1064 = vadd.f32 %v309, %v1063
      %v1065 = vpop.f32.mrf.mxu0
      %v1066 = vadd.f32 %v305, %v1065
      %v1067 = vpop.f32.mrf.mxu0
      %v1068 = vadd.f32 %v309, %v1067
      %1069 = vmatprep.mubr.bf16.mxu0 0
      %1070 = vmatmul.mubr.bf16.gmra.mxu0 %v275
      %v1071 = vpop.f32.mrf.mxu0
      %v1072 = vadd.f32 %v305, %v1071
      %v1073 = vpop.f32.mrf.mxu0
      %v1074 = vadd.f32 %v309, %v1073
      %v1075 = vpop.f32.mrf.mxu0
      %v1076 = vadd.f32 %v305, %v1075
      %v1077 = vpop.f32.mrf.mxu0
      %v1078 = vadd.f32 %v309, %v1077
      %1079 = vmatprep.mubr.bf16.mxu0 0
      %1080 = vmatmul.mubr.bf16.gmra.mxu0 %v276
      %v1081 = vpop.f32.mrf.mxu0
      %v1082 = vadd.f32 %v305, %v1081
      %v1083 = vpop.f32.mrf.mxu0
      %v1084 = vadd.f32 %v309, %v1083
      %v1085 = vpop.f32.mrf.mxu0
      %v1086 = vadd.f32 %v305, %v1085
      %v1087 = vpop.f32.mrf.mxu0
      %v1088 = vadd.f32 %v309, %v1087
      %1089 = vdwg.mxu0
      %v1090 = vmax.f32 %v673, 0.0
      %v1091 = vmax.f32 %v675, 0.0
      %v1092 = vmax.f32 %v786, 0.0
      %v1093 = vmax.f32 %v788, 0.0
      %v1094 = vmax.f32 %v899, 0.0
      %v1095 = vmax.f32 %v901, 0.0
      %v1096 = vmax.f32 %v1012, 0.0
      %v1097 = vmax.f32 %v1014, 0.0
      %v1098 = vmax.f32 %v677, 0.0
      %v1099 = vmax.f32 %v679, 0.0
      %v1100 = vmax.f32 %v790, 0.0
      %v1101 = vmax.f32 %v792, 0.0
      %v1102 = vmax.f32 %v903, 0.0
      %v1103 = vmax.f32 %v905, 0.0
      %v1104 = vmax.f32 %v1016, 0.0
      %v1105 = vmax.f32 %v1018, 0.0
      %v1106 = vmax.f32 %v683, 0.0
      %v1107 = vmax.f32 %v685, 0.0
      %v1108 = vmax.f32 %v796, 0.0
      %v1109 = vmax.f32 %v798, 0.0
      %v1110 = vmax.f32 %v909, 0.0
      %v1111 = vmax.f32 %v911, 0.0
      %v1112 = vmax.f32 %v1022, 0.0
      %v1113 = vmax.f32 %v1024, 0.0
      %v1114 = vmax.f32 %v687, 0.0
      %v1115 = vmax.f32 %v689, 0.0
      %v1116 = vmax.f32 %v800, 0.0
      %v1117 = vmax.f32 %v802, 0.0
      %v1118 = vmax.f32 %v913, 0.0
      %v1119 = vmax.f32 %v915, 0.0
      %v1120 = vmax.f32 %v1026, 0.0
      %v1121 = vmax.f32 %v1028, 0.0
      %v1122 = vmax.f32 %v693, 0.0
      %v1123 = vmax.f32 %v695, 0.0
      %v1124 = vmax.f32 %v806, 0.0
      %v1125 = vmax.f32 %v808, 0.0
      %v1126 = vmax.f32 %v919, 0.0
      %v1127 = vmax.f32 %v921, 0.0
      %v1128 = vmax.f32 %v1032, 0.0
      %v1129 = vmax.f32 %v1034, 0.0
      %v1130 = vmax.f32 %v697, 0.0
      %v1131 = vmax.f32 %v699, 0.0
      %v1132 = vmax.f32 %v810, 0.0
      %v1133 = vmax.f32 %v812, 0.0
      %v1134 = vmax.f32 %v923, 0.0
      %v1135 = vmax.f32 %v925, 0.0
      %v1136 = vmax.f32 %v1036, 0.0
      %v1137 = vmax.f32 %v1038, 0.0
      %v1138 = vmax.f32 %v703, 0.0
      %v1139 = vmax.f32 %v705, 0.0
      %v1140 = vmax.f32 %v816, 0.0
      %v1141 = vmax.f32 %v818, 0.0
      %v1142 = vmax.f32 %v929, 0.0
      %v1143 = vmax.f32 %v931, 0.0
      %v1144 = vmax.f32 %v1042, 0.0
      %v1145 = vmax.f32 %v1044, 0.0
      %v1146 = vmax.f32 %v707, 0.0
      %v1147 = vmax.f32 %v709, 0.0
      %v1148 = vmax.f32 %v820, 0.0
      %v1149 = vmax.f32 %v822, 0.0
      %v1150 = vmax.f32 %v933, 0.0
      %v1151 = vmax.f32 %v935, 0.0
      %v1152 = vmax.f32 %v1046, 0.0
      %v1153 = vmax.f32 %v1048, 0.0
      %v1154 = vmax.f32 %v713, 0.0
      %v1155 = vmax.f32 %v715, 0.0
      %v1156 = vmax.f32 %v826, 0.0
      %v1157 = vmax.f32 %v828, 0.0
      %v1158 = vmax.f32 %v939, 0.0
      %v1159 = vmax.f32 %v941, 0.0
      %v1160 = vmax.f32 %v1052, 0.0
      %v1161 = vmax.f32 %v1054, 0.0
      %v1162 = vmax.f32 %v717, 0.0
      %v1163 = vmax.f32 %v719, 0.0
      %v1164 = vmax.f32 %v830, 0.0
      %v1165 = vmax.f32 %v832, 0.0
      %v1166 = vmax.f32 %v943, 0.0
      %v1167 = vmax.f32 %v945, 0.0
      %v1168 = vmax.f32 %v1056, 0.0
      %v1169 = vmax.f32 %v1058, 0.0
      %v1170 = vmax.f32 %v723, 0.0
      %v1171 = vmax.f32 %v725, 0.0
      %v1172 = vmax.f32 %v836, 0.0
      %v1173 = vmax.f32 %v838, 0.0
      %v1174 = vmax.f32 %v949, 0.0
      %v1175 = vmax.f32 %v951, 0.0
      %v1176 = vmax.f32 %v1062, 0.0
      %v1177 = vmax.f32 %v1064, 0.0
      %v1178 = vmax.f32 %v727, 0.0
      %v1179 = vmax.f32 %v729, 0.0
      %v1180 = vmax.f32 %v840, 0.0
      %v1181 = vmax.f32 %v842, 0.0
      %v1182 = vmax.f32 %v953, 0.0
      %v1183 = vmax.f32 %v955, 0.0
      %v1184 = vmax.f32 %v1066, 0.0
      %v1185 = vmax.f32 %v1068, 0.0
      %v1186 = vmax.f32 %v733, 0.0
      %v1187 = vmax.f32 %v735, 0.0
      %v1188 = vmax.f32 %v846, 0.0
      %v1189 = vmax.f32 %v848, 0.0
      %v1190 = vmax.f32 %v959, 0.0
      %v1191 = vmax.f32 %v961, 0.0
      %v1192 = vmax.f32 %v1072, 0.0
      %v1193 = vmax.f32 %v1074, 0.0
      %v1194 = vmax.f32 %v737, 0.0
      %v1195 = vmax.f32 %v739, 0.0
      %v1196 = vmax.f32 %v850, 0.0
      %v1197 = vmax.f32 %v852, 0.0
      %v1198 = vmax.f32 %v963, 0.0
      %v1199 = vmax.f32 %v965, 0.0
      %v1200 = vmax.f32 %v1076, 0.0
      %v1201 = vmax.f32 %v1078, 0.0
      %v1202 = vmax.f32 %v743, 0.0
      %v1203 = vmax.f32 %v745, 0.0
      %v1204 = vmax.f32 %v856, 0.0
      %v1205 = vmax.f32 %v858, 0.0
      %v1206 = vmax.f32 %v969, 0.0
      %v1207 = vmax.f32 %v971, 0.0
      %v1208 = vmax.f32 %v1082, 0.0
      %v1209 = vmax.f32 %v1084, 0.0
      %v1210 = vmax.f32 %v747, 0.0
      %v1211 = vmax.f32 %v749, 0.0
      %v1212 = vmax.f32 %v860, 0.0
      %v1213 = vmax.f32 %v862, 0.0
      %v1214 = vmax.f32 %v973, 0.0
      %v1215 = vmax.f32 %v975, 0.0
      %v1216 = vmax.f32 %v1086, 0.0
      %v1217 = vmax.f32 %v1088, 0.0
      %v1218 = vld [vmem:[#allocation9] sm:$0xff]
      %v1219 = vld [vmem:[#allocation9 + $0x8] sm:$0xff]
      %v1220 = vld [vmem:[#allocation9 + $0x10] sm:$0xff]
      %v1221 = vld [vmem:[#allocation9 + $0x18] sm:$0xff]
      %v1222 = vld [vmem:[#allocation9 + $0x20] sm:$0xff]
      %v1223 = vld [vmem:[#allocation9 + $0x28] sm:$0xff]
      %v1224 = vld [vmem:[#allocation9 + $0x30] sm:$0xff]
      %v1225 = vld [vmem:[#allocation9 + $0x38] sm:$0xff]
      %v1226 = vld [vmem:[#allocation9 + $0x40] sm:$0xff]
      %v1227 = vld [vmem:[#allocation9 + $0x48] sm:$0xff]
      %v1228 = vld [vmem:[#allocation9 + $0x50] sm:$0xff]
      %v1229 = vld [vmem:[#allocation9 + $0x58] sm:$0xff]
      %v1230 = vld [vmem:[#allocation9 + $0x60] sm:$0xff]
      %v1231 = vld [vmem:[#allocation9 + $0x68] sm:$0xff]
      %v1232 = vld [vmem:[#allocation9 + $0x70] sm:$0xff]
      %v1233 = vld [vmem:[#allocation9 + $0x78] sm:$0xff]
      %v1234 = vld [vmem:[#allocation9 + $0x80] sm:$0xff]
      %v1235 = vld [vmem:[#allocation9 + $0x88] sm:$0xff]
      %v1236 = vld [vmem:[#allocation9 + $0x90] sm:$0xff]
      %v1237 = vld [vmem:[#allocation9 + $0x98] sm:$0xff]
      %v1238 = vld [vmem:[#allocation9 + $0xa0] sm:$0xff]
      %v1239 = vld [vmem:[#allocation9 + $0xa8] sm:$0xff]
      %v1240 = vld [vmem:[#allocation9 + $0xb0] sm:$0xff]
      %v1241 = vld [vmem:[#allocation9 + $0xb8] sm:$0xff]
      %v1242 = vld [vmem:[#allocation9 + $0xc0] sm:$0xff]
      %v1243 = vld [vmem:[#allocation9 + $0xc8] sm:$0xff]
      %v1244 = vld [vmem:[#allocation9 + $0xd0] sm:$0xff]
      %v1245 = vld [vmem:[#allocation9 + $0xd8] sm:$0xff]
      %v1246 = vld [vmem:[#allocation9 + $0xe0] sm:$0xff]
      %v1247 = vld [vmem:[#allocation9 + $0xe8] sm:$0xff]
      %v1248 = vld [vmem:[#allocation9 + $0xf0] sm:$0xff]
      %v1249 = vld [vmem:[#allocation9 + $0xf8] sm:$0xff]
      %v1250 = vld [vmem:[#allocation9 + $0x100] sm:$0xff]
      %v1251 = vld [vmem:[#allocation9 + $0x108] sm:$0xff]
      %v1252 = vld [vmem:[#allocation9 + $0x110] sm:$0xff]
      %v1253 = vld [vmem:[#allocation9 + $0x118] sm:$0xff]
      %v1254 = vld [vmem:[#allocation9 + $0x120] sm:$0xff]
      %v1255 = vld [vmem:[#allocation9 + $0x128] sm:$0xff]
      %v1256 = vld [vmem:[#allocation9 + $0x130] sm:$0xff]
      %v1257 = vld [vmem:[#allocation9 + $0x138] sm:$0xff]
      %v1258 = vld [vmem:[#allocation9 + $0x140] sm:$0xff]
      %v1259 = vld [vmem:[#allocation9 + $0x148] sm:$0xff]
      %v1260 = vld [vmem:[#allocation9 + $0x150] sm:$0xff]
      %v1261 = vld [vmem:[#allocation9 + $0x158] sm:$0xff]
      %v1262 = vld [vmem:[#allocation9 + $0x160] sm:$0xff]
      %v1263 = vld [vmem:[#allocation9 + $0x168] sm:$0xff]
      %v1264 = vld [vmem:[#allocation9 + $0x170] sm:$0xff]
      %v1265 = vld [vmem:[#allocation9 + $0x178] sm:$0xff]
      %v1266 = vld [vmem:[#allocation9 + $0x180] sm:$0xff]
      %v1267 = vld [vmem:[#allocation9 + $0x188] sm:$0xff]
      %v1268 = vld [vmem:[#allocation9 + $0x190] sm:$0xff]
      %v1269 = vld [vmem:[#allocation9 + $0x198] sm:$0xff]
      %v1270 = vld [vmem:[#allocation9 + $0x1a0] sm:$0xff]
      %v1271 = vld [vmem:[#allocation9 + $0x1a8] sm:$0xff]
      %v1272 = vld [vmem:[#allocation9 + $0x1b0] sm:$0xff]
      %v1273 = vld [vmem:[#allocation9 + $0x1b8] sm:$0xff]
      %v1274 = vld [vmem:[#allocation9 + $0x1c0] sm:$0xff]
      %v1275 = vld [vmem:[#allocation9 + $0x1c8] sm:$0xff]
      %v1276 = vld [vmem:[#allocation9 + $0x1d0] sm:$0xff]
      %v1277 = vld [vmem:[#allocation9 + $0x1d8] sm:$0xff]
      %v1278 = vld [vmem:[#allocation9 + $0x1e0] sm:$0xff]
      %v1279 = vld [vmem:[#allocation9 + $0x1e8] sm:$0xff]
      %v1280 = vld [vmem:[#allocation9 + $0x1f0] sm:$0xff]
      %v1281 = vld [vmem:[#allocation9 + $0x1f8] sm:$0xff]
      %v1282 = vld [vmem:[#allocation9 + $0x200] sm:$0xff]
      %v1283 = vld [vmem:[#allocation9 + $0x208] sm:$0xff]
      %v1284 = vld [vmem:[#allocation9 + $0x210] sm:$0xff]
      %v1285 = vld [vmem:[#allocation9 + $0x218] sm:$0xff]
      %v1286 = vld [vmem:[#allocation9 + $0x220] sm:$0xff]
      %v1287 = vld [vmem:[#allocation9 + $0x228] sm:$0xff]
      %v1288 = vld [vmem:[#allocation9 + $0x230] sm:$0xff]
      %v1289 = vld [vmem:[#allocation9 + $0x238] sm:$0xff]
      %v1290 = vld [vmem:[#allocation9 + $0x240] sm:$0xff]
      %v1291 = vld [vmem:[#allocation9 + $0x248] sm:$0xff]
      %v1292 = vld [vmem:[#allocation9 + $0x250] sm:$0xff]
      %v1293 = vld [vmem:[#allocation9 + $0x258] sm:$0xff]
      %v1294 = vld [vmem:[#allocation9 + $0x260] sm:$0xff]
      %v1295 = vld [vmem:[#allocation9 + $0x268] sm:$0xff]
      %v1296 = vld [vmem:[#allocation9 + $0x270] sm:$0xff]
      %v1297 = vld [vmem:[#allocation9 + $0x278] sm:$0xff]
      %v1298 = vld [vmem:[#allocation9 + $0x280] sm:$0xff]
      %v1299 = vld [vmem:[#allocation9 + $0x288] sm:$0xff]
      %v1300 = vld [vmem:[#allocation9 + $0x290] sm:$0xff]
      %v1301 = vld [vmem:[#allocation9 + $0x298] sm:$0xff]
      %v1302 = vld [vmem:[#allocation9 + $0x2a0] sm:$0xff]
      %v1303 = vld [vmem:[#allocation9 + $0x2a8] sm:$0xff]
      %v1304 = vld [vmem:[#allocation9 + $0x2b0] sm:$0xff]
      %v1305 = vld [vmem:[#allocation9 + $0x2b8] sm:$0xff]
      %v1306 = vld [vmem:[#allocation9 + $0x2c0] sm:$0xff]
      %v1307 = vld [vmem:[#allocation9 + $0x2c8] sm:$0xff]
      %v1308 = vld [vmem:[#allocation9 + $0x2d0] sm:$0xff]
      %v1309 = vld [vmem:[#allocation9 + $0x2d8] sm:$0xff]
      %v1310 = vld [vmem:[#allocation9 + $0x2e0] sm:$0xff]
      %v1311 = vld [vmem:[#allocation9 + $0x2e8] sm:$0xff]
      %v1312 = vld [vmem:[#allocation9 + $0x2f0] sm:$0xff]
      %v1313 = vld [vmem:[#allocation9 + $0x2f8] sm:$0xff]
      %v1314 = vld [vmem:[#allocation9 + $0x300] sm:$0xff]
      %v1315 = vld [vmem:[#allocation9 + $0x308] sm:$0xff]
      %v1316 = vld [vmem:[#allocation9 + $0x310] sm:$0xff]
      %v1317 = vld [vmem:[#allocation9 + $0x318] sm:$0xff]
      %v1318 = vld [vmem:[#allocation9 + $0x320] sm:$0xff]
      %v1319 = vld [vmem:[#allocation9 + $0x328] sm:$0xff]
      %v1320 = vld [vmem:[#allocation9 + $0x330] sm:$0xff]
      %v1321 = vld [vmem:[#allocation9 + $0x338] sm:$0xff]
      %v1322 = vld [vmem:[#allocation9 + $0x340] sm:$0xff]
      %v1323 = vld [vmem:[#allocation9 + $0x348] sm:$0xff]
      %v1324 = vld [vmem:[#allocation9 + $0x350] sm:$0xff]
      %v1325 = vld [vmem:[#allocation9 + $0x358] sm:$0xff]
      %v1326 = vld [vmem:[#allocation9 + $0x360] sm:$0xff]
      %v1327 = vld [vmem:[#allocation9 + $0x368] sm:$0xff]
      %v1328 = vld [vmem:[#allocation9 + $0x370] sm:$0xff]
      %v1329 = vld [vmem:[#allocation9 + $0x378] sm:$0xff]
      %v1330 = vld [vmem:[#allocation9 + $0x380] sm:$0xff]
      %v1331 = vld [vmem:[#allocation9 + $0x388] sm:$0xff]
      %v1332 = vld [vmem:[#allocation9 + $0x390] sm:$0xff]
      %v1333 = vld [vmem:[#allocation9 + $0x398] sm:$0xff]
      %v1334 = vld [vmem:[#allocation9 + $0x3a0] sm:$0xff]
      %v1335 = vld [vmem:[#allocation9 + $0x3a8] sm:$0xff]
      %v1336 = vld [vmem:[#allocation9 + $0x3b0] sm:$0xff]
      %v1337 = vld [vmem:[#allocation9 + $0x3b8] sm:$0xff]
      %v1338 = vld [vmem:[#allocation9 + $0x3c0] sm:$0xff]
      %v1339 = vld [vmem:[#allocation9 + $0x3c8] sm:$0xff]
      %v1340 = vld [vmem:[#allocation9 + $0x3d0] sm:$0xff]
      %v1341 = vld [vmem:[#allocation9 + $0x3d8] sm:$0xff]
      %v1342 = vld [vmem:[#allocation9 + $0x3e0] sm:$0xff]
      %v1343 = vld [vmem:[#allocation9 + $0x3e8] sm:$0xff]
      %v1344 = vld [vmem:[#allocation9 + $0x3f0] sm:$0xff]
      %v1345 = vld [vmem:[#allocation9 + $0x3f8] sm:$0xff]
      %v1346 = vld [vmem:[#allocation11] sm:$0x3]
      %v1347 = vpack.c.bf16 %v1098, %v1090
      %v1348 = vpack.c.bf16 %v1099, %v1091
      %v1349 = vpack.c.bf16 %v1100, %v1092
      %v1350 = vpack.c.bf16 %v1101, %v1093
      %v1351 = vpack.c.bf16 %v1102, %v1094
      %v1352 = vpack.c.bf16 %v1103, %v1095
      %v1353 = vpack.c.bf16 %v1104, %v1096
      %v1354 = vpack.c.bf16 %v1105, %v1097
      %v1355 = vpack.c.bf16 %v1114, %v1106
      %v1356 = vpack.c.bf16 %v1115, %v1107
      %v1357 = vpack.c.bf16 %v1116, %v1108
      %v1358 = vpack.c.bf16 %v1117, %v1109
      %v1359 = vpack.c.bf16 %v1118, %v1110
      %v1360 = vpack.c.bf16 %v1119, %v1111
      %v1361 = vpack.c.bf16 %v1120, %v1112
      %v1362 = vpack.c.bf16 %v1121, %v1113
      %v1363 = vpack.c.bf16 %v1130, %v1122
      %v1364 = vpack.c.bf16 %v1131, %v1123
      %v1365 = vpack.c.bf16 %v1132, %v1124
      %v1366 = vpack.c.bf16 %v1133, %v1125
      %v1367 = vpack.c.bf16 %v1134, %v1126
      %v1368 = vpack.c.bf16 %v1135, %v1127
      %v1369 = vpack.c.bf16 %v1136, %v1128
      %v1370 = vpack.c.bf16 %v1137, %v1129
      %v1371 = vpack.c.bf16 %v1146, %v1138
      %v1372 = vpack.c.bf16 %v1147, %v1139
      %v1373 = vpack.c.bf16 %v1148, %v1140
      %v1374 = vpack.c.bf16 %v1149, %v1141
      %v1375 = vpack.c.bf16 %v1150, %v1142
      %v1376 = vpack.c.bf16 %v1151, %v1143
      %v1377 = vpack.c.bf16 %v1152, %v1144
      %v1378 = vpack.c.bf16 %v1153, %v1145
      %v1379 = vpack.c.bf16 %v1162, %v1154
      %v1380 = vpack.c.bf16 %v1163, %v1155
      %v1381 = vpack.c.bf16 %v1164, %v1156
      %v1382 = vpack.c.bf16 %v1165, %v1157
      %v1383 = vpack.c.bf16 %v1166, %v1158
      %v1384 = vpack.c.bf16 %v1167, %v1159
      %v1385 = vpack.c.bf16 %v1168, %v1160
      %v1386 = vpack.c.bf16 %v1169, %v1161
      %v1387 = vpack.c.bf16 %v1178, %v1170
      %v1388 = vpack.c.bf16 %v1179, %v1171
      %v1389 = vpack.c.bf16 %v1180, %v1172
      %v1390 = vpack.c.bf16 %v1181, %v1173
      %v1391 = vpack.c.bf16 %v1182, %v1174
      %v1392 = vpack.c.bf16 %v1183, %v1175
      %v1393 = vpack.c.bf16 %v1184, %v1176
      %v1394 = vpack.c.bf16 %v1185, %v1177
      %v1395 = vpack.c.bf16 %v1194, %v1186
      %v1396 = vpack.c.bf16 %v1195, %v1187
      %v1397 = vpack.c.bf16 %v1196, %v1188
      %v1398 = vpack.c.bf16 %v1197, %v1189
      %v1399 = vpack.c.bf16 %v1198, %v1190
      %v1400 = vpack.c.bf16 %v1199, %v1191
      %v1401 = vpack.c.bf16 %v1200, %v1192
      %v1402 = vpack.c.bf16 %v1201, %v1193
      %v1403 = vpack.c.bf16 %v1210, %v1202
      %v1404 = vpack.c.bf16 %v1211, %v1203
      %v1405 = vpack.c.bf16 %v1212, %v1204
      %v1406 = vpack.c.bf16 %v1213, %v1205
      %v1407 = vpack.c.bf16 %v1214, %v1206
      %v1408 = vpack.c.bf16 %v1215, %v1207
      %v1409 = vpack.c.bf16 %v1216, %v1208
      %v1410 = vpack.c.bf16 %v1217, %v1209
      %v1412 = vlaneseq
      %v1413 = vshrl.u32 %v1412, 7
      %v1414 = vsub.s32 0, %v1413
      %v1415 = vrot.slane %v1346, %v1414
      %v1416 = vlaneseq
      %v1417 = vshrl.u32 %v1416, 7
      %v1418 = vsub.s32 1, %v1417
      %v1419 = vrot.slane %v1346, %v1418
      %v1550 = vunpack.c.l.b16 %v1218
      %v1551 = vunpack.c.h.b16 %v1218
      %v1552 = vunpack.c.l.b16 %v1219
      %v1553 = vunpack.c.h.b16 %v1219
      %v1554 = vunpack.c.l.b16 %v1220
      %v1555 = vunpack.c.h.b16 %v1220
      %v1556 = vunpack.c.l.b16 %v1221
      %v1557 = vunpack.c.h.b16 %v1221
      %v1558 = vunpack.c.l.b16 %v1222
      %v1559 = vunpack.c.h.b16 %v1222
      %v1560 = vunpack.c.l.b16 %v1223
      %v1561 = vunpack.c.h.b16 %v1223
      %v1562 = vunpack.c.l.b16 %v1224
      %v1563 = vunpack.c.h.b16 %v1224
      %v1564 = vunpack.c.l.b16 %v1225
      %v1565 = vunpack.c.h.b16 %v1225
      %v1566 = vunpack.c.l.b16 %v1226
      %v1567 = vunpack.c.h.b16 %v1226
      %v1568 = vunpack.c.l.b16 %v1227
      %v1569 = vunpack.c.h.b16 %v1227
      %v1570 = vunpack.c.l.b16 %v1228
      %v1571 = vunpack.c.h.b16 %v1228
      %v1572 = vunpack.c.l.b16 %v1229
      %v1573 = vunpack.c.h.b16 %v1229
      %v1574 = vunpack.c.l.b16 %v1230
      %v1575 = vunpack.c.h.b16 %v1230
      %v1576 = vunpack.c.l.b16 %v1231
      %v1577 = vunpack.c.h.b16 %v1231
      %v1578 = vunpack.c.l.b16 %v1232
      %v1579 = vunpack.c.h.b16 %v1232
      %v1580 = vunpack.c.l.b16 %v1233
      %v1581 = vunpack.c.h.b16 %v1233
      %v1582 = vunpack.c.l.b16 %v1234
      %v1583 = vunpack.c.h.b16 %v1234
      %v1584 = vunpack.c.l.b16 %v1235
      %v1585 = vunpack.c.h.b16 %v1235
      %v1586 = vunpack.c.l.b16 %v1236
      %v1587 = vunpack.c.h.b16 %v1236
      %v1588 = vunpack.c.l.b16 %v1237
      %v1589 = vunpack.c.h.b16 %v1237
      %v1590 = vunpack.c.l.b16 %v1238
      %v1591 = vunpack.c.h.b16 %v1238
      %v1592 = vunpack.c.l.b16 %v1239
      %v1593 = vunpack.c.h.b16 %v1239
      %v1594 = vunpack.c.l.b16 %v1240
      %v1595 = vunpack.c.h.b16 %v1240
      %v1596 = vunpack.c.l.b16 %v1241
      %v1597 = vunpack.c.h.b16 %v1241
      %v1598 = vunpack.c.l.b16 %v1242
      %v1599 = vunpack.c.h.b16 %v1242
      %v1600 = vunpack.c.l.b16 %v1243
      %v1601 = vunpack.c.h.b16 %v1243
      %v1602 = vunpack.c.l.b16 %v1244
      %v1603 = vunpack.c.h.b16 %v1244
      %v1604 = vunpack.c.l.b16 %v1245
      %v1605 = vunpack.c.h.b16 %v1245
      %v1606 = vunpack.c.l.b16 %v1246
      %v1607 = vunpack.c.h.b16 %v1246
      %v1608 = vunpack.c.l.b16 %v1247
      %v1609 = vunpack.c.h.b16 %v1247
      %v1610 = vunpack.c.l.b16 %v1248
      %v1611 = vunpack.c.h.b16 %v1248
      %v1612 = vunpack.c.l.b16 %v1249
      %v1613 = vunpack.c.h.b16 %v1249
      %v1614 = vunpack.c.l.b16 %v1250
      %v1615 = vunpack.c.h.b16 %v1250
      %v1616 = vunpack.c.l.b16 %v1251
      %v1617 = vunpack.c.h.b16 %v1251
      %v1618 = vunpack.c.l.b16 %v1252
      %v1619 = vunpack.c.h.b16 %v1252
      %v1620 = vunpack.c.l.b16 %v1253
      %v1621 = vunpack.c.h.b16 %v1253
      %v1622 = vunpack.c.l.b16 %v1254
      %v1623 = vunpack.c.h.b16 %v1254
      %v1624 = vunpack.c.l.b16 %v1255
      %v1625 = vunpack.c.h.b16 %v1255
      %v1626 = vunpack.c.l.b16 %v1256
      %v1627 = vunpack.c.h.b16 %v1256
      %v1628 = vunpack.c.l.b16 %v1257
      %v1629 = vunpack.c.h.b16 %v1257
      %v1630 = vunpack.c.l.b16 %v1258
      %v1631 = vunpack.c.h.b16 %v1258
      %v1632 = vunpack.c.l.b16 %v1259
      %v1633 = vunpack.c.h.b16 %v1259
      %v1634 = vunpack.c.l.b16 %v1260
      %v1635 = vunpack.c.h.b16 %v1260
      %v1636 = vunpack.c.l.b16 %v1261
      %v1637 = vunpack.c.h.b16 %v1261
      %v1638 = vunpack.c.l.b16 %v1262
      %v1639 = vunpack.c.h.b16 %v1262
      %v1640 = vunpack.c.l.b16 %v1263
      %v1641 = vunpack.c.h.b16 %v1263
      %v1642 = vunpack.c.l.b16 %v1264
      %v1643 = vunpack.c.h.b16 %v1264
      %v1644 = vunpack.c.l.b16 %v1265
      %v1645 = vunpack.c.h.b16 %v1265
      %v1646 = vunpack.c.l.b16 %v1266
      %v1647 = vunpack.c.h.b16 %v1266
      %v1648 = vunpack.c.l.b16 %v1267
      %v1649 = vunpack.c.h.b16 %v1267
      %v1650 = vunpack.c.l.b16 %v1268
      %v1651 = vunpack.c.h.b16 %v1268
      %v1652 = vunpack.c.l.b16 %v1269
      %v1653 = vunpack.c.h.b16 %v1269
      %v1654 = vunpack.c.l.b16 %v1270
      %v1655 = vunpack.c.h.b16 %v1270
      %v1656 = vunpack.c.l.b16 %v1271
      %v1657 = vunpack.c.h.b16 %v1271
      %v1658 = vunpack.c.l.b16 %v1272
      %v1659 = vunpack.c.h.b16 %v1272
      %v1660 = vunpack.c.l.b16 %v1273
      %v1661 = vunpack.c.h.b16 %v1273
      %v1662 = vunpack.c.l.b16 %v1274
      %v1663 = vunpack.c.h.b16 %v1274
      %v1664 = vunpack.c.l.b16 %v1275
      %v1665 = vunpack.c.h.b16 %v1275
      %v1666 = vunpack.c.l.b16 %v1276
      %v1667 = vunpack.c.h.b16 %v1276
      %v1668 = vunpack.c.l.b16 %v1277
      %v1669 = vunpack.c.h.b16 %v1277
      %v1670 = vunpack.c.l.b16 %v1278
      %v1671 = vunpack.c.h.b16 %v1278
      %v1672 = vunpack.c.l.b16 %v1279
      %v1673 = vunpack.c.h.b16 %v1279
      %v1674 = vunpack.c.l.b16 %v1280
      %v1675 = vunpack.c.h.b16 %v1280
      %v1676 = vunpack.c.l.b16 %v1281
      %v1677 = vunpack.c.h.b16 %v1281
      %v1678 = vunpack.c.l.b16 %v1282
      %v1679 = vunpack.c.h.b16 %v1282
      %v1680 = vunpack.c.l.b16 %v1283
      %v1681 = vunpack.c.h.b16 %v1283
      %v1682 = vunpack.c.l.b16 %v1284
      %v1683 = vunpack.c.h.b16 %v1284
      %v1684 = vunpack.c.l.b16 %v1285
      %v1685 = vunpack.c.h.b16 %v1285
      %v1686 = vunpack.c.l.b16 %v1286
      %v1687 = vunpack.c.h.b16 %v1286
      %v1688 = vunpack.c.l.b16 %v1287
      %v1689 = vunpack.c.h.b16 %v1287
      %v1690 = vunpack.c.l.b16 %v1288
      %v1691 = vunpack.c.h.b16 %v1288
      %v1692 = vunpack.c.l.b16 %v1289
      %v1693 = vunpack.c.h.b16 %v1289
      %v1694 = vunpack.c.l.b16 %v1290
      %v1695 = vunpack.c.h.b16 %v1290
      %v1696 = vunpack.c.l.b16 %v1291
      %v1697 = vunpack.c.h.b16 %v1291
      %v1698 = vunpack.c.l.b16 %v1292
      %v1699 = vunpack.c.h.b16 %v1292
      %v1700 = vunpack.c.l.b16 %v1293
      %v1701 = vunpack.c.h.b16 %v1293
      %v1702 = vunpack.c.l.b16 %v1294
      %v1703 = vunpack.c.h.b16 %v1294
      %v1704 = vunpack.c.l.b16 %v1295
      %v1705 = vunpack.c.h.b16 %v1295
      %v1706 = vunpack.c.l.b16 %v1296
      %v1707 = vunpack.c.h.b16 %v1296
      %v1708 = vunpack.c.l.b16 %v1297
      %v1709 = vunpack.c.h.b16 %v1297
      %v1710 = vunpack.c.l.b16 %v1298
      %v1711 = vunpack.c.h.b16 %v1298
      %v1712 = vunpack.c.l.b16 %v1299
      %v1713 = vunpack.c.h.b16 %v1299
      %v1714 = vunpack.c.l.b16 %v1300
      %v1715 = vunpack.c.h.b16 %v1300
      %v1716 = vunpack.c.l.b16 %v1301
      %v1717 = vunpack.c.h.b16 %v1301
      %v1718 = vunpack.c.l.b16 %v1302
      %v1719 = vunpack.c.h.b16 %v1302
      %v1720 = vunpack.c.l.b16 %v1303
      %v1721 = vunpack.c.h.b16 %v1303
      %v1722 = vunpack.c.l.b16 %v1304
      %v1723 = vunpack.c.h.b16 %v1304
      %v1724 = vunpack.c.l.b16 %v1305
      %v1725 = vunpack.c.h.b16 %v1305
      %v1726 = vunpack.c.l.b16 %v1306
      %v1727 = vunpack.c.h.b16 %v1306
      %v1728 = vunpack.c.l.b16 %v1307
      %v1729 = vunpack.c.h.b16 %v1307
      %v1730 = vunpack.c.l.b16 %v1308
      %v1731 = vunpack.c.h.b16 %v1308
      %v1732 = vunpack.c.l.b16 %v1309
      %v1733 = vunpack.c.h.b16 %v1309
      %v1734 = vunpack.c.l.b16 %v1310
      %v1735 = vunpack.c.h.b16 %v1310
      %v1736 = vunpack.c.l.b16 %v1311
      %v1737 = vunpack.c.h.b16 %v1311
      %v1738 = vunpack.c.l.b16 %v1312
      %v1739 = vunpack.c.h.b16 %v1312
      %v1740 = vunpack.c.l.b16 %v1313
      %v1741 = vunpack.c.h.b16 %v1313
      %v1742 = vunpack.c.l.b16 %v1314
      %v1743 = vunpack.c.h.b16 %v1314
      %v1744 = vunpack.c.l.b16 %v1315
      %v1745 = vunpack.c.h.b16 %v1315
      %v1746 = vunpack.c.l.b16 %v1316
      %v1747 = vunpack.c.h.b16 %v1316
      %v1748 = vunpack.c.l.b16 %v1317
      %v1749 = vunpack.c.h.b16 %v1317
      %v1750 = vunpack.c.l.b16 %v1318
      %v1751 = vunpack.c.h.b16 %v1318
      %v1752 = vunpack.c.l.b16 %v1319
      %v1753 = vunpack.c.h.b16 %v1319
      %v1754 = vunpack.c.l.b16 %v1320
      %v1755 = vunpack.c.h.b16 %v1320
      %v1756 = vunpack.c.l.b16 %v1321
      %v1757 = vunpack.c.h.b16 %v1321
      %v1758 = vunpack.c.l.b16 %v1322
      %v1759 = vunpack.c.h.b16 %v1322
      %v1760 = vunpack.c.l.b16 %v1323
      %v1761 = vunpack.c.h.b16 %v1323
      %v1762 = vunpack.c.l.b16 %v1324
      %v1763 = vunpack.c.h.b16 %v1324
      %v1764 = vunpack.c.l.b16 %v1325
      %v1765 = vunpack.c.h.b16 %v1325
      %v1766 = vunpack.c.l.b16 %v1326
      %v1767 = vunpack.c.h.b16 %v1326
      %v1768 = vunpack.c.l.b16 %v1327
      %v1769 = vunpack.c.h.b16 %v1327
      %v1770 = vunpack.c.l.b16 %v1328
      %v1771 = vunpack.c.h.b16 %v1328
      %v1772 = vunpack.c.l.b16 %v1329
      %v1773 = vunpack.c.h.b16 %v1329
      %v1774 = vunpack.c.l.b16 %v1330
      %v1775 = vunpack.c.h.b16 %v1330
      %v1776 = vunpack.c.l.b16 %v1331
      %v1777 = vunpack.c.h.b16 %v1331
      %v1778 = vunpack.c.l.b16 %v1332
      %v1779 = vunpack.c.h.b16 %v1332
      %v1780 = vunpack.c.l.b16 %v1333
      %v1781 = vunpack.c.h.b16 %v1333
      %v1782 = vunpack.c.l.b16 %v1334
      %v1783 = vunpack.c.h.b16 %v1334
      %v1784 = vunpack.c.l.b16 %v1335
      %v1785 = vunpack.c.h.b16 %v1335
      %v1786 = vunpack.c.l.b16 %v1336
      %v1787 = vunpack.c.h.b16 %v1336
      %v1788 = vunpack.c.l.b16 %v1337
      %v1789 = vunpack.c.h.b16 %v1337
      %v1790 = vunpack.c.l.b16 %v1338
      %v1791 = vunpack.c.h.b16 %v1338
      %v1792 = vunpack.c.l.b16 %v1339
      %v1793 = vunpack.c.h.b16 %v1339
      %v1794 = vunpack.c.l.b16 %v1340
      %v1795 = vunpack.c.h.b16 %v1340
      %v1796 = vunpack.c.l.b16 %v1341
      %v1797 = vunpack.c.h.b16 %v1341
      %v1798 = vunpack.c.l.b16 %v1342
      %v1799 = vunpack.c.h.b16 %v1342
      %v1800 = vunpack.c.l.b16 %v1343
      %v1801 = vunpack.c.h.b16 %v1343
      %v1802 = vunpack.c.l.b16 %v1344
      %v1803 = vunpack.c.h.b16 %v1344
      %v1804 = vunpack.c.l.b16 %v1345
      %v1805 = vunpack.c.h.b16 %v1345
      %v1806 = vpack.c.b16 %v1552, %v1550
      %v1807 = vpack.c.b16 %v1553, %v1551
      %v1808 = vpack.c.b16 %v1556, %v1554
      %v1809 = vpack.c.b16 %v1557, %v1555
      %v1810 = vpack.c.b16 %v1560, %v1558
      %v1811 = vpack.c.b16 %v1561, %v1559
      %v1812 = vpack.c.b16 %v1564, %v1562
      %v1813 = vpack.c.b16 %v1565, %v1563
      %v1814 = vpack.c.b16 %v1568, %v1566
      %v1815 = vpack.c.b16 %v1569, %v1567
      %v1816 = vpack.c.b16 %v1572, %v1570
      %v1817 = vpack.c.b16 %v1573, %v1571
      %v1818 = vpack.c.b16 %v1576, %v1574
      %v1819 = vpack.c.b16 %v1577, %v1575
      %v1820 = vpack.c.b16 %v1580, %v1578
      %v1821 = vpack.c.b16 %v1581, %v1579
      %v1822 = vpack.c.b16 %v1584, %v1582
      %v1823 = vpack.c.b16 %v1585, %v1583
      %v1824 = vpack.c.b16 %v1588, %v1586
      %v1825 = vpack.c.b16 %v1589, %v1587
      %v1826 = vpack.c.b16 %v1592, %v1590
      %v1827 = vpack.c.b16 %v1593, %v1591
      %v1828 = vpack.c.b16 %v1596, %v1594
      %v1829 = vpack.c.b16 %v1597, %v1595
      %v1830 = vpack.c.b16 %v1600, %v1598
      %v1831 = vpack.c.b16 %v1601, %v1599
      %v1832 = vpack.c.b16 %v1604, %v1602
      %v1833 = vpack.c.b16 %v1605, %v1603
      %v1834 = vpack.c.b16 %v1608, %v1606
      %v1835 = vpack.c.b16 %v1609, %v1607
      %v1836 = vpack.c.b16 %v1612, %v1610
      %v1837 = vpack.c.b16 %v1613, %v1611
      %v1838 = vpack.c.b16 %v1616, %v1614
      %v1839 = vpack.c.b16 %v1617, %v1615
      %v1840 = vpack.c.b16 %v1620, %v1618
      %v1841 = vpack.c.b16 %v1621, %v1619
      %v1842 = vpack.c.b16 %v1624, %v1622
      %v1843 = vpack.c.b16 %v1625, %v1623
      %v1844 = vpack.c.b16 %v1628, %v1626
      %v1845 = vpack.c.b16 %v1629, %v1627
      %v1846 = vpack.c.b16 %v1632, %v1630
      %v1847 = vpack.c.b16 %v1633, %v1631
      %v1848 = vpack.c.b16 %v1636, %v1634
      %v1849 = vpack.c.b16 %v1637, %v1635
      %v1850 = vpack.c.b16 %v1640, %v1638
      %v1851 = vpack.c.b16 %v1641, %v1639
      %v1852 = vpack.c.b16 %v1644, %v1642
      %v1853 = vpack.c.b16 %v1645, %v1643
      %v1854 = vpack.c.b16 %v1648, %v1646
      %v1855 = vpack.c.b16 %v1649, %v1647
      %v1856 = vpack.c.b16 %v1652, %v1650
      %v1857 = vpack.c.b16 %v1653, %v1651
      %v1858 = vpack.c.b16 %v1656, %v1654
      %v1859 = vpack.c.b16 %v1657, %v1655
      %v1860 = vpack.c.b16 %v1660, %v1658
      %v1861 = vpack.c.b16 %v1661, %v1659
      %v1862 = vpack.c.b16 %v1664, %v1662
      %v1863 = vpack.c.b16 %v1665, %v1663
      %v1864 = vpack.c.b16 %v1668, %v1666
      %v1865 = vpack.c.b16 %v1669, %v1667
      %v1866 = vpack.c.b16 %v1672, %v1670
      %v1867 = vpack.c.b16 %v1673, %v1671
      %v1868 = vpack.c.b16 %v1676, %v1674
      %v1869 = vpack.c.b16 %v1677, %v1675
      %v1870 = vpack.c.b16 %v1680, %v1678
      %v1871 = vpack.c.b16 %v1681, %v1679
      %v1872 = vpack.c.b16 %v1684, %v1682
      %v1873 = vpack.c.b16 %v1685, %v1683
      %v1874 = vpack.c.b16 %v1688, %v1686
      %v1875 = vpack.c.b16 %v1689, %v1687
      %v1876 = vpack.c.b16 %v1692, %v1690
      %v1877 = vpack.c.b16 %v1693, %v1691
      %v1878 = vpack.c.b16 %v1696, %v1694
      %v1879 = vpack.c.b16 %v1697, %v1695
      %v1880 = vpack.c.b16 %v1700, %v1698
      %v1881 = vpack.c.b16 %v1701, %v1699
      %v1882 = vpack.c.b16 %v1704, %v1702
      %v1883 = vpack.c.b16 %v1705, %v1703
      %v1884 = vpack.c.b16 %v1708, %v1706
      %v1885 = vpack.c.b16 %v1709, %v1707
      %v1886 = vpack.c.b16 %v1712, %v1710
      %v1887 = vpack.c.b16 %v1713, %v1711
      %v1888 = vpack.c.b16 %v1716, %v1714
      %v1889 = vpack.c.b16 %v1717, %v1715
      %v1890 = vpack.c.b16 %v1720, %v1718
      %v1891 = vpack.c.b16 %v1721, %v1719
      %v1892 = vpack.c.b16 %v1724, %v1722
      %v1893 = vpack.c.b16 %v1725, %v1723
      %v1894 = vpack.c.b16 %v1728, %v1726
      %v1895 = vpack.c.b16 %v1729, %v1727
      %v1896 = vpack.c.b16 %v1732, %v1730
      %v1897 = vpack.c.b16 %v1733, %v1731
      %v1898 = vpack.c.b16 %v1736, %v1734
      %v1899 = vpack.c.b16 %v1737, %v1735
      %v1900 = vpack.c.b16 %v1740, %v1738
      %v1901 = vpack.c.b16 %v1741, %v1739
      %v1902 = vpack.c.b16 %v1744, %v1742
      %v1903 = vpack.c.b16 %v1745, %v1743
      %v1904 = vpack.c.b16 %v1748, %v1746
      %v1905 = vpack.c.b16 %v1749, %v1747
      %v1906 = vpack.c.b16 %v1752, %v1750
      %v1907 = vpack.c.b16 %v1753, %v1751
      %v1908 = vpack.c.b16 %v1756, %v1754
      %v1909 = vpack.c.b16 %v1757, %v1755
      %v1910 = vpack.c.b16 %v1760, %v1758
      %v1911 = vpack.c.b16 %v1761, %v1759
      %v1912 = vpack.c.b16 %v1764, %v1762
      %v1913 = vpack.c.b16 %v1765, %v1763
      %v1914 = vpack.c.b16 %v1768, %v1766
      %v1915 = vpack.c.b16 %v1769, %v1767
      %v1916 = vpack.c.b16 %v1772, %v1770
      %v1917 = vpack.c.b16 %v1773, %v1771
      %v1918 = vpack.c.b16 %v1776, %v1774
      %v1919 = vpack.c.b16 %v1777, %v1775
      %v1920 = vpack.c.b16 %v1780, %v1778
      %v1921 = vpack.c.b16 %v1781, %v1779
      %v1922 = vpack.c.b16 %v1784, %v1782
      %v1923 = vpack.c.b16 %v1785, %v1783
      %v1924 = vpack.c.b16 %v1788, %v1786
      %v1925 = vpack.c.b16 %v1789, %v1787
      %v1926 = vpack.c.b16 %v1792, %v1790
      %v1927 = vpack.c.b16 %v1793, %v1791
      %v1928 = vpack.c.b16 %v1796, %v1794
      %v1929 = vpack.c.b16 %v1797, %v1795
      %v1930 = vpack.c.b16 %v1800, %v1798
      %v1931 = vpack.c.b16 %v1801, %v1799
      %v1932 = vpack.c.b16 %v1804, %v1802
      %v1933 = vpack.c.b16 %v1805, %v1803
      %2062 = vmatprep.subr.bf16.mxu0 %v1821
      %2063 = vmatpush1.bf16.msra.mxu0 %v1820
      %2064 = vmatprep.subr.bf16.mxu0 %v1819
      %2065 = vmatpush1.bf16.msra.mxu0 %v1818
      %2066 = vmatprep.subr.bf16.mxu0 %v1817
      %2067 = vmatpush1.bf16.msra.mxu0 %v1816
      %2068 = vmatprep.subr.bf16.mxu0 %v1815
      %2069 = vmatpush1.bf16.msra.mxu0 %v1814
      %2070 = vmatprep.subr.bf16.mxu0 %v1813
      %2071 = vmatpush1.bf16.msra.mxu0 %v1812
      %2072 = vmatprep.subr.bf16.mxu0 %v1811
      %2073 = vmatpush1.bf16.msra.mxu0 %v1810
      %2074 = vmatprep.subr.bf16.mxu0 %v1809
      %2075 = vmatpush1.bf16.msra.mxu0 %v1808
      %2076 = vmatprep.subr.bf16.mxu0 %v1807
      %2077 = vmatpush1.bf16.msra.mxu0 %v1806
      %2078 = vmatprep.subr.bf16.mxu0 %v1837
      %2079 = vmatpush2.bf16.msra.mxu0 %v1836
      %2080 = vmatprep.subr.bf16.mxu0 %v1835
      %2081 = vmatpush2.bf16.msra.mxu0 %v1834
      %2082 = vmatprep.subr.bf16.mxu0 %v1833
      %2083 = vmatpush2.bf16.msra.mxu0 %v1832
      %2084 = vmatprep.subr.bf16.mxu0 %v1831
      %2085 = vmatpush2.bf16.msra.mxu0 %v1830
      %2086 = vmatprep.subr.bf16.mxu0 %v1829
      %2087 = vmatpush2.bf16.msra.mxu0 %v1828
      %2088 = vmatprep.subr.bf16.mxu0 %v1827
      %2089 = vmatpush2.bf16.msra.mxu0 %v1826
      %2090 = vmatprep.subr.bf16.mxu0 %v1825
      %2091 = vmatpush2.bf16.msra.mxu0 %v1824
      %2092 = vmatprep.subr.bf16.mxu0 %v1823
      %2093 = vmatpush2.bf16.msra.mxu0 %v1822
      %2094 = vmatprep.mubr.bf16.mxu0 %v1348
      %2095 = vmatmul.mubr.bf16.gmra.mxu0 %v1347
      %v2096 = vpop.f32.mrf.mxu0
      %v2097 = vadd.f32 %v1415, %v2096
      %v2098 = vpop.f32.mrf.mxu0
      %v2099 = vadd.f32 %v1419, %v2098
      %v2100 = vpop.f32.mrf.mxu0
      %v2101 = vadd.f32 %v1415, %v2100
      %v2102 = vpop.f32.mrf.mxu0
      %v2103 = vadd.f32 %v1419, %v2102
      %2104 = vmatprep.mubr.bf16.mxu0 %v1356
      %2105 = vmatmul.mubr.bf16.gmra.mxu0 %v1355
      %v2106 = vpop.f32.mrf.mxu0
      %v2107 = vadd.f32 %v1415, %v2106
      %v2108 = vpop.f32.mrf.mxu0
      %v2109 = vadd.f32 %v1419, %v2108
      %v2110 = vpop.f32.mrf.mxu0
      %v2111 = vadd.f32 %v1415, %v2110
      %v2112 = vpop.f32.mrf.mxu0
      %v2113 = vadd.f32 %v1419, %v2112
      %2114 = vmatprep.mubr.bf16.mxu0 %v1364
      %2115 = vmatmul.mubr.bf16.gmra.mxu0 %v1363
      %v2116 = vpop.f32.mrf.mxu0
      %v2117 = vadd.f32 %v1415, %v2116
      %v2118 = vpop.f32.mrf.mxu0
      %v2119 = vadd.f32 %v1419, %v2118
      %v2120 = vpop.f32.mrf.mxu0
      %v2121 = vadd.f32 %v1415, %v2120
      %v2122 = vpop.f32.mrf.mxu0
      %v2123 = vadd.f32 %v1419, %v2122
      %2124 = vmatprep.mubr.bf16.mxu0 %v1372
      %2125 = vmatmul.mubr.bf16.gmra.mxu0 %v1371
      %v2126 = vpop.f32.mrf.mxu0
      %v2127 = vadd.f32 %v1415, %v2126
      %v2128 = vpop.f32.mrf.mxu0
      %v2129 = vadd.f32 %v1419, %v2128
      %v2130 = vpop.f32.mrf.mxu0
      %v2131 = vadd.f32 %v1415, %v2130
      %v2132 = vpop.f32.mrf.mxu0
      %v2133 = vadd.f32 %v1419, %v2132
      %2134 = vmatprep.mubr.bf16.mxu0 %v1380
      %2135 = vmatmul.mubr.bf16.gmra.mxu0 %v1379
      %v2136 = vpop.f32.mrf.mxu0
      %v2137 = vadd.f32 %v1415, %v2136
      %v2138 = vpop.f32.mrf.mxu0
      %v2139 = vadd.f32 %v1419, %v2138
      %v2140 = vpop.f32.mrf.mxu0
      %v2141 = vadd.f32 %v1415, %v2140
      %v2142 = vpop.f32.mrf.mxu0
      %v2143 = vadd.f32 %v1419, %v2142
      %2144 = vmatprep.mubr.bf16.mxu0 %v1388
      %2145 = vmatmul.mubr.bf16.gmra.mxu0 %v1387
      %v2146 = vpop.f32.mrf.mxu0
      %v2147 = vadd.f32 %v1415, %v2146
      %v2148 = vpop.f32.mrf.mxu0
      %v2149 = vadd.f32 %v1419, %v2148
      %v2150 = vpop.f32.mrf.mxu0
      %v2151 = vadd.f32 %v1415, %v2150
      %v2152 = vpop.f32.mrf.mxu0
      %v2153 = vadd.f32 %v1419, %v2152
      %2154 = vmatprep.mubr.bf16.mxu0 %v1396
      %2155 = vmatmul.mubr.bf16.gmra.mxu0 %v1395
      %v2156 = vpop.f32.mrf.mxu0
      %v2157 = vadd.f32 %v1415, %v2156
      %v2158 = vpop.f32.mrf.mxu0
      %v2159 = vadd.f32 %v1419, %v2158
      %v2160 = vpop.f32.mrf.mxu0
      %v2161 = vadd.f32 %v1415, %v2160
      %v2162 = vpop.f32.mrf.mxu0
      %v2163 = vadd.f32 %v1419, %v2162
      %2164 = vmatprep.mubr.bf16.mxu0 %v1404
      %2165 = vmatmul.mubr.bf16.gmra.mxu0 %v1403
      %v2166 = vpop.f32.mrf.mxu0
      %v2167 = vadd.f32 %v1415, %v2166
      %v2168 = vpop.f32.mrf.mxu0
      %v2169 = vadd.f32 %v1419, %v2168
      %v2170 = vpop.f32.mrf.mxu0
      %v2171 = vadd.f32 %v1415, %v2170
      %v2172 = vpop.f32.mrf.mxu0
      %v2173 = vadd.f32 %v1419, %v2172
      %2174 = vdwg.mxu0
      %2175 = vmatprep.subr.bf16.mxu0 %v1853
      %2176 = vmatpush1.bf16.msra.mxu0 %v1852
      %2177 = vmatprep.subr.bf16.mxu0 %v1851
      %2178 = vmatpush1.bf16.msra.mxu0 %v1850
      %2179 = vmatprep.subr.bf16.mxu0 %v1849
      %2180 = vmatpush1.bf16.msra.mxu0 %v1848
      %2181 = vmatprep.subr.bf16.mxu0 %v1847
      %2182 = vmatpush1.bf16.msra.mxu0 %v1846
      %2183 = vmatprep.subr.bf16.mxu0 %v1845
      %2184 = vmatpush1.bf16.msra.mxu0 %v1844
      %2185 = vmatprep.subr.bf16.mxu0 %v1843
      %2186 = vmatpush1.bf16.msra.mxu0 %v1842
      %2187 = vmatprep.subr.bf16.mxu0 %v1841
      %2188 = vmatpush1.bf16.msra.mxu0 %v1840
      %2189 = vmatprep.subr.bf16.mxu0 %v1839
      %2190 = vmatpush1.bf16.msra.mxu0 %v1838
      %2191 = vmatprep.subr.bf16.mxu0 %v1869
      %2192 = vmatpush2.bf16.msra.mxu0 %v1868
      %2193 = vmatprep.subr.bf16.mxu0 %v1867
      %2194 = vmatpush2.bf16.msra.mxu0 %v1866
      %2195 = vmatprep.subr.bf16.mxu0 %v1865
      %2196 = vmatpush2.bf16.msra.mxu0 %v1864
      %2197 = vmatprep.subr.bf16.mxu0 %v1863
      %2198 = vmatpush2.bf16.msra.mxu0 %v1862
      %2199 = vmatprep.subr.bf16.mxu0 %v1861
      %2200 = vmatpush2.bf16.msra.mxu0 %v1860
      %2201 = vmatprep.subr.bf16.mxu0 %v1859
      %2202 = vmatpush2.bf16.msra.mxu0 %v1858
      %2203 = vmatprep.subr.bf16.mxu0 %v1857
      %2204 = vmatpush2.bf16.msra.mxu0 %v1856
      %2205 = vmatprep.subr.bf16.mxu0 %v1855
      %2206 = vmatpush2.bf16.msra.mxu0 %v1854
      %2207 = vmatprep.mubr.bf16.mxu0 %v1350
      %2208 = vmatmul.mubr.bf16.gmra.mxu0 %v1349
      %v2209 = vpop.f32.mrf.mxu0
      %v2210 = vadd.f32 %v2097, %v2209
      %v2211 = vpop.f32.mrf.mxu0
      %v2212 = vadd.f32 %v2099, %v2211
      %v2213 = vpop.f32.mrf.mxu0
      %v2214 = vadd.f32 %v2101, %v2213
      %v2215 = vpop.f32.mrf.mxu0
      %v2216 = vadd.f32 %v2103, %v2215
      %2217 = vmatprep.mubr.bf16.mxu0 %v1358
      %2218 = vmatmul.mubr.bf16.gmra.mxu0 %v1357
      %v2219 = vpop.f32.mrf.mxu0
      %v2220 = vadd.f32 %v2107, %v2219
      %v2221 = vpop.f32.mrf.mxu0
      %v2222 = vadd.f32 %v2109, %v2221
      %v2223 = vpop.f32.mrf.mxu0
      %v2224 = vadd.f32 %v2111, %v2223
      %v2225 = vpop.f32.mrf.mxu0
      %v2226 = vadd.f32 %v2113, %v2225
      %2227 = vmatprep.mubr.bf16.mxu0 %v1366
      %2228 = vmatmul.mubr.bf16.gmra.mxu0 %v1365
      %v2229 = vpop.f32.mrf.mxu0
      %v2230 = vadd.f32 %v2117, %v2229
      %v2231 = vpop.f32.mrf.mxu0
      %v2232 = vadd.f32 %v2119, %v2231
      %v2233 = vpop.f32.mrf.mxu0
      %v2234 = vadd.f32 %v2121, %v2233
      %v2235 = vpop.f32.mrf.mxu0
      %v2236 = vadd.f32 %v2123, %v2235
      %2237 = vmatprep.mubr.bf16.mxu0 %v1374
      %2238 = vmatmul.mubr.bf16.gmra.mxu0 %v1373
      %v2239 = vpop.f32.mrf.mxu0
      %v2240 = vadd.f32 %v2127, %v2239
      %v2241 = vpop.f32.mrf.mxu0
      %v2242 = vadd.f32 %v2129, %v2241
      %v2243 = vpop.f32.mrf.mxu0
      %v2244 = vadd.f32 %v2131, %v2243
      %v2245 = vpop.f32.mrf.mxu0
      %v2246 = vadd.f32 %v2133, %v2245
      %2247 = vmatprep.mubr.bf16.mxu0 %v1382
      %2248 = vmatmul.mubr.bf16.gmra.mxu0 %v1381
      %v2249 = vpop.f32.mrf.mxu0
      %v2250 = vadd.f32 %v2137, %v2249
      %v2251 = vpop.f32.mrf.mxu0
      %v2252 = vadd.f32 %v2139, %v2251
      %v2253 = vpop.f32.mrf.mxu0
      %v2254 = vadd.f32 %v2141, %v2253
      %v2255 = vpop.f32.mrf.mxu0
      %v2256 = vadd.f32 %v2143, %v2255
      %2257 = vmatprep.mubr.bf16.mxu0 %v1390
      %2258 = vmatmul.mubr.bf16.gmra.mxu0 %v1389
      %v2259 = vpop.f32.mrf.mxu0
      %v2260 = vadd.f32 %v2147, %v2259
      %v2261 = vpop.f32.mrf.mxu0
      %v2262 = vadd.f32 %v2149, %v2261
      %v2263 = vpop.f32.mrf.mxu0
      %v2264 = vadd.f32 %v2151, %v2263
      %v2265 = vpop.f32.mrf.mxu0
      %v2266 = vadd.f32 %v2153, %v2265
      %2267 = vmatprep.mubr.bf16.mxu0 %v1398
      %2268 = vmatmul.mubr.bf16.gmra.mxu0 %v1397
      %v2269 = vpop.f32.mrf.mxu0
      %v2270 = vadd.f32 %v2157, %v2269
      %v2271 = vpop.f32.mrf.mxu0
      %v2272 = vadd.f32 %v2159, %v2271
      %v2273 = vpop.f32.mrf.mxu0
      %v2274 = vadd.f32 %v2161, %v2273
      %v2275 = vpop.f32.mrf.mxu0
      %v2276 = vadd.f32 %v2163, %v2275
      %2277 = vmatprep.mubr.bf16.mxu0 %v1406
      %2278 = vmatmul.mubr.bf16.gmra.mxu0 %v1405
      %v2279 = vpop.f32.mrf.mxu0
      %v2280 = vadd.f32 %v2167, %v2279
      %v2281 = vpop.f32.mrf.mxu0
      %v2282 = vadd.f32 %v2169, %v2281
      %v2283 = vpop.f32.mrf.mxu0
      %v2284 = vadd.f32 %v2171, %v2283
      %v2285 = vpop.f32.mrf.mxu0
      %v2286 = vadd.f32 %v2173, %v2285
      %2287 = vdwg.mxu0
      %2288 = vmatprep.subr.bf16.mxu0 %v1885
      %2289 = vmatpush1.bf16.msra.mxu0 %v1884
      %2290 = vmatprep.subr.bf16.mxu0 %v1883
      %2291 = vmatpush1.bf16.msra.mxu0 %v1882
      %2292 = vmatprep.subr.bf16.mxu0 %v1881
      %2293 = vmatpush1.bf16.msra.mxu0 %v1880
      %2294 = vmatprep.subr.bf16.mxu0 %v1879
      %2295 = vmatpush1.bf16.msra.mxu0 %v1878
      %2296 = vmatprep.subr.bf16.mxu0 %v1877
      %2297 = vmatpush1.bf16.msra.mxu0 %v1876
      %2298 = vmatprep.subr.bf16.mxu0 %v1875
      %2299 = vmatpush1.bf16.msra.mxu0 %v1874
      %2300 = vmatprep.subr.bf16.mxu0 %v1873
      %2301 = vmatpush1.bf16.msra.mxu0 %v1872
      %2302 = vmatprep.subr.bf16.mxu0 %v1871
      %2303 = vmatpush1.bf16.msra.mxu0 %v1870
      %2304 = vmatprep.subr.bf16.mxu0 %v1901
      %2305 = vmatpush2.bf16.msra.mxu0 %v1900
      %2306 = vmatprep.subr.bf16.mxu0 %v1899
      %2307 = vmatpush2.bf16.msra.mxu0 %v1898
      %2308 = vmatprep.subr.bf16.mxu0 %v1897
      %2309 = vmatpush2.bf16.msra.mxu0 %v1896
      %2310 = vmatprep.subr.bf16.mxu0 %v1895
      %2311 = vmatpush2.bf16.msra.mxu0 %v1894
      %2312 = vmatprep.subr.bf16.mxu0 %v1893
      %2313 = vmatpush2.bf16.msra.mxu0 %v1892
      %2314 = vmatprep.subr.bf16.mxu0 %v1891
      %2315 = vmatpush2.bf16.msra.mxu0 %v1890
      %2316 = vmatprep.subr.bf16.mxu0 %v1889
      %2317 = vmatpush2.bf16.msra.mxu0 %v1888
      %2318 = vmatprep.subr.bf16.mxu0 %v1887
      %2319 = vmatpush2.bf16.msra.mxu0 %v1886
      %2320 = vmatprep.mubr.bf16.mxu0 %v1352
      %2321 = vmatmul.mubr.bf16.gmra.mxu0 %v1351
      %v2322 = vpop.f32.mrf.mxu0
      %v2323 = vadd.f32 %v2210, %v2322
      %v2324 = vpop.f32.mrf.mxu0
      %v2325 = vadd.f32 %v2212, %v2324
      %v2326 = vpop.f32.mrf.mxu0
      %v2327 = vadd.f32 %v2214, %v2326
      %v2328 = vpop.f32.mrf.mxu0
      %v2329 = vadd.f32 %v2216, %v2328
      %2330 = vmatprep.mubr.bf16.mxu0 %v1360
      %2331 = vmatmul.mubr.bf16.gmra.mxu0 %v1359
      %v2332 = vpop.f32.mrf.mxu0
      %v2333 = vadd.f32 %v2220, %v2332
      %v2334 = vpop.f32.mrf.mxu0
      %v2335 = vadd.f32 %v2222, %v2334
      %v2336 = vpop.f32.mrf.mxu0
      %v2337 = vadd.f32 %v2224, %v2336
      %v2338 = vpop.f32.mrf.mxu0
      %v2339 = vadd.f32 %v2226, %v2338
      %2340 = vmatprep.mubr.bf16.mxu0 %v1368
      %2341 = vmatmul.mubr.bf16.gmra.mxu0 %v1367
      %v2342 = vpop.f32.mrf.mxu0
      %v2343 = vadd.f32 %v2230, %v2342
      %v2344 = vpop.f32.mrf.mxu0
      %v2345 = vadd.f32 %v2232, %v2344
      %v2346 = vpop.f32.mrf.mxu0
      %v2347 = vadd.f32 %v2234, %v2346
      %v2348 = vpop.f32.mrf.mxu0
      %v2349 = vadd.f32 %v2236, %v2348
      %2350 = vmatprep.mubr.bf16.mxu0 %v1376
      %2351 = vmatmul.mubr.bf16.gmra.mxu0 %v1375
      %v2352 = vpop.f32.mrf.mxu0
      %v2353 = vadd.f32 %v2240, %v2352
      %v2354 = vpop.f32.mrf.mxu0
      %v2355 = vadd.f32 %v2242, %v2354
      %v2356 = vpop.f32.mrf.mxu0
      %v2357 = vadd.f32 %v2244, %v2356
      %v2358 = vpop.f32.mrf.mxu0
      %v2359 = vadd.f32 %v2246, %v2358
      %2360 = vmatprep.mubr.bf16.mxu0 %v1384
      %2361 = vmatmul.mubr.bf16.gmra.mxu0 %v1383
      %v2362 = vpop.f32.mrf.mxu0
      %v2363 = vadd.f32 %v2250, %v2362
      %v2364 = vpop.f32.mrf.mxu0
      %v2365 = vadd.f32 %v2252, %v2364
      %v2366 = vpop.f32.mrf.mxu0
      %v2367 = vadd.f32 %v2254, %v2366
      %v2368 = vpop.f32.mrf.mxu0
      %v2369 = vadd.f32 %v2256, %v2368
      %2370 = vmatprep.mubr.bf16.mxu0 %v1392
      %2371 = vmatmul.mubr.bf16.gmra.mxu0 %v1391
      %v2372 = vpop.f32.mrf.mxu0
      %v2373 = vadd.f32 %v2260, %v2372
      %v2374 = vpop.f32.mrf.mxu0
      %v2375 = vadd.f32 %v2262, %v2374
      %v2376 = vpop.f32.mrf.mxu0
      %v2377 = vadd.f32 %v2264, %v2376
      %v2378 = vpop.f32.mrf.mxu0
      %v2379 = vadd.f32 %v2266, %v2378
      %2380 = vmatprep.mubr.bf16.mxu0 %v1400
      %2381 = vmatmul.mubr.bf16.gmra.mxu0 %v1399
      %v2382 = vpop.f32.mrf.mxu0
      %v2383 = vadd.f32 %v2270, %v2382
      %v2384 = vpop.f32.mrf.mxu0
      %v2385 = vadd.f32 %v2272, %v2384
      %v2386 = vpop.f32.mrf.mxu0
      %v2387 = vadd.f32 %v2274, %v2386
      %v2388 = vpop.f32.mrf.mxu0
      %v2389 = vadd.f32 %v2276, %v2388
      %2390 = vmatprep.mubr.bf16.mxu0 %v1408
      %2391 = vmatmul.mubr.bf16.gmra.mxu0 %v1407
      %v2392 = vpop.f32.mrf.mxu0
      %v2393 = vadd.f32 %v2280, %v2392
      %v2394 = vpop.f32.mrf.mxu0
      %v2395 = vadd.f32 %v2282, %v2394
      %v2396 = vpop.f32.mrf.mxu0
      %v2397 = vadd.f32 %v2284, %v2396
      %v2398 = vpop.f32.mrf.mxu0
      %v2399 = vadd.f32 %v2286, %v2398
      %2400 = vdwg.mxu0
      %2401 = vmatprep.subr.bf16.mxu0 %v1917
      %2402 = vmatpush1.bf16.msra.mxu0 %v1916
      %2403 = vmatprep.subr.bf16.mxu0 %v1915
      %2404 = vmatpush1.bf16.msra.mxu0 %v1914
      %2405 = vmatprep.subr.bf16.mxu0 %v1913
      %2406 = vmatpush1.bf16.msra.mxu0 %v1912
      %2407 = vmatprep.subr.bf16.mxu0 %v1911
      %2408 = vmatpush1.bf16.msra.mxu0 %v1910
      %2409 = vmatprep.subr.bf16.mxu0 %v1909
      %2410 = vmatpush1.bf16.msra.mxu0 %v1908
      %2411 = vmatprep.subr.bf16.mxu0 %v1907
      %2412 = vmatpush1.bf16.msra.mxu0 %v1906
      %2413 = vmatprep.subr.bf16.mxu0 %v1905
      %2414 = vmatpush1.bf16.msra.mxu0 %v1904
      %2415 = vmatprep.subr.bf16.mxu0 %v1903
      %2416 = vmatpush1.bf16.msra.mxu0 %v1902
      %2417 = vmatprep.subr.bf16.mxu0 %v1933
      %2418 = vmatpush2.bf16.msra.mxu0 %v1932
      %2419 = vmatprep.subr.bf16.mxu0 %v1931
      %2420 = vmatpush2.bf16.msra.mxu0 %v1930
      %2421 = vmatprep.subr.bf16.mxu0 %v1929
      %2422 = vmatpush2.bf16.msra.mxu0 %v1928
      %2423 = vmatprep.subr.bf16.mxu0 %v1927
      %2424 = vmatpush2.bf16.msra.mxu0 %v1926
      %2425 = vmatprep.subr.bf16.mxu0 %v1925
      %2426 = vmatpush2.bf16.msra.mxu0 %v1924
      %2427 = vmatprep.subr.bf16.mxu0 %v1923
      %2428 = vmatpush2.bf16.msra.mxu0 %v1922
      %2429 = vmatprep.subr.bf16.mxu0 %v1921
      %2430 = vmatpush2.bf16.msra.mxu0 %v1920
      %2431 = vmatprep.subr.bf16.mxu0 %v1919
      %2432 = vmatpush2.bf16.msra.mxu0 %v1918
      %2433 = vmatprep.mubr.bf16.mxu0 %v1354
      %2434 = vmatmul.mubr.bf16.gmra.mxu0 %v1353
      %v2435 = vpop.f32.mrf.mxu0
      %v2436 = vadd.f32 %v2323, %v2435
      %v2437 = vpop.f32.mrf.mxu0
      %v2438 = vadd.f32 %v2325, %v2437
      %v2439 = vpop.f32.mrf.mxu0
      %v2440 = vadd.f32 %v2327, %v2439
      %v2441 = vpop.f32.mrf.mxu0
      %v2442 = vadd.f32 %v2329, %v2441
      %2443 = vmatprep.mubr.bf16.mxu0 %v1362
      %2444 = vmatmul.mubr.bf16.gmra.mxu0 %v1361
      %v2445 = vpop.f32.mrf.mxu0
      %v2446 = vadd.f32 %v2333, %v2445
      %v2447 = vpop.f32.mrf.mxu0
      %v2448 = vadd.f32 %v2335, %v2447
      %v2449 = vpop.f32.mrf.mxu0
      %v2450 = vadd.f32 %v2337, %v2449
      %v2451 = vpop.f32.mrf.mxu0
      %v2452 = vadd.f32 %v2339, %v2451
      %2453 = vmatprep.mubr.bf16.mxu0 %v1370
      %2454 = vmatmul.mubr.bf16.gmra.mxu0 %v1369
      %v2455 = vpop.f32.mrf.mxu0
      %v2456 = vadd.f32 %v2343, %v2455
      %v2457 = vpop.f32.mrf.mxu0
      %v2458 = vadd.f32 %v2345, %v2457
      %v2459 = vpop.f32.mrf.mxu0
      %v2460 = vadd.f32 %v2347, %v2459
      %v2461 = vpop.f32.mrf.mxu0
      %v2462 = vadd.f32 %v2349, %v2461
      %2463 = vmatprep.mubr.bf16.mxu0 %v1378
      %2464 = vmatmul.mubr.bf16.gmra.mxu0 %v1377
      %v2465 = vpop.f32.mrf.mxu0
      %v2466 = vadd.f32 %v2353, %v2465
      %v2467 = vpop.f32.mrf.mxu0
      %v2468 = vadd.f32 %v2355, %v2467
      %v2469 = vpop.f32.mrf.mxu0
      %v2470 = vadd.f32 %v2357, %v2469
      %v2471 = vpop.f32.mrf.mxu0
      %v2472 = vadd.f32 %v2359, %v2471
      %2473 = vmatprep.mubr.bf16.mxu0 %v1386
      %2474 = vmatmul.mubr.bf16.gmra.mxu0 %v1385
      %v2475 = vpop.f32.mrf.mxu0
      %v2476 = vadd.f32 %v2363, %v2475
      %v2477 = vpop.f32.mrf.mxu0
      %v2478 = vadd.f32 %v2365, %v2477
      %v2479 = vpop.f32.mrf.mxu0
      %v2480 = vadd.f32 %v2367, %v2479
      %v2481 = vpop.f32.mrf.mxu0
      %v2482 = vadd.f32 %v2369, %v2481
      %2483 = vmatprep.mubr.bf16.mxu0 %v1394
      %2484 = vmatmul.mubr.bf16.gmra.mxu0 %v1393
      %v2485 = vpop.f32.mrf.mxu0
      %v2486 = vadd.f32 %v2373, %v2485
      %v2487 = vpop.f32.mrf.mxu0
      %v2488 = vadd.f32 %v2375, %v2487
      %v2489 = vpop.f32.mrf.mxu0
      %v2490 = vadd.f32 %v2377, %v2489
      %v2491 = vpop.f32.mrf.mxu0
      %v2492 = vadd.f32 %v2379, %v2491
      %2493 = vmatprep.mubr.bf16.mxu0 %v1402
      %2494 = vmatmul.mubr.bf16.gmra.mxu0 %v1401
      %v2495 = vpop.f32.mrf.mxu0
      %v2496 = vadd.f32 %v2383, %v2495
      %v2497 = vpop.f32.mrf.mxu0
      %v2498 = vadd.f32 %v2385, %v2497
      %v2499 = vpop.f32.mrf.mxu0
      %v2500 = vadd.f32 %v2387, %v2499
      %v2501 = vpop.f32.mrf.mxu0
      %v2502 = vadd.f32 %v2389, %v2501
      %2503 = vmatprep.mubr.bf16.mxu0 %v1410
      %2504 = vmatmul.mubr.bf16.gmra.mxu0 %v1409
      %v2505 = vpop.f32.mrf.mxu0
      %v2506 = vadd.f32 %v2393, %v2505
      %v2507 = vpop.f32.mrf.mxu0
      %v2508 = vadd.f32 %v2395, %v2507
      %v2509 = vpop.f32.mrf.mxu0
      %v2510 = vadd.f32 %v2397, %v2509
      %v2511 = vpop.f32.mrf.mxu0
      %v2512 = vadd.f32 %v2399, %v2511
      %2513 = vdwg.mxu0
      %v2514 = vmax.f32 %v2436, 0.0
      %v2515 = vmax.f32 %v2438, 0.0
      %v2516 = vmax.f32 %v2440, 0.0
      %v2517 = vmax.f32 %v2442, 0.0
      %v2518 = vmax.f32 %v2446, 0.0
      %v2519 = vmax.f32 %v2448, 0.0
      %v2520 = vmax.f32 %v2450, 0.0
      %v2521 = vmax.f32 %v2452, 0.0
      %v2522 = vmax.f32 %v2456, 0.0
      %v2523 = vmax.f32 %v2458, 0.0
      %v2524 = vmax.f32 %v2460, 0.0
      %v2525 = vmax.f32 %v2462, 0.0
      %v2526 = vmax.f32 %v2466, 0.0
      %v2527 = vmax.f32 %v2468, 0.0
      %v2528 = vmax.f32 %v2470, 0.0
      %v2529 = vmax.f32 %v2472, 0.0
      %v2530 = vmax.f32 %v2476, 0.0
      %v2531 = vmax.f32 %v2478, 0.0
      %v2532 = vmax.f32 %v2480, 0.0
      %v2533 = vmax.f32 %v2482, 0.0
      %v2534 = vmax.f32 %v2486, 0.0
      %v2535 = vmax.f32 %v2488, 0.0
      %v2536 = vmax.f32 %v2490, 0.0
      %v2537 = vmax.f32 %v2492, 0.0
      %v2538 = vmax.f32 %v2496, 0.0
      %v2539 = vmax.f32 %v2498, 0.0
      %v2540 = vmax.f32 %v2500, 0.0
      %v2541 = vmax.f32 %v2502, 0.0
      %v2542 = vmax.f32 %v2506, 0.0
      %v2543 = vmax.f32 %v2508, 0.0
      %v2544 = vmax.f32 %v2510, 0.0
      %v2545 = vmax.f32 %v2512, 0.0
      %v2546 = vld [vmem:[#allocation12] sm:$0xff]
      %v2547 = vld [vmem:[#allocation12 + $0x8] sm:$0xff]
      %v2548 = vld [vmem:[#allocation12 + $0x10] sm:$0xff]
      %v2549 = vld [vmem:[#allocation12 + $0x18] sm:$0xff]
      %v2550 = vld [vmem:[#allocation12 + $0x20] sm:$0xff]
      %v2551 = vld [vmem:[#allocation12 + $0x28] sm:$0xff]
      %v2552 = vld [vmem:[#allocation12 + $0x30] sm:$0xff]
      %v2553 = vld [vmem:[#allocation12 + $0x38] sm:$0xff]
      %v2554 = vld [vmem:[#allocation12 + $0x40] sm:$0xff]
      %v2555 = vld [vmem:[#allocation12 + $0x48] sm:$0xff]
      %v2556 = vld [vmem:[#allocation12 + $0x50] sm:$0xff]
      %v2557 = vld [vmem:[#allocation12 + $0x58] sm:$0xff]
      %v2558 = vld [vmem:[#allocation12 + $0x60] sm:$0xff]
      %v2559 = vld [vmem:[#allocation12 + $0x68] sm:$0xff]
      %v2560 = vld [vmem:[#allocation12 + $0x70] sm:$0xff]
      %v2561 = vld [vmem:[#allocation12 + $0x78] sm:$0xff]
      %v2562 = vld [vmem:[#allocation12 + $0x80] sm:$0xff]
      %v2563 = vld [vmem:[#allocation12 + $0x88] sm:$0xff]
      %v2564 = vld [vmem:[#allocation12 + $0x90] sm:$0xff]
      %v2565 = vld [vmem:[#allocation12 + $0x98] sm:$0xff]
      %v2566 = vld [vmem:[#allocation12 + $0xa0] sm:$0xff]
      %v2567 = vld [vmem:[#allocation12 + $0xa8] sm:$0xff]
      %v2568 = vld [vmem:[#allocation12 + $0xb0] sm:$0xff]
      %v2569 = vld [vmem:[#allocation12 + $0xb8] sm:$0xff]
      %v2570 = vld [vmem:[#allocation12 + $0xc0] sm:$0xff]
      %v2571 = vld [vmem:[#allocation12 + $0xc8] sm:$0xff]
      %v2572 = vld [vmem:[#allocation12 + $0xd0] sm:$0xff]
      %v2573 = vld [vmem:[#allocation12 + $0xd8] sm:$0xff]
      %v2574 = vld [vmem:[#allocation12 + $0xe0] sm:$0xff]
      %v2575 = vld [vmem:[#allocation12 + $0xe8] sm:$0xff]
      %v2576 = vld [vmem:[#allocation12 + $0xf0] sm:$0xff]
      %v2577 = vld [vmem:[#allocation12 + $0xf8] sm:$0xff]
      %v2578 = vld [vmem:[#allocation12 + $0x100] sm:$0xff]
      %v2579 = vld [vmem:[#allocation12 + $0x108] sm:$0xff]
      %v2580 = vld [vmem:[#allocation12 + $0x110] sm:$0xff]
      %v2581 = vld [vmem:[#allocation12 + $0x118] sm:$0xff]
      %v2582 = vld [vmem:[#allocation12 + $0x120] sm:$0xff]
      %v2583 = vld [vmem:[#allocation12 + $0x128] sm:$0xff]
      %v2584 = vld [vmem:[#allocation12 + $0x130] sm:$0xff]
      %v2585 = vld [vmem:[#allocation12 + $0x138] sm:$0xff]
      %v2586 = vld [vmem:[#allocation12 + $0x140] sm:$0xff]
      %v2587 = vld [vmem:[#allocation12 + $0x148] sm:$0xff]
      %v2588 = vld [vmem:[#allocation12 + $0x150] sm:$0xff]
      %v2589 = vld [vmem:[#allocation12 + $0x158] sm:$0xff]
      %v2590 = vld [vmem:[#allocation12 + $0x160] sm:$0xff]
      %v2591 = vld [vmem:[#allocation12 + $0x168] sm:$0xff]
      %v2592 = vld [vmem:[#allocation12 + $0x170] sm:$0xff]
      %v2593 = vld [vmem:[#allocation12 + $0x178] sm:$0xff]
      %v2594 = vld [vmem:[#allocation12 + $0x180] sm:$0xff]
      %v2595 = vld [vmem:[#allocation12 + $0x188] sm:$0xff]
      %v2596 = vld [vmem:[#allocation12 + $0x190] sm:$0xff]
      %v2597 = vld [vmem:[#allocation12 + $0x198] sm:$0xff]
      %v2598 = vld [vmem:[#allocation12 + $0x1a0] sm:$0xff]
      %v2599 = vld [vmem:[#allocation12 + $0x1a8] sm:$0xff]
      %v2600 = vld [vmem:[#allocation12 + $0x1b0] sm:$0xff]
      %v2601 = vld [vmem:[#allocation12 + $0x1b8] sm:$0xff]
      %v2602 = vld [vmem:[#allocation12 + $0x1c0] sm:$0xff]
      %v2603 = vld [vmem:[#allocation12 + $0x1c8] sm:$0xff]
      %v2604 = vld [vmem:[#allocation12 + $0x1d0] sm:$0xff]
      %v2605 = vld [vmem:[#allocation12 + $0x1d8] sm:$0xff]
      %v2606 = vld [vmem:[#allocation12 + $0x1e0] sm:$0xff]
      %v2607 = vld [vmem:[#allocation12 + $0x1e8] sm:$0xff]
      %v2608 = vld [vmem:[#allocation12 + $0x1f0] sm:$0xff]
      %v2609 = vld [vmem:[#allocation12 + $0x1f8] sm:$0xff]
      %v2610 = vld [vmem:[%s6] sm:$0xf]
      %v2611 = vpack.c.bf16 %v2516, %v2514
      %v2612 = vpack.c.bf16 %v2517, %v2515
      %v2613 = vpack.c.bf16 %v2520, %v2518
      %v2614 = vpack.c.bf16 %v2521, %v2519
      %v2615 = vpack.c.bf16 %v2524, %v2522
      %v2616 = vpack.c.bf16 %v2525, %v2523
      %v2617 = vpack.c.bf16 %v2528, %v2526
      %v2618 = vpack.c.bf16 %v2529, %v2527
      %v2619 = vpack.c.bf16 %v2532, %v2530
      %v2620 = vpack.c.bf16 %v2533, %v2531
      %v2621 = vpack.c.bf16 %v2536, %v2534
      %v2622 = vpack.c.bf16 %v2537, %v2535
      %v2623 = vpack.c.bf16 %v2540, %v2538
      %v2624 = vpack.c.bf16 %v2541, %v2539
      %v2625 = vpack.c.bf16 %v2544, %v2542
      %v2626 = vpack.c.bf16 %v2545, %v2543
      %v2628 = vlaneseq
      %v2629 = vshrl.u32 %v2628, 7
      %v2630 = vsub.s32 0, %v2629
      %v2631 = vrot.slane %v2610, %v2630
      %v2632 = vlaneseq
      %v2633 = vshrl.u32 %v2632, 7
      %v2634 = vsub.s32 1, %v2633
      %v2635 = vrot.slane %v2610, %v2634
      %v2636 = vlaneseq
      %v2637 = vshrl.u32 %v2636, 7
      %v2638 = vsub.s32 2, %v2637
      %v2639 = vrot.slane %v2610, %v2638
      %v2640 = vlaneseq
      %v2641 = vshrl.u32 %v2640, 7
      %v2642 = vsub.s32 3, %v2641
      %v2643 = vrot.slane %v2610, %v2642
      %v2712 = vunpack.c.l.b16 %v2546
      %v2713 = vunpack.c.h.b16 %v2546
      %v2714 = vunpack.c.l.b16 %v2547
      %v2715 = vunpack.c.h.b16 %v2547
      %v2716 = vunpack.c.l.b16 %v2548
      %v2717 = vunpack.c.h.b16 %v2548
      %v2718 = vunpack.c.l.b16 %v2549
      %v2719 = vunpack.c.h.b16 %v2549
      %v2720 = vunpack.c.l.b16 %v2550
      %v2721 = vunpack.c.h.b16 %v2550
      %v2722 = vunpack.c.l.b16 %v2551
      %v2723 = vunpack.c.h.b16 %v2551
      %v2724 = vunpack.c.l.b16 %v2552
      %v2725 = vunpack.c.h.b16 %v2552
      %v2726 = vunpack.c.l.b16 %v2553
      %v2727 = vunpack.c.h.b16 %v2553
      %v2728 = vunpack.c.l.b16 %v2554
      %v2729 = vunpack.c.h.b16 %v2554
      %v2730 = vunpack.c.l.b16 %v2555
      %v2731 = vunpack.c.h.b16 %v2555
      %v2732 = vunpack.c.l.b16 %v2556
      %v2733 = vunpack.c.h.b16 %v2556
      %v2734 = vunpack.c.l.b16 %v2557
      %v2735 = vunpack.c.h.b16 %v2557
      %v2736 = vunpack.c.l.b16 %v2558
      %v2737 = vunpack.c.h.b16 %v2558
      %v2738 = vunpack.c.l.b16 %v2559
      %v2739 = vunpack.c.h.b16 %v2559
      %v2740 = vunpack.c.l.b16 %v2560
      %v2741 = vunpack.c.h.b16 %v2560
      %v2742 = vunpack.c.l.b16 %v2561
      %v2743 = vunpack.c.h.b16 %v2561
      %v2744 = vunpack.c.l.b16 %v2562
      %v2745 = vunpack.c.h.b16 %v2562
      %v2746 = vunpack.c.l.b16 %v2563
      %v2747 = vunpack.c.h.b16 %v2563
      %v2748 = vunpack.c.l.b16 %v2564
      %v2749 = vunpack.c.h.b16 %v2564
      %v2750 = vunpack.c.l.b16 %v2565
      %v2751 = vunpack.c.h.b16 %v2565
      %v2752 = vunpack.c.l.b16 %v2566
      %v2753 = vunpack.c.h.b16 %v2566
      %v2754 = vunpack.c.l.b16 %v2567
      %v2755 = vunpack.c.h.b16 %v2567
      %v2756 = vunpack.c.l.b16 %v2568
      %v2757 = vunpack.c.h.b16 %v2568
      %v2758 = vunpack.c.l.b16 %v2569
      %v2759 = vunpack.c.h.b16 %v2569
      %v2760 = vunpack.c.l.b16 %v2570
      %v2761 = vunpack.c.h.b16 %v2570
      %v2762 = vunpack.c.l.b16 %v2571
      %v2763 = vunpack.c.h.b16 %v2571
      %v2764 = vunpack.c.l.b16 %v2572
      %v2765 = vunpack.c.h.b16 %v2572
      %v2766 = vunpack.c.l.b16 %v2573
      %v2767 = vunpack.c.h.b16 %v2573
      %v2768 = vunpack.c.l.b16 %v2574
      %v2769 = vunpack.c.h.b16 %v2574
      %v2770 = vunpack.c.l.b16 %v2575
      %v2771 = vunpack.c.h.b16 %v2575
      %v2772 = vunpack.c.l.b16 %v2576
      %v2773 = vunpack.c.h.b16 %v2576
      %v2774 = vunpack.c.l.b16 %v2577
      %v2775 = vunpack.c.h.b16 %v2577
      %v2776 = vunpack.c.l.b16 %v2578
      %v2777 = vunpack.c.h.b16 %v2578
      %v2778 = vunpack.c.l.b16 %v2579
      %v2779 = vunpack.c.h.b16 %v2579
      %v2780 = vunpack.c.l.b16 %v2580
      %v2781 = vunpack.c.h.b16 %v2580
      %v2782 = vunpack.c.l.b16 %v2581
      %v2783 = vunpack.c.h.b16 %v2581
      %v2784 = vunpack.c.l.b16 %v2582
      %v2785 = vunpack.c.h.b16 %v2582
      %v2786 = vunpack.c.l.b16 %v2583
      %v2787 = vunpack.c.h.b16 %v2583
      %v2788 = vunpack.c.l.b16 %v2584
      %v2789 = vunpack.c.h.b16 %v2584
      %v2790 = vunpack.c.l.b16 %v2585
      %v2791 = vunpack.c.h.b16 %v2585
      %v2792 = vunpack.c.l.b16 %v2586
      %v2793 = vunpack.c.h.b16 %v2586
      %v2794 = vunpack.c.l.b16 %v2587
      %v2795 = vunpack.c.h.b16 %v2587
      %v2796 = vunpack.c.l.b16 %v2588
      %v2797 = vunpack.c.h.b16 %v2588
      %v2798 = vunpack.c.l.b16 %v2589
      %v2799 = vunpack.c.h.b16 %v2589
      %v2800 = vunpack.c.l.b16 %v2590
      %v2801 = vunpack.c.h.b16 %v2590
      %v2802 = vunpack.c.l.b16 %v2591
      %v2803 = vunpack.c.h.b16 %v2591
      %v2804 = vunpack.c.l.b16 %v2592
      %v2805 = vunpack.c.h.b16 %v2592
      %v2806 = vunpack.c.l.b16 %v2593
      %v2807 = vunpack.c.h.b16 %v2593
      %v2808 = vunpack.c.l.b16 %v2594
      %v2809 = vunpack.c.h.b16 %v2594
      %v2810 = vunpack.c.l.b16 %v2595
      %v2811 = vunpack.c.h.b16 %v2595
      %v2812 = vunpack.c.l.b16 %v2596
      %v2813 = vunpack.c.h.b16 %v2596
      %v2814 = vunpack.c.l.b16 %v2597
      %v2815 = vunpack.c.h.b16 %v2597
      %v2816 = vunpack.c.l.b16 %v2598
      %v2817 = vunpack.c.h.b16 %v2598
      %v2818 = vunpack.c.l.b16 %v2599
      %v2819 = vunpack.c.h.b16 %v2599
      %v2820 = vunpack.c.l.b16 %v2600
      %v2821 = vunpack.c.h.b16 %v2600
      %v2822 = vunpack.c.l.b16 %v2601
      %v2823 = vunpack.c.h.b16 %v2601
      %v2824 = vunpack.c.l.b16 %v2602
      %v2825 = vunpack.c.h.b16 %v2602
      %v2826 = vunpack.c.l.b16 %v2603
      %v2827 = vunpack.c.h.b16 %v2603
      %v2828 = vunpack.c.l.b16 %v2604
      %v2829 = vunpack.c.h.b16 %v2604
      %v2830 = vunpack.c.l.b16 %v2605
      %v2831 = vunpack.c.h.b16 %v2605
      %v2832 = vunpack.c.l.b16 %v2606
      %v2833 = vunpack.c.h.b16 %v2606
      %v2834 = vunpack.c.l.b16 %v2607
      %v2835 = vunpack.c.h.b16 %v2607
      %v2836 = vunpack.c.l.b16 %v2608
      %v2837 = vunpack.c.h.b16 %v2608
      %v2838 = vunpack.c.l.b16 %v2609
      %v2839 = vunpack.c.h.b16 %v2609
      %v2840 = vpack.c.b16 %v2716, %v2712
      %v2841 = vpack.c.b16 %v2717, %v2713
      %v2842 = vpack.c.b16 %v2718, %v2714
      %v2843 = vpack.c.b16 %v2719, %v2715
      %v2844 = vpack.c.b16 %v2724, %v2720
      %v2845 = vpack.c.b16 %v2725, %v2721
      %v2846 = vpack.c.b16 %v2726, %v2722
      %v2847 = vpack.c.b16 %v2727, %v2723
      %v2848 = vpack.c.b16 %v2732, %v2728
      %v2849 = vpack.c.b16 %v2733, %v2729
      %v2850 = vpack.c.b16 %v2734, %v2730
      %v2851 = vpack.c.b16 %v2735, %v2731
      %v2852 = vpack.c.b16 %v2740, %v2736
      %v2853 = vpack.c.b16 %v2741, %v2737
      %v2854 = vpack.c.b16 %v2742, %v2738
      %v2855 = vpack.c.b16 %v2743, %v2739
      %v2856 = vpack.c.b16 %v2748, %v2744
      %v2857 = vpack.c.b16 %v2749, %v2745
      %v2858 = vpack.c.b16 %v2750, %v2746
      %v2859 = vpack.c.b16 %v2751, %v2747
      %v2860 = vpack.c.b16 %v2756, %v2752
      %v2861 = vpack.c.b16 %v2757, %v2753
      %v2862 = vpack.c.b16 %v2758, %v2754
      %v2863 = vpack.c.b16 %v2759, %v2755
      %v2864 = vpack.c.b16 %v2764, %v2760
      %v2865 = vpack.c.b16 %v2765, %v2761
      %v2866 = vpack.c.b16 %v2766, %v2762
      %v2867 = vpack.c.b16 %v2767, %v2763
      %v2868 = vpack.c.b16 %v2772, %v2768
      %v2869 = vpack.c.b16 %v2773, %v2769
      %v2870 = vpack.c.b16 %v2774, %v2770
      %v2871 = vpack.c.b16 %v2775, %v2771
      %v2872 = vpack.c.b16 %v2780, %v2776
      %v2873 = vpack.c.b16 %v2781, %v2777
      %v2874 = vpack.c.b16 %v2782, %v2778
      %v2875 = vpack.c.b16 %v2783, %v2779
      %v2876 = vpack.c.b16 %v2788, %v2784
      %v2877 = vpack.c.b16 %v2789, %v2785
      %v2878 = vpack.c.b16 %v2790, %v2786
      %v2879 = vpack.c.b16 %v2791, %v2787
      %v2880 = vpack.c.b16 %v2796, %v2792
      %v2881 = vpack.c.b16 %v2797, %v2793
      %v2882 = vpack.c.b16 %v2798, %v2794
      %v2883 = vpack.c.b16 %v2799, %v2795
      %v2884 = vpack.c.b16 %v2804, %v2800
      %v2885 = vpack.c.b16 %v2805, %v2801
      %v2886 = vpack.c.b16 %v2806, %v2802
      %v2887 = vpack.c.b16 %v2807, %v2803
      %v2888 = vpack.c.b16 %v2812, %v2808
      %v2889 = vpack.c.b16 %v2813, %v2809
      %v2890 = vpack.c.b16 %v2814, %v2810
      %v2891 = vpack.c.b16 %v2815, %v2811
      %v2892 = vpack.c.b16 %v2820, %v2816
      %v2893 = vpack.c.b16 %v2821, %v2817
      %v2894 = vpack.c.b16 %v2822, %v2818
      %v2895 = vpack.c.b16 %v2823, %v2819
      %v2896 = vpack.c.b16 %v2828, %v2824
      %v2897 = vpack.c.b16 %v2829, %v2825
      %v2898 = vpack.c.b16 %v2830, %v2826
      %v2899 = vpack.c.b16 %v2831, %v2827
      %v2900 = vpack.c.b16 %v2836, %v2832
      %v2901 = vpack.c.b16 %v2837, %v2833
      %v2902 = vpack.c.b16 %v2838, %v2834
      %v2903 = vpack.c.b16 %v2839, %v2835
      %2968 = vmatprep.subr.bf16.mxu0 %v2869
      %2969 = vmatpush1.bf16.msra.mxu0 %v2868
      %2970 = vmatprep.subr.bf16.mxu0 %v2865
      %2971 = vmatpush1.bf16.msra.mxu0 %v2864
      %2972 = vmatprep.subr.bf16.mxu0 %v2861
      %2973 = vmatpush1.bf16.msra.mxu0 %v2860
      %2974 = vmatprep.subr.bf16.mxu0 %v2857
      %2975 = vmatpush1.bf16.msra.mxu0 %v2856
      %2976 = vmatprep.subr.bf16.mxu0 %v2853
      %2977 = vmatpush1.bf16.msra.mxu0 %v2852
      %2978 = vmatprep.subr.bf16.mxu0 %v2849
      %2979 = vmatpush1.bf16.msra.mxu0 %v2848
      %2980 = vmatprep.subr.bf16.mxu0 %v2845
      %2981 = vmatpush1.bf16.msra.mxu0 %v2844
      %2982 = vmatprep.subr.bf16.mxu0 %v2841
      %2983 = vmatpush1.bf16.msra.mxu0 %v2840
      %2984 = vmatprep.subr.bf16.mxu0 %v2901
      %2985 = vmatpush2.bf16.msra.mxu0 %v2900
      %2986 = vmatprep.subr.bf16.mxu0 %v2897
      %2987 = vmatpush2.bf16.msra.mxu0 %v2896
      %2988 = vmatprep.subr.bf16.mxu0 %v2893
      %2989 = vmatpush2.bf16.msra.mxu0 %v2892
      %2990 = vmatprep.subr.bf16.mxu0 %v2889
      %2991 = vmatpush2.bf16.msra.mxu0 %v2888
      %2992 = vmatprep.subr.bf16.mxu0 %v2885
      %2993 = vmatpush2.bf16.msra.mxu0 %v2884
      %2994 = vmatprep.subr.bf16.mxu0 %v2881
      %2995 = vmatpush2.bf16.msra.mxu0 %v2880
      %2996 = vmatprep.subr.bf16.mxu0 %v2877
      %2997 = vmatpush2.bf16.msra.mxu0 %v2876
      %2998 = vmatprep.subr.bf16.mxu0 %v2873
      %2999 = vmatpush2.bf16.msra.mxu0 %v2872
      %3000 = vmatprep.mubr.bf16.mxu0 %v2612
      %3001 = vmatmul.mubr.bf16.gmra.mxu0 %v2611
      %v3002 = vpop.f32.mrf.mxu0
      %v3003 = vadd.f32 %v2631, %v3002
      %v3004 = vpop.f32.mrf.mxu0
      %v3005 = vadd.f32 %v2635, %v3004
      %v3006 = vpop.f32.mrf.mxu0
      %v3007 = vadd.f32 %v2631, %v3006
      %v3008 = vpop.f32.mrf.mxu0
      %v3009 = vadd.f32 %v2635, %v3008
      %3010 = vmatprep.mubr.bf16.mxu0 %v2614
      %3011 = vmatmul.mubr.bf16.gmra.mxu0 %v2613
      %v3012 = vpop.f32.mrf.mxu0
      %v3013 = vadd.f32 %v2631, %v3012
      %v3014 = vpop.f32.mrf.mxu0
      %v3015 = vadd.f32 %v2635, %v3014
      %v3016 = vpop.f32.mrf.mxu0
      %v3017 = vadd.f32 %v2631, %v3016
      %v3018 = vpop.f32.mrf.mxu0
      %v3019 = vadd.f32 %v2635, %v3018
      %3020 = vmatprep.mubr.bf16.mxu0 %v2616
      %3021 = vmatmul.mubr.bf16.gmra.mxu0 %v2615
      %v3022 = vpop.f32.mrf.mxu0
      %v3023 = vadd.f32 %v2631, %v3022
      %v3024 = vpop.f32.mrf.mxu0
      %v3025 = vadd.f32 %v2635, %v3024
      %v3026 = vpop.f32.mrf.mxu0
      %v3027 = vadd.f32 %v2631, %v3026
      %v3028 = vpop.f32.mrf.mxu0
      %v3029 = vadd.f32 %v2635, %v3028
      %3030 = vmatprep.mubr.bf16.mxu0 %v2618
      %3031 = vmatmul.mubr.bf16.gmra.mxu0 %v2617
      %v3032 = vpop.f32.mrf.mxu0
      %v3033 = vadd.f32 %v2631, %v3032
      %v3034 = vpop.f32.mrf.mxu0
      %v3035 = vadd.f32 %v2635, %v3034
      %v3036 = vpop.f32.mrf.mxu0
      %v3037 = vadd.f32 %v2631, %v3036
      %v3038 = vpop.f32.mrf.mxu0
      %v3039 = vadd.f32 %v2635, %v3038
      %3040 = vmatprep.mubr.bf16.mxu0 %v2620
      %3041 = vmatmul.mubr.bf16.gmra.mxu0 %v2619
      %v3042 = vpop.f32.mrf.mxu0
      %v3043 = vadd.f32 %v2631, %v3042
      %v3044 = vpop.f32.mrf.mxu0
      %v3045 = vadd.f32 %v2635, %v3044
      %v3046 = vpop.f32.mrf.mxu0
      %v3047 = vadd.f32 %v2631, %v3046
      %v3048 = vpop.f32.mrf.mxu0
      %v3049 = vadd.f32 %v2635, %v3048
      %3050 = vmatprep.mubr.bf16.mxu0 %v2622
      %3051 = vmatmul.mubr.bf16.gmra.mxu0 %v2621
      %v3052 = vpop.f32.mrf.mxu0
      %v3053 = vadd.f32 %v2631, %v3052
      %v3054 = vpop.f32.mrf.mxu0
      %v3055 = vadd.f32 %v2635, %v3054
      %v3056 = vpop.f32.mrf.mxu0
      %v3057 = vadd.f32 %v2631, %v3056
      %v3058 = vpop.f32.mrf.mxu0
      %v3059 = vadd.f32 %v2635, %v3058
      %3060 = vmatprep.mubr.bf16.mxu0 %v2624
      %3061 = vmatmul.mubr.bf16.gmra.mxu0 %v2623
      %v3062 = vpop.f32.mrf.mxu0
      %v3063 = vadd.f32 %v2631, %v3062
      %v3064 = vpop.f32.mrf.mxu0
      %v3065 = vadd.f32 %v2635, %v3064
      %v3066 = vpop.f32.mrf.mxu0
      %v3067 = vadd.f32 %v2631, %v3066
      %v3068 = vpop.f32.mrf.mxu0
      %v3069 = vadd.f32 %v2635, %v3068
      %3070 = vmatprep.mubr.bf16.mxu0 %v2626
      %3071 = vmatmul.mubr.bf16.gmra.mxu0 %v2625
      %v3072 = vpop.f32.mrf.mxu0
      %v3073 = vadd.f32 %v2631, %v3072
      %v3074 = vpop.f32.mrf.mxu0
      %v3075 = vadd.f32 %v2635, %v3074
      %v3076 = vpop.f32.mrf.mxu0
      %v3077 = vadd.f32 %v2631, %v3076
      %v3078 = vpop.f32.mrf.mxu0
      %v3079 = vadd.f32 %v2635, %v3078
      %3080 = vdwg.mxu0
      %3081 = vmatprep.subr.bf16.mxu0 %v2871
      %3082 = vmatpush1.bf16.msra.mxu0 %v2870
      %3083 = vmatprep.subr.bf16.mxu0 %v2867
      %3084 = vmatpush1.bf16.msra.mxu0 %v2866
      %3085 = vmatprep.subr.bf16.mxu0 %v2863
      %3086 = vmatpush1.bf16.msra.mxu0 %v2862
      %3087 = vmatprep.subr.bf16.mxu0 %v2859
      %3088 = vmatpush1.bf16.msra.mxu0 %v2858
      %3089 = vmatprep.subr.bf16.mxu0 %v2855
      %3090 = vmatpush1.bf16.msra.mxu0 %v2854
      %3091 = vmatprep.subr.bf16.mxu0 %v2851
      %3092 = vmatpush1.bf16.msra.mxu0 %v2850
      %3093 = vmatprep.subr.bf16.mxu0 %v2847
      %3094 = vmatpush1.bf16.msra.mxu0 %v2846
      %3095 = vmatprep.subr.bf16.mxu0 %v2843
      %3096 = vmatpush1.bf16.msra.mxu0 %v2842
      %3097 = vmatprep.subr.bf16.mxu0 %v2903
      %3098 = vmatpush2.bf16.msra.mxu0 %v2902
      %3099 = vmatprep.subr.bf16.mxu0 %v2899
      %3100 = vmatpush2.bf16.msra.mxu0 %v2898
      %3101 = vmatprep.subr.bf16.mxu0 %v2895
      %3102 = vmatpush2.bf16.msra.mxu0 %v2894
      %3103 = vmatprep.subr.bf16.mxu0 %v2891
      %3104 = vmatpush2.bf16.msra.mxu0 %v2890
      %3105 = vmatprep.subr.bf16.mxu0 %v2887
      %3106 = vmatpush2.bf16.msra.mxu0 %v2886
      %3107 = vmatprep.subr.bf16.mxu0 %v2883
      %3108 = vmatpush2.bf16.msra.mxu0 %v2882
      %3109 = vmatprep.subr.bf16.mxu0 %v2879
      %3110 = vmatpush2.bf16.msra.mxu0 %v2878
      %3111 = vmatprep.subr.bf16.mxu0 %v2875
      %3112 = vmatpush2.bf16.msra.mxu0 %v2874
      %3113 = vmatprep.mubr.bf16.mxu0 %v2612
      %3114 = vmatmul.mubr.bf16.gmra.mxu0 %v2611
      %v3115 = vpop.f32.mrf.mxu0
      %v3116 = vadd.f32 %v2639, %v3115
      %v3117 = vpop.f32.mrf.mxu0
      %v3118 = vadd.f32 %v2643, %v3117
      %v3119 = vpop.f32.mrf.mxu0
      %v3120 = vadd.f32 %v2639, %v3119
      %v3121 = vpop.f32.mrf.mxu0
      %v3122 = vadd.f32 %v2643, %v3121
      %3123 = vmatprep.mubr.bf16.mxu0 %v2614
      %3124 = vmatmul.mubr.bf16.gmra.mxu0 %v2613
      %v3125 = vpop.f32.mrf.mxu0
      %v3126 = vadd.f32 %v2639, %v3125
      %v3127 = vpop.f32.mrf.mxu0
      %v3128 = vadd.f32 %v2643, %v3127
      %v3129 = vpop.f32.mrf.mxu0
      %v3130 = vadd.f32 %v2639, %v3129
      %v3131 = vpop.f32.mrf.mxu0
      %v3132 = vadd.f32 %v2643, %v3131
      %3133 = vmatprep.mubr.bf16.mxu0 %v2616
      %3134 = vmatmul.mubr.bf16.gmra.mxu0 %v2615
      %v3135 = vpop.f32.mrf.mxu0
      %v3136 = vadd.f32 %v2639, %v3135
      %v3137 = vpop.f32.mrf.mxu0
      %v3138 = vadd.f32 %v2643, %v3137
      %v3139 = vpop.f32.mrf.mxu0
      %v3140 = vadd.f32 %v2639, %v3139
      %v3141 = vpop.f32.mrf.mxu0
      %v3142 = vadd.f32 %v2643, %v3141
      %3143 = vmatprep.mubr.bf16.mxu0 %v2618
      %3144 = vmatmul.mubr.bf16.gmra.mxu0 %v2617
      %v3145 = vpop.f32.mrf.mxu0
      %v3146 = vadd.f32 %v2639, %v3145
      %v3147 = vpop.f32.mrf.mxu0
      %v3148 = vadd.f32 %v2643, %v3147
      %v3149 = vpop.f32.mrf.mxu0
      %v3150 = vadd.f32 %v2639, %v3149
      %v3151 = vpop.f32.mrf.mxu0
      %v3152 = vadd.f32 %v2643, %v3151
      %3153 = vmatprep.mubr.bf16.mxu0 %v2620
      %3154 = vmatmul.mubr.bf16.gmra.mxu0 %v2619
      %v3155 = vpop.f32.mrf.mxu0
      %v3156 = vadd.f32 %v2639, %v3155
      %v3157 = vpop.f32.mrf.mxu0
      %v3158 = vadd.f32 %v2643, %v3157
      %v3159 = vpop.f32.mrf.mxu0
      %v3160 = vadd.f32 %v2639, %v3159
      %v3161 = vpop.f32.mrf.mxu0
      %v3162 = vadd.f32 %v2643, %v3161
      %3163 = vmatprep.mubr.bf16.mxu0 %v2622
      %3164 = vmatmul.mubr.bf16.gmra.mxu0 %v2621
      %v3165 = vpop.f32.mrf.mxu0
      %v3166 = vadd.f32 %v2639, %v3165
      %v3167 = vpop.f32.mrf.mxu0
      %v3168 = vadd.f32 %v2643, %v3167
      %v3169 = vpop.f32.mrf.mxu0
      %v3170 = vadd.f32 %v2639, %v3169
      %v3171 = vpop.f32.mrf.mxu0
      %v3172 = vadd.f32 %v2643, %v3171
      %3173 = vmatprep.mubr.bf16.mxu0 %v2624
      %3174 = vmatmul.mubr.bf16.gmra.mxu0 %v2623
      %v3175 = vpop.f32.mrf.mxu0
      %v3176 = vadd.f32 %v2639, %v3175
      %v3177 = vpop.f32.mrf.mxu0
      %v3178 = vadd.f32 %v2643, %v3177
      %v3179 = vpop.f32.mrf.mxu0
      %v3180 = vadd.f32 %v2639, %v3179
      %v3181 = vpop.f32.mrf.mxu0
      %v3182 = vadd.f32 %v2643, %v3181
      %3183 = vmatprep.mubr.bf16.mxu0 %v2626
      %3184 = vmatmul.mubr.bf16.gmra.mxu0 %v2625
      %v3185 = vpop.f32.mrf.mxu0
      %v3186 = vadd.f32 %v2639, %v3185
      %v3187 = vpop.f32.mrf.mxu0
      %v3188 = vadd.f32 %v2643, %v3187
      %v3189 = vpop.f32.mrf.mxu0
      %v3190 = vadd.f32 %v2639, %v3189
      %v3191 = vpop.f32.mrf.mxu0
      %v3192 = vadd.f32 %v2643, %v3191
      %3193 = vdwg.mxu0
      %v3194 = vmax.f32 %v3003, 0.0
      %v3195 = vmax.f32 %v3005, 0.0
      %v3196 = vmax.f32 %v3116, 0.0
      %v3197 = vmax.f32 %v3118, 0.0
      %v3198 = vmax.f32 %v3007, 0.0
      %v3199 = vmax.f32 %v3009, 0.0
      %v3200 = vmax.f32 %v3120, 0.0
      %v3201 = vmax.f32 %v3122, 0.0
      %v3202 = vmax.f32 %v3013, 0.0
      %v3203 = vmax.f32 %v3015, 0.0
      %v3204 = vmax.f32 %v3126, 0.0
      %v3205 = vmax.f32 %v3128, 0.0
      %v3206 = vmax.f32 %v3017, 0.0
      %v3207 = vmax.f32 %v3019, 0.0
      %v3208 = vmax.f32 %v3130, 0.0
      %v3209 = vmax.f32 %v3132, 0.0
      %v3210 = vmax.f32 %v3023, 0.0
      %v3211 = vmax.f32 %v3025, 0.0
      %v3212 = vmax.f32 %v3136, 0.0
      %v3213 = vmax.f32 %v3138, 0.0
      %v3214 = vmax.f32 %v3027, 0.0
      %v3215 = vmax.f32 %v3029, 0.0
      %v3216 = vmax.f32 %v3140, 0.0
      %v3217 = vmax.f32 %v3142, 0.0
      %v3218 = vmax.f32 %v3033, 0.0
      %v3219 = vmax.f32 %v3035, 0.0
      %v3220 = vmax.f32 %v3146, 0.0
      %v3221 = vmax.f32 %v3148, 0.0
      %v3222 = vmax.f32 %v3037, 0.0
      %v3223 = vmax.f32 %v3039, 0.0
      %v3224 = vmax.f32 %v3150, 0.0
      %v3225 = vmax.f32 %v3152, 0.0
      %v3226 = vmax.f32 %v3043, 0.0
      %v3227 = vmax.f32 %v3045, 0.0
      %v3228 = vmax.f32 %v3156, 0.0
      %v3229 = vmax.f32 %v3158, 0.0
      %v3230 = vmax.f32 %v3047, 0.0
      %v3231 = vmax.f32 %v3049, 0.0
      %v3232 = vmax.f32 %v3160, 0.0
      %v3233 = vmax.f32 %v3162, 0.0
      %v3234 = vmax.f32 %v3053, 0.0
      %v3235 = vmax.f32 %v3055, 0.0
      %v3236 = vmax.f32 %v3166, 0.0
      %v3237 = vmax.f32 %v3168, 0.0
      %v3238 = vmax.f32 %v3057, 0.0
      %v3239 = vmax.f32 %v3059, 0.0
      %v3240 = vmax.f32 %v3170, 0.0
      %v3241 = vmax.f32 %v3172, 0.0
      %v3242 = vmax.f32 %v3063, 0.0
      %v3243 = vmax.f32 %v3065, 0.0
      %v3244 = vmax.f32 %v3176, 0.0
      %v3245 = vmax.f32 %v3178, 0.0
      %v3246 = vmax.f32 %v3067, 0.0
      %v3247 = vmax.f32 %v3069, 0.0
      %v3248 = vmax.f32 %v3180, 0.0
      %v3249 = vmax.f32 %v3182, 0.0
      %v3250 = vmax.f32 %v3073, 0.0
      %v3251 = vmax.f32 %v3075, 0.0
      %v3252 = vmax.f32 %v3186, 0.0
      %v3253 = vmax.f32 %v3188, 0.0
      %v3254 = vmax.f32 %v3077, 0.0
      %v3255 = vmax.f32 %v3079, 0.0
      %v3256 = vmax.f32 %v3190, 0.0
      %v3257 = vmax.f32 %v3192, 0.0
      %v3258 = vld [vmem:[#allocation14] sm:$0xff]
      %v3259 = vld [vmem:[#allocation14 + $0x8] sm:$0xff]
      %v3260 = vld [vmem:[#allocation14 + $0x10] sm:$0xff]
      %v3261 = vld [vmem:[#allocation14 + $0x18] sm:$0xff]
      %v3262 = vld [vmem:[#allocation14 + $0x20] sm:$0xff]
      %v3263 = vld [vmem:[#allocation14 + $0x28] sm:$0xff]
      %v3264 = vld [vmem:[#allocation14 + $0x30] sm:$0xff]
      %v3265 = vld [vmem:[#allocation14 + $0x38] sm:$0xff]
      %v3266 = vld [vmem:[#allocation14 + $0x40] sm:$0xff]
      %v3267 = vld [vmem:[#allocation14 + $0x48] sm:$0xff]
      %v3268 = vld [vmem:[#allocation14 + $0x50] sm:$0xff]
      %v3269 = vld [vmem:[#allocation14 + $0x58] sm:$0xff]
      %v3270 = vld [vmem:[#allocation14 + $0x60] sm:$0xff]
      %v3271 = vld [vmem:[#allocation14 + $0x68] sm:$0xff]
      %v3272 = vld [vmem:[#allocation14 + $0x70] sm:$0xff]
      %v3273 = vld [vmem:[#allocation14 + $0x78] sm:$0xff]
      %v3274 = vld [vmem:[#allocation14 + $0x80] sm:$0xff]
      %v3275 = vld [vmem:[#allocation14 + $0x88] sm:$0xff]
      %v3276 = vld [vmem:[#allocation14 + $0x90] sm:$0xff]
      %v3277 = vld [vmem:[#allocation14 + $0x98] sm:$0xff]
      %v3278 = vld [vmem:[#allocation14 + $0xa0] sm:$0xff]
      %v3279 = vld [vmem:[#allocation14 + $0xa8] sm:$0xff]
      %v3280 = vld [vmem:[#allocation14 + $0xb0] sm:$0xff]
      %v3281 = vld [vmem:[#allocation14 + $0xb8] sm:$0xff]
      %v3282 = vld [vmem:[#allocation14 + $0xc0] sm:$0xff]
      %v3283 = vld [vmem:[#allocation14 + $0xc8] sm:$0xff]
      %v3284 = vld [vmem:[#allocation14 + $0xd0] sm:$0xff]
      %v3285 = vld [vmem:[#allocation14 + $0xd8] sm:$0xff]
      %v3286 = vld [vmem:[#allocation14 + $0xe0] sm:$0xff]
      %v3287 = vld [vmem:[#allocation14 + $0xe8] sm:$0xff]
      %v3288 = vld [vmem:[#allocation14 + $0xf0] sm:$0xff]
      %v3289 = vld [vmem:[#allocation14 + $0xf8] sm:$0xff]
      %v3290 = vld [vmem:[#allocation14 + $0x100] sm:$0xff]
      %v3291 = vld [vmem:[#allocation14 + $0x108] sm:$0xff]
      %v3292 = vld [vmem:[#allocation14 + $0x110] sm:$0xff]
      %v3293 = vld [vmem:[#allocation14 + $0x118] sm:$0xff]
      %v3294 = vld [vmem:[#allocation14 + $0x120] sm:$0xff]
      %v3295 = vld [vmem:[#allocation14 + $0x128] sm:$0xff]
      %v3296 = vld [vmem:[#allocation14 + $0x130] sm:$0xff]
      %v3297 = vld [vmem:[#allocation14 + $0x138] sm:$0xff]
      %v3298 = vld [vmem:[#allocation14 + $0x140] sm:$0xff]
      %v3299 = vld [vmem:[#allocation14 + $0x148] sm:$0xff]
      %v3300 = vld [vmem:[#allocation14 + $0x150] sm:$0xff]
      %v3301 = vld [vmem:[#allocation14 + $0x158] sm:$0xff]
      %v3302 = vld [vmem:[#allocation14 + $0x160] sm:$0xff]
      %v3303 = vld [vmem:[#allocation14 + $0x168] sm:$0xff]
      %v3304 = vld [vmem:[#allocation14 + $0x170] sm:$0xff]
      %v3305 = vld [vmem:[#allocation14 + $0x178] sm:$0xff]
      %v3306 = vld [vmem:[#allocation14 + $0x180] sm:$0xff]
      %v3307 = vld [vmem:[#allocation14 + $0x188] sm:$0xff]
      %v3308 = vld [vmem:[#allocation14 + $0x190] sm:$0xff]
      %v3309 = vld [vmem:[#allocation14 + $0x198] sm:$0xff]
      %v3310 = vld [vmem:[#allocation14 + $0x1a0] sm:$0xff]
      %v3311 = vld [vmem:[#allocation14 + $0x1a8] sm:$0xff]
      %v3312 = vld [vmem:[#allocation14 + $0x1b0] sm:$0xff]
      %v3313 = vld [vmem:[#allocation14 + $0x1b8] sm:$0xff]
      %v3314 = vld [vmem:[#allocation14 + $0x1c0] sm:$0xff]
      %v3315 = vld [vmem:[#allocation14 + $0x1c8] sm:$0xff]
      %v3316 = vld [vmem:[#allocation14 + $0x1d0] sm:$0xff]
      %v3317 = vld [vmem:[#allocation14 + $0x1d8] sm:$0xff]
      %v3318 = vld [vmem:[#allocation14 + $0x1e0] sm:$0xff]
      %v3319 = vld [vmem:[#allocation14 + $0x1e8] sm:$0xff]
      %v3320 = vld [vmem:[#allocation14 + $0x1f0] sm:$0xff]
      %v3321 = vld [vmem:[#allocation14 + $0x1f8] sm:$0xff]
      %v3322 = vld [vmem:[#allocation14 + $0x200] sm:$0xff]
      %v3323 = vld [vmem:[#allocation14 + $0x208] sm:$0xff]
      %v3324 = vld [vmem:[#allocation14 + $0x210] sm:$0xff]
      %v3325 = vld [vmem:[#allocation14 + $0x218] sm:$0xff]
      %v3326 = vld [vmem:[#allocation14 + $0x220] sm:$0xff]
      %v3327 = vld [vmem:[#allocation14 + $0x228] sm:$0xff]
      %v3328 = vld [vmem:[#allocation14 + $0x230] sm:$0xff]
      %v3329 = vld [vmem:[#allocation14 + $0x238] sm:$0xff]
      %v3330 = vld [vmem:[#allocation14 + $0x240] sm:$0xff]
      %v3331 = vld [vmem:[#allocation14 + $0x248] sm:$0xff]
      %v3332 = vld [vmem:[#allocation14 + $0x250] sm:$0xff]
      %v3333 = vld [vmem:[#allocation14 + $0x258] sm:$0xff]
      %v3334 = vld [vmem:[#allocation14 + $0x260] sm:$0xff]
      %v3335 = vld [vmem:[#allocation14 + $0x268] sm:$0xff]
      %v3336 = vld [vmem:[#allocation14 + $0x270] sm:$0xff]
      %v3337 = vld [vmem:[#allocation14 + $0x278] sm:$0xff]
      %v3338 = vld [vmem:[#allocation14 + $0x280] sm:$0xff]
      %v3339 = vld [vmem:[#allocation14 + $0x288] sm:$0xff]
      %v3340 = vld [vmem:[#allocation14 + $0x290] sm:$0xff]
      %v3341 = vld [vmem:[#allocation14 + $0x298] sm:$0xff]
      %v3342 = vld [vmem:[#allocation14 + $0x2a0] sm:$0xff]
      %v3343 = vld [vmem:[#allocation14 + $0x2a8] sm:$0xff]
      %v3344 = vld [vmem:[#allocation14 + $0x2b0] sm:$0xff]
      %v3345 = vld [vmem:[#allocation14 + $0x2b8] sm:$0xff]
      %v3346 = vld [vmem:[#allocation14 + $0x2c0] sm:$0xff]
      %v3347 = vld [vmem:[#allocation14 + $0x2c8] sm:$0xff]
      %v3348 = vld [vmem:[#allocation14 + $0x2d0] sm:$0xff]
      %v3349 = vld [vmem:[#allocation14 + $0x2d8] sm:$0xff]
      %v3350 = vld [vmem:[#allocation14 + $0x2e0] sm:$0xff]
      %v3351 = vld [vmem:[#allocation14 + $0x2e8] sm:$0xff]
      %v3352 = vld [vmem:[#allocation14 + $0x2f0] sm:$0xff]
      %v3353 = vld [vmem:[#allocation14 + $0x2f8] sm:$0xff]
      %v3354 = vld [vmem:[#allocation14 + $0x300] sm:$0xff]
      %v3355 = vld [vmem:[#allocation14 + $0x308] sm:$0xff]
      %v3356 = vld [vmem:[#allocation14 + $0x310] sm:$0xff]
      %v3357 = vld [vmem:[#allocation14 + $0x318] sm:$0xff]
      %v3358 = vld [vmem:[#allocation14 + $0x320] sm:$0xff]
      %v3359 = vld [vmem:[#allocation14 + $0x328] sm:$0xff]
      %v3360 = vld [vmem:[#allocation14 + $0x330] sm:$0xff]
      %v3361 = vld [vmem:[#allocation14 + $0x338] sm:$0xff]
      %v3362 = vld [vmem:[#allocation14 + $0x340] sm:$0xff]
      %v3363 = vld [vmem:[#allocation14 + $0x348] sm:$0xff]
      %v3364 = vld [vmem:[#allocation14 + $0x350] sm:$0xff]
      %v3365 = vld [vmem:[#allocation14 + $0x358] sm:$0xff]
      %v3366 = vld [vmem:[#allocation14 + $0x360] sm:$0xff]
      %v3367 = vld [vmem:[#allocation14 + $0x368] sm:$0xff]
      %v3368 = vld [vmem:[#allocation14 + $0x370] sm:$0xff]
      %v3369 = vld [vmem:[#allocation14 + $0x378] sm:$0xff]
      %v3370 = vld [vmem:[#allocation14 + $0x380] sm:$0xff]
      %v3371 = vld [vmem:[#allocation14 + $0x388] sm:$0xff]
      %v3372 = vld [vmem:[#allocation14 + $0x390] sm:$0xff]
      %v3373 = vld [vmem:[#allocation14 + $0x398] sm:$0xff]
      %v3374 = vld [vmem:[#allocation14 + $0x3a0] sm:$0xff]
      %v3375 = vld [vmem:[#allocation14 + $0x3a8] sm:$0xff]
      %v3376 = vld [vmem:[#allocation14 + $0x3b0] sm:$0xff]
      %v3377 = vld [vmem:[#allocation14 + $0x3b8] sm:$0xff]
      %v3378 = vld [vmem:[#allocation14 + $0x3c0] sm:$0xff]
      %v3379 = vld [vmem:[#allocation14 + $0x3c8] sm:$0xff]
      %v3380 = vld [vmem:[#allocation14 + $0x3d0] sm:$0xff]
      %v3381 = vld [vmem:[#allocation14 + $0x3d8] sm:$0xff]
      %v3382 = vld [vmem:[#allocation14 + $0x3e0] sm:$0xff]
      %v3383 = vld [vmem:[#allocation14 + $0x3e8] sm:$0xff]
      %v3384 = vld [vmem:[#allocation14 + $0x3f0] sm:$0xff]
      %v3385 = vld [vmem:[#allocation14 + $0x3f8] sm:$0xff]
      %v3386 = vld [vmem:[%s8] sm:$0xf]
      %v3387 = vpack.c.bf16 %v3198, %v3194
      %v3388 = vpack.c.bf16 %v3199, %v3195
      %v3389 = vpack.c.bf16 %v3200, %v3196
      %v3390 = vpack.c.bf16 %v3201, %v3197
      %v3391 = vpack.c.bf16 %v3206, %v3202
      %v3392 = vpack.c.bf16 %v3207, %v3203
      %v3393 = vpack.c.bf16 %v3208, %v3204
      %v3394 = vpack.c.bf16 %v3209, %v3205
      %v3395 = vpack.c.bf16 %v3214, %v3210
      %v3396 = vpack.c.bf16 %v3215, %v3211
      %v3397 = vpack.c.bf16 %v3216, %v3212
      %v3398 = vpack.c.bf16 %v3217, %v3213
      %v3399 = vpack.c.bf16 %v3222, %v3218
      %v3400 = vpack.c.bf16 %v3223, %v3219
      %v3401 = vpack.c.bf16 %v3224, %v3220
      %v3402 = vpack.c.bf16 %v3225, %v3221
      %v3403 = vpack.c.bf16 %v3230, %v3226
      %v3404 = vpack.c.bf16 %v3231, %v3227
      %v3405 = vpack.c.bf16 %v3232, %v3228
      %v3406 = vpack.c.bf16 %v3233, %v3229
      %v3407 = vpack.c.bf16 %v3238, %v3234
      %v3408 = vpack.c.bf16 %v3239, %v3235
      %v3409 = vpack.c.bf16 %v3240, %v3236
      %v3410 = vpack.c.bf16 %v3241, %v3237
      %v3411 = vpack.c.bf16 %v3246, %v3242
      %v3412 = vpack.c.bf16 %v3247, %v3243
      %v3413 = vpack.c.bf16 %v3248, %v3244
      %v3414 = vpack.c.bf16 %v3249, %v3245
      %v3415 = vpack.c.bf16 %v3254, %v3250
      %v3416 = vpack.c.bf16 %v3255, %v3251
      %v3417 = vpack.c.bf16 %v3256, %v3252
      %v3418 = vpack.c.bf16 %v3257, %v3253
      %v3420 = vlaneseq
      %v3421 = vshrl.u32 %v3420, 7
      %v3422 = vsub.s32 0, %v3421
      %v3423 = vrot.slane %v3386, %v3422
      %v3424 = vlaneseq
      %v3425 = vshrl.u32 %v3424, 7
      %v3426 = vsub.s32 1, %v3425
      %v3427 = vrot.slane %v3386, %v3426
      %v3428 = vlaneseq
      %v3429 = vshrl.u32 %v3428, 7
      %v3430 = vsub.s32 2, %v3429
      %v3431 = vrot.slane %v3386, %v3430
      %v3432 = vlaneseq
      %v3433 = vshrl.u32 %v3432, 7
      %v3434 = vsub.s32 3, %v3433
      %v3435 = vrot.slane %v3386, %v3434
      %v3568 = vunpack.c.l.b16 %v3258
      %v3569 = vunpack.c.h.b16 %v3258
      %v3570 = vunpack.c.l.b16 %v3259
      %v3571 = vunpack.c.h.b16 %v3259
      %v3572 = vunpack.c.l.b16 %v3260
      %v3573 = vunpack.c.h.b16 %v3260
      %v3574 = vunpack.c.l.b16 %v3261
      %v3575 = vunpack.c.h.b16 %v3261
      %v3576 = vunpack.c.l.b16 %v3262
      %v3577 = vunpack.c.h.b16 %v3262
      %v3578 = vunpack.c.l.b16 %v3263
      %v3579 = vunpack.c.h.b16 %v3263
      %v3580 = vunpack.c.l.b16 %v3264
      %v3581 = vunpack.c.h.b16 %v3264
      %v3582 = vunpack.c.l.b16 %v3265
      %v3583 = vunpack.c.h.b16 %v3265
      %v3584 = vunpack.c.l.b16 %v3266
      %v3585 = vunpack.c.h.b16 %v3266
      %v3586 = vunpack.c.l.b16 %v3267
      %v3587 = vunpack.c.h.b16 %v3267
      %v3588 = vunpack.c.l.b16 %v3268
      %v3589 = vunpack.c.h.b16 %v3268
      %v3590 = vunpack.c.l.b16 %v3269
      %v3591 = vunpack.c.h.b16 %v3269
      %v3592 = vunpack.c.l.b16 %v3270
      %v3593 = vunpack.c.h.b16 %v3270
      %v3594 = vunpack.c.l.b16 %v3271
      %v3595 = vunpack.c.h.b16 %v3271
      %v3596 = vunpack.c.l.b16 %v3272
      %v3597 = vunpack.c.h.b16 %v3272
      %v3598 = vunpack.c.l.b16 %v3273
      %v3599 = vunpack.c.h.b16 %v3273
      %v3600 = vunpack.c.l.b16 %v3274
      %v3601 = vunpack.c.h.b16 %v3274
      %v3602 = vunpack.c.l.b16 %v3275
      %v3603 = vunpack.c.h.b16 %v3275
      %v3604 = vunpack.c.l.b16 %v3276
      %v3605 = vunpack.c.h.b16 %v3276
      %v3606 = vunpack.c.l.b16 %v3277
      %v3607 = vunpack.c.h.b16 %v3277
      %v3608 = vunpack.c.l.b16 %v3278
      %v3609 = vunpack.c.h.b16 %v3278
      %v3610 = vunpack.c.l.b16 %v3279
      %v3611 = vunpack.c.h.b16 %v3279
      %v3612 = vunpack.c.l.b16 %v3280
      %v3613 = vunpack.c.h.b16 %v3280
      %v3614 = vunpack.c.l.b16 %v3281
      %v3615 = vunpack.c.h.b16 %v3281
      %v3616 = vunpack.c.l.b16 %v3282
      %v3617 = vunpack.c.h.b16 %v3282
      %v3618 = vunpack.c.l.b16 %v3283
      %v3619 = vunpack.c.h.b16 %v3283
      %v3620 = vunpack.c.l.b16 %v3284
      %v3621 = vunpack.c.h.b16 %v3284
      %v3622 = vunpack.c.l.b16 %v3285
      %v3623 = vunpack.c.h.b16 %v3285
      %v3624 = vunpack.c.l.b16 %v3286
      %v3625 = vunpack.c.h.b16 %v3286
      %v3626 = vunpack.c.l.b16 %v3287
      %v3627 = vunpack.c.h.b16 %v3287
      %v3628 = vunpack.c.l.b16 %v3288
      %v3629 = vunpack.c.h.b16 %v3288
      %v3630 = vunpack.c.l.b16 %v3289
      %v3631 = vunpack.c.h.b16 %v3289
      %v3632 = vunpack.c.l.b16 %v3290
      %v3633 = vunpack.c.h.b16 %v3290
      %v3634 = vunpack.c.l.b16 %v3291
      %v3635 = vunpack.c.h.b16 %v3291
      %v3636 = vunpack.c.l.b16 %v3292
      %v3637 = vunpack.c.h.b16 %v3292
      %v3638 = vunpack.c.l.b16 %v3293
      %v3639 = vunpack.c.h.b16 %v3293
      %v3640 = vunpack.c.l.b16 %v3294
      %v3641 = vunpack.c.h.b16 %v3294
      %v3642 = vunpack.c.l.b16 %v3295
      %v3643 = vunpack.c.h.b16 %v3295
      %v3644 = vunpack.c.l.b16 %v3296
      %v3645 = vunpack.c.h.b16 %v3296
      %v3646 = vunpack.c.l.b16 %v3297
      %v3647 = vunpack.c.h.b16 %v3297
      %v3648 = vunpack.c.l.b16 %v3298
      %v3649 = vunpack.c.h.b16 %v3298
      %v3650 = vunpack.c.l.b16 %v3299
      %v3651 = vunpack.c.h.b16 %v3299
      %v3652 = vunpack.c.l.b16 %v3300
      %v3653 = vunpack.c.h.b16 %v3300
      %v3654 = vunpack.c.l.b16 %v3301
      %v3655 = vunpack.c.h.b16 %v3301
      %v3656 = vunpack.c.l.b16 %v3302
      %v3657 = vunpack.c.h.b16 %v3302
      %v3658 = vunpack.c.l.b16 %v3303
      %v3659 = vunpack.c.h.b16 %v3303
      %v3660 = vunpack.c.l.b16 %v3304
      %v3661 = vunpack.c.h.b16 %v3304
      %v3662 = vunpack.c.l.b16 %v3305
      %v3663 = vunpack.c.h.b16 %v3305
      %v3664 = vunpack.c.l.b16 %v3306
      %v3665 = vunpack.c.h.b16 %v3306
      %v3666 = vunpack.c.l.b16 %v3307
      %v3667 = vunpack.c.h.b16 %v3307
      %v3668 = vunpack.c.l.b16 %v3308
      %v3669 = vunpack.c.h.b16 %v3308
      %v3670 = vunpack.c.l.b16 %v3309
      %v3671 = vunpack.c.h.b16 %v3309
      %v3672 = vunpack.c.l.b16 %v3310
      %v3673 = vunpack.c.h.b16 %v3310
      %v3674 = vunpack.c.l.b16 %v3311
      %v3675 = vunpack.c.h.b16 %v3311
      %v3676 = vunpack.c.l.b16 %v3312
      %v3677 = vunpack.c.h.b16 %v3312
      %v3678 = vunpack.c.l.b16 %v3313
      %v3679 = vunpack.c.h.b16 %v3313
      %v3680 = vunpack.c.l.b16 %v3314
      %v3681 = vunpack.c.h.b16 %v3314
      %v3682 = vunpack.c.l.b16 %v3315
      %v3683 = vunpack.c.h.b16 %v3315
      %v3684 = vunpack.c.l.b16 %v3316
      %v3685 = vunpack.c.h.b16 %v3316
      %v3686 = vunpack.c.l.b16 %v3317
      %v3687 = vunpack.c.h.b16 %v3317
      %v3688 = vunpack.c.l.b16 %v3318
      %v3689 = vunpack.c.h.b16 %v3318
      %v3690 = vunpack.c.l.b16 %v3319
      %v3691 = vunpack.c.h.b16 %v3319
      %v3692 = vunpack.c.l.b16 %v3320
      %v3693 = vunpack.c.h.b16 %v3320
      %v3694 = vunpack.c.l.b16 %v3321
      %v3695 = vunpack.c.h.b16 %v3321
      %v3696 = vunpack.c.l.b16 %v3322
      %v3697 = vunpack.c.h.b16 %v3322
      %v3698 = vunpack.c.l.b16 %v3323
      %v3699 = vunpack.c.h.b16 %v3323
      %v3700 = vunpack.c.l.b16 %v3324
      %v3701 = vunpack.c.h.b16 %v3324
      %v3702 = vunpack.c.l.b16 %v3325
      %v3703 = vunpack.c.h.b16 %v3325
      %v3704 = vunpack.c.l.b16 %v3326
      %v3705 = vunpack.c.h.b16 %v3326
      %v3706 = vunpack.c.l.b16 %v3327
      %v3707 = vunpack.c.h.b16 %v3327
      %v3708 = vunpack.c.l.b16 %v3328
      %v3709 = vunpack.c.h.b16 %v3328
      %v3710 = vunpack.c.l.b16 %v3329
      %v3711 = vunpack.c.h.b16 %v3329
      %v3712 = vunpack.c.l.b16 %v3330
      %v3713 = vunpack.c.h.b16 %v3330
      %v3714 = vunpack.c.l.b16 %v3331
      %v3715 = vunpack.c.h.b16 %v3331
      %v3716 = vunpack.c.l.b16 %v3332
      %v3717 = vunpack.c.h.b16 %v3332
      %v3718 = vunpack.c.l.b16 %v3333
      %v3719 = vunpack.c.h.b16 %v3333
      %v3720 = vunpack.c.l.b16 %v3334
      %v3721 = vunpack.c.h.b16 %v3334
      %v3722 = vunpack.c.l.b16 %v3335
      %v3723 = vunpack.c.h.b16 %v3335
      %v3724 = vunpack.c.l.b16 %v3336
      %v3725 = vunpack.c.h.b16 %v3336
      %v3726 = vunpack.c.l.b16 %v3337
      %v3727 = vunpack.c.h.b16 %v3337
      %v3728 = vunpack.c.l.b16 %v3338
      %v3729 = vunpack.c.h.b16 %v3338
      %v3730 = vunpack.c.l.b16 %v3339
      %v3731 = vunpack.c.h.b16 %v3339
      %v3732 = vunpack.c.l.b16 %v3340
      %v3733 = vunpack.c.h.b16 %v3340
      %v3734 = vunpack.c.l.b16 %v3341
      %v3735 = vunpack.c.h.b16 %v3341
      %v3736 = vunpack.c.l.b16 %v3342
      %v3737 = vunpack.c.h.b16 %v3342
      %v3738 = vunpack.c.l.b16 %v3343
      %v3739 = vunpack.c.h.b16 %v3343
      %v3740 = vunpack.c.l.b16 %v3344
      %v3741 = vunpack.c.h.b16 %v3344
      %v3742 = vunpack.c.l.b16 %v3345
      %v3743 = vunpack.c.h.b16 %v3345
      %v3744 = vunpack.c.l.b16 %v3346
      %v3745 = vunpack.c.h.b16 %v3346
      %v3746 = vunpack.c.l.b16 %v3347
      %v3747 = vunpack.c.h.b16 %v3347
      %v3748 = vunpack.c.l.b16 %v3348
      %v3749 = vunpack.c.h.b16 %v3348
      %v3750 = vunpack.c.l.b16 %v3349
      %v3751 = vunpack.c.h.b16 %v3349
      %v3752 = vunpack.c.l.b16 %v3350
      %v3753 = vunpack.c.h.b16 %v3350
      %v3754 = vunpack.c.l.b16 %v3351
      %v3755 = vunpack.c.h.b16 %v3351
      %v3756 = vunpack.c.l.b16 %v3352
      %v3757 = vunpack.c.h.b16 %v3352
      %v3758 = vunpack.c.l.b16 %v3353
      %v3759 = vunpack.c.h.b16 %v3353
      %v3760 = vunpack.c.l.b16 %v3354
      %v3761 = vunpack.c.h.b16 %v3354
      %v3762 = vunpack.c.l.b16 %v3355
      %v3763 = vunpack.c.h.b16 %v3355
      %v3764 = vunpack.c.l.b16 %v3356
      %v3765 = vunpack.c.h.b16 %v3356
      %v3766 = vunpack.c.l.b16 %v3357
      %v3767 = vunpack.c.h.b16 %v3357
      %v3768 = vunpack.c.l.b16 %v3358
      %v3769 = vunpack.c.h.b16 %v3358
      %v3770 = vunpack.c.l.b16 %v3359
      %v3771 = vunpack.c.h.b16 %v3359
      %v3772 = vunpack.c.l.b16 %v3360
      %v3773 = vunpack.c.h.b16 %v3360
      %v3774 = vunpack.c.l.b16 %v3361
      %v3775 = vunpack.c.h.b16 %v3361
      %v3776 = vunpack.c.l.b16 %v3362
      %v3777 = vunpack.c.h.b16 %v3362
      %v3778 = vunpack.c.l.b16 %v3363
      %v3779 = vunpack.c.h.b16 %v3363
      %v3780 = vunpack.c.l.b16 %v3364
      %v3781 = vunpack.c.h.b16 %v3364
      %v3782 = vunpack.c.l.b16 %v3365
      %v3783 = vunpack.c.h.b16 %v3365
      %v3784 = vunpack.c.l.b16 %v3366
      %v3785 = vunpack.c.h.b16 %v3366
      %v3786 = vunpack.c.l.b16 %v3367
      %v3787 = vunpack.c.h.b16 %v3367
      %v3788 = vunpack.c.l.b16 %v3368
      %v3789 = vunpack.c.h.b16 %v3368
      %v3790 = vunpack.c.l.b16 %v3369
      %v3791 = vunpack.c.h.b16 %v3369
      %v3792 = vunpack.c.l.b16 %v3370
      %v3793 = vunpack.c.h.b16 %v3370
      %v3794 = vunpack.c.l.b16 %v3371
      %v3795 = vunpack.c.h.b16 %v3371
      %v3796 = vunpack.c.l.b16 %v3372
      %v3797 = vunpack.c.h.b16 %v3372
      %v3798 = vunpack.c.l.b16 %v3373
      %v3799 = vunpack.c.h.b16 %v3373
      %v3800 = vunpack.c.l.b16 %v3374
      %v3801 = vunpack.c.h.b16 %v3374
      %v3802 = vunpack.c.l.b16 %v3375
      %v3803 = vunpack.c.h.b16 %v3375
      %v3804 = vunpack.c.l.b16 %v3376
      %v3805 = vunpack.c.h.b16 %v3376
      %v3806 = vunpack.c.l.b16 %v3377
      %v3807 = vunpack.c.h.b16 %v3377
      %v3808 = vunpack.c.l.b16 %v3378
      %v3809 = vunpack.c.h.b16 %v3378
      %v3810 = vunpack.c.l.b16 %v3379
      %v3811 = vunpack.c.h.b16 %v3379
      %v3812 = vunpack.c.l.b16 %v3380
      %v3813 = vunpack.c.h.b16 %v3380
      %v3814 = vunpack.c.l.b16 %v3381
      %v3815 = vunpack.c.h.b16 %v3381
      %v3816 = vunpack.c.l.b16 %v3382
      %v3817 = vunpack.c.h.b16 %v3382
      %v3818 = vunpack.c.l.b16 %v3383
      %v3819 = vunpack.c.h.b16 %v3383
      %v3820 = vunpack.c.l.b16 %v3384
      %v3821 = vunpack.c.h.b16 %v3384
      %v3822 = vunpack.c.l.b16 %v3385
      %v3823 = vunpack.c.h.b16 %v3385
      %v3824 = vpack.c.b16 %v3572, %v3568
      %v3825 = vpack.c.b16 %v3573, %v3569
      %v3826 = vpack.c.b16 %v3574, %v3570
      %v3827 = vpack.c.b16 %v3575, %v3571
      %v3828 = vpack.c.b16 %v3580, %v3576
      %v3829 = vpack.c.b16 %v3581, %v3577
      %v3830 = vpack.c.b16 %v3582, %v3578
      %v3831 = vpack.c.b16 %v3583, %v3579
      %v3832 = vpack.c.b16 %v3588, %v3584
      %v3833 = vpack.c.b16 %v3589, %v3585
      %v3834 = vpack.c.b16 %v3590, %v3586
      %v3835 = vpack.c.b16 %v3591, %v3587
      %v3836 = vpack.c.b16 %v3596, %v3592
      %v3837 = vpack.c.b16 %v3597, %v3593
      %v3838 = vpack.c.b16 %v3598, %v3594
      %v3839 = vpack.c.b16 %v3599, %v3595
      %v3840 = vpack.c.b16 %v3604, %v3600
      %v3841 = vpack.c.b16 %v3605, %v3601
      %v3842 = vpack.c.b16 %v3606, %v3602
      %v3843 = vpack.c.b16 %v3607, %v3603
      %v3844 = vpack.c.b16 %v3612, %v3608
      %v3845 = vpack.c.b16 %v3613, %v3609
      %v3846 = vpack.c.b16 %v3614, %v3610
      %v3847 = vpack.c.b16 %v3615, %v3611
      %v3848 = vpack.c.b16 %v3620, %v3616
      %v3849 = vpack.c.b16 %v3621, %v3617
      %v3850 = vpack.c.b16 %v3622, %v3618
      %v3851 = vpack.c.b16 %v3623, %v3619
      %v3852 = vpack.c.b16 %v3628, %v3624
      %v3853 = vpack.c.b16 %v3629, %v3625
      %v3854 = vpack.c.b16 %v3630, %v3626
      %v3855 = vpack.c.b16 %v3631, %v3627
      %v3856 = vpack.c.b16 %v3636, %v3632
      %v3857 = vpack.c.b16 %v3637, %v3633
      %v3858 = vpack.c.b16 %v3638, %v3634
      %v3859 = vpack.c.b16 %v3639, %v3635
      %v3860 = vpack.c.b16 %v3644, %v3640
      %v3861 = vpack.c.b16 %v3645, %v3641
      %v3862 = vpack.c.b16 %v3646, %v3642
      %v3863 = vpack.c.b16 %v3647, %v3643
      %v3864 = vpack.c.b16 %v3652, %v3648
      %v3865 = vpack.c.b16 %v3653, %v3649
      %v3866 = vpack.c.b16 %v3654, %v3650
      %v3867 = vpack.c.b16 %v3655, %v3651
      %v3868 = vpack.c.b16 %v3660, %v3656
      %v3869 = vpack.c.b16 %v3661, %v3657
      %v3870 = vpack.c.b16 %v3662, %v3658
      %v3871 = vpack.c.b16 %v3663, %v3659
      %v3872 = vpack.c.b16 %v3668, %v3664
      %v3873 = vpack.c.b16 %v3669, %v3665
      %v3874 = vpack.c.b16 %v3670, %v3666
      %v3875 = vpack.c.b16 %v3671, %v3667
      %v3876 = vpack.c.b16 %v3676, %v3672
      %v3877 = vpack.c.b16 %v3677, %v3673
      %v3878 = vpack.c.b16 %v3678, %v3674
      %v3879 = vpack.c.b16 %v3679, %v3675
      %v3880 = vpack.c.b16 %v3684, %v3680
      %v3881 = vpack.c.b16 %v3685, %v3681
      %v3882 = vpack.c.b16 %v3686, %v3682
      %v3883 = vpack.c.b16 %v3687, %v3683
      %v3884 = vpack.c.b16 %v3692, %v3688
      %v3885 = vpack.c.b16 %v3693, %v3689
      %v3886 = vpack.c.b16 %v3694, %v3690
      %v3887 = vpack.c.b16 %v3695, %v3691
      %v3888 = vpack.c.b16 %v3700, %v3696
      %v3889 = vpack.c.b16 %v3701, %v3697
      %v3890 = vpack.c.b16 %v3702, %v3698
      %v3891 = vpack.c.b16 %v3703, %v3699
      %v3892 = vpack.c.b16 %v3708, %v3704
      %v3893 = vpack.c.b16 %v3709, %v3705
      %v3894 = vpack.c.b16 %v3710, %v3706
      %v3895 = vpack.c.b16 %v3711, %v3707
      %v3896 = vpack.c.b16 %v3716, %v3712
      %v3897 = vpack.c.b16 %v3717, %v3713
      %v3898 = vpack.c.b16 %v3718, %v3714
      %v3899 = vpack.c.b16 %v3719, %v3715
      %v3900 = vpack.c.b16 %v3724, %v3720
      %v3901 = vpack.c.b16 %v3725, %v3721
      %v3902 = vpack.c.b16 %v3726, %v3722
      %v3903 = vpack.c.b16 %v3727, %v3723
      %v3904 = vpack.c.b16 %v3732, %v3728
      %v3905 = vpack.c.b16 %v3733, %v3729
      %v3906 = vpack.c.b16 %v3734, %v3730
      %v3907 = vpack.c.b16 %v3735, %v3731
      %v3908 = vpack.c.b16 %v3740, %v3736
      %v3909 = vpack.c.b16 %v3741, %v3737
      %v3910 = vpack.c.b16 %v3742, %v3738
      %v3911 = vpack.c.b16 %v3743, %v3739
      %v3912 = vpack.c.b16 %v3748, %v3744
      %v3913 = vpack.c.b16 %v3749, %v3745
      %v3914 = vpack.c.b16 %v3750, %v3746
      %v3915 = vpack.c.b16 %v3751, %v3747
      %v3916 = vpack.c.b16 %v3756, %v3752
      %v3917 = vpack.c.b16 %v3757, %v3753
      %v3918 = vpack.c.b16 %v3758, %v3754
      %v3919 = vpack.c.b16 %v3759, %v3755
      %v3920 = vpack.c.b16 %v3764, %v3760
      %v3921 = vpack.c.b16 %v3765, %v3761
      %v3922 = vpack.c.b16 %v3766, %v3762
      %v3923 = vpack.c.b16 %v3767, %v3763
      %v3924 = vpack.c.b16 %v3772, %v3768
      %v3925 = vpack.c.b16 %v3773, %v3769
      %v3926 = vpack.c.b16 %v3774, %v3770
      %v3927 = vpack.c.b16 %v3775, %v3771
      %v3928 = vpack.c.b16 %v3780, %v3776
      %v3929 = vpack.c.b16 %v3781, %v3777
      %v3930 = vpack.c.b16 %v3782, %v3778
      %v3931 = vpack.c.b16 %v3783, %v3779
      %v3932 = vpack.c.b16 %v3788, %v3784
      %v3933 = vpack.c.b16 %v3789, %v3785
      %v3934 = vpack.c.b16 %v3790, %v3786
      %v3935 = vpack.c.b16 %v3791, %v3787
      %v3936 = vpack.c.b16 %v3796, %v3792
      %v3937 = vpack.c.b16 %v3797, %v3793
      %v3938 = vpack.c.b16 %v3798, %v3794
      %v3939 = vpack.c.b16 %v3799, %v3795
      %v3940 = vpack.c.b16 %v3804, %v3800
      %v3941 = vpack.c.b16 %v3805, %v3801
      %v3942 = vpack.c.b16 %v3806, %v3802
      %v3943 = vpack.c.b16 %v3807, %v3803
      %v3944 = vpack.c.b16 %v3812, %v3808
      %v3945 = vpack.c.b16 %v3813, %v3809
      %v3946 = vpack.c.b16 %v3814, %v3810
      %v3947 = vpack.c.b16 %v3815, %v3811
      %v3948 = vpack.c.b16 %v3820, %v3816
      %v3949 = vpack.c.b16 %v3821, %v3817
      %v3950 = vpack.c.b16 %v3822, %v3818
      %v3951 = vpack.c.b16 %v3823, %v3819
      %4080 = vmatprep.subr.bf16.mxu0 %v3853
      %4081 = vmatpush1.bf16.msra.mxu0 %v3852
      %4082 = vmatprep.subr.bf16.mxu0 %v3849
      %4083 = vmatpush1.bf16.msra.mxu0 %v3848
      %4084 = vmatprep.subr.bf16.mxu0 %v3845
      %4085 = vmatpush1.bf16.msra.mxu0 %v3844
      %4086 = vmatprep.subr.bf16.mxu0 %v3841
      %4087 = vmatpush1.bf16.msra.mxu0 %v3840
      %4088 = vmatprep.subr.bf16.mxu0 %v3837
      %4089 = vmatpush1.bf16.msra.mxu0 %v3836
      %4090 = vmatprep.subr.bf16.mxu0 %v3833
      %4091 = vmatpush1.bf16.msra.mxu0 %v3832
      %4092 = vmatprep.subr.bf16.mxu0 %v3829
      %4093 = vmatpush1.bf16.msra.mxu0 %v3828
      %4094 = vmatprep.subr.bf16.mxu0 %v3825
      %4095 = vmatpush1.bf16.msra.mxu0 %v3824
      %4096 = vmatprep.subr.bf16.mxu0 %v3885
      %4097 = vmatpush2.bf16.msra.mxu0 %v3884
      %4098 = vmatprep.subr.bf16.mxu0 %v3881
      %4099 = vmatpush2.bf16.msra.mxu0 %v3880
      %4100 = vmatprep.subr.bf16.mxu0 %v3877
      %4101 = vmatpush2.bf16.msra.mxu0 %v3876
      %4102 = vmatprep.subr.bf16.mxu0 %v3873
      %4103 = vmatpush2.bf16.msra.mxu0 %v3872
      %4104 = vmatprep.subr.bf16.mxu0 %v3869
      %4105 = vmatpush2.bf16.msra.mxu0 %v3868
      %4106 = vmatprep.subr.bf16.mxu0 %v3865
      %4107 = vmatpush2.bf16.msra.mxu0 %v3864
      %4108 = vmatprep.subr.bf16.mxu0 %v3861
      %4109 = vmatpush2.bf16.msra.mxu0 %v3860
      %4110 = vmatprep.subr.bf16.mxu0 %v3857
      %4111 = vmatpush2.bf16.msra.mxu0 %v3856
      %4112 = vmatprep.mubr.bf16.mxu0 %v3388
      %4113 = vmatmul.mubr.bf16.gmra.mxu0 %v3387
      %v4114 = vpop.f32.mrf.mxu0
      %v4115 = vadd.f32 %v3423, %v4114
      %v4116 = vpop.f32.mrf.mxu0
      %v4117 = vadd.f32 %v3427, %v4116
      %v4118 = vpop.f32.mrf.mxu0
      %v4119 = vadd.f32 %v3423, %v4118
      %v4120 = vpop.f32.mrf.mxu0
      %v4121 = vadd.f32 %v3427, %v4120
      %4122 = vmatprep.mubr.bf16.mxu0 %v3392
      %4123 = vmatmul.mubr.bf16.gmra.mxu0 %v3391
      %v4124 = vpop.f32.mrf.mxu0
      %v4125 = vadd.f32 %v3423, %v4124
      %v4126 = vpop.f32.mrf.mxu0
      %v4127 = vadd.f32 %v3427, %v4126
      %v4128 = vpop.f32.mrf.mxu0
      %v4129 = vadd.f32 %v3423, %v4128
      %v4130 = vpop.f32.mrf.mxu0
      %v4131 = vadd.f32 %v3427, %v4130
      %4132 = vmatprep.mubr.bf16.mxu0 %v3396
      %4133 = vmatmul.mubr.bf16.gmra.mxu0 %v3395
      %v4134 = vpop.f32.mrf.mxu0
      %v4135 = vadd.f32 %v3423, %v4134
      %v4136 = vpop.f32.mrf.mxu0
      %v4137 = vadd.f32 %v3427, %v4136
      %v4138 = vpop.f32.mrf.mxu0
      %v4139 = vadd.f32 %v3423, %v4138
      %v4140 = vpop.f32.mrf.mxu0
      %v4141 = vadd.f32 %v3427, %v4140
      %4142 = vmatprep.mubr.bf16.mxu0 %v3400
      %4143 = vmatmul.mubr.bf16.gmra.mxu0 %v3399
      %v4144 = vpop.f32.mrf.mxu0
      %v4145 = vadd.f32 %v3423, %v4144
      %v4146 = vpop.f32.mrf.mxu0
      %v4147 = vadd.f32 %v3427, %v4146
      %v4148 = vpop.f32.mrf.mxu0
      %v4149 = vadd.f32 %v3423, %v4148
      %v4150 = vpop.f32.mrf.mxu0
      %v4151 = vadd.f32 %v3427, %v4150
      %4152 = vmatprep.mubr.bf16.mxu0 %v3404
      %4153 = vmatmul.mubr.bf16.gmra.mxu0 %v3403
      %v4154 = vpop.f32.mrf.mxu0
      %v4155 = vadd.f32 %v3423, %v4154
      %v4156 = vpop.f32.mrf.mxu0
      %v4157 = vadd.f32 %v3427, %v4156
      %v4158 = vpop.f32.mrf.mxu0
      %v4159 = vadd.f32 %v3423, %v4158
      %v4160 = vpop.f32.mrf.mxu0
      %v4161 = vadd.f32 %v3427, %v4160
      %4162 = vmatprep.mubr.bf16.mxu0 %v3408
      %4163 = vmatmul.mubr.bf16.gmra.mxu0 %v3407
      %v4164 = vpop.f32.mrf.mxu0
      %v4165 = vadd.f32 %v3423, %v4164
      %v4166 = vpop.f32.mrf.mxu0
      %v4167 = vadd.f32 %v3427, %v4166
      %v4168 = vpop.f32.mrf.mxu0
      %v4169 = vadd.f32 %v3423, %v4168
      %v4170 = vpop.f32.mrf.mxu0
      %v4171 = vadd.f32 %v3427, %v4170
      %4172 = vmatprep.mubr.bf16.mxu0 %v3412
      %4173 = vmatmul.mubr.bf16.gmra.mxu0 %v3411
      %v4174 = vpop.f32.mrf.mxu0
      %v4175 = vadd.f32 %v3423, %v4174
      %v4176 = vpop.f32.mrf.mxu0
      %v4177 = vadd.f32 %v3427, %v4176
      %v4178 = vpop.f32.mrf.mxu0
      %v4179 = vadd.f32 %v3423, %v4178
      %v4180 = vpop.f32.mrf.mxu0
      %v4181 = vadd.f32 %v3427, %v4180
      %4182 = vmatprep.mubr.bf16.mxu0 %v3416
      %4183 = vmatmul.mubr.bf16.gmra.mxu0 %v3415
      %v4184 = vpop.f32.mrf.mxu0
      %v4185 = vadd.f32 %v3423, %v4184
      %v4186 = vpop.f32.mrf.mxu0
      %v4187 = vadd.f32 %v3427, %v4186
      %v4188 = vpop.f32.mrf.mxu0
      %v4189 = vadd.f32 %v3423, %v4188
      %v4190 = vpop.f32.mrf.mxu0
      %v4191 = vadd.f32 %v3427, %v4190
      %4192 = vdwg.mxu0
      %4193 = vmatprep.subr.bf16.mxu0 %v3917
      %4194 = vmatpush1.bf16.msra.mxu0 %v3916
      %4195 = vmatprep.subr.bf16.mxu0 %v3913
      %4196 = vmatpush1.bf16.msra.mxu0 %v3912
      %4197 = vmatprep.subr.bf16.mxu0 %v3909
      %4198 = vmatpush1.bf16.msra.mxu0 %v3908
      %4199 = vmatprep.subr.bf16.mxu0 %v3905
      %4200 = vmatpush1.bf16.msra.mxu0 %v3904
      %4201 = vmatprep.subr.bf16.mxu0 %v3901
      %4202 = vmatpush1.bf16.msra.mxu0 %v3900
      %4203 = vmatprep.subr.bf16.mxu0 %v3897
      %4204 = vmatpush1.bf16.msra.mxu0 %v3896
      %4205 = vmatprep.subr.bf16.mxu0 %v3893
      %4206 = vmatpush1.bf16.msra.mxu0 %v3892
      %4207 = vmatprep.subr.bf16.mxu0 %v3889
      %4208 = vmatpush1.bf16.msra.mxu0 %v3888
      %4209 = vmatprep.subr.bf16.mxu0 %v3949
      %4210 = vmatpush2.bf16.msra.mxu0 %v3948
      %4211 = vmatprep.subr.bf16.mxu0 %v3945
      %4212 = vmatpush2.bf16.msra.mxu0 %v3944
      %4213 = vmatprep.subr.bf16.mxu0 %v3941
      %4214 = vmatpush2.bf16.msra.mxu0 %v3940
      %4215 = vmatprep.subr.bf16.mxu0 %v3937
      %4216 = vmatpush2.bf16.msra.mxu0 %v3936
      %4217 = vmatprep.subr.bf16.mxu0 %v3933
      %4218 = vmatpush2.bf16.msra.mxu0 %v3932
      %4219 = vmatprep.subr.bf16.mxu0 %v3929
      %4220 = vmatpush2.bf16.msra.mxu0 %v3928
      %4221 = vmatprep.subr.bf16.mxu0 %v3925
      %4222 = vmatpush2.bf16.msra.mxu0 %v3924
      %4223 = vmatprep.subr.bf16.mxu0 %v3921
      %4224 = vmatpush2.bf16.msra.mxu0 %v3920
      %4225 = vmatprep.mubr.bf16.mxu0 %v3390
      %4226 = vmatmul.mubr.bf16.gmra.mxu0 %v3389
      %v4227 = vpop.f32.mrf.mxu0
      %v4228 = vadd.f32 %v4115, %v4227
      %v4229 = vpop.f32.mrf.mxu0
      %v4230 = vadd.f32 %v4117, %v4229
      %v4231 = vpop.f32.mrf.mxu0
      %v4232 = vadd.f32 %v4119, %v4231
      %v4233 = vpop.f32.mrf.mxu0
      %v4234 = vadd.f32 %v4121, %v4233
      %4235 = vmatprep.mubr.bf16.mxu0 %v3394
      %4236 = vmatmul.mubr.bf16.gmra.mxu0 %v3393
      %v4237 = vpop.f32.mrf.mxu0
      %v4238 = vadd.f32 %v4125, %v4237
      %v4239 = vpop.f32.mrf.mxu0
      %v4240 = vadd.f32 %v4127, %v4239
      %v4241 = vpop.f32.mrf.mxu0
      %v4242 = vadd.f32 %v4129, %v4241
      %v4243 = vpop.f32.mrf.mxu0
      %v4244 = vadd.f32 %v4131, %v4243
      %4245 = vmatprep.mubr.bf16.mxu0 %v3398
      %4246 = vmatmul.mubr.bf16.gmra.mxu0 %v3397
      %v4247 = vpop.f32.mrf.mxu0
      %v4248 = vadd.f32 %v4135, %v4247
      %v4249 = vpop.f32.mrf.mxu0
      %v4250 = vadd.f32 %v4137, %v4249
      %v4251 = vpop.f32.mrf.mxu0
      %v4252 = vadd.f32 %v4139, %v4251
      %v4253 = vpop.f32.mrf.mxu0
      %v4254 = vadd.f32 %v4141, %v4253
      %4255 = vmatprep.mubr.bf16.mxu0 %v3402
      %4256 = vmatmul.mubr.bf16.gmra.mxu0 %v3401
      %v4257 = vpop.f32.mrf.mxu0
      %v4258 = vadd.f32 %v4145, %v4257
      %v4259 = vpop.f32.mrf.mxu0
      %v4260 = vadd.f32 %v4147, %v4259
      %v4261 = vpop.f32.mrf.mxu0
      %v4262 = vadd.f32 %v4149, %v4261
      %v4263 = vpop.f32.mrf.mxu0
      %v4264 = vadd.f32 %v4151, %v4263
      %4265 = vmatprep.mubr.bf16.mxu0 %v3406
      %4266 = vmatmul.mubr.bf16.gmra.mxu0 %v3405
      %v4267 = vpop.f32.mrf.mxu0
      %v4268 = vadd.f32 %v4155, %v4267
      %v4269 = vpop.f32.mrf.mxu0
      %v4270 = vadd.f32 %v4157, %v4269
      %v4271 = vpop.f32.mrf.mxu0
      %v4272 = vadd.f32 %v4159, %v4271
      %v4273 = vpop.f32.mrf.mxu0
      %v4274 = vadd.f32 %v4161, %v4273
      %4275 = vmatprep.mubr.bf16.mxu0 %v3410
      %4276 = vmatmul.mubr.bf16.gmra.mxu0 %v3409
      %v4277 = vpop.f32.mrf.mxu0
      %v4278 = vadd.f32 %v4165, %v4277
      %v4279 = vpop.f32.mrf.mxu0
      %v4280 = vadd.f32 %v4167, %v4279
      %v4281 = vpop.f32.mrf.mxu0
      %v4282 = vadd.f32 %v4169, %v4281
      %v4283 = vpop.f32.mrf.mxu0
      %v4284 = vadd.f32 %v4171, %v4283
      %4285 = vmatprep.mubr.bf16.mxu0 %v3414
      %4286 = vmatmul.mubr.bf16.gmra.mxu0 %v3413
      %v4287 = vpop.f32.mrf.mxu0
      %v4288 = vadd.f32 %v4175, %v4287
      %v4289 = vpop.f32.mrf.mxu0
      %v4290 = vadd.f32 %v4177, %v4289
      %v4291 = vpop.f32.mrf.mxu0
      %v4292 = vadd.f32 %v4179, %v4291
      %v4293 = vpop.f32.mrf.mxu0
      %v4294 = vadd.f32 %v4181, %v4293
      %4295 = vmatprep.mubr.bf16.mxu0 %v3418
      %4296 = vmatmul.mubr.bf16.gmra.mxu0 %v3417
      %v4297 = vpop.f32.mrf.mxu0
      %v4298 = vadd.f32 %v4185, %v4297
      %v4299 = vpop.f32.mrf.mxu0
      %v4300 = vadd.f32 %v4187, %v4299
      %v4301 = vpop.f32.mrf.mxu0
      %v4302 = vadd.f32 %v4189, %v4301
      %v4303 = vpop.f32.mrf.mxu0
      %v4304 = vadd.f32 %v4191, %v4303
      %4305 = vdwg.mxu0
      %4306 = vmatprep.subr.bf16.mxu0 %v3855
      %4307 = vmatpush1.bf16.msra.mxu0 %v3854
      %4308 = vmatprep.subr.bf16.mxu0 %v3851
      %4309 = vmatpush1.bf16.msra.mxu0 %v3850
      %4310 = vmatprep.subr.bf16.mxu0 %v3847
      %4311 = vmatpush1.bf16.msra.mxu0 %v3846
      %4312 = vmatprep.subr.bf16.mxu0 %v3843
      %4313 = vmatpush1.bf16.msra.mxu0 %v3842
      %4314 = vmatprep.subr.bf16.mxu0 %v3839
      %4315 = vmatpush1.bf16.msra.mxu0 %v3838
      %4316 = vmatprep.subr.bf16.mxu0 %v3835
      %4317 = vmatpush1.bf16.msra.mxu0 %v3834
      %4318 = vmatprep.subr.bf16.mxu0 %v3831
      %4319 = vmatpush1.bf16.msra.mxu0 %v3830
      %4320 = vmatprep.subr.bf16.mxu0 %v3827
      %4321 = vmatpush1.bf16.msra.mxu0 %v3826
      %4322 = vmatprep.subr.bf16.mxu0 %v3887
      %4323 = vmatpush2.bf16.msra.mxu0 %v3886
      %4324 = vmatprep.subr.bf16.mxu0 %v3883
      %4325 = vmatpush2.bf16.msra.mxu0 %v3882
      %4326 = vmatprep.subr.bf16.mxu0 %v3879
      %4327 = vmatpush2.bf16.msra.mxu0 %v3878
      %4328 = vmatprep.subr.bf16.mxu0 %v3875
      %4329 = vmatpush2.bf16.msra.mxu0 %v3874
      %4330 = vmatprep.subr.bf16.mxu0 %v3871
      %4331 = vmatpush2.bf16.msra.mxu0 %v3870
      %4332 = vmatprep.subr.bf16.mxu0 %v3867
      %4333 = vmatpush2.bf16.msra.mxu0 %v3866
      %4334 = vmatprep.subr.bf16.mxu0 %v3863
      %4335 = vmatpush2.bf16.msra.mxu0 %v3862
      %4336 = vmatprep.subr.bf16.mxu0 %v3859
      %4337 = vmatpush2.bf16.msra.mxu0 %v3858
      %4338 = vmatprep.mubr.bf16.mxu0 %v3388
      %4339 = vmatmul.mubr.bf16.gmra.mxu0 %v3387
      %v4340 = vpop.f32.mrf.mxu0
      %v4341 = vadd.f32 %v3431, %v4340
      %v4342 = vpop.f32.mrf.mxu0
      %v4343 = vadd.f32 %v3435, %v4342
      %v4344 = vpop.f32.mrf.mxu0
      %v4345 = vadd.f32 %v3431, %v4344
      %v4346 = vpop.f32.mrf.mxu0
      %v4347 = vadd.f32 %v3435, %v4346
      %4348 = vmatprep.mubr.bf16.mxu0 %v3392
      %4349 = vmatmul.mubr.bf16.gmra.mxu0 %v3391
      %v4350 = vpop.f32.mrf.mxu0
      %v4351 = vadd.f32 %v3431, %v4350
      %v4352 = vpop.f32.mrf.mxu0
      %v4353 = vadd.f32 %v3435, %v4352
      %v4354 = vpop.f32.mrf.mxu0
      %v4355 = vadd.f32 %v3431, %v4354
      %v4356 = vpop.f32.mrf.mxu0
      %v4357 = vadd.f32 %v3435, %v4356
      %4358 = vmatprep.mubr.bf16.mxu0 %v3396
      %4359 = vmatmul.mubr.bf16.gmra.mxu0 %v3395
      %v4360 = vpop.f32.mrf.mxu0
      %v4361 = vadd.f32 %v3431, %v4360
      %v4362 = vpop.f32.mrf.mxu0
      %v4363 = vadd.f32 %v3435, %v4362
      %v4364 = vpop.f32.mrf.mxu0
      %v4365 = vadd.f32 %v3431, %v4364
      %v4366 = vpop.f32.mrf.mxu0
      %v4367 = vadd.f32 %v3435, %v4366
      %4368 = vmatprep.mubr.bf16.mxu0 %v3400
      %4369 = vmatmul.mubr.bf16.gmra.mxu0 %v3399
      %v4370 = vpop.f32.mrf.mxu0
      %v4371 = vadd.f32 %v3431, %v4370
      %v4372 = vpop.f32.mrf.mxu0
      %v4373 = vadd.f32 %v3435, %v4372
      %v4374 = vpop.f32.mrf.mxu0
      %v4375 = vadd.f32 %v3431, %v4374
      %v4376 = vpop.f32.mrf.mxu0
      %v4377 = vadd.f32 %v3435, %v4376
      %4378 = vmatprep.mubr.bf16.mxu0 %v3404
      %4379 = vmatmul.mubr.bf16.gmra.mxu0 %v3403
      %v4380 = vpop.f32.mrf.mxu0
      %v4381 = vadd.f32 %v3431, %v4380
      %v4382 = vpop.f32.mrf.mxu0
      %v4383 = vadd.f32 %v3435, %v4382
      %v4384 = vpop.f32.mrf.mxu0
      %v4385 = vadd.f32 %v3431, %v4384
      %v4386 = vpop.f32.mrf.mxu0
      %v4387 = vadd.f32 %v3435, %v4386
      %4388 = vmatprep.mubr.bf16.mxu0 %v3408
      %4389 = vmatmul.mubr.bf16.gmra.mxu0 %v3407
      %v4390 = vpop.f32.mrf.mxu0
      %v4391 = vadd.f32 %v3431, %v4390
      %v4392 = vpop.f32.mrf.mxu0
      %v4393 = vadd.f32 %v3435, %v4392
      %v4394 = vpop.f32.mrf.mxu0
      %v4395 = vadd.f32 %v3431, %v4394
      %v4396 = vpop.f32.mrf.mxu0
      %v4397 = vadd.f32 %v3435, %v4396
      %4398 = vmatprep.mubr.bf16.mxu0 %v3412
      %4399 = vmatmul.mubr.bf16.gmra.mxu0 %v3411
      %v4400 = vpop.f32.mrf.mxu0
      %v4401 = vadd.f32 %v3431, %v4400
      %v4402 = vpop.f32.mrf.mxu0
      %v4403 = vadd.f32 %v3435, %v4402
      %v4404 = vpop.f32.mrf.mxu0
      %v4405 = vadd.f32 %v3431, %v4404
      %v4406 = vpop.f32.mrf.mxu0
      %v4407 = vadd.f32 %v3435, %v4406
      %4408 = vmatprep.mubr.bf16.mxu0 %v3416
      %4409 = vmatmul.mubr.bf16.gmra.mxu0 %v3415
      %v4410 = vpop.f32.mrf.mxu0
      %v4411 = vadd.f32 %v3431, %v4410
      %v4412 = vpop.f32.mrf.mxu0
      %v4413 = vadd.f32 %v3435, %v4412
      %v4414 = vpop.f32.mrf.mxu0
      %v4415 = vadd.f32 %v3431, %v4414
      %v4416 = vpop.f32.mrf.mxu0
      %v4417 = vadd.f32 %v3435, %v4416
      %4418 = vdwg.mxu0
      %4419 = vmatprep.subr.bf16.mxu0 %v3919
      %4420 = vmatpush1.bf16.msra.mxu0 %v3918
      %4421 = vmatprep.subr.bf16.mxu0 %v3915
      %4422 = vmatpush1.bf16.msra.mxu0 %v3914
      %4423 = vmatprep.subr.bf16.mxu0 %v3911
      %4424 = vmatpush1.bf16.msra.mxu0 %v3910
      %4425 = vmatprep.subr.bf16.mxu0 %v3907
      %4426 = vmatpush1.bf16.msra.mxu0 %v3906
      %4427 = vmatprep.subr.bf16.mxu0 %v3903
      %4428 = vmatpush1.bf16.msra.mxu0 %v3902
      %4429 = vmatprep.subr.bf16.mxu0 %v3899
      %4430 = vmatpush1.bf16.msra.mxu0 %v3898
      %4431 = vmatprep.subr.bf16.mxu0 %v3895
      %4432 = vmatpush1.bf16.msra.mxu0 %v3894
      %4433 = vmatprep.subr.bf16.mxu0 %v3891
      %4434 = vmatpush1.bf16.msra.mxu0 %v3890
      %4435 = vmatprep.subr.bf16.mxu0 %v3951
      %4436 = vmatpush2.bf16.msra.mxu0 %v3950
      %4437 = vmatprep.subr.bf16.mxu0 %v3947
      %4438 = vmatpush2.bf16.msra.mxu0 %v3946
      %4439 = vmatprep.subr.bf16.mxu0 %v3943
      %4440 = vmatpush2.bf16.msra.mxu0 %v3942
      %4441 = vmatprep.subr.bf16.mxu0 %v3939
      %4442 = vmatpush2.bf16.msra.mxu0 %v3938
      %4443 = vmatprep.subr.bf16.mxu0 %v3935
      %4444 = vmatpush2.bf16.msra.mxu0 %v3934
      %4445 = vmatprep.subr.bf16.mxu0 %v3931
      %4446 = vmatpush2.bf16.msra.mxu0 %v3930
      %4447 = vmatprep.subr.bf16.mxu0 %v3927
      %4448 = vmatpush2.bf16.msra.mxu0 %v3926
      %4449 = vmatprep.subr.bf16.mxu0 %v3923
      %4450 = vmatpush2.bf16.msra.mxu0 %v3922
      %4451 = vmatprep.mubr.bf16.mxu0 %v3390
      %4452 = vmatmul.mubr.bf16.gmra.mxu0 %v3389
      %v4453 = vpop.f32.mrf.mxu0
      %v4454 = vadd.f32 %v4341, %v4453
      %v4455 = vpop.f32.mrf.mxu0
      %v4456 = vadd.f32 %v4343, %v4455
      %v4457 = vpop.f32.mrf.mxu0
      %v4458 = vadd.f32 %v4345, %v4457
      %v4459 = vpop.f32.mrf.mxu0
      %v4460 = vadd.f32 %v4347, %v4459
      %4461 = vmatprep.mubr.bf16.mxu0 %v3394
      %4462 = vmatmul.mubr.bf16.gmra.mxu0 %v3393
      %v4463 = vpop.f32.mrf.mxu0
      %v4464 = vadd.f32 %v4351, %v4463
      %v4465 = vpop.f32.mrf.mxu0
      %v4466 = vadd.f32 %v4353, %v4465
      %v4467 = vpop.f32.mrf.mxu0
      %v4468 = vadd.f32 %v4355, %v4467
      %v4469 = vpop.f32.mrf.mxu0
      %v4470 = vadd.f32 %v4357, %v4469
      %4471 = vmatprep.mubr.bf16.mxu0 %v3398
      %4472 = vmatmul.mubr.bf16.gmra.mxu0 %v3397
      %v4473 = vpop.f32.mrf.mxu0
      %v4474 = vadd.f32 %v4361, %v4473
      %v4475 = vpop.f32.mrf.mxu0
      %v4476 = vadd.f32 %v4363, %v4475
      %v4477 = vpop.f32.mrf.mxu0
      %v4478 = vadd.f32 %v4365, %v4477
      %v4479 = vpop.f32.mrf.mxu0
      %v4480 = vadd.f32 %v4367, %v4479
      %4481 = vmatprep.mubr.bf16.mxu0 %v3402
      %4482 = vmatmul.mubr.bf16.gmra.mxu0 %v3401
      %v4483 = vpop.f32.mrf.mxu0
      %v4484 = vadd.f32 %v4371, %v4483
      %v4485 = vpop.f32.mrf.mxu0
      %v4486 = vadd.f32 %v4373, %v4485
      %v4487 = vpop.f32.mrf.mxu0
      %v4488 = vadd.f32 %v4375, %v4487
      %v4489 = vpop.f32.mrf.mxu0
      %v4490 = vadd.f32 %v4377, %v4489
      %4491 = vmatprep.mubr.bf16.mxu0 %v3406
      %4492 = vmatmul.mubr.bf16.gmra.mxu0 %v3405
      %v4493 = vpop.f32.mrf.mxu0
      %v4494 = vadd.f32 %v4381, %v4493
      %v4495 = vpop.f32.mrf.mxu0
      %v4496 = vadd.f32 %v4383, %v4495
      %v4497 = vpop.f32.mrf.mxu0
      %v4498 = vadd.f32 %v4385, %v4497
      %v4499 = vpop.f32.mrf.mxu0
      %v4500 = vadd.f32 %v4387, %v4499
      %4501 = vmatprep.mubr.bf16.mxu0 %v3410
      %4502 = vmatmul.mubr.bf16.gmra.mxu0 %v3409
      %v4503 = vpop.f32.mrf.mxu0
      %v4504 = vadd.f32 %v4391, %v4503
      %v4505 = vpop.f32.mrf.mxu0
      %v4506 = vadd.f32 %v4393, %v4505
      %v4507 = vpop.f32.mrf.mxu0
      %v4508 = vadd.f32 %v4395, %v4507
      %v4509 = vpop.f32.mrf.mxu0
      %v4510 = vadd.f32 %v4397, %v4509
      %4511 = vmatprep.mubr.bf16.mxu0 %v3414
      %4512 = vmatmul.mubr.bf16.gmra.mxu0 %v3413
      %v4513 = vpop.f32.mrf.mxu0
      %v4514 = vadd.f32 %v4401, %v4513
      %v4515 = vpop.f32.mrf.mxu0
      %v4516 = vadd.f32 %v4403, %v4515
      %v4517 = vpop.f32.mrf.mxu0
      %v4518 = vadd.f32 %v4405, %v4517
      %v4519 = vpop.f32.mrf.mxu0
      %v4520 = vadd.f32 %v4407, %v4519
      %4521 = vmatprep.mubr.bf16.mxu0 %v3418
      %4522 = vmatmul.mubr.bf16.gmra.mxu0 %v3417
      %v4523 = vpop.f32.mrf.mxu0
      %v4524 = vadd.f32 %v4411, %v4523
      %v4525 = vpop.f32.mrf.mxu0
      %v4526 = vadd.f32 %v4413, %v4525
      %v4527 = vpop.f32.mrf.mxu0
      %v4528 = vadd.f32 %v4415, %v4527
      %v4529 = vpop.f32.mrf.mxu0
      %v4530 = vadd.f32 %v4417, %v4529
      %4531 = vdwg.mxu0
      %v4532 = vmax.f32 %v4228, 0.0
      %v4533 = vmax.f32 %v4230, 0.0
      %v4534 = vmax.f32 %v4454, 0.0
      %v4535 = vmax.f32 %v4456, 0.0
      %v4536 = vmax.f32 %v4232, 0.0
      %v4537 = vmax.f32 %v4234, 0.0
      %v4538 = vmax.f32 %v4458, 0.0
      %v4539 = vmax.f32 %v4460, 0.0
      %v4540 = vmax.f32 %v4238, 0.0
      %v4541 = vmax.f32 %v4240, 0.0
      %v4542 = vmax.f32 %v4464, 0.0
      %v4543 = vmax.f32 %v4466, 0.0
      %v4544 = vmax.f32 %v4242, 0.0
      %v4545 = vmax.f32 %v4244, 0.0
      %v4546 = vmax.f32 %v4468, 0.0
      %v4547 = vmax.f32 %v4470, 0.0
      %v4548 = vmax.f32 %v4248, 0.0
      %v4549 = vmax.f32 %v4250, 0.0
      %v4550 = vmax.f32 %v4474, 0.0
      %v4551 = vmax.f32 %v4476, 0.0
      %v4552 = vmax.f32 %v4252, 0.0
      %v4553 = vmax.f32 %v4254, 0.0
      %v4554 = vmax.f32 %v4478, 0.0
      %v4555 = vmax.f32 %v4480, 0.0
      %v4556 = vmax.f32 %v4258, 0.0
      %v4557 = vmax.f32 %v4260, 0.0
      %v4558 = vmax.f32 %v4484, 0.0
      %v4559 = vmax.f32 %v4486, 0.0
      %v4560 = vmax.f32 %v4262, 0.0
      %v4561 = vmax.f32 %v4264, 0.0
      %v4562 = vmax.f32 %v4488, 0.0
      %v4563 = vmax.f32 %v4490, 0.0
      %v4564 = vmax.f32 %v4268, 0.0
      %v4565 = vmax.f32 %v4270, 0.0
      %v4566 = vmax.f32 %v4494, 0.0
      %v4567 = vmax.f32 %v4496, 0.0
      %v4568 = vmax.f32 %v4272, 0.0
      %v4569 = vmax.f32 %v4274, 0.0
      %v4570 = vmax.f32 %v4498, 0.0
      %v4571 = vmax.f32 %v4500, 0.0
      %v4572 = vmax.f32 %v4278, 0.0
      %v4573 = vmax.f32 %v4280, 0.0
      %v4574 = vmax.f32 %v4504, 0.0
      %v4575 = vmax.f32 %v4506, 0.0
      %v4576 = vmax.f32 %v4282, 0.0
      %v4577 = vmax.f32 %v4284, 0.0
      %v4578 = vmax.f32 %v4508, 0.0
      %v4579 = vmax.f32 %v4510, 0.0
      %v4580 = vmax.f32 %v4288, 0.0
      %v4581 = vmax.f32 %v4290, 0.0
      %v4582 = vmax.f32 %v4514, 0.0
      %v4583 = vmax.f32 %v4516, 0.0
      %v4584 = vmax.f32 %v4292, 0.0
      %v4585 = vmax.f32 %v4294, 0.0
      %v4586 = vmax.f32 %v4518, 0.0
      %v4587 = vmax.f32 %v4520, 0.0
      %v4588 = vmax.f32 %v4298, 0.0
      %v4589 = vmax.f32 %v4300, 0.0
      %v4590 = vmax.f32 %v4524, 0.0
      %v4591 = vmax.f32 %v4526, 0.0
      %v4592 = vmax.f32 %v4302, 0.0
      %v4593 = vmax.f32 %v4304, 0.0
      %v4594 = vmax.f32 %v4528, 0.0
      %v4595 = vmax.f32 %v4530, 0.0
      %v4596 = vld [vmem:[#allocation15] sm:$0xff]
      %v4597 = vld [vmem:[#allocation15 + $0x8] sm:$0xff]
      %v4598 = vld [vmem:[#allocation15 + $0x10] sm:$0xff]
      %v4599 = vld [vmem:[#allocation15 + $0x18] sm:$0xff]
      %v4600 = vld [vmem:[#allocation15 + $0x20] sm:$0xff]
      %v4601 = vld [vmem:[#allocation15 + $0x28] sm:$0xff]
      %v4602 = vld [vmem:[#allocation15 + $0x30] sm:$0xff]
      %v4603 = vld [vmem:[#allocation15 + $0x38] sm:$0xff]
      %v4604 = vld [vmem:[#allocation15 + $0x40] sm:$0xff]
      %v4605 = vld [vmem:[#allocation15 + $0x48] sm:$0xff]
      %v4606 = vld [vmem:[#allocation15 + $0x50] sm:$0xff]
      %v4607 = vld [vmem:[#allocation15 + $0x58] sm:$0xff]
      %v4608 = vld [vmem:[#allocation15 + $0x60] sm:$0xff]
      %v4609 = vld [vmem:[#allocation15 + $0x68] sm:$0xff]
      %v4610 = vld [vmem:[#allocation15 + $0x70] sm:$0xff]
      %v4611 = vld [vmem:[#allocation15 + $0x78] sm:$0xff]
      %v4612 = vld [vmem:[#allocation15 + $0x80] sm:$0xff]
      %v4613 = vld [vmem:[#allocation15 + $0x88] sm:$0xff]
      %v4614 = vld [vmem:[#allocation15 + $0x90] sm:$0xff]
      %v4615 = vld [vmem:[#allocation15 + $0x98] sm:$0xff]
      %v4616 = vld [vmem:[#allocation15 + $0xa0] sm:$0xff]
      %v4617 = vld [vmem:[#allocation15 + $0xa8] sm:$0xff]
      %v4618 = vld [vmem:[#allocation15 + $0xb0] sm:$0xff]
      %v4619 = vld [vmem:[#allocation15 + $0xb8] sm:$0xff]
      %v4620 = vld [vmem:[#allocation15 + $0xc0] sm:$0xff]
      %v4621 = vld [vmem:[#allocation15 + $0xc8] sm:$0xff]
      %v4622 = vld [vmem:[#allocation15 + $0xd0] sm:$0xff]
      %v4623 = vld [vmem:[#allocation15 + $0xd8] sm:$0xff]
      %v4624 = vld [vmem:[#allocation15 + $0xe0] sm:$0xff]
      %v4625 = vld [vmem:[#allocation15 + $0xe8] sm:$0xff]
      %v4626 = vld [vmem:[#allocation15 + $0xf0] sm:$0xff]
      %v4627 = vld [vmem:[#allocation15 + $0xf8] sm:$0xff]
      %v4628 = vld [vmem:[#allocation15 + $0x100] sm:$0xff]
      %v4629 = vld [vmem:[#allocation15 + $0x108] sm:$0xff]
      %v4630 = vld [vmem:[#allocation15 + $0x110] sm:$0xff]
      %v4631 = vld [vmem:[#allocation15 + $0x118] sm:$0xff]
      %v4632 = vld [vmem:[#allocation15 + $0x120] sm:$0xff]
      %v4633 = vld [vmem:[#allocation15 + $0x128] sm:$0xff]
      %v4634 = vld [vmem:[#allocation15 + $0x130] sm:$0xff]
      %v4635 = vld [vmem:[#allocation15 + $0x138] sm:$0xff]
      %v4636 = vld [vmem:[#allocation15 + $0x140] sm:$0xff]
      %v4637 = vld [vmem:[#allocation15 + $0x148] sm:$0xff]
      %v4638 = vld [vmem:[#allocation15 + $0x150] sm:$0xff]
      %v4639 = vld [vmem:[#allocation15 + $0x158] sm:$0xff]
      %v4640 = vld [vmem:[#allocation15 + $0x160] sm:$0xff]
      %v4641 = vld [vmem:[#allocation15 + $0x168] sm:$0xff]
      %v4642 = vld [vmem:[#allocation15 + $0x170] sm:$0xff]
      %v4643 = vld [vmem:[#allocation15 + $0x178] sm:$0xff]
      %v4644 = vld [vmem:[#allocation15 + $0x180] sm:$0xff]
      %v4645 = vld [vmem:[#allocation15 + $0x188] sm:$0xff]
      %v4646 = vld [vmem:[#allocation15 + $0x190] sm:$0xff]
      %v4647 = vld [vmem:[#allocation15 + $0x198] sm:$0xff]
      %v4648 = vld [vmem:[#allocation15 + $0x1a0] sm:$0xff]
      %v4649 = vld [vmem:[#allocation15 + $0x1a8] sm:$0xff]
      %v4650 = vld [vmem:[#allocation15 + $0x1b0] sm:$0xff]
      %v4651 = vld [vmem:[#allocation15 + $0x1b8] sm:$0xff]
      %v4652 = vld [vmem:[#allocation15 + $0x1c0] sm:$0xff]
      %v4653 = vld [vmem:[#allocation15 + $0x1c8] sm:$0xff]
      %v4654 = vld [vmem:[#allocation15 + $0x1d0] sm:$0xff]
      %v4655 = vld [vmem:[#allocation15 + $0x1d8] sm:$0xff]
      %v4656 = vld [vmem:[#allocation15 + $0x1e0] sm:$0xff]
      %v4657 = vld [vmem:[#allocation15 + $0x1e8] sm:$0xff]
      %v4658 = vld [vmem:[#allocation15 + $0x1f0] sm:$0xff]
      %v4659 = vld [vmem:[#allocation15 + $0x1f8] sm:$0xff]
      %v4660 = vld [vmem:[%s10] sm:$0x3]
      %v4661 = vpack.c.bf16 %v4536, %v4532
      %v4662 = vpack.c.bf16 %v4537, %v4533
      %v4663 = vpack.c.bf16 %v4538, %v4534
      %v4664 = vpack.c.bf16 %v4539, %v4535
      %v4665 = vpack.c.bf16 %v4544, %v4540
      %v4666 = vpack.c.bf16 %v4545, %v4541
      %v4667 = vpack.c.bf16 %v4546, %v4542
      %v4668 = vpack.c.bf16 %v4547, %v4543
      %v4669 = vpack.c.bf16 %v4552, %v4548
      %v4670 = vpack.c.bf16 %v4553, %v4549
      %v4671 = vpack.c.bf16 %v4554, %v4550
      %v4672 = vpack.c.bf16 %v4555, %v4551
      %v4673 = vpack.c.bf16 %v4560, %v4556
      %v4674 = vpack.c.bf16 %v4561, %v4557
      %v4675 = vpack.c.bf16 %v4562, %v4558
      %v4676 = vpack.c.bf16 %v4563, %v4559
      %v4677 = vpack.c.bf16 %v4568, %v4564
      %v4678 = vpack.c.bf16 %v4569, %v4565
      %v4679 = vpack.c.bf16 %v4570, %v4566
      %v4680 = vpack.c.bf16 %v4571, %v4567
      %v4681 = vpack.c.bf16 %v4576, %v4572
      %v4682 = vpack.c.bf16 %v4577, %v4573
      %v4683 = vpack.c.bf16 %v4578, %v4574
      %v4684 = vpack.c.bf16 %v4579, %v4575
      %v4685 = vpack.c.bf16 %v4584, %v4580
      %v4686 = vpack.c.bf16 %v4585, %v4581
      %v4687 = vpack.c.bf16 %v4586, %v4582
      %v4688 = vpack.c.bf16 %v4587, %v4583
      %v4689 = vpack.c.bf16 %v4592, %v4588
      %v4690 = vpack.c.bf16 %v4593, %v4589
      %v4691 = vpack.c.bf16 %v4594, %v4590
      %v4692 = vpack.c.bf16 %v4595, %v4591
      %v4694 = vlaneseq
      %v4695 = vshrl.u32 %v4694, 7
      %v4696 = vsub.s32 0, %v4695
      %v4697 = vrot.slane %v4660, %v4696
      %v4698 = vlaneseq
      %v4699 = vshrl.u32 %v4698, 7
      %v4700 = vsub.s32 1, %v4699
      %v4701 = vrot.slane %v4660, %v4700
      %v4768 = vunpack.c.l.b16 %v4596
      %v4769 = vunpack.c.h.b16 %v4596
      %v4770 = vunpack.c.l.b16 %v4597
      %v4771 = vunpack.c.h.b16 %v4597
      %v4772 = vunpack.c.l.b16 %v4598
      %v4773 = vunpack.c.h.b16 %v4598
      %v4774 = vunpack.c.l.b16 %v4599
      %v4775 = vunpack.c.h.b16 %v4599
      %v4776 = vunpack.c.l.b16 %v4600
      %v4777 = vunpack.c.h.b16 %v4600
      %v4778 = vunpack.c.l.b16 %v4601
      %v4779 = vunpack.c.h.b16 %v4601
      %v4780 = vunpack.c.l.b16 %v4602
      %v4781 = vunpack.c.h.b16 %v4602
      %v4782 = vunpack.c.l.b16 %v4603
      %v4783 = vunpack.c.h.b16 %v4603
      %v4784 = vunpack.c.l.b16 %v4604
      %v4785 = vunpack.c.h.b16 %v4604
      %v4786 = vunpack.c.l.b16 %v4605
      %v4787 = vunpack.c.h.b16 %v4605
      %v4788 = vunpack.c.l.b16 %v4606
      %v4789 = vunpack.c.h.b16 %v4606
      %v4790 = vunpack.c.l.b16 %v4607
      %v4791 = vunpack.c.h.b16 %v4607
      %v4792 = vunpack.c.l.b16 %v4608
      %v4793 = vunpack.c.h.b16 %v4608
      %v4794 = vunpack.c.l.b16 %v4609
      %v4795 = vunpack.c.h.b16 %v4609
      %v4796 = vunpack.c.l.b16 %v4610
      %v4797 = vunpack.c.h.b16 %v4610
      %v4798 = vunpack.c.l.b16 %v4611
      %v4799 = vunpack.c.h.b16 %v4611
      %v4800 = vunpack.c.l.b16 %v4612
      %v4801 = vunpack.c.h.b16 %v4612
      %v4802 = vunpack.c.l.b16 %v4613
      %v4803 = vunpack.c.h.b16 %v4613
      %v4804 = vunpack.c.l.b16 %v4614
      %v4805 = vunpack.c.h.b16 %v4614
      %v4806 = vunpack.c.l.b16 %v4615
      %v4807 = vunpack.c.h.b16 %v4615
      %v4808 = vunpack.c.l.b16 %v4616
      %v4809 = vunpack.c.h.b16 %v4616
      %v4810 = vunpack.c.l.b16 %v4617
      %v4811 = vunpack.c.h.b16 %v4617
      %v4812 = vunpack.c.l.b16 %v4618
      %v4813 = vunpack.c.h.b16 %v4618
      %v4814 = vunpack.c.l.b16 %v4619
      %v4815 = vunpack.c.h.b16 %v4619
      %v4816 = vunpack.c.l.b16 %v4620
      %v4817 = vunpack.c.h.b16 %v4620
      %v4818 = vunpack.c.l.b16 %v4621
      %v4819 = vunpack.c.h.b16 %v4621
      %v4820 = vunpack.c.l.b16 %v4622
      %v4821 = vunpack.c.h.b16 %v4622
      %v4822 = vunpack.c.l.b16 %v4623
      %v4823 = vunpack.c.h.b16 %v4623
      %v4824 = vunpack.c.l.b16 %v4624
      %v4825 = vunpack.c.h.b16 %v4624
      %v4826 = vunpack.c.l.b16 %v4625
      %v4827 = vunpack.c.h.b16 %v4625
      %v4828 = vunpack.c.l.b16 %v4626
      %v4829 = vunpack.c.h.b16 %v4626
      %v4830 = vunpack.c.l.b16 %v4627
      %v4831 = vunpack.c.h.b16 %v4627
      %v4832 = vunpack.c.l.b16 %v4628
      %v4833 = vunpack.c.h.b16 %v4628
      %v4834 = vunpack.c.l.b16 %v4629
      %v4835 = vunpack.c.h.b16 %v4629
      %v4836 = vunpack.c.l.b16 %v4630
      %v4837 = vunpack.c.h.b16 %v4630
      %v4838 = vunpack.c.l.b16 %v4631
      %v4839 = vunpack.c.h.b16 %v4631
      %v4840 = vunpack.c.l.b16 %v4632
      %v4841 = vunpack.c.h.b16 %v4632
      %v4842 = vunpack.c.l.b16 %v4633
      %v4843 = vunpack.c.h.b16 %v4633
      %v4844 = vunpack.c.l.b16 %v4634
      %v4845 = vunpack.c.h.b16 %v4634
      %v4846 = vunpack.c.l.b16 %v4635
      %v4847 = vunpack.c.h.b16 %v4635
      %v4848 = vunpack.c.l.b16 %v4636
      %v4849 = vunpack.c.h.b16 %v4636
      %v4850 = vunpack.c.l.b16 %v4637
      %v4851 = vunpack.c.h.b16 %v4637
      %v4852 = vunpack.c.l.b16 %v4638
      %v4853 = vunpack.c.h.b16 %v4638
      %v4854 = vunpack.c.l.b16 %v4639
      %v4855 = vunpack.c.h.b16 %v4639
      %v4856 = vunpack.c.l.b16 %v4640
      %v4857 = vunpack.c.h.b16 %v4640
      %v4858 = vunpack.c.l.b16 %v4641
      %v4859 = vunpack.c.h.b16 %v4641
      %v4860 = vunpack.c.l.b16 %v4642
      %v4861 = vunpack.c.h.b16 %v4642
      %v4862 = vunpack.c.l.b16 %v4643
      %v4863 = vunpack.c.h.b16 %v4643
      %v4864 = vunpack.c.l.b16 %v4644
      %v4865 = vunpack.c.h.b16 %v4644
      %v4866 = vunpack.c.l.b16 %v4645
      %v4867 = vunpack.c.h.b16 %v4645
      %v4868 = vunpack.c.l.b16 %v4646
      %v4869 = vunpack.c.h.b16 %v4646
      %v4870 = vunpack.c.l.b16 %v4647
      %v4871 = vunpack.c.h.b16 %v4647
      %v4872 = vunpack.c.l.b16 %v4648
      %v4873 = vunpack.c.h.b16 %v4648
      %v4874 = vunpack.c.l.b16 %v4649
      %v4875 = vunpack.c.h.b16 %v4649
      %v4876 = vunpack.c.l.b16 %v4650
      %v4877 = vunpack.c.h.b16 %v4650
      %v4878 = vunpack.c.l.b16 %v4651
      %v4879 = vunpack.c.h.b16 %v4651
      %v4880 = vunpack.c.l.b16 %v4652
      %v4881 = vunpack.c.h.b16 %v4652
      %v4882 = vunpack.c.l.b16 %v4653
      %v4883 = vunpack.c.h.b16 %v4653
      %v4884 = vunpack.c.l.b16 %v4654
      %v4885 = vunpack.c.h.b16 %v4654
      %v4886 = vunpack.c.l.b16 %v4655
      %v4887 = vunpack.c.h.b16 %v4655
      %v4888 = vunpack.c.l.b16 %v4656
      %v4889 = vunpack.c.h.b16 %v4656
      %v4890 = vunpack.c.l.b16 %v4657
      %v4891 = vunpack.c.h.b16 %v4657
      %v4892 = vunpack.c.l.b16 %v4658
      %v4893 = vunpack.c.h.b16 %v4658
      %v4894 = vunpack.c.l.b16 %v4659
      %v4895 = vunpack.c.h.b16 %v4659
      %v4896 = vpack.c.b16 %v4770, %v4768
      %v4897 = vpack.c.b16 %v4771, %v4769
      %v4898 = vpack.c.b16 %v4774, %v4772
      %v4899 = vpack.c.b16 %v4775, %v4773
      %v4900 = vpack.c.b16 %v4778, %v4776
      %v4901 = vpack.c.b16 %v4779, %v4777
      %v4902 = vpack.c.b16 %v4782, %v4780
      %v4903 = vpack.c.b16 %v4783, %v4781
      %v4904 = vpack.c.b16 %v4786, %v4784
      %v4905 = vpack.c.b16 %v4787, %v4785
      %v4906 = vpack.c.b16 %v4790, %v4788
      %v4907 = vpack.c.b16 %v4791, %v4789
      %v4908 = vpack.c.b16 %v4794, %v4792
      %v4909 = vpack.c.b16 %v4795, %v4793
      %v4910 = vpack.c.b16 %v4798, %v4796
      %v4911 = vpack.c.b16 %v4799, %v4797
      %v4912 = vpack.c.b16 %v4802, %v4800
      %v4913 = vpack.c.b16 %v4803, %v4801
      %v4914 = vpack.c.b16 %v4806, %v4804
      %v4915 = vpack.c.b16 %v4807, %v4805
      %v4916 = vpack.c.b16 %v4810, %v4808
      %v4917 = vpack.c.b16 %v4811, %v4809
      %v4918 = vpack.c.b16 %v4814, %v4812
      %v4919 = vpack.c.b16 %v4815, %v4813
      %v4920 = vpack.c.b16 %v4818, %v4816
      %v4921 = vpack.c.b16 %v4819, %v4817
      %v4922 = vpack.c.b16 %v4822, %v4820
      %v4923 = vpack.c.b16 %v4823, %v4821
      %v4924 = vpack.c.b16 %v4826, %v4824
      %v4925 = vpack.c.b16 %v4827, %v4825
      %v4926 = vpack.c.b16 %v4830, %v4828
      %v4927 = vpack.c.b16 %v4831, %v4829
      %v4928 = vpack.c.b16 %v4834, %v4832
      %v4929 = vpack.c.b16 %v4835, %v4833
      %v4930 = vpack.c.b16 %v4838, %v4836
      %v4931 = vpack.c.b16 %v4839, %v4837
      %v4932 = vpack.c.b16 %v4842, %v4840
      %v4933 = vpack.c.b16 %v4843, %v4841
      %v4934 = vpack.c.b16 %v4846, %v4844
      %v4935 = vpack.c.b16 %v4847, %v4845
      %v4936 = vpack.c.b16 %v4850, %v4848
      %v4937 = vpack.c.b16 %v4851, %v4849
      %v4938 = vpack.c.b16 %v4854, %v4852
      %v4939 = vpack.c.b16 %v4855, %v4853
      %v4940 = vpack.c.b16 %v4858, %v4856
      %v4941 = vpack.c.b16 %v4859, %v4857
      %v4942 = vpack.c.b16 %v4862, %v4860
      %v4943 = vpack.c.b16 %v4863, %v4861
      %v4944 = vpack.c.b16 %v4866, %v4864
      %v4945 = vpack.c.b16 %v4867, %v4865
      %v4946 = vpack.c.b16 %v4870, %v4868
      %v4947 = vpack.c.b16 %v4871, %v4869
      %v4948 = vpack.c.b16 %v4874, %v4872
      %v4949 = vpack.c.b16 %v4875, %v4873
      %v4950 = vpack.c.b16 %v4878, %v4876
      %v4951 = vpack.c.b16 %v4879, %v4877
      %v4952 = vpack.c.b16 %v4882, %v4880
      %v4953 = vpack.c.b16 %v4883, %v4881
      %v4954 = vpack.c.b16 %v4886, %v4884
      %v4955 = vpack.c.b16 %v4887, %v4885
      %v4956 = vpack.c.b16 %v4890, %v4888
      %v4957 = vpack.c.b16 %v4891, %v4889
      %v4958 = vpack.c.b16 %v4894, %v4892
      %v4959 = vpack.c.b16 %v4895, %v4893
      %5024 = vmatprep.subr.bf16.mxu0 %v4911
      %5025 = vmatpush1.bf16.msra.mxu0 %v4910
      %5026 = vmatprep.subr.bf16.mxu0 %v4909
      %5027 = vmatpush1.bf16.msra.mxu0 %v4908
      %5028 = vmatprep.subr.bf16.mxu0 %v4907
      %5029 = vmatpush1.bf16.msra.mxu0 %v4906
      %5030 = vmatprep.subr.bf16.mxu0 %v4905
      %5031 = vmatpush1.bf16.msra.mxu0 %v4904
      %5032 = vmatprep.subr.bf16.mxu0 %v4903
      %5033 = vmatpush1.bf16.msra.mxu0 %v4902
      %5034 = vmatprep.subr.bf16.mxu0 %v4901
      %5035 = vmatpush1.bf16.msra.mxu0 %v4900
      %5036 = vmatprep.subr.bf16.mxu0 %v4899
      %5037 = vmatpush1.bf16.msra.mxu0 %v4898
      %5038 = vmatprep.subr.bf16.mxu0 %v4897
      %5039 = vmatpush1.bf16.msra.mxu0 %v4896
      %5040 = vmatprep.subr.bf16.mxu0 %v4927
      %5041 = vmatpush2.bf16.msra.mxu0 %v4926
      %5042 = vmatprep.subr.bf16.mxu0 %v4925
      %5043 = vmatpush2.bf16.msra.mxu0 %v4924
      %5044 = vmatprep.subr.bf16.mxu0 %v4923
      %5045 = vmatpush2.bf16.msra.mxu0 %v4922
      %5046 = vmatprep.subr.bf16.mxu0 %v4921
      %5047 = vmatpush2.bf16.msra.mxu0 %v4920
      %5048 = vmatprep.subr.bf16.mxu0 %v4919
      %5049 = vmatpush2.bf16.msra.mxu0 %v4918
      %5050 = vmatprep.subr.bf16.mxu0 %v4917
      %5051 = vmatpush2.bf16.msra.mxu0 %v4916
      %5052 = vmatprep.subr.bf16.mxu0 %v4915
      %5053 = vmatpush2.bf16.msra.mxu0 %v4914
      %5054 = vmatprep.subr.bf16.mxu0 %v4913
      %5055 = vmatpush2.bf16.msra.mxu0 %v4912
      %5056 = vmatprep.mubr.bf16.mxu0 %v4662
      %5057 = vmatmul.mubr.bf16.gmra.mxu0 %v4661
      %v5058 = vpop.f32.mrf.mxu0
      %v5059 = vadd.f32 %v4697, %v5058
      %v5060 = vpop.f32.mrf.mxu0
      %v5061 = vadd.f32 %v4701, %v5060
      %v5062 = vpop.f32.mrf.mxu0
      %v5063 = vadd.f32 %v4697, %v5062
      %v5064 = vpop.f32.mrf.mxu0
      %v5065 = vadd.f32 %v4701, %v5064
      %5066 = vmatprep.mubr.bf16.mxu0 %v4666
      %5067 = vmatmul.mubr.bf16.gmra.mxu0 %v4665
      %v5068 = vpop.f32.mrf.mxu0
      %v5069 = vadd.f32 %v4697, %v5068
      %v5070 = vpop.f32.mrf.mxu0
      %v5071 = vadd.f32 %v4701, %v5070
      %v5072 = vpop.f32.mrf.mxu0
      %v5073 = vadd.f32 %v4697, %v5072
      %v5074 = vpop.f32.mrf.mxu0
      %v5075 = vadd.f32 %v4701, %v5074
      %5076 = vmatprep.mubr.bf16.mxu0 %v4670
      %5077 = vmatmul.mubr.bf16.gmra.mxu0 %v4669
      %v5078 = vpop.f32.mrf.mxu0
      %v5079 = vadd.f32 %v4697, %v5078
      %v5080 = vpop.f32.mrf.mxu0
      %v5081 = vadd.f32 %v4701, %v5080
      %v5082 = vpop.f32.mrf.mxu0
      %v5083 = vadd.f32 %v4697, %v5082
      %v5084 = vpop.f32.mrf.mxu0
      %v5085 = vadd.f32 %v4701, %v5084
      %5086 = vmatprep.mubr.bf16.mxu0 %v4674
      %5087 = vmatmul.mubr.bf16.gmra.mxu0 %v4673
      %v5088 = vpop.f32.mrf.mxu0
      %v5089 = vadd.f32 %v4697, %v5088
      %v5090 = vpop.f32.mrf.mxu0
      %v5091 = vadd.f32 %v4701, %v5090
      %v5092 = vpop.f32.mrf.mxu0
      %v5093 = vadd.f32 %v4697, %v5092
      %v5094 = vpop.f32.mrf.mxu0
      %v5095 = vadd.f32 %v4701, %v5094
      %5096 = vmatprep.mubr.bf16.mxu0 %v4678
      %5097 = vmatmul.mubr.bf16.gmra.mxu0 %v4677
      %v5098 = vpop.f32.mrf.mxu0
      %v5099 = vadd.f32 %v4697, %v5098
      %v5100 = vpop.f32.mrf.mxu0
      %v5101 = vadd.f32 %v4701, %v5100
      %v5102 = vpop.f32.mrf.mxu0
      %v5103 = vadd.f32 %v4697, %v5102
      %v5104 = vpop.f32.mrf.mxu0
      %v5105 = vadd.f32 %v4701, %v5104
      %5106 = vmatprep.mubr.bf16.mxu0 %v4682
      %5107 = vmatmul.mubr.bf16.gmra.mxu0 %v4681
      %v5108 = vpop.f32.mrf.mxu0
      %v5109 = vadd.f32 %v4697, %v5108
      %v5110 = vpop.f32.mrf.mxu0
      %v5111 = vadd.f32 %v4701, %v5110
      %v5112 = vpop.f32.mrf.mxu0
      %v5113 = vadd.f32 %v4697, %v5112
      %v5114 = vpop.f32.mrf.mxu0
      %v5115 = vadd.f32 %v4701, %v5114
      %5116 = vmatprep.mubr.bf16.mxu0 %v4686
      %5117 = vmatmul.mubr.bf16.gmra.mxu0 %v4685
      %v5118 = vpop.f32.mrf.mxu0
      %v5119 = vadd.f32 %v4697, %v5118
      %v5120 = vpop.f32.mrf.mxu0
      %v5121 = vadd.f32 %v4701, %v5120
      %v5122 = vpop.f32.mrf.mxu0
      %v5123 = vadd.f32 %v4697, %v5122
      %v5124 = vpop.f32.mrf.mxu0
      %v5125 = vadd.f32 %v4701, %v5124
      %5126 = vmatprep.mubr.bf16.mxu0 %v4690
      %5127 = vmatmul.mubr.bf16.gmra.mxu0 %v4689
      %v5128 = vpop.f32.mrf.mxu0
      %v5129 = vadd.f32 %v4697, %v5128
      %v5130 = vpop.f32.mrf.mxu0
      %v5131 = vadd.f32 %v4701, %v5130
      %v5132 = vpop.f32.mrf.mxu0
      %v5133 = vadd.f32 %v4697, %v5132
      %v5134 = vpop.f32.mrf.mxu0
      %v5135 = vadd.f32 %v4701, %v5134
      %5136 = vdwg.mxu0
      %5137 = vmatprep.subr.bf16.mxu0 %v4943
      %5138 = vmatpush1.bf16.msra.mxu0 %v4942
      %5139 = vmatprep.subr.bf16.mxu0 %v4941
      %5140 = vmatpush1.bf16.msra.mxu0 %v4940
      %5141 = vmatprep.subr.bf16.mxu0 %v4939
      %5142 = vmatpush1.bf16.msra.mxu0 %v4938
      %5143 = vmatprep.subr.bf16.mxu0 %v4937
      %5144 = vmatpush1.bf16.msra.mxu0 %v4936
      %5145 = vmatprep.subr.bf16.mxu0 %v4935
      %5146 = vmatpush1.bf16.msra.mxu0 %v4934
      %5147 = vmatprep.subr.bf16.mxu0 %v4933
      %5148 = vmatpush1.bf16.msra.mxu0 %v4932
      %5149 = vmatprep.subr.bf16.mxu0 %v4931
      %5150 = vmatpush1.bf16.msra.mxu0 %v4930
      %5151 = vmatprep.subr.bf16.mxu0 %v4929
      %5152 = vmatpush1.bf16.msra.mxu0 %v4928
      %5153 = vmatprep.subr.bf16.mxu0 %v4959
      %5154 = vmatpush2.bf16.msra.mxu0 %v4958
      %5155 = vmatprep.subr.bf16.mxu0 %v4957
      %5156 = vmatpush2.bf16.msra.mxu0 %v4956
      %5157 = vmatprep.subr.bf16.mxu0 %v4955
      %5158 = vmatpush2.bf16.msra.mxu0 %v4954
      %5159 = vmatprep.subr.bf16.mxu0 %v4953
      %5160 = vmatpush2.bf16.msra.mxu0 %v4952
      %5161 = vmatprep.subr.bf16.mxu0 %v4951
      %5162 = vmatpush2.bf16.msra.mxu0 %v4950
      %5163 = vmatprep.subr.bf16.mxu0 %v4949
      %5164 = vmatpush2.bf16.msra.mxu0 %v4948
      %5165 = vmatprep.subr.bf16.mxu0 %v4947
      %5166 = vmatpush2.bf16.msra.mxu0 %v4946
      %5167 = vmatprep.subr.bf16.mxu0 %v4945
      %5168 = vmatpush2.bf16.msra.mxu0 %v4944
      %5169 = vmatprep.mubr.bf16.mxu0 %v4664
      %5170 = vmatmul.mubr.bf16.gmra.mxu0 %v4663
      %v5171 = vpop.f32.mrf.mxu0
      %v5172 = vadd.f32 %v5059, %v5171
      %v5173 = vpop.f32.mrf.mxu0
      %v5174 = vadd.f32 %v5061, %v5173
      %v5175 = vpop.f32.mrf.mxu0
      %v5176 = vadd.f32 %v5063, %v5175
      %v5177 = vpop.f32.mrf.mxu0
      %v5178 = vadd.f32 %v5065, %v5177
      %5179 = vmatprep.mubr.bf16.mxu0 %v4668
      %5180 = vmatmul.mubr.bf16.gmra.mxu0 %v4667
      %v5181 = vpop.f32.mrf.mxu0
      %v5182 = vadd.f32 %v5069, %v5181
      %v5183 = vpop.f32.mrf.mxu0
      %v5184 = vadd.f32 %v5071, %v5183
      %v5185 = vpop.f32.mrf.mxu0
      %v5186 = vadd.f32 %v5073, %v5185
      %v5187 = vpop.f32.mrf.mxu0
      %v5188 = vadd.f32 %v5075, %v5187
      %5189 = vmatprep.mubr.bf16.mxu0 %v4672
      %5190 = vmatmul.mubr.bf16.gmra.mxu0 %v4671
      %v5191 = vpop.f32.mrf.mxu0
      %v5192 = vadd.f32 %v5079, %v5191
      %v5193 = vpop.f32.mrf.mxu0
      %v5194 = vadd.f32 %v5081, %v5193
      %v5195 = vpop.f32.mrf.mxu0
      %v5196 = vadd.f32 %v5083, %v5195
      %v5197 = vpop.f32.mrf.mxu0
      %v5198 = vadd.f32 %v5085, %v5197
      %5199 = vmatprep.mubr.bf16.mxu0 %v4676
      %5200 = vmatmul.mubr.bf16.gmra.mxu0 %v4675
      %v5201 = vpop.f32.mrf.mxu0
      %v5202 = vadd.f32 %v5089, %v5201
      %v5203 = vpop.f32.mrf.mxu0
      %v5204 = vadd.f32 %v5091, %v5203
      %v5205 = vpop.f32.mrf.mxu0
      %v5206 = vadd.f32 %v5093, %v5205
      %v5207 = vpop.f32.mrf.mxu0
      %v5208 = vadd.f32 %v5095, %v5207
      %5209 = vmatprep.mubr.bf16.mxu0 %v4680
      %5210 = vmatmul.mubr.bf16.gmra.mxu0 %v4679
      %v5211 = vpop.f32.mrf.mxu0
      %v5212 = vadd.f32 %v5099, %v5211
      %v5213 = vpop.f32.mrf.mxu0
      %v5214 = vadd.f32 %v5101, %v5213
      %v5215 = vpop.f32.mrf.mxu0
      %v5216 = vadd.f32 %v5103, %v5215
      %v5217 = vpop.f32.mrf.mxu0
      %v5218 = vadd.f32 %v5105, %v5217
      %5219 = vmatprep.mubr.bf16.mxu0 %v4684
      %5220 = vmatmul.mubr.bf16.gmra.mxu0 %v4683
      %v5221 = vpop.f32.mrf.mxu0
      %v5222 = vadd.f32 %v5109, %v5221
      %v5223 = vpop.f32.mrf.mxu0
      %v5224 = vadd.f32 %v5111, %v5223
      %v5225 = vpop.f32.mrf.mxu0
      %v5226 = vadd.f32 %v5113, %v5225
      %v5227 = vpop.f32.mrf.mxu0
      %v5228 = vadd.f32 %v5115, %v5227
      %5229 = vmatprep.mubr.bf16.mxu0 %v4688
      %5230 = vmatmul.mubr.bf16.gmra.mxu0 %v4687
      %v5231 = vpop.f32.mrf.mxu0
      %v5232 = vadd.f32 %v5119, %v5231
      %v5233 = vpop.f32.mrf.mxu0
      %v5234 = vadd.f32 %v5121, %v5233
      %v5235 = vpop.f32.mrf.mxu0
      %v5236 = vadd.f32 %v5123, %v5235
      %v5237 = vpop.f32.mrf.mxu0
      %v5238 = vadd.f32 %v5125, %v5237
      %5239 = vmatprep.mubr.bf16.mxu0 %v4692
      %5240 = vmatmul.mubr.bf16.gmra.mxu0 %v4691
      %v5241 = vpop.f32.mrf.mxu0
      %v5242 = vadd.f32 %v5129, %v5241
      %v5243 = vpop.f32.mrf.mxu0
      %v5244 = vadd.f32 %v5131, %v5243
      %v5245 = vpop.f32.mrf.mxu0
      %v5246 = vadd.f32 %v5133, %v5245
      %v5247 = vpop.f32.mrf.mxu0
      %v5248 = vadd.f32 %v5135, %v5247
      %5249 = vdwg.mxu0
      %v5250 = vmax.f32 %v5172, 0.0
      %v5251 = vmax.f32 %v5174, 0.0
      %v5252 = vmax.f32 %v5176, 0.0
      %v5253 = vmax.f32 %v5178, 0.0
      %v5254 = vmax.f32 %v5182, 0.0
      %v5255 = vmax.f32 %v5184, 0.0
      %v5256 = vmax.f32 %v5186, 0.0
      %v5257 = vmax.f32 %v5188, 0.0
      %v5258 = vmax.f32 %v5192, 0.0
      %v5259 = vmax.f32 %v5194, 0.0
      %v5260 = vmax.f32 %v5196, 0.0
      %v5261 = vmax.f32 %v5198, 0.0
      %v5262 = vmax.f32 %v5202, 0.0
      %v5263 = vmax.f32 %v5204, 0.0
      %v5264 = vmax.f32 %v5206, 0.0
      %v5265 = vmax.f32 %v5208, 0.0
      %v5266 = vmax.f32 %v5212, 0.0
      %v5267 = vmax.f32 %v5214, 0.0
      %v5268 = vmax.f32 %v5216, 0.0
      %v5269 = vmax.f32 %v5218, 0.0
      %v5270 = vmax.f32 %v5222, 0.0
      %v5271 = vmax.f32 %v5224, 0.0
      %v5272 = vmax.f32 %v5226, 0.0
      %v5273 = vmax.f32 %v5228, 0.0
      %v5274 = vmax.f32 %v5232, 0.0
      %v5275 = vmax.f32 %v5234, 0.0
      %v5276 = vmax.f32 %v5236, 0.0
      %v5277 = vmax.f32 %v5238, 0.0
      %v5278 = vmax.f32 %v5242, 0.0
      %v5279 = vmax.f32 %v5244, 0.0
      %v5280 = vmax.f32 %v5246, 0.0
      %v5281 = vmax.f32 %v5248, 0.0
      %v5282 = vld [vmem:[#allocation17] sm:$0xff]
      %v5283 = vld [vmem:[#allocation17 + $0x8] sm:$0xff]
      %v5284 = vld [vmem:[#allocation17 + $0x10] sm:$0xff]
      %v5285 = vld [vmem:[#allocation17 + $0x18] sm:$0xff]
      %v5286 = vld [vmem:[#allocation17 + $0x20] sm:$0xff]
      %v5287 = vld [vmem:[#allocation17 + $0x28] sm:$0xff]
      %v5288 = vld [vmem:[#allocation17 + $0x30] sm:$0xff]
      %v5289 = vld [vmem:[#allocation17 + $0x38] sm:$0xff]
      %v5290 = vld [vmem:[#allocation17 + $0x40] sm:$0xff]
      %v5291 = vld [vmem:[#allocation17 + $0x48] sm:$0xff]
      %v5292 = vld [vmem:[#allocation17 + $0x50] sm:$0xff]
      %v5293 = vld [vmem:[#allocation17 + $0x58] sm:$0xff]
      %v5294 = vld [vmem:[#allocation17 + $0x60] sm:$0xff]
      %v5295 = vld [vmem:[#allocation17 + $0x68] sm:$0xff]
      %v5296 = vld [vmem:[#allocation17 + $0x70] sm:$0xff]
      %v5297 = vld [vmem:[#allocation17 + $0x78] sm:$0xff]
      %v5298 = vld [vmem:[#allocation17 + $0x80] sm:$0xff]
      %v5299 = vld [vmem:[#allocation17 + $0x88] sm:$0xff]
      %v5300 = vld [vmem:[#allocation17 + $0x90] sm:$0xff]
      %v5301 = vld [vmem:[#allocation17 + $0x98] sm:$0xff]
      %v5302 = vld [vmem:[#allocation17 + $0xa0] sm:$0xff]
      %v5303 = vld [vmem:[#allocation17 + $0xa8] sm:$0xff]
      %v5304 = vld [vmem:[#allocation17 + $0xb0] sm:$0xff]
      %v5305 = vld [vmem:[#allocation17 + $0xb8] sm:$0xff]
      %v5306 = vld [vmem:[#allocation17 + $0xc0] sm:$0xff]
      %v5307 = vld [vmem:[#allocation17 + $0xc8] sm:$0xff]
      %v5308 = vld [vmem:[#allocation17 + $0xd0] sm:$0xff]
      %v5309 = vld [vmem:[#allocation17 + $0xd8] sm:$0xff]
      %v5310 = vld [vmem:[#allocation17 + $0xe0] sm:$0xff]
      %v5311 = vld [vmem:[#allocation17 + $0xe8] sm:$0xff]
      %v5312 = vld [vmem:[#allocation17 + $0xf0] sm:$0xff]
      %v5313 = vld [vmem:[#allocation17 + $0xf8] sm:$0xff]
      %v5314 = vld [vmem:[#allocation17 + $0x100] sm:$0xff]
      %v5315 = vld [vmem:[#allocation17 + $0x108] sm:$0xff]
      %v5316 = vld [vmem:[#allocation17 + $0x110] sm:$0xff]
      %v5317 = vld [vmem:[#allocation17 + $0x118] sm:$0xff]
      %v5318 = vld [vmem:[#allocation17 + $0x120] sm:$0xff]
      %v5319 = vld [vmem:[#allocation17 + $0x128] sm:$0xff]
      %v5320 = vld [vmem:[#allocation17 + $0x130] sm:$0xff]
      %v5321 = vld [vmem:[#allocation17 + $0x138] sm:$0xff]
      %v5322 = vld [vmem:[#allocation17 + $0x140] sm:$0xff]
      %v5323 = vld [vmem:[#allocation17 + $0x148] sm:$0xff]
      %v5324 = vld [vmem:[#allocation17 + $0x150] sm:$0xff]
      %v5325 = vld [vmem:[#allocation17 + $0x158] sm:$0xff]
      %v5326 = vld [vmem:[#allocation17 + $0x160] sm:$0xff]
      %v5327 = vld [vmem:[#allocation17 + $0x168] sm:$0xff]
      %v5328 = vld [vmem:[#allocation17 + $0x170] sm:$0xff]
      %v5329 = vld [vmem:[#allocation17 + $0x178] sm:$0xff]
      %v5330 = vld [vmem:[#allocation17 + $0x180] sm:$0xff]
      %v5331 = vld [vmem:[#allocation17 + $0x188] sm:$0xff]
      %v5332 = vld [vmem:[#allocation17 + $0x190] sm:$0xff]
      %v5333 = vld [vmem:[#allocation17 + $0x198] sm:$0xff]
      %v5334 = vld [vmem:[#allocation17 + $0x1a0] sm:$0xff]
      %v5335 = vld [vmem:[#allocation17 + $0x1a8] sm:$0xff]
      %v5336 = vld [vmem:[#allocation17 + $0x1b0] sm:$0xff]
      %v5337 = vld [vmem:[#allocation17 + $0x1b8] sm:$0xff]
      %v5338 = vld [vmem:[#allocation17 + $0x1c0] sm:$0xff]
      %v5339 = vld [vmem:[#allocation17 + $0x1c8] sm:$0xff]
      %v5340 = vld [vmem:[#allocation17 + $0x1d0] sm:$0xff]
      %v5341 = vld [vmem:[#allocation17 + $0x1d8] sm:$0xff]
      %v5342 = vld [vmem:[#allocation17 + $0x1e0] sm:$0xff]
      %v5343 = vld [vmem:[#allocation17 + $0x1e8] sm:$0xff]
      %v5344 = vld [vmem:[#allocation17 + $0x1f0] sm:$0xff]
      %v5345 = vld [vmem:[#allocation17 + $0x1f8] sm:$0xff]
      %v5346 = vld [vmem:[#allocation17 + $0x200] sm:$0xff]
      %v5347 = vld [vmem:[#allocation17 + $0x208] sm:$0xff]
      %v5348 = vld [vmem:[#allocation17 + $0x210] sm:$0xff]
      %v5349 = vld [vmem:[#allocation17 + $0x218] sm:$0xff]
      %v5350 = vld [vmem:[#allocation17 + $0x220] sm:$0xff]
      %v5351 = vld [vmem:[#allocation17 + $0x228] sm:$0xff]
      %v5352 = vld [vmem:[#allocation17 + $0x230] sm:$0xff]
      %v5353 = vld [vmem:[#allocation17 + $0x238] sm:$0xff]
      %v5354 = vld [vmem:[#allocation17 + $0x240] sm:$0xff]
      %v5355 = vld [vmem:[#allocation17 + $0x248] sm:$0xff]
      %v5356 = vld [vmem:[#allocation17 + $0x250] sm:$0xff]
      %v5357 = vld [vmem:[#allocation17 + $0x258] sm:$0xff]
      %v5358 = vld [vmem:[#allocation17 + $0x260] sm:$0xff]
      %v5359 = vld [vmem:[#allocation17 + $0x268] sm:$0xff]
      %v5360 = vld [vmem:[#allocation17 + $0x270] sm:$0xff]
      %v5361 = vld [vmem:[#allocation17 + $0x278] sm:$0xff]
      %v5362 = vld [vmem:[#allocation17 + $0x280] sm:$0xff]
      %v5363 = vld [vmem:[#allocation17 + $0x288] sm:$0xff]
      %v5364 = vld [vmem:[#allocation17 + $0x290] sm:$0xff]
      %v5365 = vld [vmem:[#allocation17 + $0x298] sm:$0xff]
      %v5366 = vld [vmem:[#allocation17 + $0x2a0] sm:$0xff]
      %v5367 = vld [vmem:[#allocation17 + $0x2a8] sm:$0xff]
      %v5368 = vld [vmem:[#allocation17 + $0x2b0] sm:$0xff]
      %v5369 = vld [vmem:[#allocation17 + $0x2b8] sm:$0xff]
      %v5370 = vld [vmem:[#allocation17 + $0x2c0] sm:$0xff]
      %v5371 = vld [vmem:[#allocation17 + $0x2c8] sm:$0xff]
      %v5372 = vld [vmem:[#allocation17 + $0x2d0] sm:$0xff]
      %v5373 = vld [vmem:[#allocation17 + $0x2d8] sm:$0xff]
      %v5374 = vld [vmem:[#allocation17 + $0x2e0] sm:$0xff]
      %v5375 = vld [vmem:[#allocation17 + $0x2e8] sm:$0xff]
      %v5376 = vld [vmem:[#allocation17 + $0x2f0] sm:$0xff]
      %v5377 = vld [vmem:[#allocation17 + $0x2f8] sm:$0xff]
      %v5378 = vld [vmem:[#allocation17 + $0x300] sm:$0xff]
      %v5379 = vld [vmem:[#allocation17 + $0x308] sm:$0xff]
      %v5380 = vld [vmem:[#allocation17 + $0x310] sm:$0xff]
      %v5381 = vld [vmem:[#allocation17 + $0x318] sm:$0xff]
      %v5382 = vld [vmem:[#allocation17 + $0x320] sm:$0xff]
      %v5383 = vld [vmem:[#allocation17 + $0x328] sm:$0xff]
      %v5384 = vld [vmem:[#allocation17 + $0x330] sm:$0xff]
      %v5385 = vld [vmem:[#allocation17 + $0x338] sm:$0xff]
      %v5386 = vld [vmem:[#allocation17 + $0x340] sm:$0xff]
      %v5387 = vld [vmem:[#allocation17 + $0x348] sm:$0xff]
      %v5388 = vld [vmem:[#allocation17 + $0x350] sm:$0xff]
      %v5389 = vld [vmem:[#allocation17 + $0x358] sm:$0xff]
      %v5390 = vld [vmem:[#allocation17 + $0x360] sm:$0xff]
      %v5391 = vld [vmem:[#allocation17 + $0x368] sm:$0xff]
      %v5392 = vld [vmem:[#allocation17 + $0x370] sm:$0xff]
      %v5393 = vld [vmem:[#allocation17 + $0x378] sm:$0xff]
      %v5394 = vld [vmem:[#allocation17 + $0x380] sm:$0xff]
      %v5395 = vld [vmem:[#allocation17 + $0x388] sm:$0xff]
      %v5396 = vld [vmem:[#allocation17 + $0x390] sm:$0xff]
      %v5397 = vld [vmem:[#allocation17 + $0x398] sm:$0xff]
      %v5398 = vld [vmem:[#allocation17 + $0x3a0] sm:$0xff]
      %v5399 = vld [vmem:[#allocation17 + $0x3a8] sm:$0xff]
      %v5400 = vld [vmem:[#allocation17 + $0x3b0] sm:$0xff]
      %v5401 = vld [vmem:[#allocation17 + $0x3b8] sm:$0xff]
      %v5402 = vld [vmem:[#allocation17 + $0x3c0] sm:$0xff]
      %v5403 = vld [vmem:[#allocation17 + $0x3c8] sm:$0xff]
      %v5404 = vld [vmem:[#allocation17 + $0x3d0] sm:$0xff]
      %v5405 = vld [vmem:[#allocation17 + $0x3d8] sm:$0xff]
      %v5406 = vld [vmem:[#allocation17 + $0x3e0] sm:$0xff]
      %v5407 = vld [vmem:[#allocation17 + $0x3e8] sm:$0xff]
      %v5408 = vld [vmem:[#allocation17 + $0x3f0] sm:$0xff]
      %v5409 = vld [vmem:[#allocation17 + $0x3f8] sm:$0xff]
      %v5410 = vld [vmem:[%s12] sm:$0xff]
      %v5411 = vpack.c.bf16 %v5252, %v5250
      %v5412 = vpack.c.bf16 %v5253, %v5251
      %v5413 = vpack.c.bf16 %v5256, %v5254
      %v5414 = vpack.c.bf16 %v5257, %v5255
      %v5415 = vpack.c.bf16 %v5260, %v5258
      %v5416 = vpack.c.bf16 %v5261, %v5259
      %v5417 = vpack.c.bf16 %v5264, %v5262
      %v5418 = vpack.c.bf16 %v5265, %v5263
      %v5419 = vpack.c.bf16 %v5268, %v5266
      %v5420 = vpack.c.bf16 %v5269, %v5267
      %v5421 = vpack.c.bf16 %v5272, %v5270
      %v5422 = vpack.c.bf16 %v5273, %v5271
      %v5423 = vpack.c.bf16 %v5276, %v5274
      %v5424 = vpack.c.bf16 %v5277, %v5275
      %v5425 = vpack.c.bf16 %v5280, %v5278
      %v5426 = vpack.c.bf16 %v5281, %v5279
      %v5428 = vlaneseq
      %v5429 = vshrl.u32 %v5428, 7
      %v5430 = vsub.s32 0, %v5429
      %v5431 = vrot.slane %v5410, %v5430
      %v5432 = vlaneseq
      %v5433 = vshrl.u32 %v5432, 7
      %v5434 = vsub.s32 1, %v5433
      %v5435 = vrot.slane %v5410, %v5434
      %v5436 = vlaneseq
      %v5437 = vshrl.u32 %v5436, 7
      %v5438 = vsub.s32 2, %v5437
      %v5439 = vrot.slane %v5410, %v5438
      %v5440 = vlaneseq
      %v5441 = vshrl.u32 %v5440, 7
      %v5442 = vsub.s32 3, %v5441
      %v5443 = vrot.slane %v5410, %v5442
      %v5444 = vlaneseq
      %v5445 = vshrl.u32 %v5444, 7
      %v5446 = vsub.s32 4, %v5445
      %v5447 = vrot.slane %v5410, %v5446
      %v5448 = vlaneseq
      %v5449 = vshrl.u32 %v5448, 7
      %v5450 = vsub.s32 5, %v5449
      %v5451 = vrot.slane %v5410, %v5450
      %v5452 = vlaneseq
      %v5453 = vshrl.u32 %v5452, 7
      %v5454 = vsub.s32 6, %v5453
      %v5455 = vrot.slane %v5410, %v5454
      %v5456 = vlaneseq
      %v5457 = vshrl.u32 %v5456, 7
      %v5458 = vsub.s32 7, %v5457
      %v5459 = vrot.slane %v5410, %v5458
      %v5596 = vunpack.c.l.b16 %v5282
      %v5597 = vunpack.c.h.b16 %v5282
      %v5598 = vunpack.c.l.b16 %v5283
      %v5599 = vunpack.c.h.b16 %v5283
      %v5600 = vunpack.c.l.b16 %v5284
      %v5601 = vunpack.c.h.b16 %v5284
      %v5602 = vunpack.c.l.b16 %v5285
      %v5603 = vunpack.c.h.b16 %v5285
      %v5604 = vunpack.c.l.b16 %v5286
      %v5605 = vunpack.c.h.b16 %v5286
      %v5606 = vunpack.c.l.b16 %v5287
      %v5607 = vunpack.c.h.b16 %v5287
      %v5608 = vunpack.c.l.b16 %v5288
      %v5609 = vunpack.c.h.b16 %v5288
      %v5610 = vunpack.c.l.b16 %v5289
      %v5611 = vunpack.c.h.b16 %v5289
      %v5612 = vunpack.c.l.b16 %v5290
      %v5613 = vunpack.c.h.b16 %v5290
      %v5614 = vunpack.c.l.b16 %v5291
      %v5615 = vunpack.c.h.b16 %v5291
      %v5616 = vunpack.c.l.b16 %v5292
      %v5617 = vunpack.c.h.b16 %v5292
      %v5618 = vunpack.c.l.b16 %v5293
      %v5619 = vunpack.c.h.b16 %v5293
      %v5620 = vunpack.c.l.b16 %v5294
      %v5621 = vunpack.c.h.b16 %v5294
      %v5622 = vunpack.c.l.b16 %v5295
      %v5623 = vunpack.c.h.b16 %v5295
      %v5624 = vunpack.c.l.b16 %v5296
      %v5625 = vunpack.c.h.b16 %v5296
      %v5626 = vunpack.c.l.b16 %v5297
      %v5627 = vunpack.c.h.b16 %v5297
      %v5628 = vunpack.c.l.b16 %v5298
      %v5629 = vunpack.c.h.b16 %v5298
      %v5630 = vunpack.c.l.b16 %v5299
      %v5631 = vunpack.c.h.b16 %v5299
      %v5632 = vunpack.c.l.b16 %v5300
      %v5633 = vunpack.c.h.b16 %v5300
      %v5634 = vunpack.c.l.b16 %v5301
      %v5635 = vunpack.c.h.b16 %v5301
      %v5636 = vunpack.c.l.b16 %v5302
      %v5637 = vunpack.c.h.b16 %v5302
      %v5638 = vunpack.c.l.b16 %v5303
      %v5639 = vunpack.c.h.b16 %v5303
      %v5640 = vunpack.c.l.b16 %v5304
      %v5641 = vunpack.c.h.b16 %v5304
      %v5642 = vunpack.c.l.b16 %v5305
      %v5643 = vunpack.c.h.b16 %v5305
      %v5644 = vunpack.c.l.b16 %v5306
      %v5645 = vunpack.c.h.b16 %v5306
      %v5646 = vunpack.c.l.b16 %v5307
      %v5647 = vunpack.c.h.b16 %v5307
      %v5648 = vunpack.c.l.b16 %v5308
      %v5649 = vunpack.c.h.b16 %v5308
      %v5650 = vunpack.c.l.b16 %v5309
      %v5651 = vunpack.c.h.b16 %v5309
      %v5652 = vunpack.c.l.b16 %v5310
      %v5653 = vunpack.c.h.b16 %v5310
      %v5654 = vunpack.c.l.b16 %v5311
      %v5655 = vunpack.c.h.b16 %v5311
      %v5656 = vunpack.c.l.b16 %v5312
      %v5657 = vunpack.c.h.b16 %v5312
      %v5658 = vunpack.c.l.b16 %v5313
      %v5659 = vunpack.c.h.b16 %v5313
      %v5660 = vunpack.c.l.b16 %v5314
      %v5661 = vunpack.c.h.b16 %v5314
      %v5662 = vunpack.c.l.b16 %v5315
      %v5663 = vunpack.c.h.b16 %v5315
      %v5664 = vunpack.c.l.b16 %v5316
      %v5665 = vunpack.c.h.b16 %v5316
      %v5666 = vunpack.c.l.b16 %v5317
      %v5667 = vunpack.c.h.b16 %v5317
      %v5668 = vunpack.c.l.b16 %v5318
      %v5669 = vunpack.c.h.b16 %v5318
      %v5670 = vunpack.c.l.b16 %v5319
      %v5671 = vunpack.c.h.b16 %v5319
      %v5672 = vunpack.c.l.b16 %v5320
      %v5673 = vunpack.c.h.b16 %v5320
      %v5674 = vunpack.c.l.b16 %v5321
      %v5675 = vunpack.c.h.b16 %v5321
      %v5676 = vunpack.c.l.b16 %v5322
      %v5677 = vunpack.c.h.b16 %v5322
      %v5678 = vunpack.c.l.b16 %v5323
      %v5679 = vunpack.c.h.b16 %v5323
      %v5680 = vunpack.c.l.b16 %v5324
      %v5681 = vunpack.c.h.b16 %v5324
      %v5682 = vunpack.c.l.b16 %v5325
      %v5683 = vunpack.c.h.b16 %v5325
      %v5684 = vunpack.c.l.b16 %v5326
      %v5685 = vunpack.c.h.b16 %v5326
      %v5686 = vunpack.c.l.b16 %v5327
      %v5687 = vunpack.c.h.b16 %v5327
      %v5688 = vunpack.c.l.b16 %v5328
      %v5689 = vunpack.c.h.b16 %v5328
      %v5690 = vunpack.c.l.b16 %v5329
      %v5691 = vunpack.c.h.b16 %v5329
      %v5692 = vunpack.c.l.b16 %v5330
      %v5693 = vunpack.c.h.b16 %v5330
      %v5694 = vunpack.c.l.b16 %v5331
      %v5695 = vunpack.c.h.b16 %v5331
      %v5696 = vunpack.c.l.b16 %v5332
      %v5697 = vunpack.c.h.b16 %v5332
      %v5698 = vunpack.c.l.b16 %v5333
      %v5699 = vunpack.c.h.b16 %v5333
      %v5700 = vunpack.c.l.b16 %v5334
      %v5701 = vunpack.c.h.b16 %v5334
      %v5702 = vunpack.c.l.b16 %v5335
      %v5703 = vunpack.c.h.b16 %v5335
      %v5704 = vunpack.c.l.b16 %v5336
      %v5705 = vunpack.c.h.b16 %v5336
      %v5706 = vunpack.c.l.b16 %v5337
      %v5707 = vunpack.c.h.b16 %v5337
      %v5708 = vunpack.c.l.b16 %v5338
      %v5709 = vunpack.c.h.b16 %v5338
      %v5710 = vunpack.c.l.b16 %v5339
      %v5711 = vunpack.c.h.b16 %v5339
      %v5712 = vunpack.c.l.b16 %v5340
      %v5713 = vunpack.c.h.b16 %v5340
      %v5714 = vunpack.c.l.b16 %v5341
      %v5715 = vunpack.c.h.b16 %v5341
      %v5716 = vunpack.c.l.b16 %v5342
      %v5717 = vunpack.c.h.b16 %v5342
      %v5718 = vunpack.c.l.b16 %v5343
      %v5719 = vunpack.c.h.b16 %v5343
      %v5720 = vunpack.c.l.b16 %v5344
      %v5721 = vunpack.c.h.b16 %v5344
      %v5722 = vunpack.c.l.b16 %v5345
      %v5723 = vunpack.c.h.b16 %v5345
      %v5724 = vunpack.c.l.b16 %v5346
      %v5725 = vunpack.c.h.b16 %v5346
      %v5726 = vunpack.c.l.b16 %v5347
      %v5727 = vunpack.c.h.b16 %v5347
      %v5728 = vunpack.c.l.b16 %v5348
      %v5729 = vunpack.c.h.b16 %v5348
      %v5730 = vunpack.c.l.b16 %v5349
      %v5731 = vunpack.c.h.b16 %v5349
      %v5732 = vunpack.c.l.b16 %v5350
      %v5733 = vunpack.c.h.b16 %v5350
      %v5734 = vunpack.c.l.b16 %v5351
      %v5735 = vunpack.c.h.b16 %v5351
      %v5736 = vunpack.c.l.b16 %v5352
      %v5737 = vunpack.c.h.b16 %v5352
      %v5738 = vunpack.c.l.b16 %v5353
      %v5739 = vunpack.c.h.b16 %v5353
      %v5740 = vunpack.c.l.b16 %v5354
      %v5741 = vunpack.c.h.b16 %v5354
      %v5742 = vunpack.c.l.b16 %v5355
      %v5743 = vunpack.c.h.b16 %v5355
      %v5744 = vunpack.c.l.b16 %v5356
      %v5745 = vunpack.c.h.b16 %v5356
      %v5746 = vunpack.c.l.b16 %v5357
      %v5747 = vunpack.c.h.b16 %v5357
      %v5748 = vunpack.c.l.b16 %v5358
      %v5749 = vunpack.c.h.b16 %v5358
      %v5750 = vunpack.c.l.b16 %v5359
      %v5751 = vunpack.c.h.b16 %v5359
      %v5752 = vunpack.c.l.b16 %v5360
      %v5753 = vunpack.c.h.b16 %v5360
      %v5754 = vunpack.c.l.b16 %v5361
      %v5755 = vunpack.c.h.b16 %v5361
      %v5756 = vunpack.c.l.b16 %v5362
      %v5757 = vunpack.c.h.b16 %v5362
      %v5758 = vunpack.c.l.b16 %v5363
      %v5759 = vunpack.c.h.b16 %v5363
      %v5760 = vunpack.c.l.b16 %v5364
      %v5761 = vunpack.c.h.b16 %v5364
      %v5762 = vunpack.c.l.b16 %v5365
      %v5763 = vunpack.c.h.b16 %v5365
      %v5764 = vunpack.c.l.b16 %v5366
      %v5765 = vunpack.c.h.b16 %v5366
      %v5766 = vunpack.c.l.b16 %v5367
      %v5767 = vunpack.c.h.b16 %v5367
      %v5768 = vunpack.c.l.b16 %v5368
      %v5769 = vunpack.c.h.b16 %v5368
      %v5770 = vunpack.c.l.b16 %v5369
      %v5771 = vunpack.c.h.b16 %v5369
      %v5772 = vunpack.c.l.b16 %v5370
      %v5773 = vunpack.c.h.b16 %v5370
      %v5774 = vunpack.c.l.b16 %v5371
      %v5775 = vunpack.c.h.b16 %v5371
      %v5776 = vunpack.c.l.b16 %v5372
      %v5777 = vunpack.c.h.b16 %v5372
      %v5778 = vunpack.c.l.b16 %v5373
      %v5779 = vunpack.c.h.b16 %v5373
      %v5780 = vunpack.c.l.b16 %v5374
      %v5781 = vunpack.c.h.b16 %v5374
      %v5782 = vunpack.c.l.b16 %v5375
      %v5783 = vunpack.c.h.b16 %v5375
      %v5784 = vunpack.c.l.b16 %v5376
      %v5785 = vunpack.c.h.b16 %v5376
      %v5786 = vunpack.c.l.b16 %v5377
      %v5787 = vunpack.c.h.b16 %v5377
      %v5788 = vunpack.c.l.b16 %v5378
      %v5789 = vunpack.c.h.b16 %v5378
      %v5790 = vunpack.c.l.b16 %v5379
      %v5791 = vunpack.c.h.b16 %v5379
      %v5792 = vunpack.c.l.b16 %v5380
      %v5793 = vunpack.c.h.b16 %v5380
      %v5794 = vunpack.c.l.b16 %v5381
      %v5795 = vunpack.c.h.b16 %v5381
      %v5796 = vunpack.c.l.b16 %v5382
      %v5797 = vunpack.c.h.b16 %v5382
      %v5798 = vunpack.c.l.b16 %v5383
      %v5799 = vunpack.c.h.b16 %v5383
      %v5800 = vunpack.c.l.b16 %v5384
      %v5801 = vunpack.c.h.b16 %v5384
      %v5802 = vunpack.c.l.b16 %v5385
      %v5803 = vunpack.c.h.b16 %v5385
      %v5804 = vunpack.c.l.b16 %v5386
      %v5805 = vunpack.c.h.b16 %v5386
      %v5806 = vunpack.c.l.b16 %v5387
      %v5807 = vunpack.c.h.b16 %v5387
      %v5808 = vunpack.c.l.b16 %v5388
      %v5809 = vunpack.c.h.b16 %v5388
      %v5810 = vunpack.c.l.b16 %v5389
      %v5811 = vunpack.c.h.b16 %v5389
      %v5812 = vunpack.c.l.b16 %v5390
      %v5813 = vunpack.c.h.b16 %v5390
      %v5814 = vunpack.c.l.b16 %v5391
      %v5815 = vunpack.c.h.b16 %v5391
      %v5816 = vunpack.c.l.b16 %v5392
      %v5817 = vunpack.c.h.b16 %v5392
      %v5818 = vunpack.c.l.b16 %v5393
      %v5819 = vunpack.c.h.b16 %v5393
      %v5820 = vunpack.c.l.b16 %v5394
      %v5821 = vunpack.c.h.b16 %v5394
      %v5822 = vunpack.c.l.b16 %v5395
      %v5823 = vunpack.c.h.b16 %v5395
      %v5824 = vunpack.c.l.b16 %v5396
      %v5825 = vunpack.c.h.b16 %v5396
      %v5826 = vunpack.c.l.b16 %v5397
      %v5827 = vunpack.c.h.b16 %v5397
      %v5828 = vunpack.c.l.b16 %v5398
      %v5829 = vunpack.c.h.b16 %v5398
      %v5830 = vunpack.c.l.b16 %v5399
      %v5831 = vunpack.c.h.b16 %v5399
      %v5832 = vunpack.c.l.b16 %v5400
      %v5833 = vunpack.c.h.b16 %v5400
      %v5834 = vunpack.c.l.b16 %v5401
      %v5835 = vunpack.c.h.b16 %v5401
      %v5836 = vunpack.c.l.b16 %v5402
      %v5837 = vunpack.c.h.b16 %v5402
      %v5838 = vunpack.c.l.b16 %v5403
      %v5839 = vunpack.c.h.b16 %v5403
      %v5840 = vunpack.c.l.b16 %v5404
      %v5841 = vunpack.c.h.b16 %v5404
      %v5842 = vunpack.c.l.b16 %v5405
      %v5843 = vunpack.c.h.b16 %v5405
      %v5844 = vunpack.c.l.b16 %v5406
      %v5845 = vunpack.c.h.b16 %v5406
      %v5846 = vunpack.c.l.b16 %v5407
      %v5847 = vunpack.c.h.b16 %v5407
      %v5848 = vunpack.c.l.b16 %v5408
      %v5849 = vunpack.c.h.b16 %v5408
      %v5850 = vunpack.c.l.b16 %v5409
      %v5851 = vunpack.c.h.b16 %v5409
      %v5852 = vpack.c.b16 %v5604, %v5596
      %v5853 = vpack.c.b16 %v5605, %v5597
      %v5854 = vpack.c.b16 %v5606, %v5598
      %v5855 = vpack.c.b16 %v5607, %v5599
      %v5856 = vpack.c.b16 %v5608, %v5600
      %v5857 = vpack.c.b16 %v5609, %v5601
      %v5858 = vpack.c.b16 %v5610, %v5602
      %v5859 = vpack.c.b16 %v5611, %v5603
      %v5860 = vpack.c.b16 %v5620, %v5612
      %v5861 = vpack.c.b16 %v5621, %v5613
      %v5862 = vpack.c.b16 %v5622, %v5614
      %v5863 = vpack.c.b16 %v5623, %v5615
      %v5864 = vpack.c.b16 %v5624, %v5616
      %v5865 = vpack.c.b16 %v5625, %v5617
      %v5866 = vpack.c.b16 %v5626, %v5618
      %v5867 = vpack.c.b16 %v5627, %v5619
      %v5868 = vpack.c.b16 %v5636, %v5628
      %v5869 = vpack.c.b16 %v5637, %v5629
      %v5870 = vpack.c.b16 %v5638, %v5630
      %v5871 = vpack.c.b16 %v5639, %v5631
      %v5872 = vpack.c.b16 %v5640, %v5632
      %v5873 = vpack.c.b16 %v5641, %v5633
      %v5874 = vpack.c.b16 %v5642, %v5634
      %v5875 = vpack.c.b16 %v5643, %v5635
      %v5876 = vpack.c.b16 %v5652, %v5644
      %v5877 = vpack.c.b16 %v5653, %v5645
      %v5878 = vpack.c.b16 %v5654, %v5646
      %v5879 = vpack.c.b16 %v5655, %v5647
      %v5880 = vpack.c.b16 %v5656, %v5648
      %v5881 = vpack.c.b16 %v5657, %v5649
      %v5882 = vpack.c.b16 %v5658, %v5650
      %v5883 = vpack.c.b16 %v5659, %v5651
      %v5884 = vpack.c.b16 %v5668, %v5660
      %v5885 = vpack.c.b16 %v5669, %v5661
      %v5886 = vpack.c.b16 %v5670, %v5662
      %v5887 = vpack.c.b16 %v5671, %v5663
      %v5888 = vpack.c.b16 %v5672, %v5664
      %v5889 = vpack.c.b16 %v5673, %v5665
      %v5890 = vpack.c.b16 %v5674, %v5666
      %v5891 = vpack.c.b16 %v5675, %v5667
      %v5892 = vpack.c.b16 %v5684, %v5676
      %v5893 = vpack.c.b16 %v5685, %v5677
      %v5894 = vpack.c.b16 %v5686, %v5678
      %v5895 = vpack.c.b16 %v5687, %v5679
      %v5896 = vpack.c.b16 %v5688, %v5680
      %v5897 = vpack.c.b16 %v5689, %v5681
      %v5898 = vpack.c.b16 %v5690, %v5682
      %v5899 = vpack.c.b16 %v5691, %v5683
      %v5900 = vpack.c.b16 %v5700, %v5692
      %v5901 = vpack.c.b16 %v5701, %v5693
      %v5902 = vpack.c.b16 %v5702, %v5694
      %v5903 = vpack.c.b16 %v5703, %v5695
      %v5904 = vpack.c.b16 %v5704, %v5696
      %v5905 = vpack.c.b16 %v5705, %v5697
      %v5906 = vpack.c.b16 %v5706, %v5698
      %v5907 = vpack.c.b16 %v5707, %v5699
      %v5908 = vpack.c.b16 %v5716, %v5708
      %v5909 = vpack.c.b16 %v5717, %v5709
      %v5910 = vpack.c.b16 %v5718, %v5710
      %v5911 = vpack.c.b16 %v5719, %v5711
      %v5912 = vpack.c.b16 %v5720, %v5712
      %v5913 = vpack.c.b16 %v5721, %v5713
      %v5914 = vpack.c.b16 %v5722, %v5714
      %v5915 = vpack.c.b16 %v5723, %v5715
      %v5916 = vpack.c.b16 %v5732, %v5724
      %v5917 = vpack.c.b16 %v5733, %v5725
      %v5918 = vpack.c.b16 %v5734, %v5726
      %v5919 = vpack.c.b16 %v5735, %v5727
      %v5920 = vpack.c.b16 %v5736, %v5728
      %v5921 = vpack.c.b16 %v5737, %v5729
      %v5922 = vpack.c.b16 %v5738, %v5730
      %v5923 = vpack.c.b16 %v5739, %v5731
      %v5924 = vpack.c.b16 %v5748, %v5740
      %v5925 = vpack.c.b16 %v5749, %v5741
      %v5926 = vpack.c.b16 %v5750, %v5742
      %v5927 = vpack.c.b16 %v5751, %v5743
      %v5928 = vpack.c.b16 %v5752, %v5744
      %v5929 = vpack.c.b16 %v5753, %v5745
      %v5930 = vpack.c.b16 %v5754, %v5746
      %v5931 = vpack.c.b16 %v5755, %v5747
      %v5932 = vpack.c.b16 %v5764, %v5756
      %v5933 = vpack.c.b16 %v5765, %v5757
      %v5934 = vpack.c.b16 %v5766, %v5758
      %v5935 = vpack.c.b16 %v5767, %v5759
      %v5936 = vpack.c.b16 %v5768, %v5760
      %v5937 = vpack.c.b16 %v5769, %v5761
      %v5938 = vpack.c.b16 %v5770, %v5762
      %v5939 = vpack.c.b16 %v5771, %v5763
      %v5940 = vpack.c.b16 %v5780, %v5772
      %v5941 = vpack.c.b16 %v5781, %v5773
      %v5942 = vpack.c.b16 %v5782, %v5774
      %v5943 = vpack.c.b16 %v5783, %v5775
      %v5944 = vpack.c.b16 %v5784, %v5776
      %v5945 = vpack.c.b16 %v5785, %v5777
      %v5946 = vpack.c.b16 %v5786, %v5778
      %v5947 = vpack.c.b16 %v5787, %v5779
      %v5948 = vpack.c.b16 %v5796, %v5788
      %v5949 = vpack.c.b16 %v5797, %v5789
      %v5950 = vpack.c.b16 %v5798, %v5790
      %v5951 = vpack.c.b16 %v5799, %v5791
      %v5952 = vpack.c.b16 %v5800, %v5792
      %v5953 = vpack.c.b16 %v5801, %v5793
      %v5954 = vpack.c.b16 %v5802, %v5794
      %v5955 = vpack.c.b16 %v5803, %v5795
      %v5956 = vpack.c.b16 %v5812, %v5804
      %v5957 = vpack.c.b16 %v5813, %v5805
      %v5958 = vpack.c.b16 %v5814, %v5806
      %v5959 = vpack.c.b16 %v5815, %v5807
      %v5960 = vpack.c.b16 %v5816, %v5808
      %v5961 = vpack.c.b16 %v5817, %v5809
      %v5962 = vpack.c.b16 %v5818, %v5810
      %v5963 = vpack.c.b16 %v5819, %v5811
      %v5964 = vpack.c.b16 %v5828, %v5820
      %v5965 = vpack.c.b16 %v5829, %v5821
      %v5966 = vpack.c.b16 %v5830, %v5822
      %v5967 = vpack.c.b16 %v5831, %v5823
      %v5968 = vpack.c.b16 %v5832, %v5824
      %v5969 = vpack.c.b16 %v5833, %v5825
      %v5970 = vpack.c.b16 %v5834, %v5826
      %v5971 = vpack.c.b16 %v5835, %v5827
      %v5972 = vpack.c.b16 %v5844, %v5836
      %v5973 = vpack.c.b16 %v5845, %v5837
      %v5974 = vpack.c.b16 %v5846, %v5838
      %v5975 = vpack.c.b16 %v5847, %v5839
      %v5976 = vpack.c.b16 %v5848, %v5840
      %v5977 = vpack.c.b16 %v5849, %v5841
      %v5978 = vpack.c.b16 %v5850, %v5842
      %v5979 = vpack.c.b16 %v5851, %v5843
      %6108 = vmatprep.subr.bf16.mxu0 %v5909
      %6109 = vmatpush1.bf16.msra.mxu0 %v5908
      %6110 = vmatprep.subr.bf16.mxu0 %v5901
      %6111 = vmatpush1.bf16.msra.mxu0 %v5900
      %6112 = vmatprep.subr.bf16.mxu0 %v5893
      %6113 = vmatpush1.bf16.msra.mxu0 %v5892
      %6114 = vmatprep.subr.bf16.mxu0 %v5885
      %6115 = vmatpush1.bf16.msra.mxu0 %v5884
      %6116 = vmatprep.subr.bf16.mxu0 %v5877
      %6117 = vmatpush1.bf16.msra.mxu0 %v5876
      %6118 = vmatprep.subr.bf16.mxu0 %v5869
      %6119 = vmatpush1.bf16.msra.mxu0 %v5868
      %6120 = vmatprep.subr.bf16.mxu0 %v5861
      %6121 = vmatpush1.bf16.msra.mxu0 %v5860
      %6122 = vmatprep.subr.bf16.mxu0 %v5853
      %6123 = vmatpush1.bf16.msra.mxu0 %v5852
      %6124 = vmatprep.subr.bf16.mxu0 %v5973
      %6125 = vmatpush2.bf16.msra.mxu0 %v5972
      %6126 = vmatprep.subr.bf16.mxu0 %v5965
      %6127 = vmatpush2.bf16.msra.mxu0 %v5964
      %6128 = vmatprep.subr.bf16.mxu0 %v5957
      %6129 = vmatpush2.bf16.msra.mxu0 %v5956
      %6130 = vmatprep.subr.bf16.mxu0 %v5949
      %6131 = vmatpush2.bf16.msra.mxu0 %v5948
      %6132 = vmatprep.subr.bf16.mxu0 %v5941
      %6133 = vmatpush2.bf16.msra.mxu0 %v5940
      %6134 = vmatprep.subr.bf16.mxu0 %v5933
      %6135 = vmatpush2.bf16.msra.mxu0 %v5932
      %6136 = vmatprep.subr.bf16.mxu0 %v5925
      %6137 = vmatpush2.bf16.msra.mxu0 %v5924
      %6138 = vmatprep.subr.bf16.mxu0 %v5917
      %6139 = vmatpush2.bf16.msra.mxu0 %v5916
      %6140 = vmatprep.mubr.bf16.mxu0 %v5412
      %6141 = vmatmul.mubr.bf16.gmra.mxu0 %v5411
      %v6142 = vpop.f32.mrf.mxu0
      %v6143 = vadd.f32 %v5431, %v6142
      %v6144 = vpop.f32.mrf.mxu0
      %v6145 = vadd.f32 %v5435, %v6144
      %v6146 = vpop.f32.mrf.mxu0
      %v6147 = vadd.f32 %v5431, %v6146
      %v6148 = vpop.f32.mrf.mxu0
      %v6149 = vadd.f32 %v5435, %v6148
      %6150 = vmatprep.mubr.bf16.mxu0 %v5414
      %6151 = vmatmul.mubr.bf16.gmra.mxu0 %v5413
      %v6152 = vpop.f32.mrf.mxu0
      %v6153 = vadd.f32 %v5431, %v6152
      %v6154 = vpop.f32.mrf.mxu0
      %v6155 = vadd.f32 %v5435, %v6154
      %v6156 = vpop.f32.mrf.mxu0
      %v6157 = vadd.f32 %v5431, %v6156
      %v6158 = vpop.f32.mrf.mxu0
      %v6159 = vadd.f32 %v5435, %v6158
      %6160 = vmatprep.mubr.bf16.mxu0 %v5416
      %6161 = vmatmul.mubr.bf16.gmra.mxu0 %v5415
      %v6162 = vpop.f32.mrf.mxu0
      %v6163 = vadd.f32 %v5431, %v6162
      %v6164 = vpop.f32.mrf.mxu0
      %v6165 = vadd.f32 %v5435, %v6164
      %v6166 = vpop.f32.mrf.mxu0
      %v6167 = vadd.f32 %v5431, %v6166
      %v6168 = vpop.f32.mrf.mxu0
      %v6169 = vadd.f32 %v5435, %v6168
      %6170 = vmatprep.mubr.bf16.mxu0 %v5418
      %6171 = vmatmul.mubr.bf16.gmra.mxu0 %v5417
      %v6172 = vpop.f32.mrf.mxu0
      %v6173 = vadd.f32 %v5431, %v6172
      %v6174 = vpop.f32.mrf.mxu0
      %v6175 = vadd.f32 %v5435, %v6174
      %v6176 = vpop.f32.mrf.mxu0
      %v6177 = vadd.f32 %v5431, %v6176
      %v6178 = vpop.f32.mrf.mxu0
      %v6179 = vadd.f32 %v5435, %v6178
      %6180 = vmatprep.mubr.bf16.mxu0 %v5420
      %6181 = vmatmul.mubr.bf16.gmra.mxu0 %v5419
      %v6182 = vpop.f32.mrf.mxu0
      %v6183 = vadd.f32 %v5431, %v6182
      %v6184 = vpop.f32.mrf.mxu0
      %v6185 = vadd.f32 %v5435, %v6184
      %v6186 = vpop.f32.mrf.mxu0
      %v6187 = vadd.f32 %v5431, %v6186
      %v6188 = vpop.f32.mrf.mxu0
      %v6189 = vadd.f32 %v5435, %v6188
      %6190 = vmatprep.mubr.bf16.mxu0 %v5422
      %6191 = vmatmul.mubr.bf16.gmra.mxu0 %v5421
      %v6192 = vpop.f32.mrf.mxu0
      %v6193 = vadd.f32 %v5431, %v6192
      %v6194 = vpop.f32.mrf.mxu0
      %v6195 = vadd.f32 %v5435, %v6194
      %v6196 = vpop.f32.mrf.mxu0
      %v6197 = vadd.f32 %v5431, %v6196
      %v6198 = vpop.f32.mrf.mxu0
      %v6199 = vadd.f32 %v5435, %v6198
      %6200 = vmatprep.mubr.bf16.mxu0 %v5424
      %6201 = vmatmul.mubr.bf16.gmra.mxu0 %v5423
      %v6202 = vpop.f32.mrf.mxu0
      %v6203 = vadd.f32 %v5431, %v6202
      %v6204 = vpop.f32.mrf.mxu0
      %v6205 = vadd.f32 %v5435, %v6204
      %v6206 = vpop.f32.mrf.mxu0
      %v6207 = vadd.f32 %v5431, %v6206
      %v6208 = vpop.f32.mrf.mxu0
      %v6209 = vadd.f32 %v5435, %v6208
      %6210 = vmatprep.mubr.bf16.mxu0 %v5426
      %6211 = vmatmul.mubr.bf16.gmra.mxu0 %v5425
      %v6212 = vpop.f32.mrf.mxu0
      %v6213 = vadd.f32 %v5431, %v6212
      %v6214 = vpop.f32.mrf.mxu0
      %v6215 = vadd.f32 %v5435, %v6214
      %v6216 = vpop.f32.mrf.mxu0
      %v6217 = vadd.f32 %v5431, %v6216
      %v6218 = vpop.f32.mrf.mxu0
      %v6219 = vadd.f32 %v5435, %v6218
      %6220 = vdwg.mxu0
      %6221 = vmatprep.subr.bf16.mxu0 %v5911
      %6222 = vmatpush1.bf16.msra.mxu0 %v5910
      %6223 = vmatprep.subr.bf16.mxu0 %v5903
      %6224 = vmatpush1.bf16.msra.mxu0 %v5902
      %6225 = vmatprep.subr.bf16.mxu0 %v5895
      %6226 = vmatpush1.bf16.msra.mxu0 %v5894
      %6227 = vmatprep.subr.bf16.mxu0 %v5887
      %6228 = vmatpush1.bf16.msra.mxu0 %v5886
      %6229 = vmatprep.subr.bf16.mxu0 %v5879
      %6230 = vmatpush1.bf16.msra.mxu0 %v5878
      %6231 = vmatprep.subr.bf16.mxu0 %v5871
      %6232 = vmatpush1.bf16.msra.mxu0 %v5870
      %6233 = vmatprep.subr.bf16.mxu0 %v5863
      %6234 = vmatpush1.bf16.msra.mxu0 %v5862
      %6235 = vmatprep.subr.bf16.mxu0 %v5855
      %6236 = vmatpush1.bf16.msra.mxu0 %v5854
      %6237 = vmatprep.subr.bf16.mxu0 %v5975
      %6238 = vmatpush2.bf16.msra.mxu0 %v5974
      %6239 = vmatprep.subr.bf16.mxu0 %v5967
      %6240 = vmatpush2.bf16.msra.mxu0 %v5966
      %6241 = vmatprep.subr.bf16.mxu0 %v5959
      %6242 = vmatpush2.bf16.msra.mxu0 %v5958
      %6243 = vmatprep.subr.bf16.mxu0 %v5951
      %6244 = vmatpush2.bf16.msra.mxu0 %v5950
      %6245 = vmatprep.subr.bf16.mxu0 %v5943
      %6246 = vmatpush2.bf16.msra.mxu0 %v5942
      %6247 = vmatprep.subr.bf16.mxu0 %v5935
      %6248 = vmatpush2.bf16.msra.mxu0 %v5934
      %6249 = vmatprep.subr.bf16.mxu0 %v5927
      %6250 = vmatpush2.bf16.msra.mxu0 %v5926
      %6251 = vmatprep.subr.bf16.mxu0 %v5919
      %6252 = vmatpush2.bf16.msra.mxu0 %v5918
      %6253 = vmatprep.mubr.bf16.mxu0 %v5412
      %6254 = vmatmul.mubr.bf16.gmra.mxu0 %v5411
      %v6255 = vpop.f32.mrf.mxu0
      %v6256 = vadd.f32 %v5439, %v6255
      %v6257 = vpop.f32.mrf.mxu0
      %v6258 = vadd.f32 %v5443, %v6257
      %v6259 = vpop.f32.mrf.mxu0
      %v6260 = vadd.f32 %v5439, %v6259
      %v6261 = vpop.f32.mrf.mxu0
      %v6262 = vadd.f32 %v5443, %v6261
      %6263 = vmatprep.mubr.bf16.mxu0 %v5414
      %6264 = vmatmul.mubr.bf16.gmra.mxu0 %v5413
      %v6265 = vpop.f32.mrf.mxu0
      %v6266 = vadd.f32 %v5439, %v6265
      %v6267 = vpop.f32.mrf.mxu0
      %v6268 = vadd.f32 %v5443, %v6267
      %v6269 = vpop.f32.mrf.mxu0
      %v6270 = vadd.f32 %v5439, %v6269
      %v6271 = vpop.f32.mrf.mxu0
      %v6272 = vadd.f32 %v5443, %v6271
      %6273 = vmatprep.mubr.bf16.mxu0 %v5416
      %6274 = vmatmul.mubr.bf16.gmra.mxu0 %v5415
      %v6275 = vpop.f32.mrf.mxu0
      %v6276 = vadd.f32 %v5439, %v6275
      %v6277 = vpop.f32.mrf.mxu0
      %v6278 = vadd.f32 %v5443, %v6277
      %v6279 = vpop.f32.mrf.mxu0
      %v6280 = vadd.f32 %v5439, %v6279
      %v6281 = vpop.f32.mrf.mxu0
      %v6282 = vadd.f32 %v5443, %v6281
      %6283 = vmatprep.mubr.bf16.mxu0 %v5418
      %6284 = vmatmul.mubr.bf16.gmra.mxu0 %v5417
      %v6285 = vpop.f32.mrf.mxu0
      %v6286 = vadd.f32 %v5439, %v6285
      %v6287 = vpop.f32.mrf.mxu0
      %v6288 = vadd.f32 %v5443, %v6287
      %v6289 = vpop.f32.mrf.mxu0
      %v6290 = vadd.f32 %v5439, %v6289
      %v6291 = vpop.f32.mrf.mxu0
      %v6292 = vadd.f32 %v5443, %v6291
      %6293 = vmatprep.mubr.bf16.mxu0 %v5420
      %6294 = vmatmul.mubr.bf16.gmra.mxu0 %v5419
      %v6295 = vpop.f32.mrf.mxu0
      %v6296 = vadd.f32 %v5439, %v6295
      %v6297 = vpop.f32.mrf.mxu0
      %v6298 = vadd.f32 %v5443, %v6297
      %v6299 = vpop.f32.mrf.mxu0
      %v6300 = vadd.f32 %v5439, %v6299
      %v6301 = vpop.f32.mrf.mxu0
      %v6302 = vadd.f32 %v5443, %v6301
      %6303 = vmatprep.mubr.bf16.mxu0 %v5422
      %6304 = vmatmul.mubr.bf16.gmra.mxu0 %v5421
      %v6305 = vpop.f32.mrf.mxu0
      %v6306 = vadd.f32 %v5439, %v6305
      %v6307 = vpop.f32.mrf.mxu0
      %v6308 = vadd.f32 %v5443, %v6307
      %v6309 = vpop.f32.mrf.mxu0
      %v6310 = vadd.f32 %v5439, %v6309
      %v6311 = vpop.f32.mrf.mxu0
      %v6312 = vadd.f32 %v5443, %v6311
      %6313 = vmatprep.mubr.bf16.mxu0 %v5424
      %6314 = vmatmul.mubr.bf16.gmra.mxu0 %v5423
      %v6315 = vpop.f32.mrf.mxu0
      %v6316 = vadd.f32 %v5439, %v6315
      %v6317 = vpop.f32.mrf.mxu0
      %v6318 = vadd.f32 %v5443, %v6317
      %v6319 = vpop.f32.mrf.mxu0
      %v6320 = vadd.f32 %v5439, %v6319
      %v6321 = vpop.f32.mrf.mxu0
      %v6322 = vadd.f32 %v5443, %v6321
      %6323 = vmatprep.mubr.bf16.mxu0 %v5426
      %6324 = vmatmul.mubr.bf16.gmra.mxu0 %v5425
      %v6325 = vpop.f32.mrf.mxu0
      %v6326 = vadd.f32 %v5439, %v6325
      %v6327 = vpop.f32.mrf.mxu0
      %v6328 = vadd.f32 %v5443, %v6327
      %v6329 = vpop.f32.mrf.mxu0
      %v6330 = vadd.f32 %v5439, %v6329
      %v6331 = vpop.f32.mrf.mxu0
      %v6332 = vadd.f32 %v5443, %v6331
      %6333 = vdwg.mxu0
      %6334 = vmatprep.subr.bf16.mxu0 %v5913
      %6335 = vmatpush1.bf16.msra.mxu0 %v5912
      %6336 = vmatprep.subr.bf16.mxu0 %v5905
      %6337 = vmatpush1.bf16.msra.mxu0 %v5904
      %6338 = vmatprep.subr.bf16.mxu0 %v5897
      %6339 = vmatpush1.bf16.msra.mxu0 %v5896
      %6340 = vmatprep.subr.bf16.mxu0 %v5889
      %6341 = vmatpush1.bf16.msra.mxu0 %v5888
      %6342 = vmatprep.subr.bf16.mxu0 %v5881
      %6343 = vmatpush1.bf16.msra.mxu0 %v5880
      %6344 = vmatprep.subr.bf16.mxu0 %v5873
      %6345 = vmatpush1.bf16.msra.mxu0 %v5872
      %6346 = vmatprep.subr.bf16.mxu0 %v5865
      %6347 = vmatpush1.bf16.msra.mxu0 %v5864
      %6348 = vmatprep.subr.bf16.mxu0 %v5857
      %6349 = vmatpush1.bf16.msra.mxu0 %v5856
      %6350 = vmatprep.subr.bf16.mxu0 %v5977
      %6351 = vmatpush2.bf16.msra.mxu0 %v5976
      %6352 = vmatprep.subr.bf16.mxu0 %v5969
      %6353 = vmatpush2.bf16.msra.mxu0 %v5968
      %6354 = vmatprep.subr.bf16.mxu0 %v5961
      %6355 = vmatpush2.bf16.msra.mxu0 %v5960
      %6356 = vmatprep.subr.bf16.mxu0 %v5953
      %6357 = vmatpush2.bf16.msra.mxu0 %v5952
      %6358 = vmatprep.subr.bf16.mxu0 %v5945
      %6359 = vmatpush2.bf16.msra.mxu0 %v5944
      %6360 = vmatprep.subr.bf16.mxu0 %v5937
      %6361 = vmatpush2.bf16.msra.mxu0 %v5936
      %6362 = vmatprep.subr.bf16.mxu0 %v5929
      %6363 = vmatpush2.bf16.msra.mxu0 %v5928
      %6364 = vmatprep.subr.bf16.mxu0 %v5921
      %6365 = vmatpush2.bf16.msra.mxu0 %v5920
      %6366 = vmatprep.mubr.bf16.mxu0 %v5412
      %6367 = vmatmul.mubr.bf16.gmra.mxu0 %v5411
      %v6368 = vpop.f32.mrf.mxu0
      %v6369 = vadd.f32 %v5447, %v6368
      %v6370 = vpop.f32.mrf.mxu0
      %v6371 = vadd.f32 %v5451, %v6370
      %v6372 = vpop.f32.mrf.mxu0
      %v6373 = vadd.f32 %v5447, %v6372
      %v6374 = vpop.f32.mrf.mxu0
      %v6375 = vadd.f32 %v5451, %v6374
      %6376 = vmatprep.mubr.bf16.mxu0 %v5414
      %6377 = vmatmul.mubr.bf16.gmra.mxu0 %v5413
      %v6378 = vpop.f32.mrf.mxu0
      %v6379 = vadd.f32 %v5447, %v6378
      %v6380 = vpop.f32.mrf.mxu0
      %v6381 = vadd.f32 %v5451, %v6380
      %v6382 = vpop.f32.mrf.mxu0
      %v6383 = vadd.f32 %v5447, %v6382
      %v6384 = vpop.f32.mrf.mxu0
      %v6385 = vadd.f32 %v5451, %v6384
      %6386 = vmatprep.mubr.bf16.mxu0 %v5416
      %6387 = vmatmul.mubr.bf16.gmra.mxu0 %v5415
      %v6388 = vpop.f32.mrf.mxu0
      %v6389 = vadd.f32 %v5447, %v6388
      %v6390 = vpop.f32.mrf.mxu0
      %v6391 = vadd.f32 %v5451, %v6390
      %v6392 = vpop.f32.mrf.mxu0
      %v6393 = vadd.f32 %v5447, %v6392
      %v6394 = vpop.f32.mrf.mxu0
      %v6395 = vadd.f32 %v5451, %v6394
      %6396 = vmatprep.mubr.bf16.mxu0 %v5418
      %6397 = vmatmul.mubr.bf16.gmra.mxu0 %v5417
      %v6398 = vpop.f32.mrf.mxu0
      %v6399 = vadd.f32 %v5447, %v6398
      %v6400 = vpop.f32.mrf.mxu0
      %v6401 = vadd.f32 %v5451, %v6400
      %v6402 = vpop.f32.mrf.mxu0
      %v6403 = vadd.f32 %v5447, %v6402
      %v6404 = vpop.f32.mrf.mxu0
      %v6405 = vadd.f32 %v5451, %v6404
      %6406 = vmatprep.mubr.bf16.mxu0 %v5420
      %6407 = vmatmul.mubr.bf16.gmra.mxu0 %v5419
      %v6408 = vpop.f32.mrf.mxu0
      %v6409 = vadd.f32 %v5447, %v6408
      %v6410 = vpop.f32.mrf.mxu0
      %v6411 = vadd.f32 %v5451, %v6410
      %v6412 = vpop.f32.mrf.mxu0
      %v6413 = vadd.f32 %v5447, %v6412
      %v6414 = vpop.f32.mrf.mxu0
      %v6415 = vadd.f32 %v5451, %v6414
      %6416 = vmatprep.mubr.bf16.mxu0 %v5422
      %6417 = vmatmul.mubr.bf16.gmra.mxu0 %v5421
      %v6418 = vpop.f32.mrf.mxu0
      %v6419 = vadd.f32 %v5447, %v6418
      %v6420 = vpop.f32.mrf.mxu0
      %v6421 = vadd.f32 %v5451, %v6420
      %v6422 = vpop.f32.mrf.mxu0
      %v6423 = vadd.f32 %v5447, %v6422
      %v6424 = vpop.f32.mrf.mxu0
      %v6425 = vadd.f32 %v5451, %v6424
      %6426 = vmatprep.mubr.bf16.mxu0 %v5424
      %6427 = vmatmul.mubr.bf16.gmra.mxu0 %v5423
      %v6428 = vpop.f32.mrf.mxu0
      %v6429 = vadd.f32 %v5447, %v6428
      %v6430 = vpop.f32.mrf.mxu0
      %v6431 = vadd.f32 %v5451, %v6430
      %v6432 = vpop.f32.mrf.mxu0
      %v6433 = vadd.f32 %v5447, %v6432
      %v6434 = vpop.f32.mrf.mxu0
      %v6435 = vadd.f32 %v5451, %v6434
      %6436 = vmatprep.mubr.bf16.mxu0 %v5426
      %6437 = vmatmul.mubr.bf16.gmra.mxu0 %v5425
      %v6438 = vpop.f32.mrf.mxu0
      %v6439 = vadd.f32 %v5447, %v6438
      %v6440 = vpop.f32.mrf.mxu0
      %v6441 = vadd.f32 %v5451, %v6440
      %v6442 = vpop.f32.mrf.mxu0
      %v6443 = vadd.f32 %v5447, %v6442
      %v6444 = vpop.f32.mrf.mxu0
      %v6445 = vadd.f32 %v5451, %v6444
      %6446 = vdwg.mxu0
      %6447 = vmatprep.subr.bf16.mxu0 %v5915
      %6448 = vmatpush1.bf16.msra.mxu0 %v5914
      %6449 = vmatprep.subr.bf16.mxu0 %v5907
      %6450 = vmatpush1.bf16.msra.mxu0 %v5906
      %6451 = vmatprep.subr.bf16.mxu0 %v5899
      %6452 = vmatpush1.bf16.msra.mxu0 %v5898
      %6453 = vmatprep.subr.bf16.mxu0 %v5891
      %6454 = vmatpush1.bf16.msra.mxu0 %v5890
      %6455 = vmatprep.subr.bf16.mxu0 %v5883
      %6456 = vmatpush1.bf16.msra.mxu0 %v5882
      %6457 = vmatprep.subr.bf16.mxu0 %v5875
      %6458 = vmatpush1.bf16.msra.mxu0 %v5874
      %6459 = vmatprep.subr.bf16.mxu0 %v5867
      %6460 = vmatpush1.bf16.msra.mxu0 %v5866
      %6461 = vmatprep.subr.bf16.mxu0 %v5859
      %6462 = vmatpush1.bf16.msra.mxu0 %v5858
      %6463 = vmatprep.subr.bf16.mxu0 %v5979
      %6464 = vmatpush2.bf16.msra.mxu0 %v5978
      %6465 = vmatprep.subr.bf16.mxu0 %v5971
      %6466 = vmatpush2.bf16.msra.mxu0 %v5970
      %6467 = vmatprep.subr.bf16.mxu0 %v5963
      %6468 = vmatpush2.bf16.msra.mxu0 %v5962
      %6469 = vmatprep.subr.bf16.mxu0 %v5955
      %6470 = vmatpush2.bf16.msra.mxu0 %v5954
      %6471 = vmatprep.subr.bf16.mxu0 %v5947
      %6472 = vmatpush2.bf16.msra.mxu0 %v5946
      %6473 = vmatprep.subr.bf16.mxu0 %v5939
      %6474 = vmatpush2.bf16.msra.mxu0 %v5938
      %6475 = vmatprep.subr.bf16.mxu0 %v5931
      %6476 = vmatpush2.bf16.msra.mxu0 %v5930
      %6477 = vmatprep.subr.bf16.mxu0 %v5923
      %6478 = vmatpush2.bf16.msra.mxu0 %v5922
      %6479 = vmatprep.mubr.bf16.mxu0 %v5412
      %6480 = vmatmul.mubr.bf16.gmra.mxu0 %v5411
      %v6481 = vpop.f32.mrf.mxu0
      %v6482 = vadd.f32 %v5455, %v6481
      %v6483 = vpop.f32.mrf.mxu0
      %v6484 = vadd.f32 %v5459, %v6483
      %v6485 = vpop.f32.mrf.mxu0
      %v6486 = vadd.f32 %v5455, %v6485
      %v6487 = vpop.f32.mrf.mxu0
      %v6488 = vadd.f32 %v5459, %v6487
      %6489 = vmatprep.mubr.bf16.mxu0 %v5414
      %6490 = vmatmul.mubr.bf16.gmra.mxu0 %v5413
      %v6491 = vpop.f32.mrf.mxu0
      %v6492 = vadd.f32 %v5455, %v6491
      %v6493 = vpop.f32.mrf.mxu0
      %v6494 = vadd.f32 %v5459, %v6493
      %v6495 = vpop.f32.mrf.mxu0
      %v6496 = vadd.f32 %v5455, %v6495
      %v6497 = vpop.f32.mrf.mxu0
      %v6498 = vadd.f32 %v5459, %v6497
      %6499 = vmatprep.mubr.bf16.mxu0 %v5416
      %6500 = vmatmul.mubr.bf16.gmra.mxu0 %v5415
      %v6501 = vpop.f32.mrf.mxu0
      %v6502 = vadd.f32 %v5455, %v6501
      %v6503 = vpop.f32.mrf.mxu0
      %v6504 = vadd.f32 %v5459, %v6503
      %v6505 = vpop.f32.mrf.mxu0
      %v6506 = vadd.f32 %v5455, %v6505
      %v6507 = vpop.f32.mrf.mxu0
      %v6508 = vadd.f32 %v5459, %v6507
      %6509 = vmatprep.mubr.bf16.mxu0 %v5418
      %6510 = vmatmul.mubr.bf16.gmra.mxu0 %v5417
      %v6511 = vpop.f32.mrf.mxu0
      %v6512 = vadd.f32 %v5455, %v6511
      %v6513 = vpop.f32.mrf.mxu0
      %v6514 = vadd.f32 %v5459, %v6513
      %v6515 = vpop.f32.mrf.mxu0
      %v6516 = vadd.f32 %v5455, %v6515
      %v6517 = vpop.f32.mrf.mxu0
      %v6518 = vadd.f32 %v5459, %v6517
      %6519 = vmatprep.mubr.bf16.mxu0 %v5420
      %6520 = vmatmul.mubr.bf16.gmra.mxu0 %v5419
      %v6521 = vpop.f32.mrf.mxu0
      %v6522 = vadd.f32 %v5455, %v6521
      %v6523 = vpop.f32.mrf.mxu0
      %v6524 = vadd.f32 %v5459, %v6523
      %v6525 = vpop.f32.mrf.mxu0
      %v6526 = vadd.f32 %v5455, %v6525
      %v6527 = vpop.f32.mrf.mxu0
      %v6528 = vadd.f32 %v5459, %v6527
      %6529 = vmatprep.mubr.bf16.mxu0 %v5422
      %6530 = vmatmul.mubr.bf16.gmra.mxu0 %v5421
      %v6531 = vpop.f32.mrf.mxu0
      %v6532 = vadd.f32 %v5455, %v6531
      %v6533 = vpop.f32.mrf.mxu0
      %v6534 = vadd.f32 %v5459, %v6533
      %v6535 = vpop.f32.mrf.mxu0
      %v6536 = vadd.f32 %v5455, %v6535
      %v6537 = vpop.f32.mrf.mxu0
      %v6538 = vadd.f32 %v5459, %v6537
      %6539 = vmatprep.mubr.bf16.mxu0 %v5424
      %6540 = vmatmul.mubr.bf16.gmra.mxu0 %v5423
      %v6541 = vpop.f32.mrf.mxu0
      %v6542 = vadd.f32 %v5455, %v6541
      %v6543 = vpop.f32.mrf.mxu0
      %v6544 = vadd.f32 %v5459, %v6543
      %v6545 = vpop.f32.mrf.mxu0
      %v6546 = vadd.f32 %v5455, %v6545
      %v6547 = vpop.f32.mrf.mxu0
      %v6548 = vadd.f32 %v5459, %v6547
      %6549 = vmatprep.mubr.bf16.mxu0 %v5426
      %6550 = vmatmul.mubr.bf16.gmra.mxu0 %v5425
      %v6551 = vpop.f32.mrf.mxu0
      %v6552 = vadd.f32 %v5455, %v6551
      %v6553 = vpop.f32.mrf.mxu0
      %v6554 = vadd.f32 %v5459, %v6553
      %v6555 = vpop.f32.mrf.mxu0
      %v6556 = vadd.f32 %v5455, %v6555
      %v6557 = vpop.f32.mrf.mxu0
      %v6558 = vadd.f32 %v5459, %v6557
      %6559 = vdwg.mxu0
      %v6560 = vmax.f32 %v6143, 0.0
      %v6561 = vmax.f32 %v6145, 0.0
      %v6562 = vmax.f32 %v6256, 0.0
      %v6563 = vmax.f32 %v6258, 0.0
      %v6564 = vmax.f32 %v6369, 0.0
      %v6565 = vmax.f32 %v6371, 0.0
      %v6566 = vmax.f32 %v6482, 0.0
      %v6567 = vmax.f32 %v6484, 0.0
      %v6568 = vmax.f32 %v6147, 0.0
      %v6569 = vmax.f32 %v6149, 0.0
      %v6570 = vmax.f32 %v6260, 0.0
      %v6571 = vmax.f32 %v6262, 0.0
      %v6572 = vmax.f32 %v6373, 0.0
      %v6573 = vmax.f32 %v6375, 0.0
      %v6574 = vmax.f32 %v6486, 0.0
      %v6575 = vmax.f32 %v6488, 0.0
      %v6576 = vmax.f32 %v6153, 0.0
      %v6577 = vmax.f32 %v6155, 0.0
      %v6578 = vmax.f32 %v6266, 0.0
      %v6579 = vmax.f32 %v6268, 0.0
      %v6580 = vmax.f32 %v6379, 0.0
      %v6581 = vmax.f32 %v6381, 0.0
      %v6582 = vmax.f32 %v6492, 0.0
      %v6583 = vmax.f32 %v6494, 0.0
      %v6584 = vmax.f32 %v6157, 0.0
      %v6585 = vmax.f32 %v6159, 0.0
      %v6586 = vmax.f32 %v6270, 0.0
      %v6587 = vmax.f32 %v6272, 0.0
      %v6588 = vmax.f32 %v6383, 0.0
      %v6589 = vmax.f32 %v6385, 0.0
      %v6590 = vmax.f32 %v6496, 0.0
      %v6591 = vmax.f32 %v6498, 0.0
      %v6592 = vmax.f32 %v6163, 0.0
      %v6593 = vmax.f32 %v6165, 0.0
      %v6594 = vmax.f32 %v6276, 0.0
      %v6595 = vmax.f32 %v6278, 0.0
      %v6596 = vmax.f32 %v6389, 0.0
      %v6597 = vmax.f32 %v6391, 0.0
      %v6598 = vmax.f32 %v6502, 0.0
      %v6599 = vmax.f32 %v6504, 0.0
      %v6600 = vmax.f32 %v6167, 0.0
      %v6601 = vmax.f32 %v6169, 0.0
      %v6602 = vmax.f32 %v6280, 0.0
      %v6603 = vmax.f32 %v6282, 0.0
      %v6604 = vmax.f32 %v6393, 0.0
      %v6605 = vmax.f32 %v6395, 0.0
      %v6606 = vmax.f32 %v6506, 0.0
      %v6607 = vmax.f32 %v6508, 0.0
      %v6608 = vmax.f32 %v6173, 0.0
      %v6609 = vmax.f32 %v6175, 0.0
      %v6610 = vmax.f32 %v6286, 0.0
      %v6611 = vmax.f32 %v6288, 0.0
      %v6612 = vmax.f32 %v6399, 0.0
      %v6613 = vmax.f32 %v6401, 0.0
      %v6614 = vmax.f32 %v6512, 0.0
      %v6615 = vmax.f32 %v6514, 0.0
      %v6616 = vmax.f32 %v6177, 0.0
      %v6617 = vmax.f32 %v6179, 0.0
      %v6618 = vmax.f32 %v6290, 0.0
      %v6619 = vmax.f32 %v6292, 0.0
      %v6620 = vmax.f32 %v6403, 0.0
      %v6621 = vmax.f32 %v6405, 0.0
      %v6622 = vmax.f32 %v6516, 0.0
      %v6623 = vmax.f32 %v6518, 0.0
      %v6624 = vmax.f32 %v6183, 0.0
      %v6625 = vmax.f32 %v6185, 0.0
      %v6626 = vmax.f32 %v6296, 0.0
      %v6627 = vmax.f32 %v6298, 0.0
      %v6628 = vmax.f32 %v6409, 0.0
      %v6629 = vmax.f32 %v6411, 0.0
      %v6630 = vmax.f32 %v6522, 0.0
      %v6631 = vmax.f32 %v6524, 0.0
      %v6632 = vmax.f32 %v6187, 0.0
      %v6633 = vmax.f32 %v6189, 0.0
      %v6634 = vmax.f32 %v6300, 0.0
      %v6635 = vmax.f32 %v6302, 0.0
      %v6636 = vmax.f32 %v6413, 0.0
      %v6637 = vmax.f32 %v6415, 0.0
      %v6638 = vmax.f32 %v6526, 0.0
      %v6639 = vmax.f32 %v6528, 0.0
      %v6640 = vmax.f32 %v6193, 0.0
      %v6641 = vmax.f32 %v6195, 0.0
      %v6642 = vmax.f32 %v6306, 0.0
      %v6643 = vmax.f32 %v6308, 0.0
      %v6644 = vmax.f32 %v6419, 0.0
      %v6645 = vmax.f32 %v6421, 0.0
      %v6646 = vmax.f32 %v6532, 0.0
      %v6647 = vmax.f32 %v6534, 0.0
      %v6648 = vmax.f32 %v6197, 0.0
      %v6649 = vmax.f32 %v6199, 0.0
      %v6650 = vmax.f32 %v6310, 0.0
      %v6651 = vmax.f32 %v6312, 0.0
      %v6652 = vmax.f32 %v6423, 0.0
      %v6653 = vmax.f32 %v6425, 0.0
      %v6654 = vmax.f32 %v6536, 0.0
      %v6655 = vmax.f32 %v6538, 0.0
      %v6656 = vmax.f32 %v6203, 0.0
      %v6657 = vmax.f32 %v6205, 0.0
      %v6658 = vmax.f32 %v6316, 0.0
      %v6659 = vmax.f32 %v6318, 0.0
      %v6660 = vmax.f32 %v6429, 0.0
      %v6661 = vmax.f32 %v6431, 0.0
      %v6662 = vmax.f32 %v6542, 0.0
      %v6663 = vmax.f32 %v6544, 0.0
      %v6664 = vmax.f32 %v6207, 0.0
      %v6665 = vmax.f32 %v6209, 0.0
      %v6666 = vmax.f32 %v6320, 0.0
      %v6667 = vmax.f32 %v6322, 0.0
      %v6668 = vmax.f32 %v6433, 0.0
      %v6669 = vmax.f32 %v6435, 0.0
      %v6670 = vmax.f32 %v6546, 0.0
      %v6671 = vmax.f32 %v6548, 0.0
      %v6672 = vmax.f32 %v6213, 0.0
      %v6673 = vmax.f32 %v6215, 0.0
      %v6674 = vmax.f32 %v6326, 0.0
      %v6675 = vmax.f32 %v6328, 0.0
      %v6676 = vmax.f32 %v6439, 0.0
      %v6677 = vmax.f32 %v6441, 0.0
      %v6678 = vmax.f32 %v6552, 0.0
      %v6679 = vmax.f32 %v6554, 0.0
      %v6680 = vmax.f32 %v6217, 0.0
      %v6681 = vmax.f32 %v6219, 0.0
      %v6682 = vmax.f32 %v6330, 0.0
      %v6683 = vmax.f32 %v6332, 0.0
      %v6684 = vmax.f32 %v6443, 0.0
      %v6685 = vmax.f32 %v6445, 0.0
      %v6686 = vmax.f32 %v6556, 0.0
      %v6687 = vmax.f32 %v6558, 0.0
      %6688 = vst [vmem:[#allocation2] sm:$0xff] %v6560
      %6689 = vst [vmem:[#allocation2 + $0x8] sm:$0xff] %v6561
      %6690 = vst [vmem:[#allocation2 + $0x10] sm:$0xff] %v6562
      %6691 = vst [vmem:[#allocation2 + $0x18] sm:$0xff] %v6563
      %6692 = vst [vmem:[#allocation2 + $0x20] sm:$0xff] %v6564
      %6693 = vst [vmem:[#allocation2 + $0x28] sm:$0xff] %v6565
      %6694 = vst [vmem:[#allocation2 + $0x30] sm:$0xff] %v6566
      %6695 = vst [vmem:[#allocation2 + $0x38] sm:$0xff] %v6567
      %6696 = vst [vmem:[#allocation2 + $0x40] sm:$0xff] %v6568
      %6697 = vst [vmem:[#allocation2 + $0x48] sm:$0xff] %v6569
      %6698 = vst [vmem:[#allocation2 + $0x50] sm:$0xff] %v6570
      %6699 = vst [vmem:[#allocation2 + $0x58] sm:$0xff] %v6571
      %6700 = vst [vmem:[#allocation2 + $0x60] sm:$0xff] %v6572
      %6701 = vst [vmem:[#allocation2 + $0x68] sm:$0xff] %v6573
      %6702 = vst [vmem:[#allocation2 + $0x70] sm:$0xff] %v6574
      %6703 = vst [vmem:[#allocation2 + $0x78] sm:$0xff] %v6575
      %6704 = vst [vmem:[#allocation2 + $0x80] sm:$0xff] %v6576
      %6705 = vst [vmem:[#allocation2 + $0x88] sm:$0xff] %v6577
      %6706 = vst [vmem:[#allocation2 + $0x90] sm:$0xff] %v6578
      %6707 = vst [vmem:[#allocation2 + $0x98] sm:$0xff] %v6579
      %6708 = vst [vmem:[#allocation2 + $0xa0] sm:$0xff] %v6580
      %6709 = vst [vmem:[#allocation2 + $0xa8] sm:$0xff] %v6581
      %6710 = vst [vmem:[#allocation2 + $0xb0] sm:$0xff] %v6582
      %6711 = vst [vmem:[#allocation2 + $0xb8] sm:$0xff] %v6583
      %6712 = vst [vmem:[#allocation2 + $0xc0] sm:$0xff] %v6584
      %6713 = vst [vmem:[#allocation2 + $0xc8] sm:$0xff] %v6585
      %6714 = vst [vmem:[#allocation2 + $0xd0] sm:$0xff] %v6586
      %6715 = vst [vmem:[#allocation2 + $0xd8] sm:$0xff] %v6587
      %6716 = vst [vmem:[#allocation2 + $0xe0] sm:$0xff] %v6588
      %6717 = vst [vmem:[#allocation2 + $0xe8] sm:$0xff] %v6589
      %6718 = vst [vmem:[#allocation2 + $0xf0] sm:$0xff] %v6590
      %6719 = vst [vmem:[#allocation2 + $0xf8] sm:$0xff] %v6591
      %6720 = vst [vmem:[#allocation2 + $0x100] sm:$0xff] %v6592
      %6721 = vst [vmem:[#allocation2 + $0x108] sm:$0xff] %v6593
      %6722 = vst [vmem:[#allocation2 + $0x110] sm:$0xff] %v6594
      %6723 = vst [vmem:[#allocation2 + $0x118] sm:$0xff] %v6595
      %6724 = vst [vmem:[#allocation2 + $0x120] sm:$0xff] %v6596
      %6725 = vst [vmem:[#allocation2 + $0x128] sm:$0xff] %v6597
      %6726 = vst [vmem:[#allocation2 + $0x130] sm:$0xff] %v6598
      %6727 = vst [vmem:[#allocation2 + $0x138] sm:$0xff] %v6599
      %6728 = vst [vmem:[#allocation2 + $0x140] sm:$0xff] %v6600
      %6729 = vst [vmem:[#allocation2 + $0x148] sm:$0xff] %v6601
      %6730 = vst [vmem:[#allocation2 + $0x150] sm:$0xff] %v6602
      %6731 = vst [vmem:[#allocation2 + $0x158] sm:$0xff] %v6603
      %6732 = vst [vmem:[#allocation2 + $0x160] sm:$0xff] %v6604
      %6733 = vst [vmem:[#allocation2 + $0x168] sm:$0xff] %v6605
      %6734 = vst [vmem:[#allocation2 + $0x170] sm:$0xff] %v6606
      %6735 = vst [vmem:[#allocation2 + $0x178] sm:$0xff] %v6607
      %6736 = vst [vmem:[#allocation2 + $0x180] sm:$0xff] %v6608
      %6737 = vst [vmem:[#allocation2 + $0x188] sm:$0xff] %v6609
      %6738 = vst [vmem:[#allocation2 + $0x190] sm:$0xff] %v6610
      %6739 = vst [vmem:[#allocation2 + $0x198] sm:$0xff] %v6611
      %6740 = vst [vmem:[#allocation2 + $0x1a0] sm:$0xff] %v6612
      %6741 = vst [vmem:[#allocation2 + $0x1a8] sm:$0xff] %v6613
      %6742 = vst [vmem:[#allocation2 + $0x1b0] sm:$0xff] %v6614
      %6743 = vst [vmem:[#allocation2 + $0x1b8] sm:$0xff] %v6615
      %6744 = vst [vmem:[#allocation2 + $0x1c0] sm:$0xff] %v6616
      %6745 = vst [vmem:[#allocation2 + $0x1c8] sm:$0xff] %v6617
      %6746 = vst [vmem:[#allocation2 + $0x1d0] sm:$0xff] %v6618
      %6747 = vst [vmem:[#allocation2 + $0x1d8] sm:$0xff] %v6619
      %6748 = vst [vmem:[#allocation2 + $0x1e0] sm:$0xff] %v6620
      %6749 = vst [vmem:[#allocation2 + $0x1e8] sm:$0xff] %v6621
      %6750 = vst [vmem:[#allocation2 + $0x1f0] sm:$0xff] %v6622
      %6751 = vst [vmem:[#allocation2 + $0x1f8] sm:$0xff] %v6623
      %6752 = vst [vmem:[#allocation2 + $0x200] sm:$0xff] %v6624
      %6753 = vst [vmem:[#allocation2 + $0x208] sm:$0xff] %v6625
      %6754 = vst [vmem:[#allocation2 + $0x210] sm:$0xff] %v6626
      %6755 = vst [vmem:[#allocation2 + $0x218] sm:$0xff] %v6627
      %6756 = vst [vmem:[#allocation2 + $0x220] sm:$0xff] %v6628
      %6757 = vst [vmem:[#allocation2 + $0x228] sm:$0xff] %v6629
      %6758 = vst [vmem:[#allocation2 + $0x230] sm:$0xff] %v6630
      %6759 = vst [vmem:[#allocation2 + $0x238] sm:$0xff] %v6631
      %6760 = vst [vmem:[#allocation2 + $0x240] sm:$0xff] %v6632
      %6761 = vst [vmem:[#allocation2 + $0x248] sm:$0xff] %v6633
      %6762 = vst [vmem:[#allocation2 + $0x250] sm:$0xff] %v6634
      %6763 = vst [vmem:[#allocation2 + $0x258] sm:$0xff] %v6635
      %6764 = vst [vmem:[#allocation2 + $0x260] sm:$0xff] %v6636
      %6765 = vst [vmem:[#allocation2 + $0x268] sm:$0xff] %v6637
      %6766 = vst [vmem:[#allocation2 + $0x270] sm:$0xff] %v6638
      %6767 = vst [vmem:[#allocation2 + $0x278] sm:$0xff] %v6639
      %6768 = vst [vmem:[#allocation2 + $0x280] sm:$0xff] %v6640
      %6769 = vst [vmem:[#allocation2 + $0x288] sm:$0xff] %v6641
      %6770 = vst [vmem:[#allocation2 + $0x290] sm:$0xff] %v6642
      %6771 = vst [vmem:[#allocation2 + $0x298] sm:$0xff] %v6643
      %6772 = vst [vmem:[#allocation2 + $0x2a0] sm:$0xff] %v6644
      %6773 = vst [vmem:[#allocation2 + $0x2a8] sm:$0xff] %v6645
      %6774 = vst [vmem:[#allocation2 + $0x2b0] sm:$0xff] %v6646
      %6775 = vst [vmem:[#allocation2 + $0x2b8] sm:$0xff] %v6647
      %6776 = vst [vmem:[#allocation2 + $0x2c0] sm:$0xff] %v6648
      %6777 = vst [vmem:[#allocation2 + $0x2c8] sm:$0xff] %v6649
      %6778 = vst [vmem:[#allocation2 + $0x2d0] sm:$0xff] %v6650
      %6779 = vst [vmem:[#allocation2 + $0x2d8] sm:$0xff] %v6651
      %6780 = vst [vmem:[#allocation2 + $0x2e0] sm:$0xff] %v6652
      %6781 = vst [vmem:[#allocation2 + $0x2e8] sm:$0xff] %v6653
      %6782 = vst [vmem:[#allocation2 + $0x2f0] sm:$0xff] %v6654
      %6783 = vst [vmem:[#allocation2 + $0x2f8] sm:$0xff] %v6655
      %6784 = vst [vmem:[#allocation2 + $0x300] sm:$0xff] %v6656
      %6785 = vst [vmem:[#allocation2 + $0x308] sm:$0xff] %v6657
      %6786 = vst [vmem:[#allocation2 + $0x310] sm:$0xff] %v6658
      %6787 = vst [vmem:[#allocation2 + $0x318] sm:$0xff] %v6659
      %6788 = vst [vmem:[#allocation2 + $0x320] sm:$0xff] %v6660
      %6789 = vst [vmem:[#allocation2 + $0x328] sm:$0xff] %v6661
      %6790 = vst [vmem:[#allocation2 + $0x330] sm:$0xff] %v6662
      %6791 = vst [vmem:[#allocation2 + $0x338] sm:$0xff] %v6663
      %6792 = vst [vmem:[#allocation2 + $0x340] sm:$0xff] %v6664
      %6793 = vst [vmem:[#allocation2 + $0x348] sm:$0xff] %v6665
      %6794 = vst [vmem:[#allocation2 + $0x350] sm:$0xff] %v6666
      %6795 = vst [vmem:[#allocation2 + $0x358] sm:$0xff] %v6667
      %6796 = vst [vmem:[#allocation2 + $0x360] sm:$0xff] %v6668
      %6797 = vst [vmem:[#allocation2 + $0x368] sm:$0xff] %v6669
      %6798 = vst [vmem:[#allocation2 + $0x370] sm:$0xff] %v6670
      %6799 = vst [vmem:[#allocation2 + $0x378] sm:$0xff] %v6671
      %6800 = vst [vmem:[#allocation2 + $0x380] sm:$0xff] %v6672
      %6801 = vst [vmem:[#allocation2 + $0x388] sm:$0xff] %v6673
      %6802 = vst [vmem:[#allocation2 + $0x390] sm:$0xff] %v6674
      %6803 = vst [vmem:[#allocation2 + $0x398] sm:$0xff] %v6675
      %6804 = vst [vmem:[#allocation2 + $0x3a0] sm:$0xff] %v6676
      %6805 = vst [vmem:[#allocation2 + $0x3a8] sm:$0xff] %v6677
      %6806 = vst [vmem:[#allocation2 + $0x3b0] sm:$0xff] %v6678
      %6807 = vst [vmem:[#allocation2 + $0x3b8] sm:$0xff] %v6679
      %6808 = vst [vmem:[#allocation2 + $0x3c0] sm:$0xff] %v6680
      %6809 = vst [vmem:[#allocation2 + $0x3c8] sm:$0xff] %v6681
      %6810 = vst [vmem:[#allocation2 + $0x3d0] sm:$0xff] %v6682
      %6811 = vst [vmem:[#allocation2 + $0x3d8] sm:$0xff] %v6683
      %6812 = vst [vmem:[#allocation2 + $0x3e0] sm:$0xff] %v6684
      %6813 = vst [vmem:[#allocation2 + $0x3e8] sm:$0xff] %v6685
      %6814 = vst [vmem:[#allocation2 + $0x3f0] sm:$0xff] %v6686
      %6815 = vst [vmem:[#allocation2 + $0x3f8] sm:$0xff] %v6687
    $region105: #{tpu_custom_call.1} parent=1 // pred_fallthru
      _
    %v6816 = vld [vmem:[#allocation2] sm:$0xff]
    %v6817 = vld [vmem:[#allocation2 + $0x8] sm:$0xff]
    %v6818 = vld [vmem:[#allocation2 + $0x10] sm:$0xff]
    %v6819 = vld [vmem:[#allocation2 + $0x18] sm:$0xff]
    %v6820 = vld [vmem:[#allocation2 + $0x20] sm:$0xff]
    %v6821 = vld [vmem:[#allocation2 + $0x28] sm:$0xff]
    %v6822 = vld [vmem:[#allocation2 + $0x30] sm:$0xff]
    %v6823 = vld [vmem:[#allocation2 + $0x38] sm:$0xff]
    %v6824 = vld [vmem:[#allocation2 + $0x40] sm:$0xff]
    %v6825 = vld [vmem:[#allocation2 + $0x48] sm:$0xff]
    %v6826 = vld [vmem:[#allocation2 + $0x50] sm:$0xff]
    %v6827 = vld [vmem:[#allocation2 + $0x58] sm:$0xff]
    %v6828 = vld [vmem:[#allocation2 + $0x60] sm:$0xff]
    %v6829 = vld [vmem:[#allocation2 + $0x68] sm:$0xff]
    %v6830 = vld [vmem:[#allocation2 + $0x70] sm:$0xff]
    %v6831 = vld [vmem:[#allocation2 + $0x78] sm:$0xff]
    %v6832 = vld [vmem:[#allocation2 + $0x80] sm:$0xff]
    %v6833 = vld [vmem:[#allocation2 + $0x88] sm:$0xff]
    %v6834 = vld [vmem:[#allocation2 + $0x90] sm:$0xff]
    %v6835 = vld [vmem:[#allocation2 + $0x98] sm:$0xff]
    %v6836 = vld [vmem:[#allocation2 + $0xa0] sm:$0xff]
    %v6837 = vld [vmem:[#allocation2 + $0xa8] sm:$0xff]
    %v6838 = vld [vmem:[#allocation2 + $0xb0] sm:$0xff]
    %v6839 = vld [vmem:[#allocation2 + $0xb8] sm:$0xff]
    %v6840 = vld [vmem:[#allocation2 + $0xc0] sm:$0xff]
    %v6841 = vld [vmem:[#allocation2 + $0xc8] sm:$0xff]
    %v6842 = vld [vmem:[#allocation2 + $0xd0] sm:$0xff]
    %v6843 = vld [vmem:[#allocation2 + $0xd8] sm:$0xff]
    %v6844 = vld [vmem:[#allocation2 + $0xe0] sm:$0xff]
    %v6845 = vld [vmem:[#allocation2 + $0xe8] sm:$0xff]
    %v6846 = vld [vmem:[#allocation2 + $0xf0] sm:$0xff]
    %v6847 = vld [vmem:[#allocation2 + $0xf8] sm:$0xff]
    %v6848 = vld [vmem:[#allocation2 + $0x100] sm:$0xff]
    %v6849 = vld [vmem:[#allocation2 + $0x108] sm:$0xff]
    %v6850 = vld [vmem:[#allocation2 + $0x110] sm:$0xff]
    %v6851 = vld [vmem:[#allocation2 + $0x118] sm:$0xff]
    %v6852 = vld [vmem:[#allocation2 + $0x120] sm:$0xff]
    %v6853 = vld [vmem:[#allocation2 + $0x128] sm:$0xff]
    %v6854 = vld [vmem:[#allocation2 + $0x130] sm:$0xff]
    %v6855 = vld [vmem:[#allocation2 + $0x138] sm:$0xff]
    %v6856 = vld [vmem:[#allocation2 + $0x140] sm:$0xff]
    %v6857 = vld [vmem:[#allocation2 + $0x148] sm:$0xff]
    %v6858 = vld [vmem:[#allocation2 + $0x150] sm:$0xff]
    %v6859 = vld [vmem:[#allocation2 + $0x158] sm:$0xff]
    %v6860 = vld [vmem:[#allocation2 + $0x160] sm:$0xff]
    %v6861 = vld [vmem:[#allocation2 + $0x168] sm:$0xff]
    %v6862 = vld [vmem:[#allocation2 + $0x170] sm:$0xff]
    %v6863 = vld [vmem:[#allocation2 + $0x178] sm:$0xff]
    %v6864 = vld [vmem:[#allocation2 + $0x180] sm:$0xff]
    %v6865 = vld [vmem:[#allocation2 + $0x188] sm:$0xff]
    %v6866 = vld [vmem:[#allocation2 + $0x190] sm:$0xff]
    %v6867 = vld [vmem:[#allocation2 + $0x198] sm:$0xff]
    %v6868 = vld [vmem:[#allocation2 + $0x1a0] sm:$0xff]
    %v6869 = vld [vmem:[#allocation2 + $0x1a8] sm:$0xff]
    %v6870 = vld [vmem:[#allocation2 + $0x1b0] sm:$0xff]
    %v6871 = vld [vmem:[#allocation2 + $0x1b8] sm:$0xff]
    %v6872 = vld [vmem:[#allocation2 + $0x1c0] sm:$0xff]
    %v6873 = vld [vmem:[#allocation2 + $0x1c8] sm:$0xff]
    %v6874 = vld [vmem:[#allocation2 + $0x1d0] sm:$0xff]
    %v6875 = vld [vmem:[#allocation2 + $0x1d8] sm:$0xff]
    %v6876 = vld [vmem:[#allocation2 + $0x1e0] sm:$0xff]
    %v6877 = vld [vmem:[#allocation2 + $0x1e8] sm:$0xff]
    %v6878 = vld [vmem:[#allocation2 + $0x1f0] sm:$0xff]
    %v6879 = vld [vmem:[#allocation2 + $0x1f8] sm:$0xff]
    %v6880 = vld [vmem:[#allocation2 + $0x200] sm:$0xff]
    %v6881 = vld [vmem:[#allocation2 + $0x208] sm:$0xff]
    %v6882 = vld [vmem:[#allocation2 + $0x210] sm:$0xff]
    %v6883 = vld [vmem:[#allocation2 + $0x218] sm:$0xff]
    %v6884 = vld [vmem:[#allocation2 + $0x220] sm:$0xff]
    %v6885 = vld [vmem:[#allocation2 + $0x228] sm:$0xff]
    %v6886 = vld [vmem:[#allocation2 + $0x230] sm:$0xff]
    %v6887 = vld [vmem:[#allocation2 + $0x238] sm:$0xff]
    %v6888 = vld [vmem:[#allocation2 + $0x240] sm:$0xff]
    %v6889 = vld [vmem:[#allocation2 + $0x248] sm:$0xff]
    %v6890 = vld [vmem:[#allocation2 + $0x250] sm:$0xff]
    %v6891 = vld [vmem:[#allocation2 + $0x258] sm:$0xff]
    %v6892 = vld [vmem:[#allocation2 + $0x260] sm:$0xff]
    %v6893 = vld [vmem:[#allocation2 + $0x268] sm:$0xff]
    %v6894 = vld [vmem:[#allocation2 + $0x270] sm:$0xff]
    %v6895 = vld [vmem:[#allocation2 + $0x278] sm:$0xff]
    %v6896 = vld [vmem:[#allocation2 + $0x280] sm:$0xff]
    %v6897 = vld [vmem:[#allocation2 + $0x288] sm:$0xff]
    %v6898 = vld [vmem:[#allocation2 + $0x290] sm:$0xff]
    %v6899 = vld [vmem:[#allocation2 + $0x298] sm:$0xff]
    %v6900 = vld [vmem:[#allocation2 + $0x2a0] sm:$0xff]
    %v6901 = vld [vmem:[#allocation2 + $0x2a8] sm:$0xff]
    %v6902 = vld [vmem:[#allocation2 + $0x2b0] sm:$0xff]
    %v6903 = vld [vmem:[#allocation2 + $0x2b8] sm:$0xff]
    %v6904 = vld [vmem:[#allocation2 + $0x2c0] sm:$0xff]
    %v6905 = vld [vmem:[#allocation2 + $0x2c8] sm:$0xff]
    %v6906 = vld [vmem:[#allocation2 + $0x2d0] sm:$0xff]
    %v6907 = vld [vmem:[#allocation2 + $0x2d8] sm:$0xff]
    %v6908 = vld [vmem:[#allocation2 + $0x2e0] sm:$0xff]
    %v6909 = vld [vmem:[#allocation2 + $0x2e8] sm:$0xff]
    %v6910 = vld [vmem:[#allocation2 + $0x2f0] sm:$0xff]
    %v6911 = vld [vmem:[#allocation2 + $0x2f8] sm:$0xff]
    %v6912 = vld [vmem:[#allocation2 + $0x300] sm:$0xff]
    %v6913 = vld [vmem:[#allocation2 + $0x308] sm:$0xff]
    %v6914 = vld [vmem:[#allocation2 + $0x310] sm:$0xff]
    %v6915 = vld [vmem:[#allocation2 + $0x318] sm:$0xff]
    %v6916 = vld [vmem:[#allocation2 + $0x320] sm:$0xff]
    %v6917 = vld [vmem:[#allocation2 + $0x328] sm:$0xff]
    %v6918 = vld [vmem:[#allocation2 + $0x330] sm:$0xff]
    %v6919 = vld [vmem:[#allocation2 + $0x338] sm:$0xff]
    %v6920 = vld [vmem:[#allocation2 + $0x340] sm:$0xff]
    %v6921 = vld [vmem:[#allocation2 + $0x348] sm:$0xff]
    %v6922 = vld [vmem:[#allocation2 + $0x350] sm:$0xff]
    %v6923 = vld [vmem:[#allocation2 + $0x358] sm:$0xff]
    %v6924 = vld [vmem:[#allocation2 + $0x360] sm:$0xff]
    %v6925 = vld [vmem:[#allocation2 + $0x368] sm:$0xff]
    %v6926 = vld [vmem:[#allocation2 + $0x370] sm:$0xff]
    %v6927 = vld [vmem:[#allocation2 + $0x378] sm:$0xff]
    %v6928 = vld [vmem:[#allocation2 + $0x380] sm:$0xff]
    %v6929 = vld [vmem:[#allocation2 + $0x388] sm:$0xff]
    %v6930 = vld [vmem:[#allocation2 + $0x390] sm:$0xff]
    %v6931 = vld [vmem:[#allocation2 + $0x398] sm:$0xff]
    %v6932 = vld [vmem:[#allocation2 + $0x3a0] sm:$0xff]
    %v6933 = vld [vmem:[#allocation2 + $0x3a8] sm:$0xff]
    %v6934 = vld [vmem:[#allocation2 + $0x3b0] sm:$0xff]
    %v6935 = vld [vmem:[#allocation2 + $0x3b8] sm:$0xff]
    %v6936 = vld [vmem:[#allocation2 + $0x3c0] sm:$0xff]
    %v6937 = vld [vmem:[#allocation2 + $0x3c8] sm:$0xff]
    %v6938 = vld [vmem:[#allocation2 + $0x3d0] sm:$0xff]
    %v6939 = vld [vmem:[#allocation2 + $0x3d8] sm:$0xff]
    %v6940 = vld [vmem:[#allocation2 + $0x3e0] sm:$0xff]
    %v6941 = vld [vmem:[#allocation2 + $0x3e8] sm:$0xff]
    %v6942 = vld [vmem:[#allocation2 + $0x3f0] sm:$0xff]
    %v6943 = vld [vmem:[#allocation2 + $0x3f8] sm:$0xff]
    %v6944 = vpack.c.bf16 %v6824, %v6816
    %v6945 = vpack.c.bf16 %v6825, %v6817
    %v6946 = vpack.c.bf16 %v6826, %v6818
    %v6947 = vpack.c.bf16 %v6827, %v6819
    %v6948 = vpack.c.bf16 %v6828, %v6820
    %v6949 = vpack.c.bf16 %v6829, %v6821
    %v6950 = vpack.c.bf16 %v6830, %v6822
    %v6951 = vpack.c.bf16 %v6831, %v6823
    %v6952 = vpack.c.bf16 %v6840, %v6832
    %v6953 = vpack.c.bf16 %v6841, %v6833
    %v6954 = vpack.c.bf16 %v6842, %v6834
    %v6955 = vpack.c.bf16 %v6843, %v6835
    %v6956 = vpack.c.bf16 %v6844, %v6836
    %v6957 = vpack.c.bf16 %v6845, %v6837
    %v6958 = vpack.c.bf16 %v6846, %v6838
    %v6959 = vpack.c.bf16 %v6847, %v6839
    %v6960 = vpack.c.bf16 %v6856, %v6848
    %v6961 = vpack.c.bf16 %v6857, %v6849
    %v6962 = vpack.c.bf16 %v6858, %v6850
    %v6963 = vpack.c.bf16 %v6859, %v6851
    %v6964 = vpack.c.bf16 %v6860, %v6852
    %v6965 = vpack.c.bf16 %v6861, %v6853
    %v6966 = vpack.c.bf16 %v6862, %v6854
    %v6967 = vpack.c.bf16 %v6863, %v6855
    %v6968 = vpack.c.bf16 %v6872, %v6864
    %v6969 = vpack.c.bf16 %v6873, %v6865
    %v6970 = vpack.c.bf16 %v6874, %v6866
    %v6971 = vpack.c.bf16 %v6875, %v6867
    %v6972 = vpack.c.bf16 %v6876, %v6868
    %v6973 = vpack.c.bf16 %v6877, %v6869
    %v6974 = vpack.c.bf16 %v6878, %v6870
    %v6975 = vpack.c.bf16 %v6879, %v6871
    %v6976 = vpack.c.bf16 %v6888, %v6880
    %v6977 = vpack.c.bf16 %v6889, %v6881
    %v6978 = vpack.c.bf16 %v6890, %v6882
    %v6979 = vpack.c.bf16 %v6891, %v6883
    %v6980 = vpack.c.bf16 %v6892, %v6884
    %v6981 = vpack.c.bf16 %v6893, %v6885
    %v6982 = vpack.c.bf16 %v6894, %v6886
    %v6983 = vpack.c.bf16 %v6895, %v6887
    %v6984 = vpack.c.bf16 %v6904, %v6896
    %v6985 = vpack.c.bf16 %v6905, %v6897
    %v6986 = vpack.c.bf16 %v6906, %v6898
    %v6987 = vpack.c.bf16 %v6907, %v6899
    %v6988 = vpack.c.bf16 %v6908, %v6900
    %v6989 = vpack.c.bf16 %v6909, %v6901
    %v6990 = vpack.c.bf16 %v6910, %v6902
    %v6991 = vpack.c.bf16 %v6911, %v6903
    %v6992 = vpack.c.bf16 %v6920, %v6912
    %v6993 = vpack.c.bf16 %v6921, %v6913
    %v6994 = vpack.c.bf16 %v6922, %v6914
    %v6995 = vpack.c.bf16 %v6923, %v6915
    %v6996 = vpack.c.bf16 %v6924, %v6916
    %v6997 = vpack.c.bf16 %v6925, %v6917
    %v6998 = vpack.c.bf16 %v6926, %v6918
    %v6999 = vpack.c.bf16 %v6927, %v6919
    %v7000 = vpack.c.bf16 %v6936, %v6928
    %v7001 = vpack.c.bf16 %v6937, %v6929
    %v7002 = vpack.c.bf16 %v6938, %v6930
    %v7003 = vpack.c.bf16 %v6939, %v6931
    %v7004 = vpack.c.bf16 %v6940, %v6932
    %v7005 = vpack.c.bf16 %v6941, %v6933
    %v7006 = vpack.c.bf16 %v6942, %v6934
    %v7007 = vpack.c.bf16 %v6943, %v6935
    %v7008 = vld [vmem:[#allocation18] sm:$0xff]
    %v7009 = vld [vmem:[#allocation18 + $0x8] sm:$0xff]
    %v7010 = vld [vmem:[#allocation18 + $0x10] sm:$0xff]
    %v7011 = vld [vmem:[#allocation18 + $0x18] sm:$0xff]
    %v7012 = vld [vmem:[#allocation18 + $0x20] sm:$0xff]
    %v7013 = vld [vmem:[#allocation18 + $0x28] sm:$0xff]
    %v7014 = vld [vmem:[#allocation18 + $0x30] sm:$0xff]
    %v7015 = vld [vmem:[#allocation18 + $0x38] sm:$0xff]
    %v7016 = vld [vmem:[#allocation18 + $0x40] sm:$0xff]
    %v7017 = vld [vmem:[#allocation18 + $0x48] sm:$0xff]
    %v7018 = vld [vmem:[#allocation18 + $0x50] sm:$0xff]
    %v7019 = vld [vmem:[#allocation18 + $0x58] sm:$0xff]
    %v7020 = vld [vmem:[#allocation18 + $0x60] sm:$0xff]
    %v7021 = vld [vmem:[#allocation18 + $0x68] sm:$0xff]
    %v7022 = vld [vmem:[#allocation18 + $0x70] sm:$0xff]
    %v7023 = vld [vmem:[#allocation18 + $0x78] sm:$0xff]
    %v7024 = vld [vmem:[#allocation18 + $0x80] sm:$0xff]
    %v7025 = vld [vmem:[#allocation18 + $0x88] sm:$0xff]
    %v7026 = vld [vmem:[#allocation18 + $0x90] sm:$0xff]
    %v7027 = vld [vmem:[#allocation18 + $0x98] sm:$0xff]
    %v7028 = vld [vmem:[#allocation18 + $0xa0] sm:$0xff]
    %v7029 = vld [vmem:[#allocation18 + $0xa8] sm:$0xff]
    %v7030 = vld [vmem:[#allocation18 + $0xb0] sm:$0xff]
    %v7031 = vld [vmem:[#allocation18 + $0xb8] sm:$0xff]
    %v7032 = vld [vmem:[#allocation18 + $0xc0] sm:$0xff]
    %v7033 = vld [vmem:[#allocation18 + $0xc8] sm:$0xff]
    %v7034 = vld [vmem:[#allocation18 + $0xd0] sm:$0xff]
    %v7035 = vld [vmem:[#allocation18 + $0xd8] sm:$0xff]
    %v7036 = vld [vmem:[#allocation18 + $0xe0] sm:$0xff]
    %v7037 = vld [vmem:[#allocation18 + $0xe8] sm:$0xff]
    %v7038 = vld [vmem:[#allocation18 + $0xf0] sm:$0xff]
    %v7039 = vld [vmem:[#allocation18 + $0xf8] sm:$0xff]
    %v7040 = vld [vmem:[#allocation18 + $0x100] sm:$0xff]
    %v7041 = vld [vmem:[#allocation18 + $0x108] sm:$0xff]
    %v7042 = vld [vmem:[#allocation18 + $0x110] sm:$0xff]
    %v7043 = vld [vmem:[#allocation18 + $0x118] sm:$0xff]
    %v7044 = vld [vmem:[#allocation18 + $0x120] sm:$0xff]
    %v7045 = vld [vmem:[#allocation18 + $0x128] sm:$0xff]
    %v7046 = vld [vmem:[#allocation18 + $0x130] sm:$0xff]
    %v7047 = vld [vmem:[#allocation18 + $0x138] sm:$0xff]
    %v7048 = vld [vmem:[#allocation18 + $0x140] sm:$0xff]
    %v7049 = vld [vmem:[#allocation18 + $0x148] sm:$0xff]
    %v7050 = vld [vmem:[#allocation18 + $0x150] sm:$0xff]
    %v7051 = vld [vmem:[#allocation18 + $0x158] sm:$0xff]
    %v7052 = vld [vmem:[#allocation18 + $0x160] sm:$0xff]
    %v7053 = vld [vmem:[#allocation18 + $0x168] sm:$0xff]
    %v7054 = vld [vmem:[#allocation18 + $0x170] sm:$0xff]
    %v7055 = vld [vmem:[#allocation18 + $0x178] sm:$0xff]
    %v7056 = vld [vmem:[#allocation18 + $0x180] sm:$0xff]
    %v7057 = vld [vmem:[#allocation18 + $0x188] sm:$0xff]
    %v7058 = vld [vmem:[#allocation18 + $0x190] sm:$0xff]
    %v7059 = vld [vmem:[#allocation18 + $0x198] sm:$0xff]
    %v7060 = vld [vmem:[#allocation18 + $0x1a0] sm:$0xff]
    %v7061 = vld [vmem:[#allocation18 + $0x1a8] sm:$0xff]
    %v7062 = vld [vmem:[#allocation18 + $0x1b0] sm:$0xff]
    %v7063 = vld [vmem:[#allocation18 + $0x1b8] sm:$0xff]
    %v7064 = vld [vmem:[#allocation18 + $0x1c0] sm:$0xff]
    %v7065 = vld [vmem:[#allocation18 + $0x1c8] sm:$0xff]
    %v7066 = vld [vmem:[#allocation18 + $0x1d0] sm:$0xff]
    %v7067 = vld [vmem:[#allocation18 + $0x1d8] sm:$0xff]
    %v7068 = vld [vmem:[#allocation18 + $0x1e0] sm:$0xff]
    %v7069 = vld [vmem:[#allocation18 + $0x1e8] sm:$0xff]
    %v7070 = vld [vmem:[#allocation18 + $0x1f0] sm:$0xff]
    %v7071 = vld [vmem:[#allocation18 + $0x1f8] sm:$0xff]
    %v7072 = vld [vmem:[#allocation18 + $0x200] sm:$0xff]
    %v7073 = vld [vmem:[#allocation18 + $0x208] sm:$0xff]
    %v7074 = vld [vmem:[#allocation18 + $0x210] sm:$0xff]
    %v7075 = vld [vmem:[#allocation18 + $0x218] sm:$0xff]
    %v7076 = vld [vmem:[#allocation18 + $0x220] sm:$0xff]
    %v7077 = vld [vmem:[#allocation18 + $0x228] sm:$0xff]
    %v7078 = vld [vmem:[#allocation18 + $0x230] sm:$0xff]
    %v7079 = vld [vmem:[#allocation18 + $0x238] sm:$0xff]
    %v7080 = vld [vmem:[#allocation18 + $0x240] sm:$0xff]
    %v7081 = vld [vmem:[#allocation18 + $0x248] sm:$0xff]
    %v7082 = vld [vmem:[#allocation18 + $0x250] sm:$0xff]
    %v7083 = vld [vmem:[#allocation18 + $0x258] sm:$0xff]
    %v7084 = vld [vmem:[#allocation18 + $0x260] sm:$0xff]
    %v7085 = vld [vmem:[#allocation18 + $0x268] sm:$0xff]
    %v7086 = vld [vmem:[#allocation18 + $0x270] sm:$0xff]
    %v7087 = vld [vmem:[#allocation18 + $0x278] sm:$0xff]
    %v7088 = vld [vmem:[#allocation18 + $0x280] sm:$0xff]
    %v7089 = vld [vmem:[#allocation18 + $0x288] sm:$0xff]
    %v7090 = vld [vmem:[#allocation18 + $0x290] sm:$0xff]
    %v7091 = vld [vmem:[#allocation18 + $0x298] sm:$0xff]
    %v7092 = vld [vmem:[#allocation18 + $0x2a0] sm:$0xff]
    %v7093 = vld [vmem:[#allocation18 + $0x2a8] sm:$0xff]
    %v7094 = vld [vmem:[#allocation18 + $0x2b0] sm:$0xff]
    %v7095 = vld [vmem:[#allocation18 + $0x2b8] sm:$0xff]
    %v7096 = vld [vmem:[#allocation18 + $0x2c0] sm:$0xff]
    %v7097 = vld [vmem:[#allocation18 + $0x2c8] sm:$0xff]
    %v7098 = vld [vmem:[#allocation18 + $0x2d0] sm:$0xff]
    %v7099 = vld [vmem:[#allocation18 + $0x2d8] sm:$0xff]
    %v7100 = vld [vmem:[#allocation18 + $0x2e0] sm:$0xff]
    %v7101 = vld [vmem:[#allocation18 + $0x2e8] sm:$0xff]
    %v7102 = vld [vmem:[#allocation18 + $0x2f0] sm:$0xff]
    %v7103 = vld [vmem:[#allocation18 + $0x2f8] sm:$0xff]
    %v7104 = vld [vmem:[#allocation18 + $0x300] sm:$0xff]
    %v7105 = vld [vmem:[#allocation18 + $0x308] sm:$0xff]
    %v7106 = vld [vmem:[#allocation18 + $0x310] sm:$0xff]
    %v7107 = vld [vmem:[#allocation18 + $0x318] sm:$0xff]
    %v7108 = vld [vmem:[#allocation18 + $0x320] sm:$0xff]
    %v7109 = vld [vmem:[#allocation18 + $0x328] sm:$0xff]
    %v7110 = vld [vmem:[#allocation18 + $0x330] sm:$0xff]
    %v7111 = vld [vmem:[#allocation18 + $0x338] sm:$0xff]
    %v7112 = vld [vmem:[#allocation18 + $0x340] sm:$0xff]
    %v7113 = vld [vmem:[#allocation18 + $0x348] sm:$0xff]
    %v7114 = vld [vmem:[#allocation18 + $0x350] sm:$0xff]
    %v7115 = vld [vmem:[#allocation18 + $0x358] sm:$0xff]
    %v7116 = vld [vmem:[#allocation18 + $0x360] sm:$0xff]
    %v7117 = vld [vmem:[#allocation18 + $0x368] sm:$0xff]
    %v7118 = vld [vmem:[#allocation18 + $0x370] sm:$0xff]
    %v7119 = vld [vmem:[#allocation18 + $0x378] sm:$0xff]
    %v7120 = vld [vmem:[#allocation18 + $0x380] sm:$0xff]
    %v7121 = vld [vmem:[#allocation18 + $0x388] sm:$0xff]
    %v7122 = vld [vmem:[#allocation18 + $0x390] sm:$0xff]
    %v7123 = vld [vmem:[#allocation18 + $0x398] sm:$0xff]
    %v7124 = vld [vmem:[#allocation18 + $0x3a0] sm:$0xff]
    %v7125 = vld [vmem:[#allocation18 + $0x3a8] sm:$0xff]
    %v7126 = vld [vmem:[#allocation18 + $0x3b0] sm:$0xff]
    %v7127 = vld [vmem:[#allocation18 + $0x3b8] sm:$0xff]
    %v7128 = vld [vmem:[#allocation18 + $0x3c0] sm:$0xff]
    %v7129 = vld [vmem:[#allocation18 + $0x3c8] sm:$0xff]
    %v7130 = vld [vmem:[#allocation18 + $0x3d0] sm:$0xff]
    %v7131 = vld [vmem:[#allocation18 + $0x3d8] sm:$0xff]
    %v7132 = vld [vmem:[#allocation18 + $0x3e0] sm:$0xff]
    %v7133 = vld [vmem:[#allocation18 + $0x3e8] sm:$0xff]
    %v7134 = vld [vmem:[#allocation18 + $0x3f0] sm:$0xff]
    %v7135 = vld [vmem:[#allocation18 + $0x3f8] sm:$0xff]
    %v7136 = vld [vmem:[%s14] sm:$0x3]
    %v7138 = vlaneseq
    %v7139 = vshrl.u32 %v7138, 7
    %v7140 = vsub.s32 0, %v7139
    %v7141 = vrot.slane %v7136, %v7140
    %v7142 = vlaneseq
    %v7143 = vshrl.u32 %v7142, 7
    %v7144 = vsub.s32 1, %v7143
    %v7145 = vrot.slane %v7136, %v7144
    %v7276 = vunpack.c.l.b16 %v7008
    %v7277 = vunpack.c.h.b16 %v7008
    %v7278 = vunpack.c.l.b16 %v7009
    %v7279 = vunpack.c.h.b16 %v7009
    %v7280 = vunpack.c.l.b16 %v7010
    %v7281 = vunpack.c.h.b16 %v7010
    %v7282 = vunpack.c.l.b16 %v7011
    %v7283 = vunpack.c.h.b16 %v7011
    %v7284 = vunpack.c.l.b16 %v7012
    %v7285 = vunpack.c.h.b16 %v7012
    %v7286 = vunpack.c.l.b16 %v7013
    %v7287 = vunpack.c.h.b16 %v7013
    %v7288 = vunpack.c.l.b16 %v7014
    %v7289 = vunpack.c.h.b16 %v7014
    %v7290 = vunpack.c.l.b16 %v7015
    %v7291 = vunpack.c.h.b16 %v7015
    %v7292 = vunpack.c.l.b16 %v7016
    %v7293 = vunpack.c.h.b16 %v7016
    %v7294 = vunpack.c.l.b16 %v7017
    %v7295 = vunpack.c.h.b16 %v7017
    %v7296 = vunpack.c.l.b16 %v7018
    %v7297 = vunpack.c.h.b16 %v7018
    %v7298 = vunpack.c.l.b16 %v7019
    %v7299 = vunpack.c.h.b16 %v7019
    %v7300 = vunpack.c.l.b16 %v7020
    %v7301 = vunpack.c.h.b16 %v7020
    %v7302 = vunpack.c.l.b16 %v7021
    %v7303 = vunpack.c.h.b16 %v7021
    %v7304 = vunpack.c.l.b16 %v7022
    %v7305 = vunpack.c.h.b16 %v7022
    %v7306 = vunpack.c.l.b16 %v7023
    %v7307 = vunpack.c.h.b16 %v7023
    %v7308 = vunpack.c.l.b16 %v7024
    %v7309 = vunpack.c.h.b16 %v7024
    %v7310 = vunpack.c.l.b16 %v7025
    %v7311 = vunpack.c.h.b16 %v7025
    %v7312 = vunpack.c.l.b16 %v7026
    %v7313 = vunpack.c.h.b16 %v7026
    %v7314 = vunpack.c.l.b16 %v7027
    %v7315 = vunpack.c.h.b16 %v7027
    %v7316 = vunpack.c.l.b16 %v7028
    %v7317 = vunpack.c.h.b16 %v7028
    %v7318 = vunpack.c.l.b16 %v7029
    %v7319 = vunpack.c.h.b16 %v7029
    %v7320 = vunpack.c.l.b16 %v7030
    %v7321 = vunpack.c.h.b16 %v7030
    %v7322 = vunpack.c.l.b16 %v7031
    %v7323 = vunpack.c.h.b16 %v7031
    %v7324 = vunpack.c.l.b16 %v7032
    %v7325 = vunpack.c.h.b16 %v7032
    %v7326 = vunpack.c.l.b16 %v7033
    %v7327 = vunpack.c.h.b16 %v7033
    %v7328 = vunpack.c.l.b16 %v7034
    %v7329 = vunpack.c.h.b16 %v7034
    %v7330 = vunpack.c.l.b16 %v7035
    %v7331 = vunpack.c.h.b16 %v7035
    %v7332 = vunpack.c.l.b16 %v7036
    %v7333 = vunpack.c.h.b16 %v7036
    %v7334 = vunpack.c.l.b16 %v7037
    %v7335 = vunpack.c.h.b16 %v7037
    %v7336 = vunpack.c.l.b16 %v7038
    %v7337 = vunpack.c.h.b16 %v7038
    %v7338 = vunpack.c.l.b16 %v7039
    %v7339 = vunpack.c.h.b16 %v7039
    %v7340 = vunpack.c.l.b16 %v7040
    %v7341 = vunpack.c.h.b16 %v7040
    %v7342 = vunpack.c.l.b16 %v7041
    %v7343 = vunpack.c.h.b16 %v7041
    %v7344 = vunpack.c.l.b16 %v7042
    %v7345 = vunpack.c.h.b16 %v7042
    %v7346 = vunpack.c.l.b16 %v7043
    %v7347 = vunpack.c.h.b16 %v7043
    %v7348 = vunpack.c.l.b16 %v7044
    %v7349 = vunpack.c.h.b16 %v7044
    %v7350 = vunpack.c.l.b16 %v7045
    %v7351 = vunpack.c.h.b16 %v7045
    %v7352 = vunpack.c.l.b16 %v7046
    %v7353 = vunpack.c.h.b16 %v7046
    %v7354 = vunpack.c.l.b16 %v7047
    %v7355 = vunpack.c.h.b16 %v7047
    %v7356 = vunpack.c.l.b16 %v7048
    %v7357 = vunpack.c.h.b16 %v7048
    %v7358 = vunpack.c.l.b16 %v7049
    %v7359 = vunpack.c.h.b16 %v7049
    %v7360 = vunpack.c.l.b16 %v7050
    %v7361 = vunpack.c.h.b16 %v7050
    %v7362 = vunpack.c.l.b16 %v7051
    %v7363 = vunpack.c.h.b16 %v7051
    %v7364 = vunpack.c.l.b16 %v7052
    %v7365 = vunpack.c.h.b16 %v7052
    %v7366 = vunpack.c.l.b16 %v7053
    %v7367 = vunpack.c.h.b16 %v7053
    %v7368 = vunpack.c.l.b16 %v7054
    %v7369 = vunpack.c.h.b16 %v7054
    %v7370 = vunpack.c.l.b16 %v7055
    %v7371 = vunpack.c.h.b16 %v7055
    %v7372 = vunpack.c.l.b16 %v7056
    %v7373 = vunpack.c.h.b16 %v7056
    %v7374 = vunpack.c.l.b16 %v7057
    %v7375 = vunpack.c.h.b16 %v7057
    %v7376 = vunpack.c.l.b16 %v7058
    %v7377 = vunpack.c.h.b16 %v7058
    %v7378 = vunpack.c.l.b16 %v7059
    %v7379 = vunpack.c.h.b16 %v7059
    %v7380 = vunpack.c.l.b16 %v7060
    %v7381 = vunpack.c.h.b16 %v7060
    %v7382 = vunpack.c.l.b16 %v7061
    %v7383 = vunpack.c.h.b16 %v7061
    %v7384 = vunpack.c.l.b16 %v7062
    %v7385 = vunpack.c.h.b16 %v7062
    %v7386 = vunpack.c.l.b16 %v7063
    %v7387 = vunpack.c.h.b16 %v7063
    %v7388 = vunpack.c.l.b16 %v7064
    %v7389 = vunpack.c.h.b16 %v7064
    %v7390 = vunpack.c.l.b16 %v7065
    %v7391 = vunpack.c.h.b16 %v7065
    %v7392 = vunpack.c.l.b16 %v7066
    %v7393 = vunpack.c.h.b16 %v7066
    %v7394 = vunpack.c.l.b16 %v7067
    %v7395 = vunpack.c.h.b16 %v7067
    %v7396 = vunpack.c.l.b16 %v7068
    %v7397 = vunpack.c.h.b16 %v7068
    %v7398 = vunpack.c.l.b16 %v7069
    %v7399 = vunpack.c.h.b16 %v7069
    %v7400 = vunpack.c.l.b16 %v7070
    %v7401 = vunpack.c.h.b16 %v7070
    %v7402 = vunpack.c.l.b16 %v7071
    %v7403 = vunpack.c.h.b16 %v7071
    %v7404 = vunpack.c.l.b16 %v7072
    %v7405 = vunpack.c.h.b16 %v7072
    %v7406 = vunpack.c.l.b16 %v7073
    %v7407 = vunpack.c.h.b16 %v7073
    %v7408 = vunpack.c.l.b16 %v7074
    %v7409 = vunpack.c.h.b16 %v7074
    %v7410 = vunpack.c.l.b16 %v7075
    %v7411 = vunpack.c.h.b16 %v7075
    %v7412 = vunpack.c.l.b16 %v7076
    %v7413 = vunpack.c.h.b16 %v7076
    %v7414 = vunpack.c.l.b16 %v7077
    %v7415 = vunpack.c.h.b16 %v7077
    %v7416 = vunpack.c.l.b16 %v7078
    %v7417 = vunpack.c.h.b16 %v7078
    %v7418 = vunpack.c.l.b16 %v7079
    %v7419 = vunpack.c.h.b16 %v7079
    %v7420 = vunpack.c.l.b16 %v7080
    %v7421 = vunpack.c.h.b16 %v7080
    %v7422 = vunpack.c.l.b16 %v7081
    %v7423 = vunpack.c.h.b16 %v7081
    %v7424 = vunpack.c.l.b16 %v7082
    %v7425 = vunpack.c.h.b16 %v7082
    %v7426 = vunpack.c.l.b16 %v7083
    %v7427 = vunpack.c.h.b16 %v7083
    %v7428 = vunpack.c.l.b16 %v7084
    %v7429 = vunpack.c.h.b16 %v7084
    %v7430 = vunpack.c.l.b16 %v7085
    %v7431 = vunpack.c.h.b16 %v7085
    %v7432 = vunpack.c.l.b16 %v7086
    %v7433 = vunpack.c.h.b16 %v7086
    %v7434 = vunpack.c.l.b16 %v7087
    %v7435 = vunpack.c.h.b16 %v7087
    %v7436 = vunpack.c.l.b16 %v7088
    %v7437 = vunpack.c.h.b16 %v7088
    %v7438 = vunpack.c.l.b16 %v7089
    %v7439 = vunpack.c.h.b16 %v7089
    %v7440 = vunpack.c.l.b16 %v7090
    %v7441 = vunpack.c.h.b16 %v7090
    %v7442 = vunpack.c.l.b16 %v7091
    %v7443 = vunpack.c.h.b16 %v7091
    %v7444 = vunpack.c.l.b16 %v7092
    %v7445 = vunpack.c.h.b16 %v7092
    %v7446 = vunpack.c.l.b16 %v7093
    %v7447 = vunpack.c.h.b16 %v7093
    %v7448 = vunpack.c.l.b16 %v7094
    %v7449 = vunpack.c.h.b16 %v7094
    %v7450 = vunpack.c.l.b16 %v7095
    %v7451 = vunpack.c.h.b16 %v7095
    %v7452 = vunpack.c.l.b16 %v7096
    %v7453 = vunpack.c.h.b16 %v7096
    %v7454 = vunpack.c.l.b16 %v7097
    %v7455 = vunpack.c.h.b16 %v7097
    %v7456 = vunpack.c.l.b16 %v7098
    %v7457 = vunpack.c.h.b16 %v7098
    %v7458 = vunpack.c.l.b16 %v7099
    %v7459 = vunpack.c.h.b16 %v7099
    %v7460 = vunpack.c.l.b16 %v7100
    %v7461 = vunpack.c.h.b16 %v7100
    %v7462 = vunpack.c.l.b16 %v7101
    %v7463 = vunpack.c.h.b16 %v7101
    %v7464 = vunpack.c.l.b16 %v7102
    %v7465 = vunpack.c.h.b16 %v7102
    %v7466 = vunpack.c.l.b16 %v7103
    %v7467 = vunpack.c.h.b16 %v7103
    %v7468 = vunpack.c.l.b16 %v7104
    %v7469 = vunpack.c.h.b16 %v7104
    %v7470 = vunpack.c.l.b16 %v7105
    %v7471 = vunpack.c.h.b16 %v7105
    %v7472 = vunpack.c.l.b16 %v7106
    %v7473 = vunpack.c.h.b16 %v7106
    %v7474 = vunpack.c.l.b16 %v7107
    %v7475 = vunpack.c.h.b16 %v7107
    %v7476 = vunpack.c.l.b16 %v7108
    %v7477 = vunpack.c.h.b16 %v7108
    %v7478 = vunpack.c.l.b16 %v7109
    %v7479 = vunpack.c.h.b16 %v7109
    %v7480 = vunpack.c.l.b16 %v7110
    %v7481 = vunpack.c.h.b16 %v7110
    %v7482 = vunpack.c.l.b16 %v7111
    %v7483 = vunpack.c.h.b16 %v7111
    %v7484 = vunpack.c.l.b16 %v7112
    %v7485 = vunpack.c.h.b16 %v7112
    %v7486 = vunpack.c.l.b16 %v7113
    %v7487 = vunpack.c.h.b16 %v7113
    %v7488 = vunpack.c.l.b16 %v7114
    %v7489 = vunpack.c.h.b16 %v7114
    %v7490 = vunpack.c.l.b16 %v7115
    %v7491 = vunpack.c.h.b16 %v7115
    %v7492 = vunpack.c.l.b16 %v7116
    %v7493 = vunpack.c.h.b16 %v7116
    %v7494 = vunpack.c.l.b16 %v7117
    %v7495 = vunpack.c.h.b16 %v7117
    %v7496 = vunpack.c.l.b16 %v7118
    %v7497 = vunpack.c.h.b16 %v7118
    %v7498 = vunpack.c.l.b16 %v7119
    %v7499 = vunpack.c.h.b16 %v7119
    %v7500 = vunpack.c.l.b16 %v7120
    %v7501 = vunpack.c.h.b16 %v7120
    %v7502 = vunpack.c.l.b16 %v7121
    %v7503 = vunpack.c.h.b16 %v7121
    %v7504 = vunpack.c.l.b16 %v7122
    %v7505 = vunpack.c.h.b16 %v7122
    %v7506 = vunpack.c.l.b16 %v7123
    %v7507 = vunpack.c.h.b16 %v7123
    %v7508 = vunpack.c.l.b16 %v7124
    %v7509 = vunpack.c.h.b16 %v7124
    %v7510 = vunpack.c.l.b16 %v7125
    %v7511 = vunpack.c.h.b16 %v7125
    %v7512 = vunpack.c.l.b16 %v7126
    %v7513 = vunpack.c.h.b16 %v7126
    %v7514 = vunpack.c.l.b16 %v7127
    %v7515 = vunpack.c.h.b16 %v7127
    %v7516 = vunpack.c.l.b16 %v7128
    %v7517 = vunpack.c.h.b16 %v7128
    %v7518 = vunpack.c.l.b16 %v7129
    %v7519 = vunpack.c.h.b16 %v7129
    %v7520 = vunpack.c.l.b16 %v7130
    %v7521 = vunpack.c.h.b16 %v7130
    %v7522 = vunpack.c.l.b16 %v7131
    %v7523 = vunpack.c.h.b16 %v7131
    %v7524 = vunpack.c.l.b16 %v7132
    %v7525 = vunpack.c.h.b16 %v7132
    %v7526 = vunpack.c.l.b16 %v7133
    %v7527 = vunpack.c.h.b16 %v7133
    %v7528 = vunpack.c.l.b16 %v7134
    %v7529 = vunpack.c.h.b16 %v7134
    %v7530 = vunpack.c.l.b16 %v7135
    %v7531 = vunpack.c.h.b16 %v7135
    %v7532 = vpack.c.b16 %v7278, %v7276
    %v7533 = vpack.c.b16 %v7279, %v7277
    %v7534 = vpack.c.b16 %v7282, %v7280
    %v7535 = vpack.c.b16 %v7283, %v7281
    %v7536 = vpack.c.b16 %v7286, %v7284
    %v7537 = vpack.c.b16 %v7287, %v7285
    %v7538 = vpack.c.b16 %v7290, %v7288
    %v7539 = vpack.c.b16 %v7291, %v7289
    %v7540 = vpack.c.b16 %v7294, %v7292
    %v7541 = vpack.c.b16 %v7295, %v7293
    %v7542 = vpack.c.b16 %v7298, %v7296
    %v7543 = vpack.c.b16 %v7299, %v7297
    %v7544 = vpack.c.b16 %v7302, %v7300
    %v7545 = vpack.c.b16 %v7303, %v7301
    %v7546 = vpack.c.b16 %v7306, %v7304
    %v7547 = vpack.c.b16 %v7307, %v7305
    %v7548 = vpack.c.b16 %v7310, %v7308
    %v7549 = vpack.c.b16 %v7311, %v7309
    %v7550 = vpack.c.b16 %v7314, %v7312
    %v7551 = vpack.c.b16 %v7315, %v7313
    %v7552 = vpack.c.b16 %v7318, %v7316
    %v7553 = vpack.c.b16 %v7319, %v7317
    %v7554 = vpack.c.b16 %v7322, %v7320
    %v7555 = vpack.c.b16 %v7323, %v7321
    %v7556 = vpack.c.b16 %v7326, %v7324
    %v7557 = vpack.c.b16 %v7327, %v7325
    %v7558 = vpack.c.b16 %v7330, %v7328
    %v7559 = vpack.c.b16 %v7331, %v7329
    %v7560 = vpack.c.b16 %v7334, %v7332
    %v7561 = vpack.c.b16 %v7335, %v7333
    %v7562 = vpack.c.b16 %v7338, %v7336
    %v7563 = vpack.c.b16 %v7339, %v7337
    %v7564 = vpack.c.b16 %v7342, %v7340
    %v7565 = vpack.c.b16 %v7343, %v7341
    %v7566 = vpack.c.b16 %v7346, %v7344
    %v7567 = vpack.c.b16 %v7347, %v7345
    %v7568 = vpack.c.b16 %v7350, %v7348
    %v7569 = vpack.c.b16 %v7351, %v7349
    %v7570 = vpack.c.b16 %v7354, %v7352
    %v7571 = vpack.c.b16 %v7355, %v7353
    %v7572 = vpack.c.b16 %v7358, %v7356
    %v7573 = vpack.c.b16 %v7359, %v7357
    %v7574 = vpack.c.b16 %v7362, %v7360
    %v7575 = vpack.c.b16 %v7363, %v7361
    %v7576 = vpack.c.b16 %v7366, %v7364
    %v7577 = vpack.c.b16 %v7367, %v7365
    %v7578 = vpack.c.b16 %v7370, %v7368
    %v7579 = vpack.c.b16 %v7371, %v7369
    %v7580 = vpack.c.b16 %v7374, %v7372
    %v7581 = vpack.c.b16 %v7375, %v7373
    %v7582 = vpack.c.b16 %v7378, %v7376
    %v7583 = vpack.c.b16 %v7379, %v7377
    %v7584 = vpack.c.b16 %v7382, %v7380
    %v7585 = vpack.c.b16 %v7383, %v7381
    %v7586 = vpack.c.b16 %v7386, %v7384
    %v7587 = vpack.c.b16 %v7387, %v7385
    %v7588 = vpack.c.b16 %v7390, %v7388
    %v7589 = vpack.c.b16 %v7391, %v7389
    %v7590 = vpack.c.b16 %v7394, %v7392
    %v7591 = vpack.c.b16 %v7395, %v7393
    %v7592 = vpack.c.b16 %v7398, %v7396
    %v7593 = vpack.c.b16 %v7399, %v7397
    %v7594 = vpack.c.b16 %v7402, %v7400
    %v7595 = vpack.c.b16 %v7403, %v7401
    %v7596 = vpack.c.b16 %v7406, %v7404
    %v7597 = vpack.c.b16 %v7407, %v7405
    %v7598 = vpack.c.b16 %v7410, %v7408
    %v7599 = vpack.c.b16 %v7411, %v7409
    %v7600 = vpack.c.b16 %v7414, %v7412
    %v7601 = vpack.c.b16 %v7415, %v7413
    %v7602 = vpack.c.b16 %v7418, %v7416
    %v7603 = vpack.c.b16 %v7419, %v7417
    %v7604 = vpack.c.b16 %v7422, %v7420
    %v7605 = vpack.c.b16 %v7423, %v7421
    %v7606 = vpack.c.b16 %v7426, %v7424
    %v7607 = vpack.c.b16 %v7427, %v7425
    %v7608 = vpack.c.b16 %v7430, %v7428
    %v7609 = vpack.c.b16 %v7431, %v7429
    %v7610 = vpack.c.b16 %v7434, %v7432
    %v7611 = vpack.c.b16 %v7435, %v7433
    %v7612 = vpack.c.b16 %v7438, %v7436
    %v7613 = vpack.c.b16 %v7439, %v7437
    %v7614 = vpack.c.b16 %v7442, %v7440
    %v7615 = vpack.c.b16 %v7443, %v7441
    %v7616 = vpack.c.b16 %v7446, %v7444
    %v7617 = vpack.c.b16 %v7447, %v7445
    %v7618 = vpack.c.b16 %v7450, %v7448
    %v7619 = vpack.c.b16 %v7451, %v7449
    %v7620 = vpack.c.b16 %v7454, %v7452
    %v7621 = vpack.c.b16 %v7455, %v7453
    %v7622 = vpack.c.b16 %v7458, %v7456
    %v7623 = vpack.c.b16 %v7459, %v7457
    %v7624 = vpack.c.b16 %v7462, %v7460
    %v7625 = vpack.c.b16 %v7463, %v7461
    %v7626 = vpack.c.b16 %v7466, %v7464
    %v7627 = vpack.c.b16 %v7467, %v7465
    %v7628 = vpack.c.b16 %v7470, %v7468
    %v7629 = vpack.c.b16 %v7471, %v7469
    %v7630 = vpack.c.b16 %v7474, %v7472
    %v7631 = vpack.c.b16 %v7475, %v7473
    %v7632 = vpack.c.b16 %v7478, %v7476
    %v7633 = vpack.c.b16 %v7479, %v7477
    %v7634 = vpack.c.b16 %v7482, %v7480
    %v7635 = vpack.c.b16 %v7483, %v7481
    %v7636 = vpack.c.b16 %v7486, %v7484
    %v7637 = vpack.c.b16 %v7487, %v7485
    %v7638 = vpack.c.b16 %v7490, %v7488
    %v7639 = vpack.c.b16 %v7491, %v7489
    %v7640 = vpack.c.b16 %v7494, %v7492
    %v7641 = vpack.c.b16 %v7495, %v7493
    %v7642 = vpack.c.b16 %v7498, %v7496
    %v7643 = vpack.c.b16 %v7499, %v7497
    %v7644 = vpack.c.b16 %v7502, %v7500
    %v7645 = vpack.c.b16 %v7503, %v7501
    %v7646 = vpack.c.b16 %v7506, %v7504
    %v7647 = vpack.c.b16 %v7507, %v7505
    %v7648 = vpack.c.b16 %v7510, %v7508
    %v7649 = vpack.c.b16 %v7511, %v7509
    %v7650 = vpack.c.b16 %v7514, %v7512
    %v7651 = vpack.c.b16 %v7515, %v7513
    %v7652 = vpack.c.b16 %v7518, %v7516
    %v7653 = vpack.c.b16 %v7519, %v7517
    %v7654 = vpack.c.b16 %v7522, %v7520
    %v7655 = vpack.c.b16 %v7523, %v7521
    %v7656 = vpack.c.b16 %v7526, %v7524
    %v7657 = vpack.c.b16 %v7527, %v7525
    %v7658 = vpack.c.b16 %v7530, %v7528
    %v7659 = vpack.c.b16 %v7531, %v7529
    %7788 = vmatprep.subr.bf16.mxu0 %v7547
    %7789 = vmatpush1.bf16.msra.mxu0 %v7546
    %7790 = vmatprep.subr.bf16.mxu0 %v7545
    %7791 = vmatpush1.bf16.msra.mxu0 %v7544
    %7792 = vmatprep.subr.bf16.mxu0 %v7543
    %7793 = vmatpush1.bf16.msra.mxu0 %v7542
    %7794 = vmatprep.subr.bf16.mxu0 %v7541
    %7795 = vmatpush1.bf16.msra.mxu0 %v7540
    %7796 = vmatprep.subr.bf16.mxu0 %v7539
    %7797 = vmatpush1.bf16.msra.mxu0 %v7538
    %7798 = vmatprep.subr.bf16.mxu0 %v7537
    %7799 = vmatpush1.bf16.msra.mxu0 %v7536
    %7800 = vmatprep.subr.bf16.mxu0 %v7535
    %7801 = vmatpush1.bf16.msra.mxu0 %v7534
    %7802 = vmatprep.subr.bf16.mxu0 %v7533
    %7803 = vmatpush1.bf16.msra.mxu0 %v7532
    %7804 = vmatprep.subr.bf16.mxu0 %v7563
    %7805 = vmatpush2.bf16.msra.mxu0 %v7562
    %7806 = vmatprep.subr.bf16.mxu0 %v7561
    %7807 = vmatpush2.bf16.msra.mxu0 %v7560
    %7808 = vmatprep.subr.bf16.mxu0 %v7559
    %7809 = vmatpush2.bf16.msra.mxu0 %v7558
    %7810 = vmatprep.subr.bf16.mxu0 %v7557
    %7811 = vmatpush2.bf16.msra.mxu0 %v7556
    %7812 = vmatprep.subr.bf16.mxu0 %v7555
    %7813 = vmatpush2.bf16.msra.mxu0 %v7554
    %7814 = vmatprep.subr.bf16.mxu0 %v7553
    %7815 = vmatpush2.bf16.msra.mxu0 %v7552
    %7816 = vmatprep.subr.bf16.mxu0 %v7551
    %7817 = vmatpush2.bf16.msra.mxu0 %v7550
    %7818 = vmatprep.subr.bf16.mxu0 %v7549
    %7819 = vmatpush2.bf16.msra.mxu0 %v7548
    %7820 = vmatprep.mubr.bf16.mxu0 %v6945
    %7821 = vmatmul.mubr.bf16.gmra.mxu0 %v6944
    %v7822 = vpop.f32.mrf.mxu0
    %v7823 = vadd.f32 %v7141, %v7822
    %v7824 = vpop.f32.mrf.mxu0
    %v7825 = vadd.f32 %v7145, %v7824
    %v7826 = vpop.f32.mrf.mxu0
    %v7827 = vadd.f32 %v7141, %v7826
    %v7828 = vpop.f32.mrf.mxu0
    %v7829 = vadd.f32 %v7145, %v7828
    %7830 = vmatprep.mubr.bf16.mxu0 %v6953
    %7831 = vmatmul.mubr.bf16.gmra.mxu0 %v6952
    %v7832 = vpop.f32.mrf.mxu0
    %v7833 = vadd.f32 %v7141, %v7832
    %v7834 = vpop.f32.mrf.mxu0
    %v7835 = vadd.f32 %v7145, %v7834
    %v7836 = vpop.f32.mrf.mxu0
    %v7837 = vadd.f32 %v7141, %v7836
    %v7838 = vpop.f32.mrf.mxu0
    %v7839 = vadd.f32 %v7145, %v7838
    %7840 = vmatprep.mubr.bf16.mxu0 %v6961
    %7841 = vmatmul.mubr.bf16.gmra.mxu0 %v6960
    %v7842 = vpop.f32.mrf.mxu0
    %v7843 = vadd.f32 %v7141, %v7842
    %v7844 = vpop.f32.mrf.mxu0
    %v7845 = vadd.f32 %v7145, %v7844
    %v7846 = vpop.f32.mrf.mxu0
    %v7847 = vadd.f32 %v7141, %v7846
    %v7848 = vpop.f32.mrf.mxu0
    %v7849 = vadd.f32 %v7145, %v7848
    %7850 = vmatprep.mubr.bf16.mxu0 %v6969
    %7851 = vmatmul.mubr.bf16.gmra.mxu0 %v6968
    %v7852 = vpop.f32.mrf.mxu0
    %v7853 = vadd.f32 %v7141, %v7852
    %v7854 = vpop.f32.mrf.mxu0
    %v7855 = vadd.f32 %v7145, %v7854
    %v7856 = vpop.f32.mrf.mxu0
    %v7857 = vadd.f32 %v7141, %v7856
    %v7858 = vpop.f32.mrf.mxu0
    %v7859 = vadd.f32 %v7145, %v7858
    %7860 = vmatprep.mubr.bf16.mxu0 %v6977
    %7861 = vmatmul.mubr.bf16.gmra.mxu0 %v6976
    %v7862 = vpop.f32.mrf.mxu0
    %v7863 = vadd.f32 %v7141, %v7862
    %v7864 = vpop.f32.mrf.mxu0
    %v7865 = vadd.f32 %v7145, %v7864
    %v7866 = vpop.f32.mrf.mxu0
    %v7867 = vadd.f32 %v7141, %v7866
    %v7868 = vpop.f32.mrf.mxu0
    %v7869 = vadd.f32 %v7145, %v7868
    %7870 = vmatprep.mubr.bf16.mxu0 %v6985
    %7871 = vmatmul.mubr.bf16.gmra.mxu0 %v6984
    %v7872 = vpop.f32.mrf.mxu0
    %v7873 = vadd.f32 %v7141, %v7872
    %v7874 = vpop.f32.mrf.mxu0
    %v7875 = vadd.f32 %v7145, %v7874
    %v7876 = vpop.f32.mrf.mxu0
    %v7877 = vadd.f32 %v7141, %v7876
    %v7878 = vpop.f32.mrf.mxu0
    %v7879 = vadd.f32 %v7145, %v7878
    %7880 = vmatprep.mubr.bf16.mxu0 %v6993
    %7881 = vmatmul.mubr.bf16.gmra.mxu0 %v6992
    %v7882 = vpop.f32.mrf.mxu0
    %v7883 = vadd.f32 %v7141, %v7882
    %v7884 = vpop.f32.mrf.mxu0
    %v7885 = vadd.f32 %v7145, %v7884
    %v7886 = vpop.f32.mrf.mxu0
    %v7887 = vadd.f32 %v7141, %v7886
    %v7888 = vpop.f32.mrf.mxu0
    %v7889 = vadd.f32 %v7145, %v7888
    %7890 = vmatprep.mubr.bf16.mxu0 %v7001
    %7891 = vmatmul.mubr.bf16.gmra.mxu0 %v7000
    %v7892 = vpop.f32.mrf.mxu0
    %v7893 = vadd.f32 %v7141, %v7892
    %v7894 = vpop.f32.mrf.mxu0
    %v7895 = vadd.f32 %v7145, %v7894
    %v7896 = vpop.f32.mrf.mxu0
    %v7897 = vadd.f32 %v7141, %v7896
    %v7898 = vpop.f32.mrf.mxu0
    %v7899 = vadd.f32 %v7145, %v7898
    %7900 = vdwg.mxu0
    %7901 = vmatprep.subr.bf16.mxu0 %v7579
    %7902 = vmatpush1.bf16.msra.mxu0 %v7578
    %7903 = vmatprep.subr.bf16.mxu0 %v7577
    %7904 = vmatpush1.bf16.msra.mxu0 %v7576
    %7905 = vmatprep.subr.bf16.mxu0 %v7575
    %7906 = vmatpush1.bf16.msra.mxu0 %v7574
    %7907 = vmatprep.subr.bf16.mxu0 %v7573
    %7908 = vmatpush1.bf16.msra.mxu0 %v7572
    %7909 = vmatprep.subr.bf16.mxu0 %v7571
    %7910 = vmatpush1.bf16.msra.mxu0 %v7570
    %7911 = vmatprep.subr.bf16.mxu0 %v7569
    %7912 = vmatpush1.bf16.msra.mxu0 %v7568
    %7913 = vmatprep.subr.bf16.mxu0 %v7567
    %7914 = vmatpush1.bf16.msra.mxu0 %v7566
    %7915 = vmatprep.subr.bf16.mxu0 %v7565
    %7916 = vmatpush1.bf16.msra.mxu0 %v7564
    %7917 = vmatprep.subr.bf16.mxu0 %v7595
    %7918 = vmatpush2.bf16.msra.mxu0 %v7594
    %7919 = vmatprep.subr.bf16.mxu0 %v7593
    %7920 = vmatpush2.bf16.msra.mxu0 %v7592
    %7921 = vmatprep.subr.bf16.mxu0 %v7591
    %7922 = vmatpush2.bf16.msra.mxu0 %v7590
    %7923 = vmatprep.subr.bf16.mxu0 %v7589
    %7924 = vmatpush2.bf16.msra.mxu0 %v7588
    %7925 = vmatprep.subr.bf16.mxu0 %v7587
    %7926 = vmatpush2.bf16.msra.mxu0 %v7586
    %7927 = vmatprep.subr.bf16.mxu0 %v7585
    %7928 = vmatpush2.bf16.msra.mxu0 %v7584
    %7929 = vmatprep.subr.bf16.mxu0 %v7583
    %7930 = vmatpush2.bf16.msra.mxu0 %v7582
    %7931 = vmatprep.subr.bf16.mxu0 %v7581
    %7932 = vmatpush2.bf16.msra.mxu0 %v7580
    %7933 = vmatprep.mubr.bf16.mxu0 %v6947
    %7934 = vmatmul.mubr.bf16.gmra.mxu0 %v6946
    %v7935 = vpop.f32.mrf.mxu0
    %v7936 = vadd.f32 %v7823, %v7935
    %v7937 = vpop.f32.mrf.mxu0
    %v7938 = vadd.f32 %v7825, %v7937
    %v7939 = vpop.f32.mrf.mxu0
    %v7940 = vadd.f32 %v7827, %v7939
    %v7941 = vpop.f32.mrf.mxu0
    %v7942 = vadd.f32 %v7829, %v7941
    %7943 = vmatprep.mubr.bf16.mxu0 %v6955
    %7944 = vmatmul.mubr.bf16.gmra.mxu0 %v6954
    %v7945 = vpop.f32.mrf.mxu0
    %v7946 = vadd.f32 %v7833, %v7945
    %v7947 = vpop.f32.mrf.mxu0
    %v7948 = vadd.f32 %v7835, %v7947
    %v7949 = vpop.f32.mrf.mxu0
    %v7950 = vadd.f32 %v7837, %v7949
    %v7951 = vpop.f32.mrf.mxu0
    %v7952 = vadd.f32 %v7839, %v7951
    %7953 = vmatprep.mubr.bf16.mxu0 %v6963
    %7954 = vmatmul.mubr.bf16.gmra.mxu0 %v6962
    %v7955 = vpop.f32.mrf.mxu0
    %v7956 = vadd.f32 %v7843, %v7955
    %v7957 = vpop.f32.mrf.mxu0
    %v7958 = vadd.f32 %v7845, %v7957
    %v7959 = vpop.f32.mrf.mxu0
    %v7960 = vadd.f32 %v7847, %v7959
    %v7961 = vpop.f32.mrf.mxu0
    %v7962 = vadd.f32 %v7849, %v7961
    %7963 = vmatprep.mubr.bf16.mxu0 %v6971
    %7964 = vmatmul.mubr.bf16.gmra.mxu0 %v6970
    %v7965 = vpop.f32.mrf.mxu0
    %v7966 = vadd.f32 %v7853, %v7965
    %v7967 = vpop.f32.mrf.mxu0
    %v7968 = vadd.f32 %v7855, %v7967
    %v7969 = vpop.f32.mrf.mxu0
    %v7970 = vadd.f32 %v7857, %v7969
    %v7971 = vpop.f32.mrf.mxu0
    %v7972 = vadd.f32 %v7859, %v7971
    %7973 = vmatprep.mubr.bf16.mxu0 %v6979
    %7974 = vmatmul.mubr.bf16.gmra.mxu0 %v6978
    %v7975 = vpop.f32.mrf.mxu0
    %v7976 = vadd.f32 %v7863, %v7975
    %v7977 = vpop.f32.mrf.mxu0
    %v7978 = vadd.f32 %v7865, %v7977
    %v7979 = vpop.f32.mrf.mxu0
    %v7980 = vadd.f32 %v7867, %v7979
    %v7981 = vpop.f32.mrf.mxu0
    %v7982 = vadd.f32 %v7869, %v7981
    %7983 = vmatprep.mubr.bf16.mxu0 %v6987
    %7984 = vmatmul.mubr.bf16.gmra.mxu0 %v6986
    %v7985 = vpop.f32.mrf.mxu0
    %v7986 = vadd.f32 %v7873, %v7985
    %v7987 = vpop.f32.mrf.mxu0
    %v7988 = vadd.f32 %v7875, %v7987
    %v7989 = vpop.f32.mrf.mxu0
    %v7990 = vadd.f32 %v7877, %v7989
    %v7991 = vpop.f32.mrf.mxu0
    %v7992 = vadd.f32 %v7879, %v7991
    %7993 = vmatprep.mubr.bf16.mxu0 %v6995
    %7994 = vmatmul.mubr.bf16.gmra.mxu0 %v6994
    %v7995 = vpop.f32.mrf.mxu0
    %v7996 = vadd.f32 %v7883, %v7995
    %v7997 = vpop.f32.mrf.mxu0
    %v7998 = vadd.f32 %v7885, %v7997
    %v7999 = vpop.f32.mrf.mxu0
    %v8000 = vadd.f32 %v7887, %v7999
    %v8001 = vpop.f32.mrf.mxu0
    %v8002 = vadd.f32 %v7889, %v8001
    %8003 = vmatprep.mubr.bf16.mxu0 %v7003
    %8004 = vmatmul.mubr.bf16.gmra.mxu0 %v7002
    %v8005 = vpop.f32.mrf.mxu0
    %v8006 = vadd.f32 %v7893, %v8005
    %v8007 = vpop.f32.mrf.mxu0
    %v8008 = vadd.f32 %v7895, %v8007
    %v8009 = vpop.f32.mrf.mxu0
    %v8010 = vadd.f32 %v7897, %v8009
    %v8011 = vpop.f32.mrf.mxu0
    %v8012 = vadd.f32 %v7899, %v8011
    %8013 = vdwg.mxu0
    %8014 = vmatprep.subr.bf16.mxu0 %v7611
    %8015 = vmatpush1.bf16.msra.mxu0 %v7610
    %8016 = vmatprep.subr.bf16.mxu0 %v7609
    %8017 = vmatpush1.bf16.msra.mxu0 %v7608
    %8018 = vmatprep.subr.bf16.mxu0 %v7607
    %8019 = vmatpush1.bf16.msra.mxu0 %v7606
    %8020 = vmatprep.subr.bf16.mxu0 %v7605
    %8021 = vmatpush1.bf16.msra.mxu0 %v7604
    %8022 = vmatprep.subr.bf16.mxu0 %v7603
    %8023 = vmatpush1.bf16.msra.mxu0 %v7602
    %8024 = vmatprep.subr.bf16.mxu0 %v7601
    %8025 = vmatpush1.bf16.msra.mxu0 %v7600
    %8026 = vmatprep.subr.bf16.mxu0 %v7599
    %8027 = vmatpush1.bf16.msra.mxu0 %v7598
    %8028 = vmatprep.subr.bf16.mxu0 %v7597
    %8029 = vmatpush1.bf16.msra.mxu0 %v7596
    %8030 = vmatprep.subr.bf16.mxu0 %v7627
    %8031 = vmatpush2.bf16.msra.mxu0 %v7626
    %8032 = vmatprep.subr.bf16.mxu0 %v7625
    %8033 = vmatpush2.bf16.msra.mxu0 %v7624
    %8034 = vmatprep.subr.bf16.mxu0 %v7623
    %8035 = vmatpush2.bf16.msra.mxu0 %v7622
    %8036 = vmatprep.subr.bf16.mxu0 %v7621
    %8037 = vmatpush2.bf16.msra.mxu0 %v7620
    %8038 = vmatprep.subr.bf16.mxu0 %v7619
    %8039 = vmatpush2.bf16.msra.mxu0 %v7618
    %8040 = vmatprep.subr.bf16.mxu0 %v7617
    %8041 = vmatpush2.bf16.msra.mxu0 %v7616
    %8042 = vmatprep.subr.bf16.mxu0 %v7615
    %8043 = vmatpush2.bf16.msra.mxu0 %v7614
    %8044 = vmatprep.subr.bf16.mxu0 %v7613
    %8045 = vmatpush2.bf16.msra.mxu0 %v7612
    %8046 = vmatprep.mubr.bf16.mxu0 %v6949
    %8047 = vmatmul.mubr.bf16.gmra.mxu0 %v6948
    %v8048 = vpop.f32.mrf.mxu0
    %v8049 = vadd.f32 %v7936, %v8048
    %v8050 = vpop.f32.mrf.mxu0
    %v8051 = vadd.f32 %v7938, %v8050
    %v8052 = vpop.f32.mrf.mxu0
    %v8053 = vadd.f32 %v7940, %v8052
    %v8054 = vpop.f32.mrf.mxu0
    %v8055 = vadd.f32 %v7942, %v8054
    %8056 = vmatprep.mubr.bf16.mxu0 %v6957
    %8057 = vmatmul.mubr.bf16.gmra.mxu0 %v6956
    %v8058 = vpop.f32.mrf.mxu0
    %v8059 = vadd.f32 %v7946, %v8058
    %v8060 = vpop.f32.mrf.mxu0
    %v8061 = vadd.f32 %v7948, %v8060
    %v8062 = vpop.f32.mrf.mxu0
    %v8063 = vadd.f32 %v7950, %v8062
    %v8064 = vpop.f32.mrf.mxu0
    %v8065 = vadd.f32 %v7952, %v8064
    %8066 = vmatprep.mubr.bf16.mxu0 %v6965
    %8067 = vmatmul.mubr.bf16.gmra.mxu0 %v6964
    %v8068 = vpop.f32.mrf.mxu0
    %v8069 = vadd.f32 %v7956, %v8068
    %v8070 = vpop.f32.mrf.mxu0
    %v8071 = vadd.f32 %v7958, %v8070
    %v8072 = vpop.f32.mrf.mxu0
    %v8073 = vadd.f32 %v7960, %v8072
    %v8074 = vpop.f32.mrf.mxu0
    %v8075 = vadd.f32 %v7962, %v8074
    %8076 = vmatprep.mubr.bf16.mxu0 %v6973
    %8077 = vmatmul.mubr.bf16.gmra.mxu0 %v6972
    %v8078 = vpop.f32.mrf.mxu0
    %v8079 = vadd.f32 %v7966, %v8078
    %v8080 = vpop.f32.mrf.mxu0
    %v8081 = vadd.f32 %v7968, %v8080
    %v8082 = vpop.f32.mrf.mxu0
    %v8083 = vadd.f32 %v7970, %v8082
    %v8084 = vpop.f32.mrf.mxu0
    %v8085 = vadd.f32 %v7972, %v8084
    %8086 = vmatprep.mubr.bf16.mxu0 %v6981
    %8087 = vmatmul.mubr.bf16.gmra.mxu0 %v6980
    %v8088 = vpop.f32.mrf.mxu0
    %v8089 = vadd.f32 %v7976, %v8088
    %v8090 = vpop.f32.mrf.mxu0
    %v8091 = vadd.f32 %v7978, %v8090
    %v8092 = vpop.f32.mrf.mxu0
    %v8093 = vadd.f32 %v7980, %v8092
    %v8094 = vpop.f32.mrf.mxu0
    %v8095 = vadd.f32 %v7982, %v8094
    %8096 = vmatprep.mubr.bf16.mxu0 %v6989
    %8097 = vmatmul.mubr.bf16.gmra.mxu0 %v6988
    %v8098 = vpop.f32.mrf.mxu0
    %v8099 = vadd.f32 %v7986, %v8098
    %v8100 = vpop.f32.mrf.mxu0
    %v8101 = vadd.f32 %v7988, %v8100
    %v8102 = vpop.f32.mrf.mxu0
    %v8103 = vadd.f32 %v7990, %v8102
    %v8104 = vpop.f32.mrf.mxu0
    %v8105 = vadd.f32 %v7992, %v8104
    %8106 = vmatprep.mubr.bf16.mxu0 %v6997
    %8107 = vmatmul.mubr.bf16.gmra.mxu0 %v6996
    %v8108 = vpop.f32.mrf.mxu0
    %v8109 = vadd.f32 %v7996, %v8108
    %v8110 = vpop.f32.mrf.mxu0
    %v8111 = vadd.f32 %v7998, %v8110
    %v8112 = vpop.f32.mrf.mxu0
    %v8113 = vadd.f32 %v8000, %v8112
    %v8114 = vpop.f32.mrf.mxu0
    %v8115 = vadd.f32 %v8002, %v8114
    %8116 = vmatprep.mubr.bf16.mxu0 %v7005
    %8117 = vmatmul.mubr.bf16.gmra.mxu0 %v7004
    %v8118 = vpop.f32.mrf.mxu0
    %v8119 = vadd.f32 %v8006, %v8118
    %v8120 = vpop.f32.mrf.mxu0
    %v8121 = vadd.f32 %v8008, %v8120
    %v8122 = vpop.f32.mrf.mxu0
    %v8123 = vadd.f32 %v8010, %v8122
    %v8124 = vpop.f32.mrf.mxu0
    %v8125 = vadd.f32 %v8012, %v8124
    %8126 = vdwg.mxu0
    %8127 = vmatprep.subr.bf16.mxu0 %v7643
    %8128 = vmatpush1.bf16.msra.mxu0 %v7642
    %8129 = vmatprep.subr.bf16.mxu0 %v7641
    %8130 = vmatpush1.bf16.msra.mxu0 %v7640
    %8131 = vmatprep.subr.bf16.mxu0 %v7639
    %8132 = vmatpush1.bf16.msra.mxu0 %v7638
    %8133 = vmatprep.subr.bf16.mxu0 %v7637
    %8134 = vmatpush1.bf16.msra.mxu0 %v7636
    %8135 = vmatprep.subr.bf16.mxu0 %v7635
    %8136 = vmatpush1.bf16.msra.mxu0 %v7634
    %8137 = vmatprep.subr.bf16.mxu0 %v7633
    %8138 = vmatpush1.bf16.msra.mxu0 %v7632
    %8139 = vmatprep.subr.bf16.mxu0 %v7631
    %8140 = vmatpush1.bf16.msra.mxu0 %v7630
    %8141 = vmatprep.subr.bf16.mxu0 %v7629
    %8142 = vmatpush1.bf16.msra.mxu0 %v7628
    %8143 = vmatprep.subr.bf16.mxu0 %v7659
    %8144 = vmatpush2.bf16.msra.mxu0 %v7658
    %8145 = vmatprep.subr.bf16.mxu0 %v7657
    %8146 = vmatpush2.bf16.msra.mxu0 %v7656
    %8147 = vmatprep.subr.bf16.mxu0 %v7655
    %8148 = vmatpush2.bf16.msra.mxu0 %v7654
    %8149 = vmatprep.subr.bf16.mxu0 %v7653
    %8150 = vmatpush2.bf16.msra.mxu0 %v7652
    %8151 = vmatprep.subr.bf16.mxu0 %v7651
    %8152 = vmatpush2.bf16.msra.mxu0 %v7650
    %8153 = vmatprep.subr.bf16.mxu0 %v7649
    %8154 = vmatpush2.bf16.msra.mxu0 %v7648
    %8155 = vmatprep.subr.bf16.mxu0 %v7647
    %8156 = vmatpush2.bf16.msra.mxu0 %v7646
    %8157 = vmatprep.subr.bf16.mxu0 %v7645
    %8158 = vmatpush2.bf16.msra.mxu0 %v7644
    %8159 = vmatprep.mubr.bf16.mxu0 %v6951
    %8160 = vmatmul.mubr.bf16.gmra.mxu0 %v6950
    %v8161 = vpop.f32.mrf.mxu0
    %v8162 = vadd.f32 %v8049, %v8161
    %v8163 = vpop.f32.mrf.mxu0
    %v8164 = vadd.f32 %v8051, %v8163
    %v8165 = vpop.f32.mrf.mxu0
    %v8166 = vadd.f32 %v8053, %v8165
    %v8167 = vpop.f32.mrf.mxu0
    %v8168 = vadd.f32 %v8055, %v8167
    %8169 = vmatprep.mubr.bf16.mxu0 %v6959
    %8170 = vmatmul.mubr.bf16.gmra.mxu0 %v6958
    %v8171 = vpop.f32.mrf.mxu0
    %v8172 = vadd.f32 %v8059, %v8171
    %v8173 = vpop.f32.mrf.mxu0
    %v8174 = vadd.f32 %v8061, %v8173
    %v8175 = vpop.f32.mrf.mxu0
    %v8176 = vadd.f32 %v8063, %v8175
    %v8177 = vpop.f32.mrf.mxu0
    %v8178 = vadd.f32 %v8065, %v8177
    %8179 = vmatprep.mubr.bf16.mxu0 %v6967
    %8180 = vmatmul.mubr.bf16.gmra.mxu0 %v6966
    %v8181 = vpop.f32.mrf.mxu0
    %v8182 = vadd.f32 %v8069, %v8181
    %v8183 = vpop.f32.mrf.mxu0
    %v8184 = vadd.f32 %v8071, %v8183
    %v8185 = vpop.f32.mrf.mxu0
    %v8186 = vadd.f32 %v8073, %v8185
    %v8187 = vpop.f32.mrf.mxu0
    %v8188 = vadd.f32 %v8075, %v8187
    %8189 = vmatprep.mubr.bf16.mxu0 %v6975
    %8190 = vmatmul.mubr.bf16.gmra.mxu0 %v6974
    %v8191 = vpop.f32.mrf.mxu0
    %v8192 = vadd.f32 %v8079, %v8191
    %v8193 = vpop.f32.mrf.mxu0
    %v8194 = vadd.f32 %v8081, %v8193
    %v8195 = vpop.f32.mrf.mxu0
    %v8196 = vadd.f32 %v8083, %v8195
    %v8197 = vpop.f32.mrf.mxu0
    %v8198 = vadd.f32 %v8085, %v8197
    %8199 = vmatprep.mubr.bf16.mxu0 %v6983
    %8200 = vmatmul.mubr.bf16.gmra.mxu0 %v6982
    %v8201 = vpop.f32.mrf.mxu0
    %v8202 = vadd.f32 %v8089, %v8201
    %v8203 = vpop.f32.mrf.mxu0
    %v8204 = vadd.f32 %v8091, %v8203
    %v8205 = vpop.f32.mrf.mxu0
    %v8206 = vadd.f32 %v8093, %v8205
    %v8207 = vpop.f32.mrf.mxu0
    %v8208 = vadd.f32 %v8095, %v8207
    %8209 = vmatprep.mubr.bf16.mxu0 %v6991
    %8210 = vmatmul.mubr.bf16.gmra.mxu0 %v6990
    %v8211 = vpop.f32.mrf.mxu0
    %v8212 = vadd.f32 %v8099, %v8211
    %v8213 = vpop.f32.mrf.mxu0
    %v8214 = vadd.f32 %v8101, %v8213
    %v8215 = vpop.f32.mrf.mxu0
    %v8216 = vadd.f32 %v8103, %v8215
    %v8217 = vpop.f32.mrf.mxu0
    %v8218 = vadd.f32 %v8105, %v8217
    %8219 = vmatprep.mubr.bf16.mxu0 %v6999
    %8220 = vmatmul.mubr.bf16.gmra.mxu0 %v6998
    %v8221 = vpop.f32.mrf.mxu0
    %v8222 = vadd.f32 %v8109, %v8221
    %v8223 = vpop.f32.mrf.mxu0
    %v8224 = vadd.f32 %v8111, %v8223
    %v8225 = vpop.f32.mrf.mxu0
    %v8226 = vadd.f32 %v8113, %v8225
    %v8227 = vpop.f32.mrf.mxu0
    %v8228 = vadd.f32 %v8115, %v8227
    %8229 = vmatprep.mubr.bf16.mxu0 %v7007
    %8230 = vmatmul.mubr.bf16.gmra.mxu0 %v7006
    %v8231 = vpop.f32.mrf.mxu0
    %v8232 = vadd.f32 %v8119, %v8231
    %v8233 = vpop.f32.mrf.mxu0
    %v8234 = vadd.f32 %v8121, %v8233
    %v8235 = vpop.f32.mrf.mxu0
    %v8236 = vadd.f32 %v8123, %v8235
    %v8237 = vpop.f32.mrf.mxu0
    %v8238 = vadd.f32 %v8125, %v8237
    %8239 = vdwg.mxu0
    %v8240 = vxor.u32 %v8162, 2147483648
    %v8241 = vxor.u32 %v8164, 2147483648
    %v8242 = vxor.u32 %v8166, 2147483648
    %v8243 = vxor.u32 %v8168, 2147483648
    %v8244 = vxor.u32 %v8172, 2147483648
    %v8245 = vxor.u32 %v8174, 2147483648
    %v8246 = vxor.u32 %v8176, 2147483648
    %v8247 = vxor.u32 %v8178, 2147483648
    %v8248 = vxor.u32 %v8182, 2147483648
    %v8249 = vxor.u32 %v8184, 2147483648
    %v8250 = vxor.u32 %v8186, 2147483648
    %v8251 = vxor.u32 %v8188, 2147483648
    %v8252 = vxor.u32 %v8192, 2147483648
    %v8253 = vxor.u32 %v8194, 2147483648
    %v8254 = vxor.u32 %v8196, 2147483648
    %v8255 = vxor.u32 %v8198, 2147483648
    %v8256 = vxor.u32 %v8202, 2147483648
    %v8257 = vxor.u32 %v8204, 2147483648
    %v8258 = vxor.u32 %v8206, 2147483648
    %v8259 = vxor.u32 %v8208, 2147483648
    %v8260 = vxor.u32 %v8212, 2147483648
    %v8261 = vxor.u32 %v8214, 2147483648
    %v8262 = vxor.u32 %v8216, 2147483648
    %v8263 = vxor.u32 %v8218, 2147483648
    %v8264 = vxor.u32 %v8222, 2147483648
    %v8265 = vxor.u32 %v8224, 2147483648
    %v8266 = vxor.u32 %v8226, 2147483648
    %v8267 = vxor.u32 %v8228, 2147483648
    %v8268 = vxor.u32 %v8232, 2147483648
    %v8269 = vxor.u32 %v8234, 2147483648
    %v8270 = vxor.u32 %v8236, 2147483648
    %v8271 = vxor.u32 %v8238, 2147483648
    %v8272 = vmul.f32 %v8240, 1.442695
    %v8273 = vpow.pop %v8272
    %v8274 = vmul.f32 %v8241, 1.442695
    %v8275 = vpow.pop %v8274
    %v8276 = vmul.f32 %v8242, 1.442695
    %v8277 = vpow.pop %v8276
    %v8278 = vmul.f32 %v8243, 1.442695
    %v8279 = vpow.pop %v8278
    %v8280 = vmul.f32 %v8244, 1.442695
    %v8281 = vpow.pop %v8280
    %v8282 = vmul.f32 %v8245, 1.442695
    %v8283 = vpow.pop %v8282
    %v8284 = vmul.f32 %v8246, 1.442695
    %v8285 = vpow.pop %v8284
    %v8286 = vmul.f32 %v8247, 1.442695
    %v8287 = vpow.pop %v8286
    %v8288 = vmul.f32 %v8248, 1.442695
    %v8289 = vpow.pop %v8288
    %v8290 = vmul.f32 %v8249, 1.442695
    %v8291 = vpow.pop %v8290
    %v8292 = vmul.f32 %v8250, 1.442695
    %v8293 = vpow.pop %v8292
    %v8294 = vmul.f32 %v8251, 1.442695
    %v8295 = vpow.pop %v8294
    %v8296 = vmul.f32 %v8252, 1.442695
    %v8297 = vpow.pop %v8296
    %v8298 = vmul.f32 %v8253, 1.442695
    %v8299 = vpow.pop %v8298
    %v8300 = vmul.f32 %v8254, 1.442695
    %v8301 = vpow.pop %v8300
    %v8302 = vmul.f32 %v8255, 1.442695
    %v8303 = vpow.pop %v8302
    %v8304 = vmul.f32 %v8256, 1.442695
    %v8305 = vpow.pop %v8304
    %v8306 = vmul.f32 %v8257, 1.442695
    %v8307 = vpow.pop %v8306
    %v8308 = vmul.f32 %v8258, 1.442695
    %v8309 = vpow.pop %v8308
    %v8310 = vmul.f32 %v8259, 1.442695
    %v8311 = vpow.pop %v8310
    %v8312 = vmul.f32 %v8260, 1.442695
    %v8313 = vpow.pop %v8312
    %v8314 = vmul.f32 %v8261, 1.442695
    %v8315 = vpow.pop %v8314
    %v8316 = vmul.f32 %v8262, 1.442695
    %v8317 = vpow.pop %v8316
    %v8318 = vmul.f32 %v8263, 1.442695
    %v8319 = vpow.pop %v8318
    %v8320 = vmul.f32 %v8264, 1.442695
    %v8321 = vpow.pop %v8320
    %v8322 = vmul.f32 %v8265, 1.442695
    %v8323 = vpow.pop %v8322
    %v8324 = vmul.f32 %v8266, 1.442695
    %v8325 = vpow.pop %v8324
    %v8326 = vmul.f32 %v8267, 1.442695
    %v8327 = vpow.pop %v8326
    %v8328 = vmul.f32 %v8268, 1.442695
    %v8329 = vpow.pop %v8328
    %v8330 = vmul.f32 %v8269, 1.442695
    %v8331 = vpow.pop %v8330
    %v8332 = vmul.f32 %v8270, 1.442695
    %v8333 = vpow.pop %v8332
    %v8334 = vmul.f32 %v8271, 1.442695
    %v8335 = vpow.pop %v8334
    %v8336 = vadd.f32 %v8273, 1.0
    %v8337 = vadd.f32 %v8275, 1.0
    %v8338 = vadd.f32 %v8277, 1.0
    %v8339 = vadd.f32 %v8279, 1.0
    %v8340 = vadd.f32 %v8281, 1.0
    %v8341 = vadd.f32 %v8283, 1.0
    %v8342 = vadd.f32 %v8285, 1.0
    %v8343 = vadd.f32 %v8287, 1.0
    %v8344 = vadd.f32 %v8289, 1.0
    %v8345 = vadd.f32 %v8291, 1.0
    %v8346 = vadd.f32 %v8293, 1.0
    %v8347 = vadd.f32 %v8295, 1.0
    %v8348 = vadd.f32 %v8297, 1.0
    %v8349 = vadd.f32 %v8299, 1.0
    %v8350 = vadd.f32 %v8301, 1.0
    %v8351 = vadd.f32 %v8303, 1.0
    %v8352 = vadd.f32 %v8305, 1.0
    %v8353 = vadd.f32 %v8307, 1.0
    %v8354 = vadd.f32 %v8309, 1.0
    %v8355 = vadd.f32 %v8311, 1.0
    %v8356 = vadd.f32 %v8313, 1.0
    %v8357 = vadd.f32 %v8315, 1.0
    %v8358 = vadd.f32 %v8317, 1.0
    %v8359 = vadd.f32 %v8319, 1.0
    %v8360 = vadd.f32 %v8321, 1.0
    %v8361 = vadd.f32 %v8323, 1.0
    %v8362 = vadd.f32 %v8325, 1.0
    %v8363 = vadd.f32 %v8327, 1.0
    %v8364 = vadd.f32 %v8329, 1.0
    %v8365 = vadd.f32 %v8331, 1.0
    %v8366 = vadd.f32 %v8333, 1.0
    %v8367 = vadd.f32 %v8335, 1.0
    %v8368 = vrcp.pop %v8336
    %v8369 = vmul.f32 1.0, %v8368
    %v8370 = vrcp.pop %v8337
    %v8371 = vmul.f32 1.0, %v8370
    %v8372 = vrcp.pop %v8338
    %v8373 = vmul.f32 1.0, %v8372
    %v8374 = vrcp.pop %v8339
    %v8375 = vmul.f32 1.0, %v8374
    %v8376 = vrcp.pop %v8340
    %v8377 = vmul.f32 1.0, %v8376
    %v8378 = vrcp.pop %v8341
    %v8379 = vmul.f32 1.0, %v8378
    %v8380 = vrcp.pop %v8342
    %v8381 = vmul.f32 1.0, %v8380
    %v8382 = vrcp.pop %v8343
    %v8383 = vmul.f32 1.0, %v8382
    %v8384 = vrcp.pop %v8344
    %v8385 = vmul.f32 1.0, %v8384
    %v8386 = vrcp.pop %v8345
    %v8387 = vmul.f32 1.0, %v8386
    %v8388 = vrcp.pop %v8346
    %v8389 = vmul.f32 1.0, %v8388
    %v8390 = vrcp.pop %v8347
    %v8391 = vmul.f32 1.0, %v8390
    %v8392 = vrcp.pop %v8348
    %v8393 = vmul.f32 1.0, %v8392
    %v8394 = vrcp.pop %v8349
    %v8395 = vmul.f32 1.0, %v8394
    %v8396 = vrcp.pop %v8350
    %v8397 = vmul.f32 1.0, %v8396
    %v8398 = vrcp.pop %v8351
    %v8399 = vmul.f32 1.0, %v8398
    %v8400 = vrcp.pop %v8352
    %v8401 = vmul.f32 1.0, %v8400
    %v8402 = vrcp.pop %v8353
    %v8403 = vmul.f32 1.0, %v8402
    %v8404 = vrcp.pop %v8354
    %v8405 = vmul.f32 1.0, %v8404
    %v8406 = vrcp.pop %v8355
    %v8407 = vmul.f32 1.0, %v8406
    %v8408 = vrcp.pop %v8356
    %v8409 = vmul.f32 1.0, %v8408
    %v8410 = vrcp.pop %v8357
    %v8411 = vmul.f32 1.0, %v8410
    %v8412 = vrcp.pop %v8358
    %v8413 = vmul.f32 1.0, %v8412
    %v8414 = vrcp.pop %v8359
    %v8415 = vmul.f32 1.0, %v8414
    %v8416 = vrcp.pop %v8360
    %v8417 = vmul.f32 1.0, %v8416
    %v8418 = vrcp.pop %v8361
    %v8419 = vmul.f32 1.0, %v8418
    %v8420 = vrcp.pop %v8362
    %v8421 = vmul.f32 1.0, %v8420
    %v8422 = vrcp.pop %v8363
    %v8423 = vmul.f32 1.0, %v8422
    %v8424 = vrcp.pop %v8364
    %v8425 = vmul.f32 1.0, %v8424
    %v8426 = vrcp.pop %v8365
    %v8427 = vmul.f32 1.0, %v8426
    %v8428 = vrcp.pop %v8366
    %v8429 = vmul.f32 1.0, %v8428
    %v8430 = vrcp.pop %v8367
    %v8431 = vmul.f32 1.0, %v8430
    %8432 = vst [vmem:[#allocation20] sm:$0xff] %v8369
    %8433 = vst [vmem:[#allocation20 + $0x8] sm:$0xff] %v8371
    %8434 = vst [vmem:[#allocation20 + $0x10] sm:$0xff] %v8373
    %8435 = vst [vmem:[#allocation20 + $0x18] sm:$0xff] %v8375
    %8436 = vst [vmem:[#allocation20 + $0x20] sm:$0xff] %v8377
    %8437 = vst [vmem:[#allocation20 + $0x28] sm:$0xff] %v8379
    %8438 = vst [vmem:[#allocation20 + $0x30] sm:$0xff] %v8381
    %8439 = vst [vmem:[#allocation20 + $0x38] sm:$0xff] %v8383
    %8440 = vst [vmem:[#allocation20 + $0x40] sm:$0xff] %v8385
    %8441 = vst [vmem:[#allocation20 + $0x48] sm:$0xff] %v8387
    %8442 = vst [vmem:[#allocation20 + $0x50] sm:$0xff] %v8389
    %8443 = vst [vmem:[#allocation20 + $0x58] sm:$0xff] %v8391
    %8444 = vst [vmem:[#allocation20 + $0x60] sm:$0xff] %v8393
    %8445 = vst [vmem:[#allocation20 + $0x68] sm:$0xff] %v8395
    %8446 = vst [vmem:[#allocation20 + $0x70] sm:$0xff] %v8397
    %8447 = vst [vmem:[#allocation20 + $0x78] sm:$0xff] %v8399
    %8448 = vst [vmem:[#allocation20 + $0x80] sm:$0xff] %v8401
    %8449 = vst [vmem:[#allocation20 + $0x88] sm:$0xff] %v8403
    %8450 = vst [vmem:[#allocation20 + $0x90] sm:$0xff] %v8405
    %8451 = vst [vmem:[#allocation20 + $0x98] sm:$0xff] %v8407
    %8452 = vst [vmem:[#allocation20 + $0xa0] sm:$0xff] %v8409
    %8453 = vst [vmem:[#allocation20 + $0xa8] sm:$0xff] %v8411
    %8454 = vst [vmem:[#allocation20 + $0xb0] sm:$0xff] %v8413
    %8455 = vst [vmem:[#allocation20 + $0xb8] sm:$0xff] %v8415
    %8456 = vst [vmem:[#allocation20 + $0xc0] sm:$0xff] %v8417
    %8457 = vst [vmem:[#allocation20 + $0xc8] sm:$0xff] %v8419
    %8458 = vst [vmem:[#allocation20 + $0xd0] sm:$0xff] %v8421
    %8459 = vst [vmem:[#allocation20 + $0xd8] sm:$0xff] %v8423
    %8460 = vst [vmem:[#allocation20 + $0xe0] sm:$0xff] %v8425
    %8461 = vst [vmem:[#allocation20 + $0xe8] sm:$0xff] %v8427
    %8462 = vst [vmem:[#allocation20 + $0xf0] sm:$0xff] %v8429
    %8463 = vst [vmem:[#allocation20 + $0xf8] sm:$0xff] %v8431
    // Predicated region
    $region106: #{tpu_custom_call.1} parent=1 // pred_check
      _
    $region107: #{tpu_custom_call.1} parent=1 // pred_check_branch
      %8465 = sbr.rel (0) target = $region109
    $region108: #{tpu_custom_call.1} parent=1 // pred_region
      %s8467 = ssub.s32 4096, 4096
      %8468 = vsyncadd [#allocation5], %s8467
      %s8469 = sshll.u32 [#allocation20], 4
      %s8470 = int_to_ptr.vmem [resolvable:$true] %s8469
      %8475 = dma.vmem_to_hbm [thread:$0]  %s8470, 4096, %s15, [#allocation5], 256, 256, 16
    $region109: #{tpu_custom_call.1} parent=1 // pred_fallthru
      _
    // Predicated region
    $region110: #{tpu_custom_call.1} parent=1 // pred_check
      _
    $region111: #{tpu_custom_call.1} parent=1 // pred_check_branch
      %8477 = sbr.rel (0) target = $region113
    $region112: #{tpu_custom_call.1} parent=1 // pred_region
      %8478 = dma.done [#allocation5], 4096
    $region113: #{tpu_custom_call.1} parent=1 // pred_fallthru
      _
    %8479 = vsyncpa [#allocation4], 1
    %8480 = vsyncpa [#allocation7], 1
    %8481 = vsyncpa [#allocation10], 1
    %8482 = vsyncpa [#allocation13], 1
    %8483 = vsyncpa [#allocation16], 1
    %8484 = vsyncpa [#allocation19], 1
    %8485 = vsyncpa [#allocation5], 1

</llo_original>
